<compile_context>
chip_gen: v6e
topology: v6e:2x2x1
jax: 0.10.0
libtpu: 0.0.40
codegen_flags: <defaults>
</compile_context>

<pallas_src>
import functools

import jax
import jax.numpy as jnp
from jax import lax
from jax.experimental import pallas as pl
from jax.experimental.pallas import tpu as pltpu


_STATIC_UNROLL_MAX_T = 16     # fully unroll the time loop up to this length


def _sigmoid_via_tanh(x):
    # sigmoid(x) == 0.5 * tanh(0.5 * x) + 0.5 : one EUP transcendental instead
    # of exp + reciprocal (EUP has a single bundle slot).
    return 0.5 * jnp.tanh(0.5 * x) + 0.5


# -----------------------------------------------------------------------------
# Fused Pallas kernel: 4 stacked LSTM layers + final Linear
# -----------------------------------------------------------------------------
def _fused_lstm_encoder_kernel(x_ref, wih0_ref, wih_rest_ref, whh_ref,
                               bias_ref, h0_ref, c0_ref, lw_ref, lb_ref,
                               out_ref, act_ref, gates_ref,
                               *, mm_dtype, n_sub, time_unroll):
    """Fused stacked-LSTM encoder for one batch tile.

    x_ref:        (T, Bt, Ip)        time-major input tile        (mm_dtype)
    wih0_ref:     (Ip, 4Hp)          layer-0 input->gates weights (mm_dtype)
    wih_rest_ref: (L-1, Hp, 4Hp)     layers 1.. input->gates      (mm_dtype)
    whh_ref:      (L, Hp, 4Hp)       hidden->gates weights        (mm_dtype)
    bias_ref:     (L, 1, 4Hp)        b_ih + b_hh, gate-padded     (f32)
    h0_ref/c0_ref:(L, Bt, Hp)        initial states               (f32)
    lw_ref:       (Hp, Lp)           final Linear weight (pre-T)  (mm_dtype)
    lb_ref:       (1, Lp)            final Linear bias            (f32)
    out_ref:      (Bt, Lp)           logits (lane-dense, padded)  (f32)
    act_ref:      (T, Bt, Hp) VMEM   inter-layer activations      (mm_dtype)
    gates_ref:    (T, Bt, 4Hp) VMEM  hoisted x-proj + bias        (f32)
    """
    T, Bt, Ip = x_ref.shape
    Hp = h0_ref.shape[2]
    n_layers = h0_ref.shape[0]          # 4 = 2 (lstm_in) + 2 (lstm_out)
    G = 4 * Hp
    sub = Bt // n_sub                   # rows per independent sub-chain

    def lstm_cell(gates, c):
        i_g = _sigmoid_via_tanh(gates[:, 0 * Hp:1 * Hp])
        f_g = _sigmoid_via_tanh(gates[:, 1 * Hp:2 * Hp])
        g_g = jnp.tanh(gates[:, 2 * Hp:3 * Hp])
        o_g = _sigmoid_via_tanh(gates[:, 3 * Hp:4 * Hp])
        c = f_g * c + i_g * g_g
        h = o_g * jnp.tanh(c)
        return h, c

    def recurrence(layer, store_all):
        """Serial LSTM-cell chain; gates_ref already holds x_t@W_ih + bias."""
        # Hoisted (Hp, 4Hp) weight.  TODO(synk): at Hp >= 512 feed jnp.dot
        # from whh_ref[layer] inside the loop instead (avoids a long-lived
        # weight value across the unrolled body).
        whh_l = whh_ref[layer]

        def step(t, carry):
            hs, cs = carry
            new_hs, new_cs = [], []
            # n_sub independent batch sub-chains: no cross dependence between
            # them, so the scheduler overlaps one chain's MXU pushes with
            # another chain's EUP/VPU gate math (the recurrence is otherwise
            # a strict matmul->EUP->VPU latency chain).
            for s in range(n_sub):
                gates = (gates_ref[t, pl.ds(s * sub, sub), :]
                         + jnp.dot(hs[s].astype(mm_dtype), whh_l,
                                   preferred_element_type=jnp.float32))
                h_new, c_new = lstm_cell(gates, cs[s])
                if store_all:            # last layer skips per-step stores
                    act_ref[t, pl.ds(s * sub, sub), :] = h_new.astype(mm_dtype)
                new_hs.append(h_new)
                new_cs.append(c_new)
            return tuple(new_hs), tuple(new_cs)

        h0_l = h0_ref[layer]
        c0_l = c0_ref[layer]
        carry = (tuple(h0_l[s * sub:(s + 1) * sub, :] for s in range(n_sub)),
                 tuple(c0_l[s * sub:(s + 1) * sub, :] for s in range(n_sub)))
        if T <= _STATIC_UNROLL_MAX_T:
            # Short sequences: fully unrolled -> max scheduler visibility.
            for t in range(T):
                carry = step(t, carry)
        else:
            # Long sequences: bounded code size / vreg live ranges.
            carry = lax.fori_loop(0, T, step, carry, unroll=time_unroll)
        hs, _ = carry
        return hs[0] if n_sub == 1 else jnp.concatenate(hs, axis=0)

    # ---- layer 0: hoisted input projection (bias folded in, not per step) ---
    xp = jnp.dot(x_ref[...].reshape(T * Bt, Ip), wih0_ref[...],
                 preferred_element_type=jnp.float32)              # (T*Bt, 4Hp)
    gates_ref[...] = (xp + bias_ref[0]).reshape(T, Bt, G)
    h_last = recurrence(0, store_all=(n_layers > 1))

    # ---- layers 1..L-1: input projection from previous layer's activations --
    for layer in range(1, n_layers):
        xp = jnp.dot(act_ref[...].reshape(T * Bt, Hp),            # already bf16
                     wih_rest_ref[layer - 1],
                     preferred_element_type=jnp.float32)
        gates_ref[...] = (xp + bias_ref[layer]).reshape(T, Bt, G)
        h_last = recurrence(layer, store_all=(layer < n_layers - 1))

    # ---- fused final Linear on the last timestep's hidden state ------------
    out_ref[...] = (jnp.dot(h_last.astype(mm_dtype), lw_ref[...],
                            preferred_element_type=jnp.float32)
                    + lb_ref[...])


# -----------------------------------------------------------------------------
# Padding / packing helpers (all one-time work in the XLA wrapper)
# -----------------------------------------------------------------------------
def _round_up(n, m):
    return ((n + m - 1) // m) * m


def _embed_gates_cols(w_t, H, Hp):
    """(rows, 4H) -> (rows, 4Hp); gate k goes to columns [k*Hp, k*Hp+H)."""
    rows = w_t.shape[0]
    out = jnp.zeros((rows, 4 * Hp), w_t.dtype)
    for k in range(4):
        out = out.at[:, k * Hp:k * Hp + H].set(w_t[:, k * H:(k + 1) * H])
    return out


def _embed_gates_vec(b, H, Hp):
    """(4H,) -> (4Hp,) with the same gate-wise placement."""
    out = jnp.zeros((4 * Hp,), b.dtype)
    for k in range(4):
        out = out.at[k * Hp:k * Hp + H].set(b[k * H:(k + 1) * H])
    return out


def _pad_rows(w, rows_p):
    return jnp.zeros((rows_p, w.shape[1]), w.dtype).at[:w.shape[0]].set(w)


def _vmem_limit_bytes():
    """~75% of physical VMEM: 48 MiB on v7x (64 MiB), 96 MiB on v5e/v6e."""
    cap = 64 * 1024 * 1024
    try:
        info = pltpu.get_tpu_info()
        cap = int(getattr(info, "vmem_capacity_bytes", cap) or cap)
    except Exception:
        pass
    return min(cap * 3 // 4, 100 * 1024 * 1024)


# -----------------------------------------------------------------------------
# Full LSTMEncoder forward (single fused pallas_call)
# -----------------------------------------------------------------------------
def lstm_encoder_forward(x, params_in, params_out, lin_w, lin_b,
                         h0_in, c0_in, h0_out, c0_out,
                         *, mm_dtype=jnp.bfloat16, batch_tile=128,
                         interleave=2, time_unroll=8, interpret=False):
    """x: (B, T, input_size) batch_first.  Returns (B, n_labels) float32."""
    B, T, I = x.shape
    H = h0_in.shape[2]
    L = lin_w.shape[0]

    Hp = _round_up(H, 128)
    Ip = _round_up(I, 128)
    Lp = _round_up(L, 128)
    Bp = _round_up(B, 16)                       # sublane-safe for bf16 & f32

    all_params = list(params_in) + list(params_out)
    n_total = len(all_params)

    # Pre-transposed, gate-padded weights (no in-kernel transposes).
    wih_list, whh_list, bias_list = [], [], []
    for li, p in enumerate(all_params):
        in_p = Ip if li == 0 else Hp
        wih_t = _pad_rows(_embed_gates_cols(p["w_ih"].T, H, Hp), in_p)
        whh_t = _pad_rows(_embed_gates_cols(p["w_hh"].T, H, Hp), Hp)
        bias = _embed_gates_vec(p["b_ih"] + p["b_hh"], H, Hp)
        wih_list.append(wih_t.astype(mm_dtype))
        whh_list.append(whh_t.astype(mm_dtype))
        bias_list.append(bias.reshape(1, 4 * Hp).astype(jnp.float32))

    wih0 = wih_list[0]                                   # (Ip, 4Hp)
    wih_rest = jnp.stack(wih_list[1:], axis=0)           # (n-1, Hp, 4Hp)
    whh = jnp.stack(whh_list, axis=0)                    # (n, Hp, 4Hp)
    bias = jnp.stack(bias_list, axis=0)                  # (n, 1, 4Hp)

    # Initial states, zero-padded so padded lanes stay exactly 0.
    h0 = jnp.concatenate([h0_in, h0_out], axis=0)        # (n, B, H)
    c0 = jnp.concatenate([c0_in, c0_out], axis=0)
    h0p = jnp.zeros((n_total, Bp, Hp), jnp.float32).at[:, :B, :H].set(h0)
    c0p = jnp.zeros((n_total, Bp, Hp), jnp.float32).at[:, :B, :H].set(c0)

    # Input: batch_first -> time-major, padded, matmul dtype.
    x_tm = jnp.transpose(x, (1, 0, 2)).astype(mm_dtype)  # (T, B, I)
    xp = jnp.zeros((T, Bp, Ip), mm_dtype).at[:, :B, :I].set(x_tm)

    # Final Linear, pre-transposed + lane-padded.
    lwp = jnp.zeros((Hp, Lp), mm_dtype).at[:H, :L].set(lin_w.T.astype(mm_dtype))
    lbp = jnp.zeros((1, Lp), jnp.float32).at[0, :L].set(lin_b)

    # Batch tile (the only parallel axis of the recurrence).  Bigger tile =>
    # larger M on the serial h@W_hh matmul (better MXU utilization).
    bt = min(_round_up(batch_tile, 16), Bp)
    while Bp % bt != 0:
        bt -= 16
    # Ensure >= 2 grid programs when batch allows it, so megacore / v7x's two
    # TensorCores both get work under dimension_semantics=("parallel",).
    if Bp // bt < 2 and Bp >= 32:
        cand = (Bp // 2) // 16 * 16
        while cand >= 16 and Bp % cand != 0:
            cand -= 16
        if cand >= 16:
            bt = cand
    grid = (Bp // bt,)

    # Independent batch sub-chains interleaved inside the time loop
    # (sub-tile must stay a multiple of 16 rows for bf16 sublane alignment).
    n_sub = 1
    for k in range(min(interleave, bt // 16), 0, -1):
        if bt % k == 0 and (bt // k) % 16 == 0:
            n_sub = k
            break

    kernel = functools.partial(_fused_lstm_encoder_kernel, mm_dtype=mm_dtype,
                               n_sub=n_sub, time_unroll=time_unroll)

    out_p = pl.pallas_call(
        kernel,
        out_shape=jax.ShapeDtypeStruct((Bp, Lp), jnp.float32),
        grid_spec=pltpu.PrefetchScalarGridSpec(
            num_scalar_prefetch=0,
            grid=grid,
            in_specs=[
                pl.BlockSpec((T, bt, Ip), lambda b: (0, b, 0)),            # x
                pl.BlockSpec((Ip, 4 * Hp), lambda b: (0, 0)),              # W_ih layer 0
                pl.BlockSpec((n_total - 1, Hp, 4 * Hp), lambda b: (0, 0, 0)),
                pl.BlockSpec((n_total, Hp, 4 * Hp), lambda b: (0, 0, 0)),  # W_hh
                pl.BlockSpec((n_total, 1, 4 * Hp), lambda b: (0, 0, 0)),   # bias
                pl.BlockSpec((n_total, bt, Hp), lambda b: (0, b, 0)),      # h0
                pl.BlockSpec((n_total, bt, Hp), lambda b: (0, b, 0)),      # c0
                pl.BlockSpec((Hp, Lp), lambda b: (0, 0)),                  # lin W^T
                pl.BlockSpec((1, Lp), lambda b: (0, 0)),                   # lin b
            ],
            out_specs=pl.BlockSpec((bt, Lp), lambda b: (b, 0)),
            scratch_shapes=[
                pltpu.VMEM((T, bt, Hp), mm_dtype),         # inter-layer acts (bf16)
                pltpu.VMEM((T, bt, 4 * Hp), jnp.float32),  # hoisted x-proj + bias
            ],
        ),
        compiler_params=pltpu.CompilerParams(
            dimension_semantics=("parallel",),             # megacore over batch
            vmem_limit_bytes=_vmem_limit_bytes(),
        ),
        interpret=interpret,
    )(xp, wih0, wih_rest, whh, bias, h0p, c0p, lwp, lbp)

    return out_p[:B, :L]


# -----------------------------------------------------------------------------
# Parameter construction (deterministic, PyTorch-style uniform init)
# -----------------------------------------------------------------------------
def init_lstm_params(key, input_size, hidden_size, n_layers):
    bound = 1.0 / jnp.sqrt(hidden_size)
    params = []
    for layer in range(n_layers):
        in_sz = input_size if layer == 0 else hidden_size
        key, k1, k2, k3, k4 = jax.random.split(key, 5)
        params.append(dict(
            w_ih=jax.random.uniform(k1, (4 * hidden_size, in_sz),
                                    jnp.float32, -bound, bound),
            w_hh=jax.random.uniform(k2, (4 * hidden_size, hidden_size),
                                    jnp.float32, -bound, bound),
            b_ih=jax.random.uniform(k3, (4 * hidden_size,),
                                    jnp.float32, -bound, bound),
            b_hh=jax.random.uniform(k4, (4 * hidden_size,),
                                    jnp.float32, -bound, bound),
        ))
    return params, key


# -----------------------------------------------------------------------------
# Pure-JAX references
# -----------------------------------------------------------------------------
def ref_forward(x, params_in, params_out, lin_w, lin_b,
                h0_in, c0_in, h0_out, c0_out, mm_dtype=jnp.float32,
                use_tanh_sigmoid=False):
    def cast(a):
        return a.astype(mm_dtype)

    sigmoid = _sigmoid_via_tanh if use_tanh_sigmoid else jax.nn.sigmoid

    def run_layer(x_tm, p, h0, c0):
        H = h0.shape[1]
        wih_t, whh_t = cast(p["w_ih"].T), cast(p["w_hh"].T)
        bias = (p["b_ih"] + p["b_hh"]).astype(jnp.float32)

        def step(carry, x_t):
            h, c = carry
            g = (jnp.dot(cast(x_t), wih_t, preferred_element_type=jnp.float32)
                 + jnp.dot(cast(h), whh_t, preferred_element_type=jnp.float32)
                 + bias)
            i = sigmoid(g[:, :H])
            f = sigmoid(g[:, H:2 * H])
            gg = jnp.tanh(g[:, 2 * H:3 * H])
            o = sigmoid(g[:, 3 * H:])
            c = f * c + i * gg
            h = o * jnp.tanh(c)
            return (h, c), h

        _, ys = lax.scan(step, (h0, c0), x_tm)
        return ys

    out = jnp.transpose(x, (1, 0, 2)).astype(jnp.float32)
    for l, p in enumerate(params_in):
        out = run_layer(out, p, h0_in[l], c0_in[l])
    for l, p in enumerate(params_out):
        out = run_layer(out, p, h0_out[l], c0_out[l])
    h_last = out[-1]
    return (jnp.dot(cast(h_last), cast(lin_w.T),
                    preferred_element_type=jnp.float32) + lin_b)


# -----------------------------------------------------------------------------
if __name__ == "__main__":
    # Small shapes consistent with the module.
    batch, seq_len, input_size = 2, 8, 4
    n_layers, hidden_size, n_labels = 2, 32, 2

    key = jax.random.PRNGKey(0)

    key, kx = jax.random.split(key)
    x = jax.random.normal(kx, (batch, seq_len, input_size), jnp.float32)

    params_in, key = init_lstm_params(key, input_size, hidden_size, n_layers)
    params_out, key = init_lstm_params(key, hidden_size, hidden_size, n_layers)
    key, kw, kb = jax.random.split(key, 3)
    lin_bound = 1.0 / jnp.sqrt(hidden_size)
    lin_w = jax.random.uniform(kw, (n_labels, hidden_size), jnp.float32,
                               -lin_bound, lin_bound)
    lin_b = jax.random.uniform(kb, (n_labels,), jnp.float32,
                               -lin_bound, lin_bound)

    # Random initial states (torch.randn equivalent, deterministic here).
    key, k1, k2, k3, k4 = jax.random.split(key, 5)
    h0_in = jax.random.normal(k1, (n_layers, batch, hidden_size), jnp.float32)
    c0_in = jax.random.normal(k2, (n_layers, batch, hidden_size), jnp.float32)
    h0_out = jax.random.normal(k3, (n_layers, batch, hidden_size), jnp.float32)
    c0_out = jax.random.normal(k4, (n_layers, batch, hidden_size), jnp.float32)

    out = lstm_encoder_forward(x, params_in, params_out, lin_w, lin_b,
                               h0_in, c0_in, h0_out, c0_out)
    out = jax.block_until_ready(out)
    assert out.shape == (batch, n_labels)

    # Kernel correctness vs matched-precision reference (bf16 matmul operands,
    # f32 accumulation & elementwise, tanh-form sigmoid — same math as kernel).
    ref_mm = ref_forward(x, params_in, params_out, lin_w, lin_b,
                         h0_in, c0_in, h0_out, c0_out, mm_dtype=jnp.bfloat16,
                         use_tanh_sigmoid=True)
    assert jnp.allclose(out, ref_mm, rtol=2e-3, atol=2e-3), \
        "mismatch vs matched-precision JAX reference"

    # Numerics sanity vs full-f32 reference (loose: accounts for bf16 matmuls).
    ref_f32 = ref_forward(x, params_in, params_out, lin_w, lin_b,
                          h0_in, c0_in, h0_out, c0_out, mm_dtype=jnp.float32)
    assert jnp.allclose(out, ref_f32, rtol=1e-1, atol=1e-1), \
        "bf16 drift too large vs f32 reference"

    print("KERNEL_OK")
</pallas_src>

<mosaic_0001>
module attributes {stable_mosaic.version = 11 : i64} {
  func.func @_fused_lstm_encoder_kernel(%arg0: i32, %arg1: memref<8x16x128xbf16, #tpu.memory_space<vmem>>, %arg2: memref<128x512xbf16, #tpu.memory_space<vmem>>, %arg3: memref<3x128x512xbf16, #tpu.memory_space<vmem>>, %arg4: memref<4x128x512xbf16, #tpu.memory_space<vmem>>, %arg5: memref<4x1x512xf32, #tpu.memory_space<vmem>>, %arg6: memref<4x16x128xf32, #tpu.memory_space<vmem>>, %arg7: memref<4x16x128xf32, #tpu.memory_space<vmem>>, %arg8: memref<128x128xbf16, #tpu.memory_space<vmem>>, %arg9: memref<1x128xf32, #tpu.memory_space<vmem>>, %arg10: memref<16x128xf32, #tpu.memory_space<vmem>>, %arg11: memref<8x16x128xbf16, #tpu.memory_space<vmem>>, %arg12: memref<8x16x512xf32, #tpu.memory_space<vmem>>) attributes {dimension_semantics = [#tpu.dimension_semantics<parallel>], iteration_bounds = array<i64: 1>, scalar_prefetch = 0 : i64, scratch_operands = 2 : i64, tpu.core_type = #tpu.core_type<tc>, window_params = [{transform_indices = @transform_0, window_bounds = array<i64: 8, 16, 128>}, {pipeline_mode = #tpu.pipeline_mode<synchronous>, transform_indices = @transform_1, window_bounds = array<i64: 128, 512>}, {pipeline_mode = #tpu.pipeline_mode<synchronous>, transform_indices = @transform_2, window_bounds = array<i64: 3, 128, 512>}, {pipeline_mode = #tpu.pipeline_mode<synchronous>, transform_indices = @transform_3, window_bounds = array<i64: 4, 128, 512>}, {pipeline_mode = #tpu.pipeline_mode<synchronous>, transform_indices = @transform_4, window_bounds = array<i64: 4, 1, 512>}, {transform_indices = @transform_5, window_bounds = array<i64: 4, 16, 128>}, {transform_indices = @transform_6, window_bounds = array<i64: 4, 16, 128>}, {pipeline_mode = #tpu.pipeline_mode<synchronous>, transform_indices = @transform_7, window_bounds = array<i64: 128, 128>}, {pipeline_mode = #tpu.pipeline_mode<synchronous>, transform_indices = @transform_8, window_bounds = array<i64: 1, 128>}, {transform_indices = @transform_9, window_bounds = array<i64: 16, 128>}]} {
    %c0 = arith.constant 0 : index
    %c0_0 = arith.constant 0 : index
    %c0_1 = arith.constant 0 : index
    %0 = vector.load %arg1[%c0, %c0_0, %c0_1] : memref<8x16x128xbf16, #tpu.memory_space<vmem>>, vector<8x16x128xbf16>
    %1 = vector.shape_cast %0 : vector<8x16x128xbf16> to vector<128x128xbf16>
    %c0_2 = arith.constant 0 : index
    %c0_3 = arith.constant 0 : index
    %2 = vector.load %arg2[%c0_2, %c0_3] : memref<128x512xbf16, #tpu.memory_space<vmem>>, vector<128x512xbf16>
    %cst = arith.constant dense<0.000000e+00> : vector<128x512xf32>
    %3 = tpu.matmul %1, %2, %cst {dimension_numbers = #tpu.dot_dimension_numbers<[1], [0], [0], [1], [0, 0, 1, 1], [], []>} : vector<128x128xbf16>, vector<128x512xbf16>, vector<128x512xf32> -> vector<128x512xf32>
    %c0_4 = arith.constant 0 : index
    %c0_5 = arith.constant 0 : index
    %c0_6 = arith.constant 0 : index
    %4 = vector.load %arg5[%c0_4, %c0_5, %c0_6] : memref<4x1x512xf32, #tpu.memory_space<vmem>>, vector<1x1x512xf32>
    %5 = vector.shape_cast %4 : vector<1x1x512xf32> to vector<1x512xf32>
    %6 = vector.broadcast %5 : vector<1x512xf32> to vector<128x512xf32>
    %7 = arith.addf %3, %6 : vector<128x512xf32>
    %8 = vector.shape_cast %7 : vector<128x512xf32> to vector<8x16x512xf32>
    %c0_7 = arith.constant 0 : index
    %c0_8 = arith.constant 0 : index
    %c0_9 = arith.constant 0 : index
    %9 = vector.load %arg12[%c0_7, %c0_8, %c0_9] : memref<8x16x512xf32, #tpu.memory_space<vmem>>, vector<8x16x512xf32>
    tpu.vector_store %arg12[%c0_7, %c0_8, %c0_9], %8 {strides = array<i32>} : memref<8x16x512xf32, #tpu.memory_space<vmem>>, vector<8x16x512xf32>,
    %c0_10 = arith.constant 0 : index
    %c0_11 = arith.constant 0 : index
    %c0_12 = arith.constant 0 : index
    %10 = vector.load %arg4[%c0_10, %c0_11, %c0_12] : memref<4x128x512xbf16, #tpu.memory_space<vmem>>, vector<1x128x512xbf16>
    %11 = vector.shape_cast %10 : vector<1x128x512xbf16> to vector<128x512xbf16>
    %c0_13 = arith.constant 0 : index
    %c0_14 = arith.constant 0 : index
    %c0_15 = arith.constant 0 : index
    %12 = vector.load %arg6[%c0_13, %c0_14, %c0_15] : memref<4x16x128xf32, #tpu.memory_space<vmem>>, vector<1x16x128xf32>
    %13 = vector.shape_cast %12 : vector<1x16x128xf32> to vector<16x128xf32>
    %c0_16 = arith.constant 0 : index
    %c0_17 = arith.constant 0 : index
    %c0_18 = arith.constant 0 : index
    %14 = vector.load %arg7[%c0_16, %c0_17, %c0_18] : memref<4x16x128xf32, #tpu.memory_space<vmem>>, vector<1x16x128xf32>
    %15 = vector.shape_cast %14 : vector<1x16x128xf32> to vector<16x128xf32>
    %c0_19 = arith.constant 0 : index
    %c0_20 = arith.constant 0 : index
    %c0_21 = arith.constant 0 : index
    %16 = vector.load %arg12[%c0_19, %c0_20, %c0_21] : memref<8x16x512xf32, #tpu.memory_space<vmem>>, vector<1x16x512xf32>
    %17 = vector.shape_cast %16 : vector<1x16x512xf32> to vector<16x512xf32>
    %18 = arith.truncf %13 : vector<16x128xf32> to vector<16x128xbf16>
    %cst_22 = arith.constant dense<0.000000e+00> : vector<16x512xf32>
    %19 = tpu.matmul %18, %11, %cst_22 {dimension_numbers = #tpu.dot_dimension_numbers<[1], [0], [0], [1], [0, 0, 1, 1], [], []>} : vector<16x128xbf16>, vector<128x512xbf16>, vector<16x512xf32> -> vector<16x512xf32>
    %20 = arith.addf %17, %19 : vector<16x512xf32>
    %21 = vector.extract_strided_slice %20 {offsets = [0, 0], sizes = [16, 128], strides = [1, 1]} : vector<16x512xf32> to vector<16x128xf32>
    %cst_23 = arith.constant 5.000000e-01 : f32
    %22 = vector.broadcast %cst_23 : f32 to vector<16x128xf32>
    %23 = arith.mulf %22, %21 : vector<16x128xf32>
    %24 = math.tanh %23 : vector<16x128xf32>
    %cst_24 = arith.constant 5.000000e-01 : f32
    %25 = vector.broadcast %cst_24 : f32 to vector<16x128xf32>
    %26 = arith.mulf %25, %24 : vector<16x128xf32>
    %cst_25 = arith.constant 5.000000e-01 : f32
    %27 = vector.broadcast %cst_25 : f32 to vector<16x128xf32>
    %28 = arith.addf %26, %27 : vector<16x128xf32>
    %29 = vector.extract_strided_slice %20 {offsets = [0, 128], sizes = [16, 128], strides = [1, 1]} : vector<16x512xf32> to vector<16x128xf32>
    %cst_26 = arith.constant 5.000000e-01 : f32
    %30 = vector.broadcast %cst_26 : f32 to vector<16x128xf32>
    %31 = arith.mulf %30, %29 : vector<16x128xf32>
    %32 = math.tanh %31 : vector<16x128xf32>
    %cst_27 = arith.constant 5.000000e-01 : f32
    %33 = vector.broadcast %cst_27 : f32 to vector<16x128xf32>
    %34 = arith.mulf %33, %32 : vector<16x128xf32>
    %cst_28 = arith.constant 5.000000e-01 : f32
    %35 = vector.broadcast %cst_28 : f32 to vector<16x128xf32>
    %36 = arith.addf %34, %35 : vector<16x128xf32>
    %37 = vector.extract_strided_slice %20 {offsets = [0, 256], sizes = [16, 128], strides = [1, 1]} : vector<16x512xf32> to vector<16x128xf32>
    %38 = math.tanh %37 : vector<16x128xf32>
    %39 = vector.extract_strided_slice %20 {offsets = [0, 384], sizes = [16, 128], strides = [1, 1]} : vector<16x512xf32> to vector<16x128xf32>
    %cst_29 = arith.constant 5.000000e-01 : f32
    %40 = vector.broadcast %cst_29 : f32 to vector<16x128xf32>
    %41 = arith.mulf %40, %39 : vector<16x128xf32>
    %42 = math.tanh %41 : vector<16x128xf32>
    %cst_30 = arith.constant 5.000000e-01 : f32
    %43 = vector.broadcast %cst_30 : f32 to vector<16x128xf32>
    %44 = arith.mulf %43, %42 : vector<16x128xf32>
    %cst_31 = arith.constant 5.000000e-01 : f32
    %45 = vector.broadcast %cst_31 : f32 to vector<16x128xf32>
    %46 = arith.addf %44, %45 : vector<16x128xf32>
    %47 = arith.mulf %36, %15 : vector<16x128xf32>
    %48 = arith.mulf %28, %38 : vector<16x128xf32>
    %49 = arith.addf %47, %48 : vector<16x128xf32>
    %50 = math.tanh %49 : vector<16x128xf32>
    %51 = arith.mulf %46, %50 : vector<16x128xf32>
    %52 = arith.truncf %51 : vector<16x128xf32> to vector<16x128xbf16>
    %c0_32 = arith.constant 0 : index
    %c0_33 = arith.constant 0 : index
    %c0_34 = arith.constant 0 : index
    %53 = vector.load %arg11[%c0_32, %c0_33, %c0_34] : memref<8x16x128xbf16, #tpu.memory_space<vmem>>, vector<1x16x128xbf16>
    %54 = vector.shape_cast %53 : vector<1x16x128xbf16> to vector<16x128xbf16>
    %55 = vector.shape_cast %52 : vector<16x128xbf16> to vector<1x16x128xbf16>
    tpu.vector_store %arg11[%c0_32, %c0_33, %c0_34], %55 {strides = array<i32>} : memref<8x16x128xbf16, #tpu.memory_space<vmem>>, vector<1x16x128xbf16>,
    %c1 = arith.constant 1 : index
    %c0_35 = arith.constant 0 : index
    %c0_36 = arith.constant 0 : index
    %56 = vector.load %arg12[%c1, %c0_35, %c0_36] : memref<8x16x512xf32, #tpu.memory_space<vmem>>, vector<1x16x512xf32>
    %57 = vector.shape_cast %56 : vector<1x16x512xf32> to vector<16x512xf32>
    %58 = arith.truncf %51 : vector<16x128xf32> to vector<16x128xbf16>
    %cst_37 = arith.constant dense<0.000000e+00> : vector<16x512xf32>
    %59 = tpu.matmul %58, %11, %cst_37 {dimension_numbers = #tpu.dot_dimension_numbers<[1], [0], [0], [1], [0, 0, 1, 1], [], []>} : vector<16x128xbf16>, vector<128x512xbf16>, vector<16x512xf32> -> vector<16x512xf32>
    %60 = arith.addf %57, %59 : vector<16x512xf32>
    %61 = vector.extract_strided_slice %60 {offsets = [0, 0], sizes = [16, 128], strides = [1, 1]} : vector<16x512xf32> to vector<16x128xf32>
    %cst_38 = arith.constant 5.000000e-01 : f32
    %62 = vector.broadcast %cst_38 : f32 to vector<16x128xf32>
    %63 = arith.mulf %62, %61 : vector<16x128xf32>
    %64 = math.tanh %63 : vector<16x128xf32>
    %cst_39 = arith.constant 5.000000e-01 : f32
    %65 = vector.broadcast %cst_39 : f32 to vector<16x128xf32>
    %66 = arith.mulf %65, %64 : vector<16x128xf32>
    %cst_40 = arith.constant 5.000000e-01 : f32
    %67 = vector.broadcast %cst_40 : f32 to vector<16x128xf32>
    %68 = arith.addf %66, %67 : vector<16x128xf32>
    %69 = vector.extract_strided_slice %60 {offsets = [0, 128], sizes = [16, 128], strides = [1, 1]} : vector<16x512xf32> to vector<16x128xf32>
    %cst_41 = arith.constant 5.000000e-01 : f32
    %70 = vector.broadcast %cst_41 : f32 to vector<16x128xf32>
    %71 = arith.mulf %70, %69 : vector<16x128xf32>
    %72 = math.tanh %71 : vector<16x128xf32>
    %cst_42 = arith.constant 5.000000e-01 : f32
    %73 = vector.broadcast %cst_42 : f32 to vector<16x128xf32>
    %74 = arith.mulf %73, %72 : vector<16x128xf32>
    %cst_43 = arith.constant 5.000000e-01 : f32
    %75 = vector.broadcast %cst_43 : f32 to vector<16x128xf32>
    %76 = arith.addf %74, %75 : vector<16x128xf32>
    %77 = vector.extract_strided_slice %60 {offsets = [0, 256], sizes = [16, 128], strides = [1, 1]} : vector<16x512xf32> to vector<16x128xf32>
    %78 = math.tanh %77 : vector<16x128xf32>
    %79 = vector.extract_strided_slice %60 {offsets = [0, 384], sizes = [16, 128], strides = [1, 1]} : vector<16x512xf32> to vector<16x128xf32>
    %cst_44 = arith.constant 5.000000e-01 : f32
    %80 = vector.broadcast %cst_44 : f32 to vector<16x128xf32>
    %81 = arith.mulf %80, %79 : vector<16x128xf32>
    %82 = math.tanh %81 : vector<16x128xf32>
    %cst_45 = arith.constant 5.000000e-01 : f32
    %83 = vector.broadcast %cst_45 : f32 to vector<16x128xf32>
    %84 = arith.mulf %83, %82 : vector<16x128xf32>
    %cst_46 = arith.constant 5.000000e-01 : f32
    %85 = vector.broadcast %cst_46 : f32 to vector<16x128xf32>
    %86 = arith.addf %84, %85 : vector<16x128xf32>
    %87 = arith.mulf %76, %49 : vector<16x128xf32>
    %88 = arith.mulf %68, %78 : vector<16x128xf32>
    %89 = arith.addf %87, %88 : vector<16x128xf32>
    %90 = math.tanh %89 : vector<16x128xf32>
    %91 = arith.mulf %86, %90 : vector<16x128xf32>
    %92 = arith.truncf %91 : vector<16x128xf32> to vector<16x128xbf16>
    %c1_47 = arith.constant 1 : index
    %c0_48 = arith.constant 0 : index
    %c0_49 = arith.constant 0 : index
    %93 = vector.load %arg11[%c1_47, %c0_48, %c0_49] : memref<8x16x128xbf16, #tpu.memory_space<vmem>>, vector<1x16x128xbf16>
    %94 = vector.shape_cast %93 : vector<1x16x128xbf16> to vector<16x128xbf16>
    %95 = vector.shape_cast %92 : vector<16x128xbf16> to vector<1x16x128xbf16>
    tpu.vector_store %arg11[%c1_47, %c0_48, %c0_49], %95 {strides = array<i32>} : memref<8x16x128xbf16, #tpu.memory_space<vmem>>, vector<1x16x128xbf16>,
    %c2 = arith.constant 2 : index
    %c0_50 = arith.constant 0 : index
    %c0_51 = arith.constant 0 : index
    %96 = vector.load %arg12[%c2, %c0_50, %c0_51] : memref<8x16x512xf32, #tpu.memory_space<vmem>>, vector<1x16x512xf32>
    %97 = vector.shape_cast %96 : vector<1x16x512xf32> to vector<16x512xf32>
    %98 = arith.truncf %91 : vector<16x128xf32> to vector<16x128xbf16>
    %cst_52 = arith.constant dense<0.000000e+00> : vector<16x512xf32>
    %99 = tpu.matmul %98, %11, %cst_52 {dimension_numbers = #tpu.dot_dimension_numbers<[1], [0], [0], [1], [0, 0, 1, 1], [], []>} : vector<16x128xbf16>, vector<128x512xbf16>, vector<16x512xf32> -> vector<16x512xf32>
    %100 = arith.addf %97, %99 : vector<16x512xf32>
    %101 = vector.extract_strided_slice %100 {offsets = [0, 0], sizes = [16, 128], strides = [1, 1]} : vector<16x512xf32> to vector<16x128xf32>
    %cst_53 = arith.constant 5.000000e-01 : f32
    %102 = vector.broadcast %cst_53 : f32 to vector<16x128xf32>
    %103 = arith.mulf %102, %101 : vector<16x128xf32>
    %104 = math.tanh %103 : vector<16x128xf32>
    %cst_54 = arith.constant 5.000000e-01 : f32
    %105 = vector.broadcast %cst_54 : f32 to vector<16x128xf32>
    %106 = arith.mulf %105, %104 : vector<16x128xf32>
    %cst_55 = arith.constant 5.000000e-01 : f32
    %107 = vector.broadcast %cst_55 : f32 to vector<16x128xf32>
    %108 = arith.addf %106, %107 : vector<16x128xf32>
    %109 = vector.extract_strided_slice %100 {offsets = [0, 128], sizes = [16, 128], strides = [1, 1]} : vector<16x512xf32> to vector<16x128xf32>
    %cst_56 = arith.constant 5.000000e-01 : f32
    %110 = vector.broadcast %cst_56 : f32 to vector<16x128xf32>
    %111 = arith.mulf %110, %109 : vector<16x128xf32>
    %112 = math.tanh %111 : vector<16x128xf32>
    %cst_57 = arith.constant 5.000000e-01 : f32
    %113 = vector.broadcast %cst_57 : f32 to vector<16x128xf32>
    %114 = arith.mulf %113, %112 : vector<16x128xf32>
    %cst_58 = arith.constant 5.000000e-01 : f32
    %115 = vector.broadcast %cst_58 : f32 to vector<16x128xf32>
    %116 = arith.addf %114, %115 : vector<16x128xf32>
    %117 = vector.extract_strided_slice %100 {offsets = [0, 256], sizes = [16, 128], strides = [1, 1]} : vector<16x512xf32> to vector<16x128xf32>
    %118 = math.tanh %117 : vector<16x128xf32>
    %119 = vector.extract_strided_slice %100 {offsets = [0, 384], sizes = [16, 128], strides = [1, 1]} : vector<16x512xf32> to vector<16x128xf32>
    %cst_59 = arith.constant 5.000000e-01 : f32
    %120 = vector.broadcast %cst_59 : f32 to vector<16x128xf32>
    %121 = arith.mulf %120, %119 : vector<16x128xf32>
    %122 = math.tanh %121 : vector<16x128xf32>
    %cst_60 = arith.constant 5.000000e-01 : f32
    %123 = vector.broadcast %cst_60 : f32 to vector<16x128xf32>
    %124 = arith.mulf %123, %122 : vector<16x128xf32>
    %cst_61 = arith.constant 5.000000e-01 : f32
    %125 = vector.broadcast %cst_61 : f32 to vector<16x128xf32>
    %126 = arith.addf %124, %125 : vector<16x128xf32>
    %127 = arith.mulf %116, %89 : vector<16x128xf32>
    %128 = arith.mulf %108, %118 : vector<16x128xf32>
    %129 = arith.addf %127, %128 : vector<16x128xf32>
    %130 = math.tanh %129 : vector<16x128xf32>
    %131 = arith.mulf %126, %130 : vector<16x128xf32>
    %132 = arith.truncf %131 : vector<16x128xf32> to vector<16x128xbf16>
    %c2_62 = arith.constant 2 : index
    %c0_63 = arith.constant 0 : index
    %c0_64 = arith.constant 0 : index
    %133 = vector.load %arg11[%c2_62, %c0_63, %c0_64] : memref<8x16x128xbf16, #tpu.memory_space<vmem>>, vector<1x16x128xbf16>
    %134 = vector.shape_cast %133 : vector<1x16x128xbf16> to vector<16x128xbf16>
    %135 = vector.shape_cast %132 : vector<16x128xbf16> to vector<1x16x128xbf16>
    tpu.vector_store %arg11[%c2_62, %c0_63, %c0_64], %135 {strides = array<i32>} : memref<8x16x128xbf16, #tpu.memory_space<vmem>>, vector<1x16x128xbf16>,
    %c3 = arith.constant 3 : index
    %c0_65 = arith.constant 0 : index
    %c0_66 = arith.constant 0 : index
    %136 = vector.load %arg12[%c3, %c0_65, %c0_66] : memref<8x16x512xf32, #tpu.memory_space<vmem>>, vector<1x16x512xf32>
    %137 = vector.shape_cast %136 : vector<1x16x512xf32> to vector<16x512xf32>
    %138 = arith.truncf %131 : vector<16x128xf32> to vector<16x128xbf16>
    %cst_67 = arith.constant dense<0.000000e+00> : vector<16x512xf32>
    %139 = tpu.matmul %138, %11, %cst_67 {dimension_numbers = #tpu.dot_dimension_numbers<[1], [0], [0], [1], [0, 0, 1, 1], [], []>} : vector<16x128xbf16>, vector<128x512xbf16>, vector<16x512xf32> -> vector<16x512xf32>
    %140 = arith.addf %137, %139 : vector<16x512xf32>
    %141 = vector.extract_strided_slice %140 {offsets = [0, 0], sizes = [16, 128], strides = [1, 1]} : vector<16x512xf32> to vector<16x128xf32>
    %cst_68 = arith.constant 5.000000e-01 : f32
    %142 = vector.broadcast %cst_68 : f32 to vector<16x128xf32>
    %143 = arith.mulf %142, %141 : vector<16x128xf32>
    %144 = math.tanh %143 : vector<16x128xf32>
    %cst_69 = arith.constant 5.000000e-01 : f32
    %145 = vector.broadcast %cst_69 : f32 to vector<16x128xf32>
    %146 = arith.mulf %145, %144 : vector<16x128xf32>
    %cst_70 = arith.constant 5.000000e-01 : f32
    %147 = vector.broadcast %cst_70 : f32 to vector<16x128xf32>
    %148 = arith.addf %146, %147 : vector<16x128xf32>
    %149 = vector.extract_strided_slice %140 {offsets = [0, 128], sizes = [16, 128], strides = [1, 1]} : vector<16x512xf32> to vector<16x128xf32>
    %cst_71 = arith.constant 5.000000e-01 : f32
    %150 = vector.broadcast %cst_71 : f32 to vector<16x128xf32>
    %151 = arith.mulf %150, %149 : vector<16x128xf32>
    %152 = math.tanh %151 : vector<16x128xf32>
    %cst_72 = arith.constant 5.000000e-01 : f32
    %153 = vector.broadcast %cst_72 : f32 to vector<16x128xf32>
    %154 = arith.mulf %153, %152 : vector<16x128xf32>
    %cst_73 = arith.constant 5.000000e-01 : f32
    %155 = vector.broadcast %cst_73 : f32 to vector<16x128xf32>
    %156 = arith.addf %154, %155 : vector<16x128xf32>
    %157 = vector.extract_strided_slice %140 {offsets = [0, 256], sizes = [16, 128], strides = [1, 1]} : vector<16x512xf32> to vector<16x128xf32>
    %158 = math.tanh %157 : vector<16x128xf32>
    %159 = vector.extract_strided_slice %140 {offsets = [0, 384], sizes = [16, 128], strides = [1, 1]} : vector<16x512xf32> to vector<16x128xf32>
    %cst_74 = arith.constant 5.000000e-01 : f32
    %160 = vector.broadcast %cst_74 : f32 to vector<16x128xf32>
    %161 = arith.mulf %160, %159 : vector<16x128xf32>
    %162 = math.tanh %161 : vector<16x128xf32>
    %cst_75 = arith.constant 5.000000e-01 : f32
    %163 = vector.broadcast %cst_75 : f32 to vector<16x128xf32>
    %164 = arith.mulf %163, %162 : vector<16x128xf32>
    %cst_76 = arith.constant 5.000000e-01 : f32
    %165 = vector.broadcast %cst_76 : f32 to vector<16x128xf32>
    %166 = arith.addf %164, %165 : vector<16x128xf32>
    %167 = arith.mulf %156, %129 : vector<16x128xf32>
    %168 = arith.mulf %148, %158 : vector<16x128xf32>
    %169 = arith.addf %167, %168 : vector<16x128xf32>
    %170 = math.tanh %169 : vector<16x128xf32>
    %171 = arith.mulf %166, %170 : vector<16x128xf32>
    %172 = arith.truncf %171 : vector<16x128xf32> to vector<16x128xbf16>
    %c3_77 = arith.constant 3 : index
    %c0_78 = arith.constant 0 : index
    %c0_79 = arith.constant 0 : index
    %173 = vector.load %arg11[%c3_77, %c0_78, %c0_79] : memref<8x16x128xbf16, #tpu.memory_space<vmem>>, vector<1x16x128xbf16>
    %174 = vector.shape_cast %173 : vector<1x16x128xbf16> to vector<16x128xbf16>
    %175 = vector.shape_cast %172 : vector<16x128xbf16> to vector<1x16x128xbf16>
    tpu.vector_store %arg11[%c3_77, %c0_78, %c0_79], %175 {strides = array<i32>} : memref<8x16x128xbf16, #tpu.memory_space<vmem>>, vector<1x16x128xbf16>,
    %c4 = arith.constant 4 : index
    %c0_80 = arith.constant 0 : index
    %c0_81 = arith.constant 0 : index
    %176 = vector.load %arg12[%c4, %c0_80, %c0_81] : memref<8x16x512xf32, #tpu.memory_space<vmem>>, vector<1x16x512xf32>
    %177 = vector.shape_cast %176 : vector<1x16x512xf32> to vector<16x512xf32>
    %178 = arith.truncf %171 : vector<16x128xf32> to vector<16x128xbf16>
    %cst_82 = arith.constant dense<0.000000e+00> : vector<16x512xf32>
    %179 = tpu.matmul %178, %11, %cst_82 {dimension_numbers = #tpu.dot_dimension_numbers<[1], [0], [0], [1], [0, 0, 1, 1], [], []>} : vector<16x128xbf16>, vector<128x512xbf16>, vector<16x512xf32> -> vector<16x512xf32>
    %180 = arith.addf %177, %179 : vector<16x512xf32>
    %181 = vector.extract_strided_slice %180 {offsets = [0, 0], sizes = [16, 128], strides = [1, 1]} : vector<16x512xf32> to vector<16x128xf32>
    %cst_83 = arith.constant 5.000000e-01 : f32
    %182 = vector.broadcast %cst_83 : f32 to vector<16x128xf32>
    %183 = arith.mulf %182, %181 : vector<16x128xf32>
    %184 = math.tanh %183 : vector<16x128xf32>
    %cst_84 = arith.constant 5.000000e-01 : f32
    %185 = vector.broadcast %cst_84 : f32 to vector<16x128xf32>
    %186 = arith.mulf %185, %184 : vector<16x128xf32>
    %cst_85 = arith.constant 5.000000e-01 : f32
    %187 = vector.broadcast %cst_85 : f32 to vector<16x128xf32>
    %188 = arith.addf %186, %187 : vector<16x128xf32>
    %189 = vector.extract_strided_slice %180 {offsets = [0, 128], sizes = [16, 128], strides = [1, 1]} : vector<16x512xf32> to vector<16x128xf32>
    %cst_86 = arith.constant 5.000000e-01 : f32
    %190 = vector.broadcast %cst_86 : f32 to vector<16x128xf32>
    %191 = arith.mulf %190, %189 : vector<16x128xf32>
    %192 = math.tanh %191 : vector<16x128xf32>
    %cst_87 = arith.constant 5.000000e-01 : f32
    %193 = vector.broadcast %cst_87 : f32 to vector<16x128xf32>
    %194 = arith.mulf %193, %192 : vector<16x128xf32>
    %cst_88 = arith.constant 5.000000e-01 : f32
    %195 = vector.broadcast %cst_88 : f32 to vector<16x128xf32>
    %196 = arith.addf %194, %195 : vector<16x128xf32>
    %197 = vector.extract_strided_slice %180 {offsets = [0, 256], sizes = [16, 128], strides = [1, 1]} : vector<16x512xf32> to vector<16x128xf32>
    %198 = math.tanh %197 : vector<16x128xf32>
    %199 = vector.extract_strided_slice %180 {offsets = [0, 384], sizes = [16, 128], strides = [1, 1]} : vector<16x512xf32> to vector<16x128xf32>
    %cst_89 = arith.constant 5.000000e-01 : f32
    %200 = vector.broadcast %cst_89 : f32 to vector<16x128xf32>
    %201 = arith.mulf %200, %199 : vector<16x128xf32>
    %202 = math.tanh %201 : vector<16x128xf32>
    %cst_90 = arith.constant 5.000000e-01 : f32
    %203 = vector.broadcast %cst_90 : f32 to vector<16x128xf32>
    %204 = arith.mulf %203, %202 : vector<16x128xf32>
    %cst_91 = arith.constant 5.000000e-01 : f32
    %205 = vector.broadcast %cst_91 : f32 to vector<16x128xf32>
    %206 = arith.addf %204, %205 : vector<16x128xf32>
    %207 = arith.mulf %196, %169 : vector<16x128xf32>
    %208 = arith.mulf %188, %198 : vector<16x128xf32>
    %209 = arith.addf %207, %208 : vector<16x128xf32>
    %210 = math.tanh %209 : vector<16x128xf32>
    %211 = arith.mulf %206, %210 : vector<16x128xf32>
    %212 = arith.truncf %211 : vector<16x128xf32> to vector<16x128xbf16>
    %c4_92 = arith.constant 4 : index
    %c0_93 = arith.constant 0 : index
    %c0_94 = arith.constant 0 : index
    %213 = vector.load %arg11[%c4_92, %c0_93, %c0_94] : memref<8x16x128xbf16, #tpu.memory_space<vmem>>, vector<1x16x128xbf16>
    %214 = vector.shape_cast %213 : vector<1x16x128xbf16> to vector<16x128xbf16>
    %215 = vector.shape_cast %212 : vector<16x128xbf16> to vector<1x16x128xbf16>
    tpu.vector_store %arg11[%c4_92, %c0_93, %c0_94], %215 {strides = array<i32>} : memref<8x16x128xbf16, #tpu.memory_space<vmem>>, vector<1x16x128xbf16>,
    %c5 = arith.constant 5 : index
    %c0_95 = arith.constant 0 : index
    %c0_96 = arith.constant 0 : index
    %216 = vector.load %arg12[%c5, %c0_95, %c0_96] : memref<8x16x512xf32, #tpu.memory_space<vmem>>, vector<1x16x512xf32>
    %217 = vector.shape_cast %216 : vector<1x16x512xf32> to vector<16x512xf32>
    %218 = arith.truncf %211 : vector<16x128xf32> to vector<16x128xbf16>
    %cst_97 = arith.constant dense<0.000000e+00> : vector<16x512xf32>
    %219 = tpu.matmul %218, %11, %cst_97 {dimension_numbers = #tpu.dot_dimension_numbers<[1], [0], [0], [1], [0, 0, 1, 1], [], []>} : vector<16x128xbf16>, vector<128x512xbf16>, vector<16x512xf32> -> vector<16x512xf32>
    %220 = arith.addf %217, %219 : vector<16x512xf32>
    %221 = vector.extract_strided_slice %220 {offsets = [0, 0], sizes = [16, 128], strides = [1, 1]} : vector<16x512xf32> to vector<16x128xf32>
    %cst_98 = arith.constant 5.000000e-01 : f32
    %222 = vector.broadcast %cst_98 : f32 to vector<16x128xf32>
    %223 = arith.mulf %222, %221 : vector<16x128xf32>
    %224 = math.tanh %223 : vector<16x128xf32>
    %cst_99 = arith.constant 5.000000e-01 : f32
    %225 = vector.broadcast %cst_99 : f32 to vector<16x128xf32>
    %226 = arith.mulf %225, %224 : vector<16x128xf32>
    %cst_100 = arith.constant 5.000000e-01 : f32
    %227 = vector.broadcast %cst_100 : f32 to vector<16x128xf32>
    %228 = arith.addf %226, %227 : vector<16x128xf32>
    %229 = vector.extract_strided_slice %220 {offsets = [0, 128], sizes = [16, 128], strides = [1, 1]} : vector<16x512xf32> to vector<16x128xf32>
    %cst_101 = arith.constant 5.000000e-01 : f32
    %230 = vector.broadcast %cst_101 : f32 to vector<16x128xf32>
    %231 = arith.mulf %230, %229 : vector<16x128xf32>
    %232 = math.tanh %231 : vector<16x128xf32>
    %cst_102 = arith.constant 5.000000e-01 : f32
    %233 = vector.broadcast %cst_102 : f32 to vector<16x128xf32>
    %234 = arith.mulf %233, %232 : vector<16x128xf32>
    %cst_103 = arith.constant 5.000000e-01 : f32
    %235 = vector.broadcast %cst_103 : f32 to vector<16x128xf32>
    %236 = arith.addf %234, %235 : vector<16x128xf32>
    %237 = vector.extract_strided_slice %220 {offsets = [0, 256], sizes = [16, 128], strides = [1, 1]} : vector<16x512xf32> to vector<16x128xf32>
    %238 = math.tanh %237 : vector<16x128xf32>
    %239 = vector.extract_strided_slice %220 {offsets = [0, 384], sizes = [16, 128], strides = [1, 1]} : vector<16x512xf32> to vector<16x128xf32>
    %cst_104 = arith.constant 5.000000e-01 : f32
    %240 = vector.broadcast %cst_104 : f32 to vector<16x128xf32>
    %241 = arith.mulf %240, %239 : vector<16x128xf32>
    %242 = math.tanh %241 : vector<16x128xf32>
    %cst_105 = arith.constant 5.000000e-01 : f32
    %243 = vector.broadcast %cst_105 : f32 to vector<16x128xf32>
    %244 = arith.mulf %243, %242 : vector<16x128xf32>
    %cst_106 = arith.constant 5.000000e-01 : f32
    %245 = vector.broadcast %cst_106 : f32 to vector<16x128xf32>
    %246 = arith.addf %244, %245 : vector<16x128xf32>
    %247 = arith.mulf %236, %209 : vector<16x128xf32>
    %248 = arith.mulf %228, %238 : vector<16x128xf32>
    %249 = arith.addf %247, %248 : vector<16x128xf32>
    %250 = math.tanh %249 : vector<16x128xf32>
    %251 = arith.mulf %246, %250 : vector<16x128xf32>
    %252 = arith.truncf %251 : vector<16x128xf32> to vector<16x128xbf16>
    %c5_107 = arith.constant 5 : index
    %c0_108 = arith.constant 0 : index
    %c0_109 = arith.constant 0 : index
    %253 = vector.load %arg11[%c5_107, %c0_108, %c0_109] : memref<8x16x128xbf16, #tpu.memory_space<vmem>>, vector<1x16x128xbf16>
    %254 = vector.shape_cast %253 : vector<1x16x128xbf16> to vector<16x128xbf16>
    %255 = vector.shape_cast %252 : vector<16x128xbf16> to vector<1x16x128xbf16>
    tpu.vector_store %arg11[%c5_107, %c0_108, %c0_109], %255 {strides = array<i32>} : memref<8x16x128xbf16, #tpu.memory_space<vmem>>, vector<1x16x128xbf16>,
    %c6 = arith.constant 6 : index
    %c0_110 = arith.constant 0 : index
    %c0_111 = arith.constant 0 : index
    %256 = vector.load %arg12[%c6, %c0_110, %c0_111] : memref<8x16x512xf32, #tpu.memory_space<vmem>>, vector<1x16x512xf32>
    %257 = vector.shape_cast %256 : vector<1x16x512xf32> to vector<16x512xf32>
    %258 = arith.truncf %251 : vector<16x128xf32> to vector<16x128xbf16>
    %cst_112 = arith.constant dense<0.000000e+00> : vector<16x512xf32>
    %259 = tpu.matmul %258, %11, %cst_112 {dimension_numbers = #tpu.dot_dimension_numbers<[1], [0], [0], [1], [0, 0, 1, 1], [], []>} : vector<16x128xbf16>, vector<128x512xbf16>, vector<16x512xf32> -> vector<16x512xf32>
    %260 = arith.addf %257, %259 : vector<16x512xf32>
    %261 = vector.extract_strided_slice %260 {offsets = [0, 0], sizes = [16, 128], strides = [1, 1]} : vector<16x512xf32> to vector<16x128xf32>
    %cst_113 = arith.constant 5.000000e-01 : f32
    %262 = vector.broadcast %cst_113 : f32 to vector<16x128xf32>
    %263 = arith.mulf %262, %261 : vector<16x128xf32>
    %264 = math.tanh %263 : vector<16x128xf32>
    %cst_114 = arith.constant 5.000000e-01 : f32
    %265 = vector.broadcast %cst_114 : f32 to vector<16x128xf32>
    %266 = arith.mulf %265, %264 : vector<16x128xf32>
    %cst_115 = arith.constant 5.000000e-01 : f32
    %267 = vector.broadcast %cst_115 : f32 to vector<16x128xf32>
    %268 = arith.addf %266, %267 : vector<16x128xf32>
    %269 = vector.extract_strided_slice %260 {offsets = [0, 128], sizes = [16, 128], strides = [1, 1]} : vector<16x512xf32> to vector<16x128xf32>
    %cst_116 = arith.constant 5.000000e-01 : f32
    %270 = vector.broadcast %cst_116 : f32 to vector<16x128xf32>
    %271 = arith.mulf %270, %269 : vector<16x128xf32>
    %272 = math.tanh %271 : vector<16x128xf32>
    %cst_117 = arith.constant 5.000000e-01 : f32
    %273 = vector.broadcast %cst_117 : f32 to vector<16x128xf32>
    %274 = arith.mulf %273, %272 : vector<16x128xf32>
    %cst_118 = arith.constant 5.000000e-01 : f32
    %275 = vector.broadcast %cst_118 : f32 to vector<16x128xf32>
    %276 = arith.addf %274, %275 : vector<16x128xf32>
    %277 = vector.extract_strided_slice %260 {offsets = [0, 256], sizes = [16, 128], strides = [1, 1]} : vector<16x512xf32> to vector<16x128xf32>
    %278 = math.tanh %277 : vector<16x128xf32>
    %279 = vector.extract_strided_slice %260 {offsets = [0, 384], sizes = [16, 128], strides = [1, 1]} : vector<16x512xf32> to vector<16x128xf32>
    %cst_119 = arith.constant 5.000000e-01 : f32
    %280 = vector.broadcast %cst_119 : f32 to vector<16x128xf32>
    %281 = arith.mulf %280, %279 : vector<16x128xf32>
    %282 = math.tanh %281 : vector<16x128xf32>
    %cst_120 = arith.constant 5.000000e-01 : f32
    %283 = vector.broadcast %cst_120 : f32 to vector<16x128xf32>
    %284 = arith.mulf %283, %282 : vector<16x128xf32>
    %cst_121 = arith.constant 5.000000e-01 : f32
    %285 = vector.broadcast %cst_121 : f32 to vector<16x128xf32>
    %286 = arith.addf %284, %285 : vector<16x128xf32>
    %287 = arith.mulf %276, %249 : vector<16x128xf32>
    %288 = arith.mulf %268, %278 : vector<16x128xf32>
    %289 = arith.addf %287, %288 : vector<16x128xf32>
    %290 = math.tanh %289 : vector<16x128xf32>
    %291 = arith.mulf %286, %290 : vector<16x128xf32>
    %292 = arith.truncf %291 : vector<16x128xf32> to vector<16x128xbf16>
    %c6_122 = arith.constant 6 : index
    %c0_123 = arith.constant 0 : index
    %c0_124 = arith.constant 0 : index
    %293 = vector.load %arg11[%c6_122, %c0_123, %c0_124] : memref<8x16x128xbf16, #tpu.memory_space<vmem>>, vector<1x16x128xbf16>
    %294 = vector.shape_cast %293 : vector<1x16x128xbf16> to vector<16x128xbf16>
    %295 = vector.shape_cast %292 : vector<16x128xbf16> to vector<1x16x128xbf16>
    tpu.vector_store %arg11[%c6_122, %c0_123, %c0_124], %295 {strides = array<i32>} : memref<8x16x128xbf16, #tpu.memory_space<vmem>>, vector<1x16x128xbf16>,
    %c7 = arith.constant 7 : index
    %c0_125 = arith.constant 0 : index
    %c0_126 = arith.constant 0 : index
    %296 = vector.load %arg12[%c7, %c0_125, %c0_126] : memref<8x16x512xf32, #tpu.memory_space<vmem>>, vector<1x16x512xf32>
    %297 = vector.shape_cast %296 : vector<1x16x512xf32> to vector<16x512xf32>
    %298 = arith.truncf %291 : vector<16x128xf32> to vector<16x128xbf16>
    %cst_127 = arith.constant dense<0.000000e+00> : vector<16x512xf32>
    %299 = tpu.matmul %298, %11, %cst_127 {dimension_numbers = #tpu.dot_dimension_numbers<[1], [0], [0], [1], [0, 0, 1, 1], [], []>} : vector<16x128xbf16>, vector<128x512xbf16>, vector<16x512xf32> -> vector<16x512xf32>
    %300 = arith.addf %297, %299 : vector<16x512xf32>
    %301 = vector.extract_strided_slice %300 {offsets = [0, 0], sizes = [16, 128], strides = [1, 1]} : vector<16x512xf32> to vector<16x128xf32>
    %cst_128 = arith.constant 5.000000e-01 : f32
    %302 = vector.broadcast %cst_128 : f32 to vector<16x128xf32>
    %303 = arith.mulf %302, %301 : vector<16x128xf32>
    %304 = math.tanh %303 : vector<16x128xf32>
    %cst_129 = arith.constant 5.000000e-01 : f32
    %305 = vector.broadcast %cst_129 : f32 to vector<16x128xf32>
    %306 = arith.mulf %305, %304 : vector<16x128xf32>
    %cst_130 = arith.constant 5.000000e-01 : f32
    %307 = vector.broadcast %cst_130 : f32 to vector<16x128xf32>
    %308 = arith.addf %306, %307 : vector<16x128xf32>
    %309 = vector.extract_strided_slice %300 {offsets = [0, 128], sizes = [16, 128], strides = [1, 1]} : vector<16x512xf32> to vector<16x128xf32>
    %cst_131 = arith.constant 5.000000e-01 : f32
    %310 = vector.broadcast %cst_131 : f32 to vector<16x128xf32>
    %311 = arith.mulf %310, %309 : vector<16x128xf32>
    %312 = math.tanh %311 : vector<16x128xf32>
    %cst_132 = arith.constant 5.000000e-01 : f32
    %313 = vector.broadcast %cst_132 : f32 to vector<16x128xf32>
    %314 = arith.mulf %313, %312 : vector<16x128xf32>
    %cst_133 = arith.constant 5.000000e-01 : f32
    %315 = vector.broadcast %cst_133 : f32 to vector<16x128xf32>
    %316 = arith.addf %314, %315 : vector<16x128xf32>
    %317 = vector.extract_strided_slice %300 {offsets = [0, 256], sizes = [16, 128], strides = [1, 1]} : vector<16x512xf32> to vector<16x128xf32>
    %318 = math.tanh %317 : vector<16x128xf32>
    %319 = vector.extract_strided_slice %300 {offsets = [0, 384], sizes = [16, 128], strides = [1, 1]} : vector<16x512xf32> to vector<16x128xf32>
    %cst_134 = arith.constant 5.000000e-01 : f32
    %320 = vector.broadcast %cst_134 : f32 to vector<16x128xf32>
    %321 = arith.mulf %320, %319 : vector<16x128xf32>
    %322 = math.tanh %321 : vector<16x128xf32>
    %cst_135 = arith.constant 5.000000e-01 : f32
    %323 = vector.broadcast %cst_135 : f32 to vector<16x128xf32>
    %324 = arith.mulf %323, %322 : vector<16x128xf32>
    %cst_136 = arith.constant 5.000000e-01 : f32
    %325 = vector.broadcast %cst_136 : f32 to vector<16x128xf32>
    %326 = arith.addf %324, %325 : vector<16x128xf32>
    %327 = arith.mulf %316, %289 : vector<16x128xf32>
    %328 = arith.mulf %308, %318 : vector<16x128xf32>
    %329 = arith.addf %327, %328 : vector<16x128xf32>
    %330 = math.tanh %329 : vector<16x128xf32>
    %331 = arith.mulf %326, %330 : vector<16x128xf32>
    %332 = arith.truncf %331 : vector<16x128xf32> to vector<16x128xbf16>
    %c7_137 = arith.constant 7 : index
    %c0_138 = arith.constant 0 : index
    %c0_139 = arith.constant 0 : index
    %333 = vector.load %arg11[%c7_137, %c0_138, %c0_139] : memref<8x16x128xbf16, #tpu.memory_space<vmem>>, vector<1x16x128xbf16>
    %334 = vector.shape_cast %333 : vector<1x16x128xbf16> to vector<16x128xbf16>
    %335 = vector.shape_cast %332 : vector<16x128xbf16> to vector<1x16x128xbf16>
    tpu.vector_store %arg11[%c7_137, %c0_138, %c0_139], %335 {strides = array<i32>} : memref<8x16x128xbf16, #tpu.memory_space<vmem>>, vector<1x16x128xbf16>,
    %c0_140 = arith.constant 0 : index
    %c0_141 = arith.constant 0 : index
    %c0_142 = arith.constant 0 : index
    %336 = vector.load %arg11[%c0_140, %c0_141, %c0_142] : memref<8x16x128xbf16, #tpu.memory_space<vmem>>, vector<8x16x128xbf16>
    %337 = vector.shape_cast %336 : vector<8x16x128xbf16> to vector<128x128xbf16>
    %c0_143 = arith.constant 0 : index
    %c0_144 = arith.constant 0 : index
    %c0_145 = arith.constant 0 : index
    %338 = vector.load %arg3[%c0_143, %c0_144, %c0_145] : memref<3x128x512xbf16, #tpu.memory_space<vmem>>, vector<1x128x512xbf16>
    %339 = vector.shape_cast %338 : vector<1x128x512xbf16> to vector<128x512xbf16>
    %cst_146 = arith.constant dense<0.000000e+00> : vector<128x512xf32>
    %340 = tpu.matmul %337, %339, %cst_146 {dimension_numbers = #tpu.dot_dimension_numbers<[1], [0], [0], [1], [0, 0, 1, 1], [], []>} : vector<128x128xbf16>, vector<128x512xbf16>, vector<128x512xf32> -> vector<128x512xf32>
    %c1_147 = arith.constant 1 : index
    %c0_148 = arith.constant 0 : index
    %c0_149 = arith.constant 0 : index
    %341 = vector.load %arg5[%c1_147, %c0_148, %c0_149] : memref<4x1x512xf32, #tpu.memory_space<vmem>>, vector<1x1x512xf32>
    %342 = vector.shape_cast %341 : vector<1x1x512xf32> to vector<1x512xf32>
    %343 = vector.broadcast %342 : vector<1x512xf32> to vector<128x512xf32>
    %344 = arith.addf %340, %343 : vector<128x512xf32>
    %345 = vector.shape_cast %344 : vector<128x512xf32> to vector<8x16x512xf32>
    %c0_150 = arith.constant 0 : index
    %c0_151 = arith.constant 0 : index
    %c0_152 = arith.constant 0 : index
    %346 = vector.load %arg12[%c0_150, %c0_151, %c0_152] : memref<8x16x512xf32, #tpu.memory_space<vmem>>, vector<8x16x512xf32>
    tpu.vector_store %arg12[%c0_150, %c0_151, %c0_152], %345 {strides = array<i32>} : memref<8x16x512xf32, #tpu.memory_space<vmem>>, vector<8x16x512xf32>,
    %c1_153 = arith.constant 1 : index
    %c0_154 = arith.constant 0 : index
    %c0_155 = arith.constant 0 : index
    %347 = vector.load %arg4[%c1_153, %c0_154, %c0_155] : memref<4x128x512xbf16, #tpu.memory_space<vmem>>, vector<1x128x512xbf16>
    %348 = vector.shape_cast %347 : vector<1x128x512xbf16> to vector<128x512xbf16>
    %c1_156 = arith.constant 1 : index
    %c0_157 = arith.constant 0 : index
    %c0_158 = arith.constant 0 : index
    %349 = vector.load %arg6[%c1_156, %c0_157, %c0_158] : memref<4x16x128xf32, #tpu.memory_space<vmem>>, vector<1x16x128xf32>
    %350 = vector.shape_cast %349 : vector<1x16x128xf32> to vector<16x128xf32>
    %c1_159 = arith.constant 1 : index
    %c0_160 = arith.constant 0 : index
    %c0_161 = arith.constant 0 : index
    %351 = vector.load %arg7[%c1_159, %c0_160, %c0_161] : memref<4x16x128xf32, #tpu.memory_space<vmem>>, vector<1x16x128xf32>
    %352 = vector.shape_cast %351 : vector<1x16x128xf32> to vector<16x128xf32>
    %c0_162 = arith.constant 0 : index
    %c0_163 = arith.constant 0 : index
    %c0_164 = arith.constant 0 : index
    %353 = vector.load %arg12[%c0_162, %c0_163, %c0_164] : memref<8x16x512xf32, #tpu.memory_space<vmem>>, vector<1x16x512xf32>
    %354 = vector.shape_cast %353 : vector<1x16x512xf32> to vector<16x512xf32>
    %355 = arith.truncf %350 : vector<16x128xf32> to vector<16x128xbf16>
    %cst_165 = arith.constant dense<0.000000e+00> : vector<16x512xf32>
    %356 = tpu.matmul %355, %348, %cst_165 {dimension_numbers = #tpu.dot_dimension_numbers<[1], [0], [0], [1], [0, 0, 1, 1], [], []>} : vector<16x128xbf16>, vector<128x512xbf16>, vector<16x512xf32> -> vector<16x512xf32>
    %357 = arith.addf %354, %356 : vector<16x512xf32>
    %358 = vector.extract_strided_slice %357 {offsets = [0, 0], sizes = [16, 128], strides = [1, 1]} : vector<16x512xf32> to vector<16x128xf32>
    %cst_166 = arith.constant 5.000000e-01 : f32
    %359 = vector.broadcast %cst_166 : f32 to vector<16x128xf32>
    %360 = arith.mulf %359, %358 : vector<16x128xf32>
    %361 = math.tanh %360 : vector<16x128xf32>
    %cst_167 = arith.constant 5.000000e-01 : f32
    %362 = vector.broadcast %cst_167 : f32 to vector<16x128xf32>
    %363 = arith.mulf %362, %361 : vector<16x128xf32>
    %cst_168 = arith.constant 5.000000e-01 : f32
    %364 = vector.broadcast %cst_168 : f32 to vector<16x128xf32>
    %365 = arith.addf %363, %364 : vector<16x128xf32>
    %366 = vector.extract_strided_slice %357 {offsets = [0, 128], sizes = [16, 128], strides = [1, 1]} : vector<16x512xf32> to vector<16x128xf32>
    %cst_169 = arith.constant 5.000000e-01 : f32
    %367 = vector.broadcast %cst_169 : f32 to vector<16x128xf32>
    %368 = arith.mulf %367, %366 : vector<16x128xf32>
    %369 = math.tanh %368 : vector<16x128xf32>
    %cst_170 = arith.constant 5.000000e-01 : f32
    %370 = vector.broadcast %cst_170 : f32 to vector<16x128xf32>
    %371 = arith.mulf %370, %369 : vector<16x128xf32>
    %cst_171 = arith.constant 5.000000e-01 : f32
    %372 = vector.broadcast %cst_171 : f32 to vector<16x128xf32>
    %373 = arith.addf %371, %372 : vector<16x128xf32>
    %374 = vector.extract_strided_slice %357 {offsets = [0, 256], sizes = [16, 128], strides = [1, 1]} : vector<16x512xf32> to vector<16x128xf32>
    %375 = math.tanh %374 : vector<16x128xf32>
    %376 = vector.extract_strided_slice %357 {offsets = [0, 384], sizes = [16, 128], strides = [1, 1]} : vector<16x512xf32> to vector<16x128xf32>
    %cst_172 = arith.constant 5.000000e-01 : f32
    %377 = vector.broadcast %cst_172 : f32 to vector<16x128xf32>
    %378 = arith.mulf %377, %376 : vector<16x128xf32>
    %379 = math.tanh %378 : vector<16x128xf32>
    %cst_173 = arith.constant 5.000000e-01 : f32
    %380 = vector.broadcast %cst_173 : f32 to vector<16x128xf32>
    %381 = arith.mulf %380, %379 : vector<16x128xf32>
    %cst_174 = arith.constant 5.000000e-01 : f32
    %382 = vector.broadcast %cst_174 : f32 to vector<16x128xf32>
    %383 = arith.addf %381, %382 : vector<16x128xf32>
    %384 = arith.mulf %373, %352 : vector<16x128xf32>
    %385 = arith.mulf %365, %375 : vector<16x128xf32>
    %386 = arith.addf %384, %385 : vector<16x128xf32>
    %387 = math.tanh %386 : vector<16x128xf32>
    %388 = arith.mulf %383, %387 : vector<16x128xf32>
    %389 = arith.truncf %388 : vector<16x128xf32> to vector<16x128xbf16>
    %c0_175 = arith.constant 0 : index
    %c0_176 = arith.constant 0 : index
    %c0_177 = arith.constant 0 : index
    %390 = vector.load %arg11[%c0_175, %c0_176, %c0_177] : memref<8x16x128xbf16, #tpu.memory_space<vmem>>, vector<1x16x128xbf16>
    %391 = vector.shape_cast %390 : vector<1x16x128xbf16> to vector<16x128xbf16>
    %392 = vector.shape_cast %389 : vector<16x128xbf16> to vector<1x16x128xbf16>
    tpu.vector_store %arg11[%c0_175, %c0_176, %c0_177], %392 {strides = array<i32>} : memref<8x16x128xbf16, #tpu.memory_space<vmem>>, vector<1x16x128xbf16>,
    %c1_178 = arith.constant 1 : index
    %c0_179 = arith.constant 0 : index
    %c0_180 = arith.constant 0 : index
    %393 = vector.load %arg12[%c1_178, %c0_179, %c0_180] : memref<8x16x512xf32, #tpu.memory_space<vmem>>, vector<1x16x512xf32>
    %394 = vector.shape_cast %393 : vector<1x16x512xf32> to vector<16x512xf32>
    %395 = arith.truncf %388 : vector<16x128xf32> to vector<16x128xbf16>
    %cst_181 = arith.constant dense<0.000000e+00> : vector<16x512xf32>
    %396 = tpu.matmul %395, %348, %cst_181 {dimension_numbers = #tpu.dot_dimension_numbers<[1], [0], [0], [1], [0, 0, 1, 1], [], []>} : vector<16x128xbf16>, vector<128x512xbf16>, vector<16x512xf32> -> vector<16x512xf32>
    %397 = arith.addf %394, %396 : vector<16x512xf32>
    %398 = vector.extract_strided_slice %397 {offsets = [0, 0], sizes = [16, 128], strides = [1, 1]} : vector<16x512xf32> to vector<16x128xf32>
    %cst_182 = arith.constant 5.000000e-01 : f32
    %399 = vector.broadcast %cst_182 : f32 to vector<16x128xf32>
    %400 = arith.mulf %399, %398 : vector<16x128xf32>
    %401 = math.tanh %400 : vector<16x128xf32>
    %cst_183 = arith.constant 5.000000e-01 : f32
    %402 = vector.broadcast %cst_183 : f32 to vector<16x128xf32>
    %403 = arith.mulf %402, %401 : vector<16x128xf32>
    %cst_184 = arith.constant 5.000000e-01 : f32
    %404 = vector.broadcast %cst_184 : f32 to vector<16x128xf32>
    %405 = arith.addf %403, %404 : vector<16x128xf32>
    %406 = vector.extract_strided_slice %397 {offsets = [0, 128], sizes = [16, 128], strides = [1, 1]} : vector<16x512xf32> to vector<16x128xf32>
    %cst_185 = arith.constant 5.000000e-01 : f32
    %407 = vector.broadcast %cst_185 : f32 to vector<16x128xf32>
    %408 = arith.mulf %407, %406 : vector<16x128xf32>
    %409 = math.tanh %408 : vector<16x128xf32>
    %cst_186 = arith.constant 5.000000e-01 : f32
    %410 = vector.broadcast %cst_186 : f32 to vector<16x128xf32>
    %411 = arith.mulf %410, %409 : vector<16x128xf32>
    %cst_187 = arith.constant 5.000000e-01 : f32
    %412 = vector.broadcast %cst_187 : f32 to vector<16x128xf32>
    %413 = arith.addf %411, %412 : vector<16x128xf32>
    %414 = vector.extract_strided_slice %397 {offsets = [0, 256], sizes = [16, 128], strides = [1, 1]} : vector<16x512xf32> to vector<16x128xf32>
    %415 = math.tanh %414 : vector<16x128xf32>
    %416 = vector.extract_strided_slice %397 {offsets = [0, 384], sizes = [16, 128], strides = [1, 1]} : vector<16x512xf32> to vector<16x128xf32>
    %cst_188 = arith.constant 5.000000e-01 : f32
    %417 = vector.broadcast %cst_188 : f32 to vector<16x128xf32>
    %418 = arith.mulf %417, %416 : vector<16x128xf32>
    %419 = math.tanh %418 : vector<16x128xf32>
    %cst_189 = arith.constant 5.000000e-01 : f32
    %420 = vector.broadcast %cst_189 : f32 to vector<16x128xf32>
    %421 = arith.mulf %420, %419 : vector<16x128xf32>
    %cst_190 = arith.constant 5.000000e-01 : f32
    %422 = vector.broadcast %cst_190 : f32 to vector<16x128xf32>
    %423 = arith.addf %421, %422 : vector<16x128xf32>
    %424 = arith.mulf %413, %386 : vector<16x128xf32>
    %425 = arith.mulf %405, %415 : vector<16x128xf32>
    %426 = arith.addf %424, %425 : vector<16x128xf32>
    %427 = math.tanh %426 : vector<16x128xf32>
    %428 = arith.mulf %423, %427 : vector<16x128xf32>
    %429 = arith.truncf %428 : vector<16x128xf32> to vector<16x128xbf16>
    %c1_191 = arith.constant 1 : index
    %c0_192 = arith.constant 0 : index
    %c0_193 = arith.constant 0 : index
    %430 = vector.load %arg11[%c1_191, %c0_192, %c0_193] : memref<8x16x128xbf16, #tpu.memory_space<vmem>>, vector<1x16x128xbf16>
    %431 = vector.shape_cast %430 : vector<1x16x128xbf16> to vector<16x128xbf16>
    %432 = vector.shape_cast %429 : vector<16x128xbf16> to vector<1x16x128xbf16>
    tpu.vector_store %arg11[%c1_191, %c0_192, %c0_193], %432 {strides = array<i32>} : memref<8x16x128xbf16, #tpu.memory_space<vmem>>, vector<1x16x128xbf16>,
    %c2_194 = arith.constant 2 : index
    %c0_195 = arith.constant 0 : index
    %c0_196 = arith.constant 0 : index
    %433 = vector.load %arg12[%c2_194, %c0_195, %c0_196] : memref<8x16x512xf32, #tpu.memory_space<vmem>>, vector<1x16x512xf32>
    %434 = vector.shape_cast %433 : vector<1x16x512xf32> to vector<16x512xf32>
    %435 = arith.truncf %428 : vector<16x128xf32> to vector<16x128xbf16>
    %cst_197 = arith.constant dense<0.000000e+00> : vector<16x512xf32>
    %436 = tpu.matmul %435, %348, %cst_197 {dimension_numbers = #tpu.dot_dimension_numbers<[1], [0], [0], [1], [0, 0, 1, 1], [], []>} : vector<16x128xbf16>, vector<128x512xbf16>, vector<16x512xf32> -> vector<16x512xf32>
    %437 = arith.addf %434, %436 : vector<16x512xf32>
    %438 = vector.extract_strided_slice %437 {offsets = [0, 0], sizes = [16, 128], strides = [1, 1]} : vector<16x512xf32> to vector<16x128xf32>
    %cst_198 = arith.constant 5.000000e-01 : f32
    %439 = vector.broadcast %cst_198 : f32 to vector<16x128xf32>
    %440 = arith.mulf %439, %438 : vector<16x128xf32>
    %441 = math.tanh %440 : vector<16x128xf32>
    %cst_199 = arith.constant 5.000000e-01 : f32
    %442 = vector.broadcast %cst_199 : f32 to vector<16x128xf32>
    %443 = arith.mulf %442, %441 : vector<16x128xf32>
    %cst_200 = arith.constant 5.000000e-01 : f32
    %444 = vector.broadcast %cst_200 : f32 to vector<16x128xf32>
    %445 = arith.addf %443, %444 : vector<16x128xf32>
    %446 = vector.extract_strided_slice %437 {offsets = [0, 128], sizes = [16, 128], strides = [1, 1]} : vector<16x512xf32> to vector<16x128xf32>
    %cst_201 = arith.constant 5.000000e-01 : f32
    %447 = vector.broadcast %cst_201 : f32 to vector<16x128xf32>
    %448 = arith.mulf %447, %446 : vector<16x128xf32>
    %449 = math.tanh %448 : vector<16x128xf32>
    %cst_202 = arith.constant 5.000000e-01 : f32
    %450 = vector.broadcast %cst_202 : f32 to vector<16x128xf32>
    %451 = arith.mulf %450, %449 : vector<16x128xf32>
    %cst_203 = arith.constant 5.000000e-01 : f32
    %452 = vector.broadcast %cst_203 : f32 to vector<16x128xf32>
    %453 = arith.addf %451, %452 : vector<16x128xf32>
    %454 = vector.extract_strided_slice %437 {offsets = [0, 256], sizes = [16, 128], strides = [1, 1]} : vector<16x512xf32> to vector<16x128xf32>
    %455 = math.tanh %454 : vector<16x128xf32>
    %456 = vector.extract_strided_slice %437 {offsets = [0, 384], sizes = [16, 128], strides = [1, 1]} : vector<16x512xf32> to vector<16x128xf32>
    %cst_204 = arith.constant 5.000000e-01 : f32
    %457 = vector.broadcast %cst_204 : f32 to vector<16x128xf32>
    %458 = arith.mulf %457, %456 : vector<16x128xf32>
    %459 = math.tanh %458 : vector<16x128xf32>
    %cst_205 = arith.constant 5.000000e-01 : f32
    %460 = vector.broadcast %cst_205 : f32 to vector<16x128xf32>
    %461 = arith.mulf %460, %459 : vector<16x128xf32>
    %cst_206 = arith.constant 5.000000e-01 : f32
    %462 = vector.broadcast %cst_206 : f32 to vector<16x128xf32>
    %463 = arith.addf %461, %462 : vector<16x128xf32>
    %464 = arith.mulf %453, %426 : vector<16x128xf32>
    %465 = arith.mulf %445, %455 : vector<16x128xf32>
    %466 = arith.addf %464, %465 : vector<16x128xf32>
    %467 = math.tanh %466 : vector<16x128xf32>
    %468 = arith.mulf %463, %467 : vector<16x128xf32>
    %469 = arith.truncf %468 : vector<16x128xf32> to vector<16x128xbf16>
    %c2_207 = arith.constant 2 : index
    %c0_208 = arith.constant 0 : index
    %c0_209 = arith.constant 0 : index
    %470 = vector.load %arg11[%c2_207, %c0_208, %c0_209] : memref<8x16x128xbf16, #tpu.memory_space<vmem>>, vector<1x16x128xbf16>
    %471 = vector.shape_cast %470 : vector<1x16x128xbf16> to vector<16x128xbf16>
    %472 = vector.shape_cast %469 : vector<16x128xbf16> to vector<1x16x128xbf16>
    tpu.vector_store %arg11[%c2_207, %c0_208, %c0_209], %472 {strides = array<i32>} : memref<8x16x128xbf16, #tpu.memory_space<vmem>>, vector<1x16x128xbf16>,
    %c3_210 = arith.constant 3 : index
    %c0_211 = arith.constant 0 : index
    %c0_212 = arith.constant 0 : index
    %473 = vector.load %arg12[%c3_210, %c0_211, %c0_212] : memref<8x16x512xf32, #tpu.memory_space<vmem>>, vector<1x16x512xf32>
    %474 = vector.shape_cast %473 : vector<1x16x512xf32> to vector<16x512xf32>
    %475 = arith.truncf %468 : vector<16x128xf32> to vector<16x128xbf16>
    %cst_213 = arith.constant dense<0.000000e+00> : vector<16x512xf32>
    %476 = tpu.matmul %475, %348, %cst_213 {dimension_numbers = #tpu.dot_dimension_numbers<[1], [0], [0], [1], [0, 0, 1, 1], [], []>} : vector<16x128xbf16>, vector<128x512xbf16>, vector<16x512xf32> -> vector<16x512xf32>
    %477 = arith.addf %474, %476 : vector<16x512xf32>
    %478 = vector.extract_strided_slice %477 {offsets = [0, 0], sizes = [16, 128], strides = [1, 1]} : vector<16x512xf32> to vector<16x128xf32>
    %cst_214 = arith.constant 5.000000e-01 : f32
    %479 = vector.broadcast %cst_214 : f32 to vector<16x128xf32>
    %480 = arith.mulf %479, %478 : vector<16x128xf32>
    %481 = math.tanh %480 : vector<16x128xf32>
    %cst_215 = arith.constant 5.000000e-01 : f32
    %482 = vector.broadcast %cst_215 : f32 to vector<16x128xf32>
    %483 = arith.mulf %482, %481 : vector<16x128xf32>
    %cst_216 = arith.constant 5.000000e-01 : f32
    %484 = vector.broadcast %cst_216 : f32 to vector<16x128xf32>
    %485 = arith.addf %483, %484 : vector<16x128xf32>
    %486 = vector.extract_strided_slice %477 {offsets = [0, 128], sizes = [16, 128], strides = [1, 1]} : vector<16x512xf32> to vector<16x128xf32>
    %cst_217 = arith.constant 5.000000e-01 : f32
    %487 = vector.broadcast %cst_217 : f32 to vector<16x128xf32>
    %488 = arith.mulf %487, %486 : vector<16x128xf32>
    %489 = math.tanh %488 : vector<16x128xf32>
    %cst_218 = arith.constant 5.000000e-01 : f32
    %490 = vector.broadcast %cst_218 : f32 to vector<16x128xf32>
    %491 = arith.mulf %490, %489 : vector<16x128xf32>
    %cst_219 = arith.constant 5.000000e-01 : f32
    %492 = vector.broadcast %cst_219 : f32 to vector<16x128xf32>
    %493 = arith.addf %491, %492 : vector<16x128xf32>
    %494 = vector.extract_strided_slice %477 {offsets = [0, 256], sizes = [16, 128], strides = [1, 1]} : vector<16x512xf32> to vector<16x128xf32>
    %495 = math.tanh %494 : vector<16x128xf32>
    %496 = vector.extract_strided_slice %477 {offsets = [0, 384], sizes = [16, 128], strides = [1, 1]} : vector<16x512xf32> to vector<16x128xf32>
    %cst_220 = arith.constant 5.000000e-01 : f32
    %497 = vector.broadcast %cst_220 : f32 to vector<16x128xf32>
    %498 = arith.mulf %497, %496 : vector<16x128xf32>
    %499 = math.tanh %498 : vector<16x128xf32>
    %cst_221 = arith.constant 5.000000e-01 : f32
    %500 = vector.broadcast %cst_221 : f32 to vector<16x128xf32>
    %501 = arith.mulf %500, %499 : vector<16x128xf32>
    %cst_222 = arith.constant 5.000000e-01 : f32
    %502 = vector.broadcast %cst_222 : f32 to vector<16x128xf32>
    %503 = arith.addf %501, %502 : vector<16x128xf32>
    %504 = arith.mulf %493, %466 : vector<16x128xf32>
    %505 = arith.mulf %485, %495 : vector<16x128xf32>
    %506 = arith.addf %504, %505 : vector<16x128xf32>
    %507 = math.tanh %506 : vector<16x128xf32>
    %508 = arith.mulf %503, %507 : vector<16x128xf32>
    %509 = arith.truncf %508 : vector<16x128xf32> to vector<16x128xbf16>
    %c3_223 = arith.constant 3 : index
    %c0_224 = arith.constant 0 : index
    %c0_225 = arith.constant 0 : index
    %510 = vector.load %arg11[%c3_223, %c0_224, %c0_225] : memref<8x16x128xbf16, #tpu.memory_space<vmem>>, vector<1x16x128xbf16>
    %511 = vector.shape_cast %510 : vector<1x16x128xbf16> to vector<16x128xbf16>
    %512 = vector.shape_cast %509 : vector<16x128xbf16> to vector<1x16x128xbf16>
    tpu.vector_store %arg11[%c3_223, %c0_224, %c0_225], %512 {strides = array<i32>} : memref<8x16x128xbf16, #tpu.memory_space<vmem>>, vector<1x16x128xbf16>,
    %c4_226 = arith.constant 4 : index
    %c0_227 = arith.constant 0 : index
    %c0_228 = arith.constant 0 : index
    %513 = vector.load %arg12[%c4_226, %c0_227, %c0_228] : memref<8x16x512xf32, #tpu.memory_space<vmem>>, vector<1x16x512xf32>
    %514 = vector.shape_cast %513 : vector<1x16x512xf32> to vector<16x512xf32>
    %515 = arith.truncf %508 : vector<16x128xf32> to vector<16x128xbf16>
    %cst_229 = arith.constant dense<0.000000e+00> : vector<16x512xf32>
    %516 = tpu.matmul %515, %348, %cst_229 {dimension_numbers = #tpu.dot_dimension_numbers<[1], [0], [0], [1], [0, 0, 1, 1], [], []>} : vector<16x128xbf16>, vector<128x512xbf16>, vector<16x512xf32> -> vector<16x512xf32>
    %517 = arith.addf %514, %516 : vector<16x512xf32>
    %518 = vector.extract_strided_slice %517 {offsets = [0, 0], sizes = [16, 128], strides = [1, 1]} : vector<16x512xf32> to vector<16x128xf32>
    %cst_230 = arith.constant 5.000000e-01 : f32
    %519 = vector.broadcast %cst_230 : f32 to vector<16x128xf32>
    %520 = arith.mulf %519, %518 : vector<16x128xf32>
    %521 = math.tanh %520 : vector<16x128xf32>
    %cst_231 = arith.constant 5.000000e-01 : f32
    %522 = vector.broadcast %cst_231 : f32 to vector<16x128xf32>
    %523 = arith.mulf %522, %521 : vector<16x128xf32>
    %cst_232 = arith.constant 5.000000e-01 : f32
    %524 = vector.broadcast %cst_232 : f32 to vector<16x128xf32>
    %525 = arith.addf %523, %524 : vector<16x128xf32>
    %526 = vector.extract_strided_slice %517 {offsets = [0, 128], sizes = [16, 128], strides = [1, 1]} : vector<16x512xf32> to vector<16x128xf32>
    %cst_233 = arith.constant 5.000000e-01 : f32
    %527 = vector.broadcast %cst_233 : f32 to vector<16x128xf32>
    %528 = arith.mulf %527, %526 : vector<16x128xf32>
    %529 = math.tanh %528 : vector<16x128xf32>
    %cst_234 = arith.constant 5.000000e-01 : f32
    %530 = vector.broadcast %cst_234 : f32 to vector<16x128xf32>
    %531 = arith.mulf %530, %529 : vector<16x128xf32>
    %cst_235 = arith.constant 5.000000e-01 : f32
    %532 = vector.broadcast %cst_235 : f32 to vector<16x128xf32>
    %533 = arith.addf %531, %532 : vector<16x128xf32>
    %534 = vector.extract_strided_slice %517 {offsets = [0, 256], sizes = [16, 128], strides = [1, 1]} : vector<16x512xf32> to vector<16x128xf32>
    %535 = math.tanh %534 : vector<16x128xf32>
    %536 = vector.extract_strided_slice %517 {offsets = [0, 384], sizes = [16, 128], strides = [1, 1]} : vector<16x512xf32> to vector<16x128xf32>
    %cst_236 = arith.constant 5.000000e-01 : f32
    %537 = vector.broadcast %cst_236 : f32 to vector<16x128xf32>
    %538 = arith.mulf %537, %536 : vector<16x128xf32>
    %539 = math.tanh %538 : vector<16x128xf32>
    %cst_237 = arith.constant 5.000000e-01 : f32
    %540 = vector.broadcast %cst_237 : f32 to vector<16x128xf32>
    %541 = arith.mulf %540, %539 : vector<16x128xf32>
    %cst_238 = arith.constant 5.000000e-01 : f32
    %542 = vector.broadcast %cst_238 : f32 to vector<16x128xf32>
    %543 = arith.addf %541, %542 : vector<16x128xf32>
    %544 = arith.mulf %533, %506 : vector<16x128xf32>
    %545 = arith.mulf %525, %535 : vector<16x128xf32>
    %546 = arith.addf %544, %545 : vector<16x128xf32>
    %547 = math.tanh %546 : vector<16x128xf32>
    %548 = arith.mulf %543, %547 : vector<16x128xf32>
    %549 = arith.truncf %548 : vector<16x128xf32> to vector<16x128xbf16>
    %c4_239 = arith.constant 4 : index
    %c0_240 = arith.constant 0 : index
    %c0_241 = arith.constant 0 : index
    %550 = vector.load %arg11[%c4_239, %c0_240, %c0_241] : memref<8x16x128xbf16, #tpu.memory_space<vmem>>, vector<1x16x128xbf16>
    %551 = vector.shape_cast %550 : vector<1x16x128xbf16> to vector<16x128xbf16>
    %552 = vector.shape_cast %549 : vector<16x128xbf16> to vector<1x16x128xbf16>
    tpu.vector_store %arg11[%c4_239, %c0_240, %c0_241], %552 {strides = array<i32>} : memref<8x16x128xbf16, #tpu.memory_space<vmem>>, vector<1x16x128xbf16>,
    %c5_242 = arith.constant 5 : index
    %c0_243 = arith.constant 0 : index
    %c0_244 = arith.constant 0 : index
    %553 = vector.load %arg12[%c5_242, %c0_243, %c0_244] : memref<8x16x512xf32, #tpu.memory_space<vmem>>, vector<1x16x512xf32>
    %554 = vector.shape_cast %553 : vector<1x16x512xf32> to vector<16x512xf32>
    %555 = arith.truncf %548 : vector<16x128xf32> to vector<16x128xbf16>
    %cst_245 = arith.constant dense<0.000000e+00> : vector<16x512xf32>
    %556 = tpu.matmul %555, %348, %cst_245 {dimension_numbers = #tpu.dot_dimension_numbers<[1], [0], [0], [1], [0, 0, 1, 1], [], []>} : vector<16x128xbf16>, vector<128x512xbf16>, vector<16x512xf32> -> vector<16x512xf32>
    %557 = arith.addf %554, %556 : vector<16x512xf32>
    %558 = vector.extract_strided_slice %557 {offsets = [0, 0], sizes = [16, 128], strides = [1, 1]} : vector<16x512xf32> to vector<16x128xf32>
    %cst_246 = arith.constant 5.000000e-01 : f32
    %559 = vector.broadcast %cst_246 : f32 to vector<16x128xf32>
    %560 = arith.mulf %559, %558 : vector<16x128xf32>
    %561 = math.tanh %560 : vector<16x128xf32>
    %cst_247 = arith.constant 5.000000e-01 : f32
    %562 = vector.broadcast %cst_247 : f32 to vector<16x128xf32>
    %563 = arith.mulf %562, %561 : vector<16x128xf32>
    %cst_248 = arith.constant 5.000000e-01 : f32
    %564 = vector.broadcast %cst_248 : f32 to vector<16x128xf32>
    %565 = arith.addf %563, %564 : vector<16x128xf32>
    %566 = vector.extract_strided_slice %557 {offsets = [0, 128], sizes = [16, 128], strides = [1, 1]} : vector<16x512xf32> to vector<16x128xf32>
    %cst_249 = arith.constant 5.000000e-01 : f32
    %567 = vector.broadcast %cst_249 : f32 to vector<16x128xf32>
    %568 = arith.mulf %567, %566 : vector<16x128xf32>
    %569 = math.tanh %568 : vector<16x128xf32>
    %cst_250 = arith.constant 5.000000e-01 : f32
    %570 = vector.broadcast %cst_250 : f32 to vector<16x128xf32>
    %571 = arith.mulf %570, %569 : vector<16x128xf32>
    %cst_251 = arith.constant 5.000000e-01 : f32
    %572 = vector.broadcast %cst_251 : f32 to vector<16x128xf32>
    %573 = arith.addf %571, %572 : vector<16x128xf32>
    %574 = vector.extract_strided_slice %557 {offsets = [0, 256], sizes = [16, 128], strides = [1, 1]} : vector<16x512xf32> to vector<16x128xf32>
    %575 = math.tanh %574 : vector<16x128xf32>
    %576 = vector.extract_strided_slice %557 {offsets = [0, 384], sizes = [16, 128], strides = [1, 1]} : vector<16x512xf32> to vector<16x128xf32>
    %cst_252 = arith.constant 5.000000e-01 : f32
    %577 = vector.broadcast %cst_252 : f32 to vector<16x128xf32>
    %578 = arith.mulf %577, %576 : vector<16x128xf32>
    %579 = math.tanh %578 : vector<16x128xf32>
    %cst_253 = arith.constant 5.000000e-01 : f32
    %580 = vector.broadcast %cst_253 : f32 to vector<16x128xf32>
    %581 = arith.mulf %580, %579 : vector<16x128xf32>
    %cst_254 = arith.constant 5.000000e-01 : f32
    %582 = vector.broadcast %cst_254 : f32 to vector<16x128xf32>
    %583 = arith.addf %581, %582 : vector<16x128xf32>
    %584 = arith.mulf %573, %546 : vector<16x128xf32>
    %585 = arith.mulf %565, %575 : vector<16x128xf32>
    %586 = arith.addf %584, %585 : vector<16x128xf32>
    %587 = math.tanh %586 : vector<16x128xf32>
    %588 = arith.mulf %583, %587 : vector<16x128xf32>
    %589 = arith.truncf %588 : vector<16x128xf32> to vector<16x128xbf16>
    %c5_255 = arith.constant 5 : index
    %c0_256 = arith.constant 0 : index
    %c0_257 = arith.constant 0 : index
    %590 = vector.load %arg11[%c5_255, %c0_256, %c0_257] : memref<8x16x128xbf16, #tpu.memory_space<vmem>>, vector<1x16x128xbf16>
    %591 = vector.shape_cast %590 : vector<1x16x128xbf16> to vector<16x128xbf16>
    %592 = vector.shape_cast %589 : vector<16x128xbf16> to vector<1x16x128xbf16>
    tpu.vector_store %arg11[%c5_255, %c0_256, %c0_257], %592 {strides = array<i32>} : memref<8x16x128xbf16, #tpu.memory_space<vmem>>, vector<1x16x128xbf16>,
    %c6_258 = arith.constant 6 : index
    %c0_259 = arith.constant 0 : index
    %c0_260 = arith.constant 0 : index
    %593 = vector.load %arg12[%c6_258, %c0_259, %c0_260] : memref<8x16x512xf32, #tpu.memory_space<vmem>>, vector<1x16x512xf32>
    %594 = vector.shape_cast %593 : vector<1x16x512xf32> to vector<16x512xf32>
    %595 = arith.truncf %588 : vector<16x128xf32> to vector<16x128xbf16>
    %cst_261 = arith.constant dense<0.000000e+00> : vector<16x512xf32>
    %596 = tpu.matmul %595, %348, %cst_261 {dimension_numbers = #tpu.dot_dimension_numbers<[1], [0], [0], [1], [0, 0, 1, 1], [], []>} : vector<16x128xbf16>, vector<128x512xbf16>, vector<16x512xf32> -> vector<16x512xf32>
    %597 = arith.addf %594, %596 : vector<16x512xf32>
    %598 = vector.extract_strided_slice %597 {offsets = [0, 0], sizes = [16, 128], strides = [1, 1]} : vector<16x512xf32> to vector<16x128xf32>
    %cst_262 = arith.constant 5.000000e-01 : f32
    %599 = vector.broadcast %cst_262 : f32 to vector<16x128xf32>
    %600 = arith.mulf %599, %598 : vector<16x128xf32>
    %601 = math.tanh %600 : vector<16x128xf32>
    %cst_263 = arith.constant 5.000000e-01 : f32
    %602 = vector.broadcast %cst_263 : f32 to vector<16x128xf32>
    %603 = arith.mulf %602, %601 : vector<16x128xf32>
    %cst_264 = arith.constant 5.000000e-01 : f32
    %604 = vector.broadcast %cst_264 : f32 to vector<16x128xf32>
    %605 = arith.addf %603, %604 : vector<16x128xf32>
    %606 = vector.extract_strided_slice %597 {offsets = [0, 128], sizes = [16, 128], strides = [1, 1]} : vector<16x512xf32> to vector<16x128xf32>
    %cst_265 = arith.constant 5.000000e-01 : f32
    %607 = vector.broadcast %cst_265 : f32 to vector<16x128xf32>
    %608 = arith.mulf %607, %606 : vector<16x128xf32>
    %609 = math.tanh %608 : vector<16x128xf32>
    %cst_266 = arith.constant 5.000000e-01 : f32
    %610 = vector.broadcast %cst_266 : f32 to vector<16x128xf32>
    %611 = arith.mulf %610, %609 : vector<16x128xf32>
    %cst_267 = arith.constant 5.000000e-01 : f32
    %612 = vector.broadcast %cst_267 : f32 to vector<16x128xf32>
    %613 = arith.addf %611, %612 : vector<16x128xf32>
    %614 = vector.extract_strided_slice %597 {offsets = [0, 256], sizes = [16, 128], strides = [1, 1]} : vector<16x512xf32> to vector<16x128xf32>
    %615 = math.tanh %614 : vector<16x128xf32>
    %616 = vector.extract_strided_slice %597 {offsets = [0, 384], sizes = [16, 128], strides = [1, 1]} : vector<16x512xf32> to vector<16x128xf32>
    %cst_268 = arith.constant 5.000000e-01 : f32
    %617 = vector.broadcast %cst_268 : f32 to vector<16x128xf32>
    %618 = arith.mulf %617, %616 : vector<16x128xf32>
    %619 = math.tanh %618 : vector<16x128xf32>
    %cst_269 = arith.constant 5.000000e-01 : f32
    %620 = vector.broadcast %cst_269 : f32 to vector<16x128xf32>
    %621 = arith.mulf %620, %619 : vector<16x128xf32>
    %cst_270 = arith.constant 5.000000e-01 : f32
    %622 = vector.broadcast %cst_270 : f32 to vector<16x128xf32>
    %623 = arith.addf %621, %622 : vector<16x128xf32>
    %624 = arith.mulf %613, %586 : vector<16x128xf32>
    %625 = arith.mulf %605, %615 : vector<16x128xf32>
    %626 = arith.addf %624, %625 : vector<16x128xf32>
    %627 = math.tanh %626 : vector<16x128xf32>
    %628 = arith.mulf %623, %627 : vector<16x128xf32>
    %629 = arith.truncf %628 : vector<16x128xf32> to vector<16x128xbf16>
    %c6_271 = arith.constant 6 : index
    %c0_272 = arith.constant 0 : index
    %c0_273 = arith.constant 0 : index
    %630 = vector.load %arg11[%c6_271, %c0_272, %c0_273] : memref<8x16x128xbf16, #tpu.memory_space<vmem>>, vector<1x16x128xbf16>
    %631 = vector.shape_cast %630 : vector<1x16x128xbf16> to vector<16x128xbf16>
    %632 = vector.shape_cast %629 : vector<16x128xbf16> to vector<1x16x128xbf16>
    tpu.vector_store %arg11[%c6_271, %c0_272, %c0_273], %632 {strides = array<i32>} : memref<8x16x128xbf16, #tpu.memory_space<vmem>>, vector<1x16x128xbf16>,
    %c7_274 = arith.constant 7 : index
    %c0_275 = arith.constant 0 : index
    %c0_276 = arith.constant 0 : index
    %633 = vector.load %arg12[%c7_274, %c0_275, %c0_276] : memref<8x16x512xf32, #tpu.memory_space<vmem>>, vector<1x16x512xf32>
    %634 = vector.shape_cast %633 : vector<1x16x512xf32> to vector<16x512xf32>
    %635 = arith.truncf %628 : vector<16x128xf32> to vector<16x128xbf16>
    %cst_277 = arith.constant dense<0.000000e+00> : vector<16x512xf32>
    %636 = tpu.matmul %635, %348, %cst_277 {dimension_numbers = #tpu.dot_dimension_numbers<[1], [0], [0], [1], [0, 0, 1, 1], [], []>} : vector<16x128xbf16>, vector<128x512xbf16>, vector<16x512xf32> -> vector<16x512xf32>
    %637 = arith.addf %634, %636 : vector<16x512xf32>
    %638 = vector.extract_strided_slice %637 {offsets = [0, 0], sizes = [16, 128], strides = [1, 1]} : vector<16x512xf32> to vector<16x128xf32>
    %cst_278 = arith.constant 5.000000e-01 : f32
    %639 = vector.broadcast %cst_278 : f32 to vector<16x128xf32>
    %640 = arith.mulf %639, %638 : vector<16x128xf32>
    %641 = math.tanh %640 : vector<16x128xf32>
    %cst_279 = arith.constant 5.000000e-01 : f32
    %642 = vector.broadcast %cst_279 : f32 to vector<16x128xf32>
    %643 = arith.mulf %642, %641 : vector<16x128xf32>
    %cst_280 = arith.constant 5.000000e-01 : f32
    %644 = vector.broadcast %cst_280 : f32 to vector<16x128xf32>
    %645 = arith.addf %643, %644 : vector<16x128xf32>
    %646 = vector.extract_strided_slice %637 {offsets = [0, 128], sizes = [16, 128], strides = [1, 1]} : vector<16x512xf32> to vector<16x128xf32>
    %cst_281 = arith.constant 5.000000e-01 : f32
    %647 = vector.broadcast %cst_281 : f32 to vector<16x128xf32>
    %648 = arith.mulf %647, %646 : vector<16x128xf32>
    %649 = math.tanh %648 : vector<16x128xf32>
    %cst_282 = arith.constant 5.000000e-01 : f32
    %650 = vector.broadcast %cst_282 : f32 to vector<16x128xf32>
    %651 = arith.mulf %650, %649 : vector<16x128xf32>
    %cst_283 = arith.constant 5.000000e-01 : f32
    %652 = vector.broadcast %cst_283 : f32 to vector<16x128xf32>
    %653 = arith.addf %651, %652 : vector<16x128xf32>
    %654 = vector.extract_strided_slice %637 {offsets = [0, 256], sizes = [16, 128], strides = [1, 1]} : vector<16x512xf32> to vector<16x128xf32>
    %655 = math.tanh %654 : vector<16x128xf32>
    %656 = vector.extract_strided_slice %637 {offsets = [0, 384], sizes = [16, 128], strides = [1, 1]} : vector<16x512xf32> to vector<16x128xf32>
    %cst_284 = arith.constant 5.000000e-01 : f32
    %657 = vector.broadcast %cst_284 : f32 to vector<16x128xf32>
    %658 = arith.mulf %657, %656 : vector<16x128xf32>
    %659 = math.tanh %658 : vector<16x128xf32>
    %cst_285 = arith.constant 5.000000e-01 : f32
    %660 = vector.broadcast %cst_285 : f32 to vector<16x128xf32>
    %661 = arith.mulf %660, %659 : vector<16x128xf32>
    %cst_286 = arith.constant 5.000000e-01 : f32
    %662 = vector.broadcast %cst_286 : f32 to vector<16x128xf32>
    %663 = arith.addf %661, %662 : vector<16x128xf32>
    %664 = arith.mulf %653, %626 : vector<16x128xf32>
    %665 = arith.mulf %645, %655 : vector<16x128xf32>
    %666 = arith.addf %664, %665 : vector<16x128xf32>
    %667 = math.tanh %666 : vector<16x128xf32>
    %668 = arith.mulf %663, %667 : vector<16x128xf32>
    %669 = arith.truncf %668 : vector<16x128xf32> to vector<16x128xbf16>
    %c7_287 = arith.constant 7 : index
    %c0_288 = arith.constant 0 : index
    %c0_289 = arith.constant 0 : index
    %670 = vector.load %arg11[%c7_287, %c0_288, %c0_289] : memref<8x16x128xbf16, #tpu.memory_space<vmem>>, vector<1x16x128xbf16>
    %671 = vector.shape_cast %670 : vector<1x16x128xbf16> to vector<16x128xbf16>
    %672 = vector.shape_cast %669 : vector<16x128xbf16> to vector<1x16x128xbf16>
    tpu.vector_store %arg11[%c7_287, %c0_288, %c0_289], %672 {strides = array<i32>} : memref<8x16x128xbf16, #tpu.memory_space<vmem>>, vector<1x16x128xbf16>,
    %c0_290 = arith.constant 0 : index
    %c0_291 = arith.constant 0 : index
    %c0_292 = arith.constant 0 : index
    %673 = vector.load %arg11[%c0_290, %c0_291, %c0_292] : memref<8x16x128xbf16, #tpu.memory_space<vmem>>, vector<8x16x128xbf16>
    %674 = vector.shape_cast %673 : vector<8x16x128xbf16> to vector<128x128xbf16>
    %c1_293 = arith.constant 1 : index
    %c0_294 = arith.constant 0 : index
    %c0_295 = arith.constant 0 : index
    %675 = vector.load %arg3[%c1_293, %c0_294, %c0_295] : memref<3x128x512xbf16, #tpu.memory_space<vmem>>, vector<1x128x512xbf16>
    %676 = vector.shape_cast %675 : vector<1x128x512xbf16> to vector<128x512xbf16>
    %cst_296 = arith.constant dense<0.000000e+00> : vector<128x512xf32>
    %677 = tpu.matmul %674, %676, %cst_296 {dimension_numbers = #tpu.dot_dimension_numbers<[1], [0], [0], [1], [0, 0, 1, 1], [], []>} : vector<128x128xbf16>, vector<128x512xbf16>, vector<128x512xf32> -> vector<128x512xf32>
    %c2_297 = arith.constant 2 : index
    %c0_298 = arith.constant 0 : index
    %c0_299 = arith.constant 0 : index
    %678 = vector.load %arg5[%c2_297, %c0_298, %c0_299] : memref<4x1x512xf32, #tpu.memory_space<vmem>>, vector<1x1x512xf32>
    %679 = vector.shape_cast %678 : vector<1x1x512xf32> to vector<1x512xf32>
    %680 = vector.broadcast %679 : vector<1x512xf32> to vector<128x512xf32>
    %681 = arith.addf %677, %680 : vector<128x512xf32>
    %682 = vector.shape_cast %681 : vector<128x512xf32> to vector<8x16x512xf32>
    %c0_300 = arith.constant 0 : index
    %c0_301 = arith.constant 0 : index
    %c0_302 = arith.constant 0 : index
    %683 = vector.load %arg12[%c0_300, %c0_301, %c0_302] : memref<8x16x512xf32, #tpu.memory_space<vmem>>, vector<8x16x512xf32>
    tpu.vector_store %arg12[%c0_300, %c0_301, %c0_302], %682 {strides = array<i32>} : memref<8x16x512xf32, #tpu.memory_space<vmem>>, vector<8x16x512xf32>,
    %c2_303 = arith.constant 2 : index
    %c0_304 = arith.constant 0 : index
    %c0_305 = arith.constant 0 : index
    %684 = vector.load %arg4[%c2_303, %c0_304, %c0_305] : memref<4x128x512xbf16, #tpu.memory_space<vmem>>, vector<1x128x512xbf16>
    %685 = vector.shape_cast %684 : vector<1x128x512xbf16> to vector<128x512xbf16>
    %c2_306 = arith.constant 2 : index
    %c0_307 = arith.constant 0 : index
    %c0_308 = arith.constant 0 : index
    %686 = vector.load %arg6[%c2_306, %c0_307, %c0_308] : memref<4x16x128xf32, #tpu.memory_space<vmem>>, vector<1x16x128xf32>
    %687 = vector.shape_cast %686 : vector<1x16x128xf32> to vector<16x128xf32>
    %c2_309 = arith.constant 2 : index
    %c0_310 = arith.constant 0 : index
    %c0_311 = arith.constant 0 : index
    %688 = vector.load %arg7[%c2_309, %c0_310, %c0_311] : memref<4x16x128xf32, #tpu.memory_space<vmem>>, vector<1x16x128xf32>
    %689 = vector.shape_cast %688 : vector<1x16x128xf32> to vector<16x128xf32>
    %c0_312 = arith.constant 0 : index
    %c0_313 = arith.constant 0 : index
    %c0_314 = arith.constant 0 : index
    %690 = vector.load %arg12[%c0_312, %c0_313, %c0_314] : memref<8x16x512xf32, #tpu.memory_space<vmem>>, vector<1x16x512xf32>
    %691 = vector.shape_cast %690 : vector<1x16x512xf32> to vector<16x512xf32>
    %692 = arith.truncf %687 : vector<16x128xf32> to vector<16x128xbf16>
    %cst_315 = arith.constant dense<0.000000e+00> : vector<16x512xf32>
    %693 = tpu.matmul %692, %685, %cst_315 {dimension_numbers = #tpu.dot_dimension_numbers<[1], [0], [0], [1], [0, 0, 1, 1], [], []>} : vector<16x128xbf16>, vector<128x512xbf16>, vector<16x512xf32> -> vector<16x512xf32>
    %694 = arith.addf %691, %693 : vector<16x512xf32>
    %695 = vector.extract_strided_slice %694 {offsets = [0, 0], sizes = [16, 128], strides = [1, 1]} : vector<16x512xf32> to vector<16x128xf32>
    %cst_316 = arith.constant 5.000000e-01 : f32
    %696 = vector.broadcast %cst_316 : f32 to vector<16x128xf32>
    %697 = arith.mulf %696, %695 : vector<16x128xf32>
    %698 = math.tanh %697 : vector<16x128xf32>
    %cst_317 = arith.constant 5.000000e-01 : f32
    %699 = vector.broadcast %cst_317 : f32 to vector<16x128xf32>
    %700 = arith.mulf %699, %698 : vector<16x128xf32>
    %cst_318 = arith.constant 5.000000e-01 : f32
    %701 = vector.broadcast %cst_318 : f32 to vector<16x128xf32>
    %702 = arith.addf %700, %701 : vector<16x128xf32>
    %703 = vector.extract_strided_slice %694 {offsets = [0, 128], sizes = [16, 128], strides = [1, 1]} : vector<16x512xf32> to vector<16x128xf32>
    %cst_319 = arith.constant 5.000000e-01 : f32
    %704 = vector.broadcast %cst_319 : f32 to vector<16x128xf32>
    %705 = arith.mulf %704, %703 : vector<16x128xf32>
    %706 = math.tanh %705 : vector<16x128xf32>
    %cst_320 = arith.constant 5.000000e-01 : f32
    %707 = vector.broadcast %cst_320 : f32 to vector<16x128xf32>
    %708 = arith.mulf %707, %706 : vector<16x128xf32>
    %cst_321 = arith.constant 5.000000e-01 : f32
    %709 = vector.broadcast %cst_321 : f32 to vector<16x128xf32>
    %710 = arith.addf %708, %709 : vector<16x128xf32>
    %711 = vector.extract_strided_slice %694 {offsets = [0, 256], sizes = [16, 128], strides = [1, 1]} : vector<16x512xf32> to vector<16x128xf32>
    %712 = math.tanh %711 : vector<16x128xf32>
    %713 = vector.extract_strided_slice %694 {offsets = [0, 384], sizes = [16, 128], strides = [1, 1]} : vector<16x512xf32> to vector<16x128xf32>
    %cst_322 = arith.constant 5.000000e-01 : f32
    %714 = vector.broadcast %cst_322 : f32 to vector<16x128xf32>
    %715 = arith.mulf %714, %713 : vector<16x128xf32>
    %716 = math.tanh %715 : vector<16x128xf32>
    %cst_323 = arith.constant 5.000000e-01 : f32
    %717 = vector.broadcast %cst_323 : f32 to vector<16x128xf32>
    %718 = arith.mulf %717, %716 : vector<16x128xf32>
    %cst_324 = arith.constant 5.000000e-01 : f32
    %719 = vector.broadcast %cst_324 : f32 to vector<16x128xf32>
    %720 = arith.addf %718, %719 : vector<16x128xf32>
    %721 = arith.mulf %710, %689 : vector<16x128xf32>
    %722 = arith.mulf %702, %712 : vector<16x128xf32>
    %723 = arith.addf %721, %722 : vector<16x128xf32>
    %724 = math.tanh %723 : vector<16x128xf32>
    %725 = arith.mulf %720, %724 : vector<16x128xf32>
    %726 = arith.truncf %725 : vector<16x128xf32> to vector<16x128xbf16>
    %c0_325 = arith.constant 0 : index
    %c0_326 = arith.constant 0 : index
    %c0_327 = arith.constant 0 : index
    %727 = vector.load %arg11[%c0_325, %c0_326, %c0_327] : memref<8x16x128xbf16, #tpu.memory_space<vmem>>, vector<1x16x128xbf16>
    %728 = vector.shape_cast %727 : vector<1x16x128xbf16> to vector<16x128xbf16>
    %729 = vector.shape_cast %726 : vector<16x128xbf16> to vector<1x16x128xbf16>
    tpu.vector_store %arg11[%c0_325, %c0_326, %c0_327], %729 {strides = array<i32>} : memref<8x16x128xbf16, #tpu.memory_space<vmem>>, vector<1x16x128xbf16>,
    %c1_328 = arith.constant 1 : index
    %c0_329 = arith.constant 0 : index
    %c0_330 = arith.constant 0 : index
    %730 = vector.load %arg12[%c1_328, %c0_329, %c0_330] : memref<8x16x512xf32, #tpu.memory_space<vmem>>, vector<1x16x512xf32>
    %731 = vector.shape_cast %730 : vector<1x16x512xf32> to vector<16x512xf32>
    %732 = arith.truncf %725 : vector<16x128xf32> to vector<16x128xbf16>
    %cst_331 = arith.constant dense<0.000000e+00> : vector<16x512xf32>
    %733 = tpu.matmul %732, %685, %cst_331 {dimension_numbers = #tpu.dot_dimension_numbers<[1], [0], [0], [1], [0, 0, 1, 1], [], []>} : vector<16x128xbf16>, vector<128x512xbf16>, vector<16x512xf32> -> vector<16x512xf32>
    %734 = arith.addf %731, %733 : vector<16x512xf32>
    %735 = vector.extract_strided_slice %734 {offsets = [0, 0], sizes = [16, 128], strides = [1, 1]} : vector<16x512xf32> to vector<16x128xf32>
    %cst_332 = arith.constant 5.000000e-01 : f32
    %736 = vector.broadcast %cst_332 : f32 to vector<16x128xf32>
    %737 = arith.mulf %736, %735 : vector<16x128xf32>
    %738 = math.tanh %737 : vector<16x128xf32>
    %cst_333 = arith.constant 5.000000e-01 : f32
    %739 = vector.broadcast %cst_333 : f32 to vector<16x128xf32>
    %740 = arith.mulf %739, %738 : vector<16x128xf32>
    %cst_334 = arith.constant 5.000000e-01 : f32
    %741 = vector.broadcast %cst_334 : f32 to vector<16x128xf32>
    %742 = arith.addf %740, %741 : vector<16x128xf32>
    %743 = vector.extract_strided_slice %734 {offsets = [0, 128], sizes = [16, 128], strides = [1, 1]} : vector<16x512xf32> to vector<16x128xf32>
    %cst_335 = arith.constant 5.000000e-01 : f32
    %744 = vector.broadcast %cst_335 : f32 to vector<16x128xf32>
    %745 = arith.mulf %744, %743 : vector<16x128xf32>
    %746 = math.tanh %745 : vector<16x128xf32>
    %cst_336 = arith.constant 5.000000e-01 : f32
    %747 = vector.broadcast %cst_336 : f32 to vector<16x128xf32>
    %748 = arith.mulf %747, %746 : vector<16x128xf32>
    %cst_337 = arith.constant 5.000000e-01 : f32
    %749 = vector.broadcast %cst_337 : f32 to vector<16x128xf32>
    %750 = arith.addf %748, %749 : vector<16x128xf32>
    %751 = vector.extract_strided_slice %734 {offsets = [0, 256], sizes = [16, 128], strides = [1, 1]} : vector<16x512xf32> to vector<16x128xf32>
    %752 = math.tanh %751 : vector<16x128xf32>
    %753 = vector.extract_strided_slice %734 {offsets = [0, 384], sizes = [16, 128], strides = [1, 1]} : vector<16x512xf32> to vector<16x128xf32>
    %cst_338 = arith.constant 5.000000e-01 : f32
    %754 = vector.broadcast %cst_338 : f32 to vector<16x128xf32>
    %755 = arith.mulf %754, %753 : vector<16x128xf32>
    %756 = math.tanh %755 : vector<16x128xf32>
    %cst_339 = arith.constant 5.000000e-01 : f32
    %757 = vector.broadcast %cst_339 : f32 to vector<16x128xf32>
    %758 = arith.mulf %757, %756 : vector<16x128xf32>
    %cst_340 = arith.constant 5.000000e-01 : f32
    %759 = vector.broadcast %cst_340 : f32 to vector<16x128xf32>
    %760 = arith.addf %758, %759 : vector<16x128xf32>
    %761 = arith.mulf %750, %723 : vector<16x128xf32>
    %762 = arith.mulf %742, %752 : vector<16x128xf32>
    %763 = arith.addf %761, %762 : vector<16x128xf32>
    %764 = math.tanh %763 : vector<16x128xf32>
    %765 = arith.mulf %760, %764 : vector<16x128xf32>
    %766 = arith.truncf %765 : vector<16x128xf32> to vector<16x128xbf16>
    %c1_341 = arith.constant 1 : index
    %c0_342 = arith.constant 0 : index
    %c0_343 = arith.constant 0 : index
    %767 = vector.load %arg11[%c1_341, %c0_342, %c0_343] : memref<8x16x128xbf16, #tpu.memory_space<vmem>>, vector<1x16x128xbf16>
    %768 = vector.shape_cast %767 : vector<1x16x128xbf16> to vector<16x128xbf16>
    %769 = vector.shape_cast %766 : vector<16x128xbf16> to vector<1x16x128xbf16>
    tpu.vector_store %arg11[%c1_341, %c0_342, %c0_343], %769 {strides = array<i32>} : memref<8x16x128xbf16, #tpu.memory_space<vmem>>, vector<1x16x128xbf16>,
    %c2_344 = arith.constant 2 : index
    %c0_345 = arith.constant 0 : index
    %c0_346 = arith.constant 0 : index
    %770 = vector.load %arg12[%c2_344, %c0_345, %c0_346] : memref<8x16x512xf32, #tpu.memory_space<vmem>>, vector<1x16x512xf32>
    %771 = vector.shape_cast %770 : vector<1x16x512xf32> to vector<16x512xf32>
    %772 = arith.truncf %765 : vector<16x128xf32> to vector<16x128xbf16>
    %cst_347 = arith.constant dense<0.000000e+00> : vector<16x512xf32>
    %773 = tpu.matmul %772, %685, %cst_347 {dimension_numbers = #tpu.dot_dimension_numbers<[1], [0], [0], [1], [0, 0, 1, 1], [], []>} : vector<16x128xbf16>, vector<128x512xbf16>, vector<16x512xf32> -> vector<16x512xf32>
    %774 = arith.addf %771, %773 : vector<16x512xf32>
    %775 = vector.extract_strided_slice %774 {offsets = [0, 0], sizes = [16, 128], strides = [1, 1]} : vector<16x512xf32> to vector<16x128xf32>
    %cst_348 = arith.constant 5.000000e-01 : f32
    %776 = vector.broadcast %cst_348 : f32 to vector<16x128xf32>
    %777 = arith.mulf %776, %775 : vector<16x128xf32>
    %778 = math.tanh %777 : vector<16x128xf32>
    %cst_349 = arith.constant 5.000000e-01 : f32
    %779 = vector.broadcast %cst_349 : f32 to vector<16x128xf32>
    %780 = arith.mulf %779, %778 : vector<16x128xf32>
    %cst_350 = arith.constant 5.000000e-01 : f32
    %781 = vector.broadcast %cst_350 : f32 to vector<16x128xf32>
    %782 = arith.addf %780, %781 : vector<16x128xf32>
    %783 = vector.extract_strided_slice %774 {offsets = [0, 128], sizes = [16, 128], strides = [1, 1]} : vector<16x512xf32> to vector<16x128xf32>
    %cst_351 = arith.constant 5.000000e-01 : f32
    %784 = vector.broadcast %cst_351 : f32 to vector<16x128xf32>
    %785 = arith.mulf %784, %783 : vector<16x128xf32>
    %786 = math.tanh %785 : vector<16x128xf32>
    %cst_352 = arith.constant 5.000000e-01 : f32
    %787 = vector.broadcast %cst_352 : f32 to vector<16x128xf32>
    %788 = arith.mulf %787, %786 : vector<16x128xf32>
    %cst_353 = arith.constant 5.000000e-01 : f32
    %789 = vector.broadcast %cst_353 : f32 to vector<16x128xf32>
    %790 = arith.addf %788, %789 : vector<16x128xf32>
    %791 = vector.extract_strided_slice %774 {offsets = [0, 256], sizes = [16, 128], strides = [1, 1]} : vector<16x512xf32> to vector<16x128xf32>
    %792 = math.tanh %791 : vector<16x128xf32>
    %793 = vector.extract_strided_slice %774 {offsets = [0, 384], sizes = [16, 128], strides = [1, 1]} : vector<16x512xf32> to vector<16x128xf32>
    %cst_354 = arith.constant 5.000000e-01 : f32
    %794 = vector.broadcast %cst_354 : f32 to vector<16x128xf32>
    %795 = arith.mulf %794, %793 : vector<16x128xf32>
    %796 = math.tanh %795 : vector<16x128xf32>
    %cst_355 = arith.constant 5.000000e-01 : f32
    %797 = vector.broadcast %cst_355 : f32 to vector<16x128xf32>
    %798 = arith.mulf %797, %796 : vector<16x128xf32>
    %cst_356 = arith.constant 5.000000e-01 : f32
    %799 = vector.broadcast %cst_356 : f32 to vector<16x128xf32>
    %800 = arith.addf %798, %799 : vector<16x128xf32>
    %801 = arith.mulf %790, %763 : vector<16x128xf32>
    %802 = arith.mulf %782, %792 : vector<16x128xf32>
    %803 = arith.addf %801, %802 : vector<16x128xf32>
    %804 = math.tanh %803 : vector<16x128xf32>
    %805 = arith.mulf %800, %804 : vector<16x128xf32>
    %806 = arith.truncf %805 : vector<16x128xf32> to vector<16x128xbf16>
    %c2_357 = arith.constant 2 : index
    %c0_358 = arith.constant 0 : index
    %c0_359 = arith.constant 0 : index
    %807 = vector.load %arg11[%c2_357, %c0_358, %c0_359] : memref<8x16x128xbf16, #tpu.memory_space<vmem>>, vector<1x16x128xbf16>
    %808 = vector.shape_cast %807 : vector<1x16x128xbf16> to vector<16x128xbf16>
    %809 = vector.shape_cast %806 : vector<16x128xbf16> to vector<1x16x128xbf16>
    tpu.vector_store %arg11[%c2_357, %c0_358, %c0_359], %809 {strides = array<i32>} : memref<8x16x128xbf16, #tpu.memory_space<vmem>>, vector<1x16x128xbf16>,
    %c3_360 = arith.constant 3 : index
    %c0_361 = arith.constant 0 : index
    %c0_362 = arith.constant 0 : index
    %810 = vector.load %arg12[%c3_360, %c0_361, %c0_362] : memref<8x16x512xf32, #tpu.memory_space<vmem>>, vector<1x16x512xf32>
    %811 = vector.shape_cast %810 : vector<1x16x512xf32> to vector<16x512xf32>
    %812 = arith.truncf %805 : vector<16x128xf32> to vector<16x128xbf16>
    %cst_363 = arith.constant dense<0.000000e+00> : vector<16x512xf32>
    %813 = tpu.matmul %812, %685, %cst_363 {dimension_numbers = #tpu.dot_dimension_numbers<[1], [0], [0], [1], [0, 0, 1, 1], [], []>} : vector<16x128xbf16>, vector<128x512xbf16>, vector<16x512xf32> -> vector<16x512xf32>
    %814 = arith.addf %811, %813 : vector<16x512xf32>
    %815 = vector.extract_strided_slice %814 {offsets = [0, 0], sizes = [16, 128], strides = [1, 1]} : vector<16x512xf32> to vector<16x128xf32>
    %cst_364 = arith.constant 5.000000e-01 : f32
    %816 = vector.broadcast %cst_364 : f32 to vector<16x128xf32>
    %817 = arith.mulf %816, %815 : vector<16x128xf32>
    %818 = math.tanh %817 : vector<16x128xf32>
    %cst_365 = arith.constant 5.000000e-01 : f32
    %819 = vector.broadcast %cst_365 : f32 to vector<16x128xf32>
    %820 = arith.mulf %819, %818 : vector<16x128xf32>
    %cst_366 = arith.constant 5.000000e-01 : f32
    %821 = vector.broadcast %cst_366 : f32 to vector<16x128xf32>
    %822 = arith.addf %820, %821 : vector<16x128xf32>
    %823 = vector.extract_strided_slice %814 {offsets = [0, 128], sizes = [16, 128], strides = [1, 1]} : vector<16x512xf32> to vector<16x128xf32>
    %cst_367 = arith.constant 5.000000e-01 : f32
    %824 = vector.broadcast %cst_367 : f32 to vector<16x128xf32>
    %825 = arith.mulf %824, %823 : vector<16x128xf32>
    %826 = math.tanh %825 : vector<16x128xf32>
    %cst_368 = arith.constant 5.000000e-01 : f32
    %827 = vector.broadcast %cst_368 : f32 to vector<16x128xf32>
    %828 = arith.mulf %827, %826 : vector<16x128xf32>
    %cst_369 = arith.constant 5.000000e-01 : f32
    %829 = vector.broadcast %cst_369 : f32 to vector<16x128xf32>
    %830 = arith.addf %828, %829 : vector<16x128xf32>
    %831 = vector.extract_strided_slice %814 {offsets = [0, 256], sizes = [16, 128], strides = [1, 1]} : vector<16x512xf32> to vector<16x128xf32>
    %832 = math.tanh %831 : vector<16x128xf32>
    %833 = vector.extract_strided_slice %814 {offsets = [0, 384], sizes = [16, 128], strides = [1, 1]} : vector<16x512xf32> to vector<16x128xf32>
    %cst_370 = arith.constant 5.000000e-01 : f32
    %834 = vector.broadcast %cst_370 : f32 to vector<16x128xf32>
    %835 = arith.mulf %834, %833 : vector<16x128xf32>
    %836 = math.tanh %835 : vector<16x128xf32>
    %cst_371 = arith.constant 5.000000e-01 : f32
    %837 = vector.broadcast %cst_371 : f32 to vector<16x128xf32>
    %838 = arith.mulf %837, %836 : vector<16x128xf32>
    %cst_372 = arith.constant 5.000000e-01 : f32
    %839 = vector.broadcast %cst_372 : f32 to vector<16x128xf32>
    %840 = arith.addf %838, %839 : vector<16x128xf32>
    %841 = arith.mulf %830, %803 : vector<16x128xf32>
    %842 = arith.mulf %822, %832 : vector<16x128xf32>
    %843 = arith.addf %841, %842 : vector<16x128xf32>
    %844 = math.tanh %843 : vector<16x128xf32>
    %845 = arith.mulf %840, %844 : vector<16x128xf32>
    %846 = arith.truncf %845 : vector<16x128xf32> to vector<16x128xbf16>
    %c3_373 = arith.constant 3 : index
    %c0_374 = arith.constant 0 : index
    %c0_375 = arith.constant 0 : index
    %847 = vector.load %arg11[%c3_373, %c0_374, %c0_375] : memref<8x16x128xbf16, #tpu.memory_space<vmem>>, vector<1x16x128xbf16>
    %848 = vector.shape_cast %847 : vector<1x16x128xbf16> to vector<16x128xbf16>
    %849 = vector.shape_cast %846 : vector<16x128xbf16> to vector<1x16x128xbf16>
    tpu.vector_store %arg11[%c3_373, %c0_374, %c0_375], %849 {strides = array<i32>} : memref<8x16x128xbf16, #tpu.memory_space<vmem>>, vector<1x16x128xbf16>,
    %c4_376 = arith.constant 4 : index
    %c0_377 = arith.constant 0 : index
    %c0_378 = arith.constant 0 : index
    %850 = vector.load %arg12[%c4_376, %c0_377, %c0_378] : memref<8x16x512xf32, #tpu.memory_space<vmem>>, vector<1x16x512xf32>
    %851 = vector.shape_cast %850 : vector<1x16x512xf32> to vector<16x512xf32>
    %852 = arith.truncf %845 : vector<16x128xf32> to vector<16x128xbf16>
    %cst_379 = arith.constant dense<0.000000e+00> : vector<16x512xf32>
    %853 = tpu.matmul %852, %685, %cst_379 {dimension_numbers = #tpu.dot_dimension_numbers<[1], [0], [0], [1], [0, 0, 1, 1], [], []>} : vector<16x128xbf16>, vector<128x512xbf16>, vector<16x512xf32> -> vector<16x512xf32>
    %854 = arith.addf %851, %853 : vector<16x512xf32>
    %855 = vector.extract_strided_slice %854 {offsets = [0, 0], sizes = [16, 128], strides = [1, 1]} : vector<16x512xf32> to vector<16x128xf32>
    %cst_380 = arith.constant 5.000000e-01 : f32
    %856 = vector.broadcast %cst_380 : f32 to vector<16x128xf32>
    %857 = arith.mulf %856, %855 : vector<16x128xf32>
    %858 = math.tanh %857 : vector<16x128xf32>
    %cst_381 = arith.constant 5.000000e-01 : f32
    %859 = vector.broadcast %cst_381 : f32 to vector<16x128xf32>
    %860 = arith.mulf %859, %858 : vector<16x128xf32>
    %cst_382 = arith.constant 5.000000e-01 : f32
    %861 = vector.broadcast %cst_382 : f32 to vector<16x128xf32>
    %862 = arith.addf %860, %861 : vector<16x128xf32>
    %863 = vector.extract_strided_slice %854 {offsets = [0, 128], sizes = [16, 128], strides = [1, 1]} : vector<16x512xf32> to vector<16x128xf32>
    %cst_383 = arith.constant 5.000000e-01 : f32
    %864 = vector.broadcast %cst_383 : f32 to vector<16x128xf32>
    %865 = arith.mulf %864, %863 : vector<16x128xf32>
    %866 = math.tanh %865 : vector<16x128xf32>
    %cst_384 = arith.constant 5.000000e-01 : f32
    %867 = vector.broadcast %cst_384 : f32 to vector<16x128xf32>
    %868 = arith.mulf %867, %866 : vector<16x128xf32>
    %cst_385 = arith.constant 5.000000e-01 : f32
    %869 = vector.broadcast %cst_385 : f32 to vector<16x128xf32>
    %870 = arith.addf %868, %869 : vector<16x128xf32>
    %871 = vector.extract_strided_slice %854 {offsets = [0, 256], sizes = [16, 128], strides = [1, 1]} : vector<16x512xf32> to vector<16x128xf32>
    %872 = math.tanh %871 : vector<16x128xf32>
    %873 = vector.extract_strided_slice %854 {offsets = [0, 384], sizes = [16, 128], strides = [1, 1]} : vector<16x512xf32> to vector<16x128xf32>
    %cst_386 = arith.constant 5.000000e-01 : f32
    %874 = vector.broadcast %cst_386 : f32 to vector<16x128xf32>
    %875 = arith.mulf %874, %873 : vector<16x128xf32>
    %876 = math.tanh %875 : vector<16x128xf32>
    %cst_387 = arith.constant 5.000000e-01 : f32
    %877 = vector.broadcast %cst_387 : f32 to vector<16x128xf32>
    %878 = arith.mulf %877, %876 : vector<16x128xf32>
    %cst_388 = arith.constant 5.000000e-01 : f32
    %879 = vector.broadcast %cst_388 : f32 to vector<16x128xf32>
    %880 = arith.addf %878, %879 : vector<16x128xf32>
    %881 = arith.mulf %870, %843 : vector<16x128xf32>
    %882 = arith.mulf %862, %872 : vector<16x128xf32>
    %883 = arith.addf %881, %882 : vector<16x128xf32>
    %884 = math.tanh %883 : vector<16x128xf32>
    %885 = arith.mulf %880, %884 : vector<16x128xf32>
    %886 = arith.truncf %885 : vector<16x128xf32> to vector<16x128xbf16>
    %c4_389 = arith.constant 4 : index
    %c0_390 = arith.constant 0 : index
    %c0_391 = arith.constant 0 : index
    %887 = vector.load %arg11[%c4_389, %c0_390, %c0_391] : memref<8x16x128xbf16, #tpu.memory_space<vmem>>, vector<1x16x128xbf16>
    %888 = vector.shape_cast %887 : vector<1x16x128xbf16> to vector<16x128xbf16>
    %889 = vector.shape_cast %886 : vector<16x128xbf16> to vector<1x16x128xbf16>
    tpu.vector_store %arg11[%c4_389, %c0_390, %c0_391], %889 {strides = array<i32>} : memref<8x16x128xbf16, #tpu.memory_space<vmem>>, vector<1x16x128xbf16>,
    %c5_392 = arith.constant 5 : index
    %c0_393 = arith.constant 0 : index
    %c0_394 = arith.constant 0 : index
    %890 = vector.load %arg12[%c5_392, %c0_393, %c0_394] : memref<8x16x512xf32, #tpu.memory_space<vmem>>, vector<1x16x512xf32>
    %891 = vector.shape_cast %890 : vector<1x16x512xf32> to vector<16x512xf32>
    %892 = arith.truncf %885 : vector<16x128xf32> to vector<16x128xbf16>
    %cst_395 = arith.constant dense<0.000000e+00> : vector<16x512xf32>
    %893 = tpu.matmul %892, %685, %cst_395 {dimension_numbers = #tpu.dot_dimension_numbers<[1], [0], [0], [1], [0, 0, 1, 1], [], []>} : vector<16x128xbf16>, vector<128x512xbf16>, vector<16x512xf32> -> vector<16x512xf32>
    %894 = arith.addf %891, %893 : vector<16x512xf32>
    %895 = vector.extract_strided_slice %894 {offsets = [0, 0], sizes = [16, 128], strides = [1, 1]} : vector<16x512xf32> to vector<16x128xf32>
    %cst_396 = arith.constant 5.000000e-01 : f32
    %896 = vector.broadcast %cst_396 : f32 to vector<16x128xf32>
    %897 = arith.mulf %896, %895 : vector<16x128xf32>
    %898 = math.tanh %897 : vector<16x128xf32>
    %cst_397 = arith.constant 5.000000e-01 : f32
    %899 = vector.broadcast %cst_397 : f32 to vector<16x128xf32>
    %900 = arith.mulf %899, %898 : vector<16x128xf32>
    %cst_398 = arith.constant 5.000000e-01 : f32
    %901 = vector.broadcast %cst_398 : f32 to vector<16x128xf32>
    %902 = arith.addf %900, %901 : vector<16x128xf32>
    %903 = vector.extract_strided_slice %894 {offsets = [0, 128], sizes = [16, 128], strides = [1, 1]} : vector<16x512xf32> to vector<16x128xf32>
    %cst_399 = arith.constant 5.000000e-01 : f32
    %904 = vector.broadcast %cst_399 : f32 to vector<16x128xf32>
    %905 = arith.mulf %904, %903 : vector<16x128xf32>
    %906 = math.tanh %905 : vector<16x128xf32>
    %cst_400 = arith.constant 5.000000e-01 : f32
    %907 = vector.broadcast %cst_400 : f32 to vector<16x128xf32>
    %908 = arith.mulf %907, %906 : vector<16x128xf32>
    %cst_401 = arith.constant 5.000000e-01 : f32
    %909 = vector.broadcast %cst_401 : f32 to vector<16x128xf32>
    %910 = arith.addf %908, %909 : vector<16x128xf32>
    %911 = vector.extract_strided_slice %894 {offsets = [0, 256], sizes = [16, 128], strides = [1, 1]} : vector<16x512xf32> to vector<16x128xf32>
    %912 = math.tanh %911 : vector<16x128xf32>
    %913 = vector.extract_strided_slice %894 {offsets = [0, 384], sizes = [16, 128], strides = [1, 1]} : vector<16x512xf32> to vector<16x128xf32>
    %cst_402 = arith.constant 5.000000e-01 : f32
    %914 = vector.broadcast %cst_402 : f32 to vector<16x128xf32>
    %915 = arith.mulf %914, %913 : vector<16x128xf32>
    %916 = math.tanh %915 : vector<16x128xf32>
    %cst_403 = arith.constant 5.000000e-01 : f32
    %917 = vector.broadcast %cst_403 : f32 to vector<16x128xf32>
    %918 = arith.mulf %917, %916 : vector<16x128xf32>
    %cst_404 = arith.constant 5.000000e-01 : f32
    %919 = vector.broadcast %cst_404 : f32 to vector<16x128xf32>
    %920 = arith.addf %918, %919 : vector<16x128xf32>
    %921 = arith.mulf %910, %883 : vector<16x128xf32>
    %922 = arith.mulf %902, %912 : vector<16x128xf32>
    %923 = arith.addf %921, %922 : vector<16x128xf32>
    %924 = math.tanh %923 : vector<16x128xf32>
    %925 = arith.mulf %920, %924 : vector<16x128xf32>
    %926 = arith.truncf %925 : vector<16x128xf32> to vector<16x128xbf16>
    %c5_405 = arith.constant 5 : index
    %c0_406 = arith.constant 0 : index
    %c0_407 = arith.constant 0 : index
    %927 = vector.load %arg11[%c5_405, %c0_406, %c0_407] : memref<8x16x128xbf16, #tpu.memory_space<vmem>>, vector<1x16x128xbf16>
    %928 = vector.shape_cast %927 : vector<1x16x128xbf16> to vector<16x128xbf16>
    %929 = vector.shape_cast %926 : vector<16x128xbf16> to vector<1x16x128xbf16>
    tpu.vector_store %arg11[%c5_405, %c0_406, %c0_407], %929 {strides = array<i32>} : memref<8x16x128xbf16, #tpu.memory_space<vmem>>, vector<1x16x128xbf16>,
    %c6_408 = arith.constant 6 : index
    %c0_409 = arith.constant 0 : index
    %c0_410 = arith.constant 0 : index
    %930 = vector.load %arg12[%c6_408, %c0_409, %c0_410] : memref<8x16x512xf32, #tpu.memory_space<vmem>>, vector<1x16x512xf32>
    %931 = vector.shape_cast %930 : vector<1x16x512xf32> to vector<16x512xf32>
    %932 = arith.truncf %925 : vector<16x128xf32> to vector<16x128xbf16>
    %cst_411 = arith.constant dense<0.000000e+00> : vector<16x512xf32>
    %933 = tpu.matmul %932, %685, %cst_411 {dimension_numbers = #tpu.dot_dimension_numbers<[1], [0], [0], [1], [0, 0, 1, 1], [], []>} : vector<16x128xbf16>, vector<128x512xbf16>, vector<16x512xf32> -> vector<16x512xf32>
    %934 = arith.addf %931, %933 : vector<16x512xf32>
    %935 = vector.extract_strided_slice %934 {offsets = [0, 0], sizes = [16, 128], strides = [1, 1]} : vector<16x512xf32> to vector<16x128xf32>
    %cst_412 = arith.constant 5.000000e-01 : f32
    %936 = vector.broadcast %cst_412 : f32 to vector<16x128xf32>
    %937 = arith.mulf %936, %935 : vector<16x128xf32>
    %938 = math.tanh %937 : vector<16x128xf32>
    %cst_413 = arith.constant 5.000000e-01 : f32
    %939 = vector.broadcast %cst_413 : f32 to vector<16x128xf32>
    %940 = arith.mulf %939, %938 : vector<16x128xf32>
    %cst_414 = arith.constant 5.000000e-01 : f32
    %941 = vector.broadcast %cst_414 : f32 to vector<16x128xf32>
    %942 = arith.addf %940, %941 : vector<16x128xf32>
    %943 = vector.extract_strided_slice %934 {offsets = [0, 128], sizes = [16, 128], strides = [1, 1]} : vector<16x512xf32> to vector<16x128xf32>
    %cst_415 = arith.constant 5.000000e-01 : f32
    %944 = vector.broadcast %cst_415 : f32 to vector<16x128xf32>
    %945 = arith.mulf %944, %943 : vector<16x128xf32>
    %946 = math.tanh %945 : vector<16x128xf32>
    %cst_416 = arith.constant 5.000000e-01 : f32
    %947 = vector.broadcast %cst_416 : f32 to vector<16x128xf32>
    %948 = arith.mulf %947, %946 : vector<16x128xf32>
    %cst_417 = arith.constant 5.000000e-01 : f32
    %949 = vector.broadcast %cst_417 : f32 to vector<16x128xf32>
    %950 = arith.addf %948, %949 : vector<16x128xf32>
    %951 = vector.extract_strided_slice %934 {offsets = [0, 256], sizes = [16, 128], strides = [1, 1]} : vector<16x512xf32> to vector<16x128xf32>
    %952 = math.tanh %951 : vector<16x128xf32>
    %953 = vector.extract_strided_slice %934 {offsets = [0, 384], sizes = [16, 128], strides = [1, 1]} : vector<16x512xf32> to vector<16x128xf32>
    %cst_418 = arith.constant 5.000000e-01 : f32
    %954 = vector.broadcast %cst_418 : f32 to vector<16x128xf32>
    %955 = arith.mulf %954, %953 : vector<16x128xf32>
    %956 = math.tanh %955 : vector<16x128xf32>
    %cst_419 = arith.constant 5.000000e-01 : f32
    %957 = vector.broadcast %cst_419 : f32 to vector<16x128xf32>
    %958 = arith.mulf %957, %956 : vector<16x128xf32>
    %cst_420 = arith.constant 5.000000e-01 : f32
    %959 = vector.broadcast %cst_420 : f32 to vector<16x128xf32>
    %960 = arith.addf %958, %959 : vector<16x128xf32>
    %961 = arith.mulf %950, %923 : vector<16x128xf32>
    %962 = arith.mulf %942, %952 : vector<16x128xf32>
    %963 = arith.addf %961, %962 : vector<16x128xf32>
    %964 = math.tanh %963 : vector<16x128xf32>
    %965 = arith.mulf %960, %964 : vector<16x128xf32>
    %966 = arith.truncf %965 : vector<16x128xf32> to vector<16x128xbf16>
    %c6_421 = arith.constant 6 : index
    %c0_422 = arith.constant 0 : index
    %c0_423 = arith.constant 0 : index
    %967 = vector.load %arg11[%c6_421, %c0_422, %c0_423] : memref<8x16x128xbf16, #tpu.memory_space<vmem>>, vector<1x16x128xbf16>
    %968 = vector.shape_cast %967 : vector<1x16x128xbf16> to vector<16x128xbf16>
    %969 = vector.shape_cast %966 : vector<16x128xbf16> to vector<1x16x128xbf16>
    tpu.vector_store %arg11[%c6_421, %c0_422, %c0_423], %969 {strides = array<i32>} : memref<8x16x128xbf16, #tpu.memory_space<vmem>>, vector<1x16x128xbf16>,
    %c7_424 = arith.constant 7 : index
    %c0_425 = arith.constant 0 : index
    %c0_426 = arith.constant 0 : index
    %970 = vector.load %arg12[%c7_424, %c0_425, %c0_426] : memref<8x16x512xf32, #tpu.memory_space<vmem>>, vector<1x16x512xf32>
    %971 = vector.shape_cast %970 : vector<1x16x512xf32> to vector<16x512xf32>
    %972 = arith.truncf %965 : vector<16x128xf32> to vector<16x128xbf16>
    %cst_427 = arith.constant dense<0.000000e+00> : vector<16x512xf32>
    %973 = tpu.matmul %972, %685, %cst_427 {dimension_numbers = #tpu.dot_dimension_numbers<[1], [0], [0], [1], [0, 0, 1, 1], [], []>} : vector<16x128xbf16>, vector<128x512xbf16>, vector<16x512xf32> -> vector<16x512xf32>
    %974 = arith.addf %971, %973 : vector<16x512xf32>
    %975 = vector.extract_strided_slice %974 {offsets = [0, 0], sizes = [16, 128], strides = [1, 1]} : vector<16x512xf32> to vector<16x128xf32>
    %cst_428 = arith.constant 5.000000e-01 : f32
    %976 = vector.broadcast %cst_428 : f32 to vector<16x128xf32>
    %977 = arith.mulf %976, %975 : vector<16x128xf32>
    %978 = math.tanh %977 : vector<16x128xf32>
    %cst_429 = arith.constant 5.000000e-01 : f32
    %979 = vector.broadcast %cst_429 : f32 to vector<16x128xf32>
    %980 = arith.mulf %979, %978 : vector<16x128xf32>
    %cst_430 = arith.constant 5.000000e-01 : f32
    %981 = vector.broadcast %cst_430 : f32 to vector<16x128xf32>
    %982 = arith.addf %980, %981 : vector<16x128xf32>
    %983 = vector.extract_strided_slice %974 {offsets = [0, 128], sizes = [16, 128], strides = [1, 1]} : vector<16x512xf32> to vector<16x128xf32>
    %cst_431 = arith.constant 5.000000e-01 : f32
    %984 = vector.broadcast %cst_431 : f32 to vector<16x128xf32>
    %985 = arith.mulf %984, %983 : vector<16x128xf32>
    %986 = math.tanh %985 : vector<16x128xf32>
    %cst_432 = arith.constant 5.000000e-01 : f32
    %987 = vector.broadcast %cst_432 : f32 to vector<16x128xf32>
    %988 = arith.mulf %987, %986 : vector<16x128xf32>
    %cst_433 = arith.constant 5.000000e-01 : f32
    %989 = vector.broadcast %cst_433 : f32 to vector<16x128xf32>
    %990 = arith.addf %988, %989 : vector<16x128xf32>
    %991 = vector.extract_strided_slice %974 {offsets = [0, 256], sizes = [16, 128], strides = [1, 1]} : vector<16x512xf32> to vector<16x128xf32>
    %992 = math.tanh %991 : vector<16x128xf32>
    %993 = vector.extract_strided_slice %974 {offsets = [0, 384], sizes = [16, 128], strides = [1, 1]} : vector<16x512xf32> to vector<16x128xf32>
    %cst_434 = arith.constant 5.000000e-01 : f32
    %994 = vector.broadcast %cst_434 : f32 to vector<16x128xf32>
    %995 = arith.mulf %994, %993 : vector<16x128xf32>
    %996 = math.tanh %995 : vector<16x128xf32>
    %cst_435 = arith.constant 5.000000e-01 : f32
    %997 = vector.broadcast %cst_435 : f32 to vector<16x128xf32>
    %998 = arith.mulf %997, %996 : vector<16x128xf32>
    %cst_436 = arith.constant 5.000000e-01 : f32
    %999 = vector.broadcast %cst_436 : f32 to vector<16x128xf32>
    %1000 = arith.addf %998, %999 : vector<16x128xf32>
    %1001 = arith.mulf %990, %963 : vector<16x128xf32>
    %1002 = arith.mulf %982, %992 : vector<16x128xf32>
    %1003 = arith.addf %1001, %1002 : vector<16x128xf32>
    %1004 = math.tanh %1003 : vector<16x128xf32>
    %1005 = arith.mulf %1000, %1004 : vector<16x128xf32>
    %1006 = arith.truncf %1005 : vector<16x128xf32> to vector<16x128xbf16>
    %c7_437 = arith.constant 7 : index
    %c0_438 = arith.constant 0 : index
    %c0_439 = arith.constant 0 : index
    %1007 = vector.load %arg11[%c7_437, %c0_438, %c0_439] : memref<8x16x128xbf16, #tpu.memory_space<vmem>>, vector<1x16x128xbf16>
    %1008 = vector.shape_cast %1007 : vector<1x16x128xbf16> to vector<16x128xbf16>
    %1009 = vector.shape_cast %1006 : vector<16x128xbf16> to vector<1x16x128xbf16>
    tpu.vector_store %arg11[%c7_437, %c0_438, %c0_439], %1009 {strides = array<i32>} : memref<8x16x128xbf16, #tpu.memory_space<vmem>>, vector<1x16x128xbf16>,
    %c0_440 = arith.constant 0 : index
    %c0_441 = arith.constant 0 : index
    %c0_442 = arith.constant 0 : index
    %1010 = vector.load %arg11[%c0_440, %c0_441, %c0_442] : memref<8x16x128xbf16, #tpu.memory_space<vmem>>, vector<8x16x128xbf16>
    %1011 = vector.shape_cast %1010 : vector<8x16x128xbf16> to vector<128x128xbf16>
    %c2_443 = arith.constant 2 : index
    %c0_444 = arith.constant 0 : index
    %c0_445 = arith.constant 0 : index
    %1012 = vector.load %arg3[%c2_443, %c0_444, %c0_445] : memref<3x128x512xbf16, #tpu.memory_space<vmem>>, vector<1x128x512xbf16>
    %1013 = vector.shape_cast %1012 : vector<1x128x512xbf16> to vector<128x512xbf16>
    %cst_446 = arith.constant dense<0.000000e+00> : vector<128x512xf32>
    %1014 = tpu.matmul %1011, %1013, %cst_446 {dimension_numbers = #tpu.dot_dimension_numbers<[1], [0], [0], [1], [0, 0, 1, 1], [], []>} : vector<128x128xbf16>, vector<128x512xbf16>, vector<128x512xf32> -> vector<128x512xf32>
    %c3_447 = arith.constant 3 : index
    %c0_448 = arith.constant 0 : index
    %c0_449 = arith.constant 0 : index
    %1015 = vector.load %arg5[%c3_447, %c0_448, %c0_449] : memref<4x1x512xf32, #tpu.memory_space<vmem>>, vector<1x1x512xf32>
    %1016 = vector.shape_cast %1015 : vector<1x1x512xf32> to vector<1x512xf32>
    %1017 = vector.broadcast %1016 : vector<1x512xf32> to vector<128x512xf32>
    %1018 = arith.addf %1014, %1017 : vector<128x512xf32>
    %1019 = vector.shape_cast %1018 : vector<128x512xf32> to vector<8x16x512xf32>
    %c0_450 = arith.constant 0 : index
    %c0_451 = arith.constant 0 : index
    %c0_452 = arith.constant 0 : index
    %1020 = vector.load %arg12[%c0_450, %c0_451, %c0_452] : memref<8x16x512xf32, #tpu.memory_space<vmem>>, vector<8x16x512xf32>
    tpu.vector_store %arg12[%c0_450, %c0_451, %c0_452], %1019 {strides = array<i32>} : memref<8x16x512xf32, #tpu.memory_space<vmem>>, vector<8x16x512xf32>,
    %c3_453 = arith.constant 3 : index
    %c0_454 = arith.constant 0 : index
    %c0_455 = arith.constant 0 : index
    %1021 = vector.load %arg4[%c3_453, %c0_454, %c0_455] : memref<4x128x512xbf16, #tpu.memory_space<vmem>>, vector<1x128x512xbf16>
    %1022 = vector.shape_cast %1021 : vector<1x128x512xbf16> to vector<128x512xbf16>
    %c3_456 = arith.constant 3 : index
    %c0_457 = arith.constant 0 : index
    %c0_458 = arith.constant 0 : index
    %1023 = vector.load %arg6[%c3_456, %c0_457, %c0_458] : memref<4x16x128xf32, #tpu.memory_space<vmem>>, vector<1x16x128xf32>
    %1024 = vector.shape_cast %1023 : vector<1x16x128xf32> to vector<16x128xf32>
    %c3_459 = arith.constant 3 : index
    %c0_460 = arith.constant 0 : index
    %c0_461 = arith.constant 0 : index
    %1025 = vector.load %arg7[%c3_459, %c0_460, %c0_461] : memref<4x16x128xf32, #tpu.memory_space<vmem>>, vector<1x16x128xf32>
    %1026 = vector.shape_cast %1025 : vector<1x16x128xf32> to vector<16x128xf32>
    %c0_462 = arith.constant 0 : index
    %c0_463 = arith.constant 0 : index
    %c0_464 = arith.constant 0 : index
    %1027 = vector.load %arg12[%c0_462, %c0_463, %c0_464] : memref<8x16x512xf32, #tpu.memory_space<vmem>>, vector<1x16x512xf32>
    %1028 = vector.shape_cast %1027 : vector<1x16x512xf32> to vector<16x512xf32>
    %1029 = arith.truncf %1024 : vector<16x128xf32> to vector<16x128xbf16>
    %cst_465 = arith.constant dense<0.000000e+00> : vector<16x512xf32>
    %1030 = tpu.matmul %1029, %1022, %cst_465 {dimension_numbers = #tpu.dot_dimension_numbers<[1], [0], [0], [1], [0, 0, 1, 1], [], []>} : vector<16x128xbf16>, vector<128x512xbf16>, vector<16x512xf32> -> vector<16x512xf32>
    %1031 = arith.addf %1028, %1030 : vector<16x512xf32>
    %1032 = vector.extract_strided_slice %1031 {offsets = [0, 0], sizes = [16, 128], strides = [1, 1]} : vector<16x512xf32> to vector<16x128xf32>
    %cst_466 = arith.constant 5.000000e-01 : f32
    %1033 = vector.broadcast %cst_466 : f32 to vector<16x128xf32>
    %1034 = arith.mulf %1033, %1032 : vector<16x128xf32>
    %1035 = math.tanh %1034 : vector<16x128xf32>
    %cst_467 = arith.constant 5.000000e-01 : f32
    %1036 = vector.broadcast %cst_467 : f32 to vector<16x128xf32>
    %1037 = arith.mulf %1036, %1035 : vector<16x128xf32>
    %cst_468 = arith.constant 5.000000e-01 : f32
    %1038 = vector.broadcast %cst_468 : f32 to vector<16x128xf32>
    %1039 = arith.addf %1037, %1038 : vector<16x128xf32>
    %1040 = vector.extract_strided_slice %1031 {offsets = [0, 128], sizes = [16, 128], strides = [1, 1]} : vector<16x512xf32> to vector<16x128xf32>
    %cst_469 = arith.constant 5.000000e-01 : f32
    %1041 = vector.broadcast %cst_469 : f32 to vector<16x128xf32>
    %1042 = arith.mulf %1041, %1040 : vector<16x128xf32>
    %1043 = math.tanh %1042 : vector<16x128xf32>
    %cst_470 = arith.constant 5.000000e-01 : f32
    %1044 = vector.broadcast %cst_470 : f32 to vector<16x128xf32>
    %1045 = arith.mulf %1044, %1043 : vector<16x128xf32>
    %cst_471 = arith.constant 5.000000e-01 : f32
    %1046 = vector.broadcast %cst_471 : f32 to vector<16x128xf32>
    %1047 = arith.addf %1045, %1046 : vector<16x128xf32>
    %1048 = vector.extract_strided_slice %1031 {offsets = [0, 256], sizes = [16, 128], strides = [1, 1]} : vector<16x512xf32> to vector<16x128xf32>
    %1049 = math.tanh %1048 : vector<16x128xf32>
    %1050 = vector.extract_strided_slice %1031 {offsets = [0, 384], sizes = [16, 128], strides = [1, 1]} : vector<16x512xf32> to vector<16x128xf32>
    %cst_472 = arith.constant 5.000000e-01 : f32
    %1051 = vector.broadcast %cst_472 : f32 to vector<16x128xf32>
    %1052 = arith.mulf %1051, %1050 : vector<16x128xf32>
    %1053 = math.tanh %1052 : vector<16x128xf32>
    %cst_473 = arith.constant 5.000000e-01 : f32
    %1054 = vector.broadcast %cst_473 : f32 to vector<16x128xf32>
    %1055 = arith.mulf %1054, %1053 : vector<16x128xf32>
    %cst_474 = arith.constant 5.000000e-01 : f32
    %1056 = vector.broadcast %cst_474 : f32 to vector<16x128xf32>
    %1057 = arith.addf %1055, %1056 : vector<16x128xf32>
    %1058 = arith.mulf %1047, %1026 : vector<16x128xf32>
    %1059 = arith.mulf %1039, %1049 : vector<16x128xf32>
    %1060 = arith.addf %1058, %1059 : vector<16x128xf32>
    %1061 = math.tanh %1060 : vector<16x128xf32>
    %1062 = arith.mulf %1057, %1061 : vector<16x128xf32>
    %c1_475 = arith.constant 1 : index
    %c0_476 = arith.constant 0 : index
    %c0_477 = arith.constant 0 : index
    %1063 = vector.load %arg12[%c1_475, %c0_476, %c0_477] : memref<8x16x512xf32, #tpu.memory_space<vmem>>, vector<1x16x512xf32>
    %1064 = vector.shape_cast %1063 : vector<1x16x512xf32> to vector<16x512xf32>
    %1065 = arith.truncf %1062 : vector<16x128xf32> to vector<16x128xbf16>
    %cst_478 = arith.constant dense<0.000000e+00> : vector<16x512xf32>
    %1066 = tpu.matmul %1065, %1022, %cst_478 {dimension_numbers = #tpu.dot_dimension_numbers<[1], [0], [0], [1], [0, 0, 1, 1], [], []>} : vector<16x128xbf16>, vector<128x512xbf16>, vector<16x512xf32> -> vector<16x512xf32>
    %1067 = arith.addf %1064, %1066 : vector<16x512xf32>
    %1068 = vector.extract_strided_slice %1067 {offsets = [0, 0], sizes = [16, 128], strides = [1, 1]} : vector<16x512xf32> to vector<16x128xf32>
    %cst_479 = arith.constant 5.000000e-01 : f32
    %1069 = vector.broadcast %cst_479 : f32 to vector<16x128xf32>
    %1070 = arith.mulf %1069, %1068 : vector<16x128xf32>
    %1071 = math.tanh %1070 : vector<16x128xf32>
    %cst_480 = arith.constant 5.000000e-01 : f32
    %1072 = vector.broadcast %cst_480 : f32 to vector<16x128xf32>
    %1073 = arith.mulf %1072, %1071 : vector<16x128xf32>
    %cst_481 = arith.constant 5.000000e-01 : f32
    %1074 = vector.broadcast %cst_481 : f32 to vector<16x128xf32>
    %1075 = arith.addf %1073, %1074 : vector<16x128xf32>
    %1076 = vector.extract_strided_slice %1067 {offsets = [0, 128], sizes = [16, 128], strides = [1, 1]} : vector<16x512xf32> to vector<16x128xf32>
    %cst_482 = arith.constant 5.000000e-01 : f32
    %1077 = vector.broadcast %cst_482 : f32 to vector<16x128xf32>
    %1078 = arith.mulf %1077, %1076 : vector<16x128xf32>
    %1079 = math.tanh %1078 : vector<16x128xf32>
    %cst_483 = arith.constant 5.000000e-01 : f32
    %1080 = vector.broadcast %cst_483 : f32 to vector<16x128xf32>
    %1081 = arith.mulf %1080, %1079 : vector<16x128xf32>
    %cst_484 = arith.constant 5.000000e-01 : f32
    %1082 = vector.broadcast %cst_484 : f32 to vector<16x128xf32>
    %1083 = arith.addf %1081, %1082 : vector<16x128xf32>
    %1084 = vector.extract_strided_slice %1067 {offsets = [0, 256], sizes = [16, 128], strides = [1, 1]} : vector<16x512xf32> to vector<16x128xf32>
    %1085 = math.tanh %1084 : vector<16x128xf32>
    %1086 = vector.extract_strided_slice %1067 {offsets = [0, 384], sizes = [16, 128], strides = [1, 1]} : vector<16x512xf32> to vector<16x128xf32>
    %cst_485 = arith.constant 5.000000e-01 : f32
    %1087 = vector.broadcast %cst_485 : f32 to vector<16x128xf32>
    %1088 = arith.mulf %1087, %1086 : vector<16x128xf32>
    %1089 = math.tanh %1088 : vector<16x128xf32>
    %cst_486 = arith.constant 5.000000e-01 : f32
    %1090 = vector.broadcast %cst_486 : f32 to vector<16x128xf32>
    %1091 = arith.mulf %1090, %1089 : vector<16x128xf32>
    %cst_487 = arith.constant 5.000000e-01 : f32
    %1092 = vector.broadcast %cst_487 : f32 to vector<16x128xf32>
    %1093 = arith.addf %1091, %1092 : vector<16x128xf32>
    %1094 = arith.mulf %1083, %1060 : vector<16x128xf32>
    %1095 = arith.mulf %1075, %1085 : vector<16x128xf32>
    %1096 = arith.addf %1094, %1095 : vector<16x128xf32>
    %1097 = math.tanh %1096 : vector<16x128xf32>
    %1098 = arith.mulf %1093, %1097 : vector<16x128xf32>
    %c2_488 = arith.constant 2 : index
    %c0_489 = arith.constant 0 : index
    %c0_490 = arith.constant 0 : index
    %1099 = vector.load %arg12[%c2_488, %c0_489, %c0_490] : memref<8x16x512xf32, #tpu.memory_space<vmem>>, vector<1x16x512xf32>
    %1100 = vector.shape_cast %1099 : vector<1x16x512xf32> to vector<16x512xf32>
    %1101 = arith.truncf %1098 : vector<16x128xf32> to vector<16x128xbf16>
    %cst_491 = arith.constant dense<0.000000e+00> : vector<16x512xf32>
    %1102 = tpu.matmul %1101, %1022, %cst_491 {dimension_numbers = #tpu.dot_dimension_numbers<[1], [0], [0], [1], [0, 0, 1, 1], [], []>} : vector<16x128xbf16>, vector<128x512xbf16>, vector<16x512xf32> -> vector<16x512xf32>
    %1103 = arith.addf %1100, %1102 : vector<16x512xf32>
    %1104 = vector.extract_strided_slice %1103 {offsets = [0, 0], sizes = [16, 128], strides = [1, 1]} : vector<16x512xf32> to vector<16x128xf32>
    %cst_492 = arith.constant 5.000000e-01 : f32
    %1105 = vector.broadcast %cst_492 : f32 to vector<16x128xf32>
    %1106 = arith.mulf %1105, %1104 : vector<16x128xf32>
    %1107 = math.tanh %1106 : vector<16x128xf32>
    %cst_493 = arith.constant 5.000000e-01 : f32
    %1108 = vector.broadcast %cst_493 : f32 to vector<16x128xf32>
    %1109 = arith.mulf %1108, %1107 : vector<16x128xf32>
    %cst_494 = arith.constant 5.000000e-01 : f32
    %1110 = vector.broadcast %cst_494 : f32 to vector<16x128xf32>
    %1111 = arith.addf %1109, %1110 : vector<16x128xf32>
    %1112 = vector.extract_strided_slice %1103 {offsets = [0, 128], sizes = [16, 128], strides = [1, 1]} : vector<16x512xf32> to vector<16x128xf32>
    %cst_495 = arith.constant 5.000000e-01 : f32
    %1113 = vector.broadcast %cst_495 : f32 to vector<16x128xf32>
    %1114 = arith.mulf %1113, %1112 : vector<16x128xf32>
    %1115 = math.tanh %1114 : vector<16x128xf32>
    %cst_496 = arith.constant 5.000000e-01 : f32
    %1116 = vector.broadcast %cst_496 : f32 to vector<16x128xf32>
    %1117 = arith.mulf %1116, %1115 : vector<16x128xf32>
    %cst_497 = arith.constant 5.000000e-01 : f32
    %1118 = vector.broadcast %cst_497 : f32 to vector<16x128xf32>
    %1119 = arith.addf %1117, %1118 : vector<16x128xf32>
    %1120 = vector.extract_strided_slice %1103 {offsets = [0, 256], sizes = [16, 128], strides = [1, 1]} : vector<16x512xf32> to vector<16x128xf32>
    %1121 = math.tanh %1120 : vector<16x128xf32>
    %1122 = vector.extract_strided_slice %1103 {offsets = [0, 384], sizes = [16, 128], strides = [1, 1]} : vector<16x512xf32> to vector<16x128xf32>
    %cst_498 = arith.constant 5.000000e-01 : f32
    %1123 = vector.broadcast %cst_498 : f32 to vector<16x128xf32>
    %1124 = arith.mulf %1123, %1122 : vector<16x128xf32>
    %1125 = math.tanh %1124 : vector<16x128xf32>
    %cst_499 = arith.constant 5.000000e-01 : f32
    %1126 = vector.broadcast %cst_499 : f32 to vector<16x128xf32>
    %1127 = arith.mulf %1126, %1125 : vector<16x128xf32>
    %cst_500 = arith.constant 5.000000e-01 : f32
    %1128 = vector.broadcast %cst_500 : f32 to vector<16x128xf32>
    %1129 = arith.addf %1127, %1128 : vector<16x128xf32>
    %1130 = arith.mulf %1119, %1096 : vector<16x128xf32>
    %1131 = arith.mulf %1111, %1121 : vector<16x128xf32>
    %1132 = arith.addf %1130, %1131 : vector<16x128xf32>
    %1133 = math.tanh %1132 : vector<16x128xf32>
    %1134 = arith.mulf %1129, %1133 : vector<16x128xf32>
    %c3_501 = arith.constant 3 : index
    %c0_502 = arith.constant 0 : index
    %c0_503 = arith.constant 0 : index
    %1135 = vector.load %arg12[%c3_501, %c0_502, %c0_503] : memref<8x16x512xf32, #tpu.memory_space<vmem>>, vector<1x16x512xf32>
    %1136 = vector.shape_cast %1135 : vector<1x16x512xf32> to vector<16x512xf32>
    %1137 = arith.truncf %1134 : vector<16x128xf32> to vector<16x128xbf16>
    %cst_504 = arith.constant dense<0.000000e+00> : vector<16x512xf32>
    %1138 = tpu.matmul %1137, %1022, %cst_504 {dimension_numbers = #tpu.dot_dimension_numbers<[1], [0], [0], [1], [0, 0, 1, 1], [], []>} : vector<16x128xbf16>, vector<128x512xbf16>, vector<16x512xf32> -> vector<16x512xf32>
    %1139 = arith.addf %1136, %1138 : vector<16x512xf32>
    %1140 = vector.extract_strided_slice %1139 {offsets = [0, 0], sizes = [16, 128], strides = [1, 1]} : vector<16x512xf32> to vector<16x128xf32>
    %cst_505 = arith.constant 5.000000e-01 : f32
    %1141 = vector.broadcast %cst_505 : f32 to vector<16x128xf32>
    %1142 = arith.mulf %1141, %1140 : vector<16x128xf32>
    %1143 = math.tanh %1142 : vector<16x128xf32>
    %cst_506 = arith.constant 5.000000e-01 : f32
    %1144 = vector.broadcast %cst_506 : f32 to vector<16x128xf32>
    %1145 = arith.mulf %1144, %1143 : vector<16x128xf32>
    %cst_507 = arith.constant 5.000000e-01 : f32
    %1146 = vector.broadcast %cst_507 : f32 to vector<16x128xf32>
    %1147 = arith.addf %1145, %1146 : vector<16x128xf32>
    %1148 = vector.extract_strided_slice %1139 {offsets = [0, 128], sizes = [16, 128], strides = [1, 1]} : vector<16x512xf32> to vector<16x128xf32>
    %cst_508 = arith.constant 5.000000e-01 : f32
    %1149 = vector.broadcast %cst_508 : f32 to vector<16x128xf32>
    %1150 = arith.mulf %1149, %1148 : vector<16x128xf32>
    %1151 = math.tanh %1150 : vector<16x128xf32>
    %cst_509 = arith.constant 5.000000e-01 : f32
    %1152 = vector.broadcast %cst_509 : f32 to vector<16x128xf32>
    %1153 = arith.mulf %1152, %1151 : vector<16x128xf32>
    %cst_510 = arith.constant 5.000000e-01 : f32
    %1154 = vector.broadcast %cst_510 : f32 to vector<16x128xf32>
    %1155 = arith.addf %1153, %1154 : vector<16x128xf32>
    %1156 = vector.extract_strided_slice %1139 {offsets = [0, 256], sizes = [16, 128], strides = [1, 1]} : vector<16x512xf32> to vector<16x128xf32>
    %1157 = math.tanh %1156 : vector<16x128xf32>
    %1158 = vector.extract_strided_slice %1139 {offsets = [0, 384], sizes = [16, 128], strides = [1, 1]} : vector<16x512xf32> to vector<16x128xf32>
    %cst_511 = arith.constant 5.000000e-01 : f32
    %1159 = vector.broadcast %cst_511 : f32 to vector<16x128xf32>
    %1160 = arith.mulf %1159, %1158 : vector<16x128xf32>
    %1161 = math.tanh %1160 : vector<16x128xf32>
    %cst_512 = arith.constant 5.000000e-01 : f32
    %1162 = vector.broadcast %cst_512 : f32 to vector<16x128xf32>
    %1163 = arith.mulf %1162, %1161 : vector<16x128xf32>
    %cst_513 = arith.constant 5.000000e-01 : f32
    %1164 = vector.broadcast %cst_513 : f32 to vector<16x128xf32>
    %1165 = arith.addf %1163, %1164 : vector<16x128xf32>
    %1166 = arith.mulf %1155, %1132 : vector<16x128xf32>
    %1167 = arith.mulf %1147, %1157 : vector<16x128xf32>
    %1168 = arith.addf %1166, %1167 : vector<16x128xf32>
    %1169 = math.tanh %1168 : vector<16x128xf32>
    %1170 = arith.mulf %1165, %1169 : vector<16x128xf32>
    %c4_514 = arith.constant 4 : index
    %c0_515 = arith.constant 0 : index
    %c0_516 = arith.constant 0 : index
    %1171 = vector.load %arg12[%c4_514, %c0_515, %c0_516] : memref<8x16x512xf32, #tpu.memory_space<vmem>>, vector<1x16x512xf32>
    %1172 = vector.shape_cast %1171 : vector<1x16x512xf32> to vector<16x512xf32>
    %1173 = arith.truncf %1170 : vector<16x128xf32> to vector<16x128xbf16>
    %cst_517 = arith.constant dense<0.000000e+00> : vector<16x512xf32>
    %1174 = tpu.matmul %1173, %1022, %cst_517 {dimension_numbers = #tpu.dot_dimension_numbers<[1], [0], [0], [1], [0, 0, 1, 1], [], []>} : vector<16x128xbf16>, vector<128x512xbf16>, vector<16x512xf32> -> vector<16x512xf32>
    %1175 = arith.addf %1172, %1174 : vector<16x512xf32>
    %1176 = vector.extract_strided_slice %1175 {offsets = [0, 0], sizes = [16, 128], strides = [1, 1]} : vector<16x512xf32> to vector<16x128xf32>
    %cst_518 = arith.constant 5.000000e-01 : f32
    %1177 = vector.broadcast %cst_518 : f32 to vector<16x128xf32>
    %1178 = arith.mulf %1177, %1176 : vector<16x128xf32>
    %1179 = math.tanh %1178 : vector<16x128xf32>
    %cst_519 = arith.constant 5.000000e-01 : f32
    %1180 = vector.broadcast %cst_519 : f32 to vector<16x128xf32>
    %1181 = arith.mulf %1180, %1179 : vector<16x128xf32>
    %cst_520 = arith.constant 5.000000e-01 : f32
    %1182 = vector.broadcast %cst_520 : f32 to vector<16x128xf32>
    %1183 = arith.addf %1181, %1182 : vector<16x128xf32>
    %1184 = vector.extract_strided_slice %1175 {offsets = [0, 128], sizes = [16, 128], strides = [1, 1]} : vector<16x512xf32> to vector<16x128xf32>
    %cst_521 = arith.constant 5.000000e-01 : f32
    %1185 = vector.broadcast %cst_521 : f32 to vector<16x128xf32>
    %1186 = arith.mulf %1185, %1184 : vector<16x128xf32>
    %1187 = math.tanh %1186 : vector<16x128xf32>
    %cst_522 = arith.constant 5.000000e-01 : f32
    %1188 = vector.broadcast %cst_522 : f32 to vector<16x128xf32>
    %1189 = arith.mulf %1188, %1187 : vector<16x128xf32>
    %cst_523 = arith.constant 5.000000e-01 : f32
    %1190 = vector.broadcast %cst_523 : f32 to vector<16x128xf32>
    %1191 = arith.addf %1189, %1190 : vector<16x128xf32>
    %1192 = vector.extract_strided_slice %1175 {offsets = [0, 256], sizes = [16, 128], strides = [1, 1]} : vector<16x512xf32> to vector<16x128xf32>
    %1193 = math.tanh %1192 : vector<16x128xf32>
    %1194 = vector.extract_strided_slice %1175 {offsets = [0, 384], sizes = [16, 128], strides = [1, 1]} : vector<16x512xf32> to vector<16x128xf32>
    %cst_524 = arith.constant 5.000000e-01 : f32
    %1195 = vector.broadcast %cst_524 : f32 to vector<16x128xf32>
    %1196 = arith.mulf %1195, %1194 : vector<16x128xf32>
    %1197 = math.tanh %1196 : vector<16x128xf32>
    %cst_525 = arith.constant 5.000000e-01 : f32
    %1198 = vector.broadcast %cst_525 : f32 to vector<16x128xf32>
    %1199 = arith.mulf %1198, %1197 : vector<16x128xf32>
    %cst_526 = arith.constant 5.000000e-01 : f32
    %1200 = vector.broadcast %cst_526 : f32 to vector<16x128xf32>
    %1201 = arith.addf %1199, %1200 : vector<16x128xf32>
    %1202 = arith.mulf %1191, %1168 : vector<16x128xf32>
    %1203 = arith.mulf %1183, %1193 : vector<16x128xf32>
    %1204 = arith.addf %1202, %1203 : vector<16x128xf32>
    %1205 = math.tanh %1204 : vector<16x128xf32>
    %1206 = arith.mulf %1201, %1205 : vector<16x128xf32>
    %c5_527 = arith.constant 5 : index
    %c0_528 = arith.constant 0 : index
    %c0_529 = arith.constant 0 : index
    %1207 = vector.load %arg12[%c5_527, %c0_528, %c0_529] : memref<8x16x512xf32, #tpu.memory_space<vmem>>, vector<1x16x512xf32>
    %1208 = vector.shape_cast %1207 : vector<1x16x512xf32> to vector<16x512xf32>
    %1209 = arith.truncf %1206 : vector<16x128xf32> to vector<16x128xbf16>
    %cst_530 = arith.constant dense<0.000000e+00> : vector<16x512xf32>
    %1210 = tpu.matmul %1209, %1022, %cst_530 {dimension_numbers = #tpu.dot_dimension_numbers<[1], [0], [0], [1], [0, 0, 1, 1], [], []>} : vector<16x128xbf16>, vector<128x512xbf16>, vector<16x512xf32> -> vector<16x512xf32>
    %1211 = arith.addf %1208, %1210 : vector<16x512xf32>
    %1212 = vector.extract_strided_slice %1211 {offsets = [0, 0], sizes = [16, 128], strides = [1, 1]} : vector<16x512xf32> to vector<16x128xf32>
    %cst_531 = arith.constant 5.000000e-01 : f32
    %1213 = vector.broadcast %cst_531 : f32 to vector<16x128xf32>
    %1214 = arith.mulf %1213, %1212 : vector<16x128xf32>
    %1215 = math.tanh %1214 : vector<16x128xf32>
    %cst_532 = arith.constant 5.000000e-01 : f32
    %1216 = vector.broadcast %cst_532 : f32 to vector<16x128xf32>
    %1217 = arith.mulf %1216, %1215 : vector<16x128xf32>
    %cst_533 = arith.constant 5.000000e-01 : f32
    %1218 = vector.broadcast %cst_533 : f32 to vector<16x128xf32>
    %1219 = arith.addf %1217, %1218 : vector<16x128xf32>
    %1220 = vector.extract_strided_slice %1211 {offsets = [0, 128], sizes = [16, 128], strides = [1, 1]} : vector<16x512xf32> to vector<16x128xf32>
    %cst_534 = arith.constant 5.000000e-01 : f32
    %1221 = vector.broadcast %cst_534 : f32 to vector<16x128xf32>
    %1222 = arith.mulf %1221, %1220 : vector<16x128xf32>
    %1223 = math.tanh %1222 : vector<16x128xf32>
    %cst_535 = arith.constant 5.000000e-01 : f32
    %1224 = vector.broadcast %cst_535 : f32 to vector<16x128xf32>
    %1225 = arith.mulf %1224, %1223 : vector<16x128xf32>
    %cst_536 = arith.constant 5.000000e-01 : f32
    %1226 = vector.broadcast %cst_536 : f32 to vector<16x128xf32>
    %1227 = arith.addf %1225, %1226 : vector<16x128xf32>
    %1228 = vector.extract_strided_slice %1211 {offsets = [0, 256], sizes = [16, 128], strides = [1, 1]} : vector<16x512xf32> to vector<16x128xf32>
    %1229 = math.tanh %1228 : vector<16x128xf32>
    %1230 = vector.extract_strided_slice %1211 {offsets = [0, 384], sizes = [16, 128], strides = [1, 1]} : vector<16x512xf32> to vector<16x128xf32>
    %cst_537 = arith.constant 5.000000e-01 : f32
    %1231 = vector.broadcast %cst_537 : f32 to vector<16x128xf32>
    %1232 = arith.mulf %1231, %1230 : vector<16x128xf32>
    %1233 = math.tanh %1232 : vector<16x128xf32>
    %cst_538 = arith.constant 5.000000e-01 : f32
    %1234 = vector.broadcast %cst_538 : f32 to vector<16x128xf32>
    %1235 = arith.mulf %1234, %1233 : vector<16x128xf32>
    %cst_539 = arith.constant 5.000000e-01 : f32
    %1236 = vector.broadcast %cst_539 : f32 to vector<16x128xf32>
    %1237 = arith.addf %1235, %1236 : vector<16x128xf32>
    %1238 = arith.mulf %1227, %1204 : vector<16x128xf32>
    %1239 = arith.mulf %1219, %1229 : vector<16x128xf32>
    %1240 = arith.addf %1238, %1239 : vector<16x128xf32>
    %1241 = math.tanh %1240 : vector<16x128xf32>
    %1242 = arith.mulf %1237, %1241 : vector<16x128xf32>
    %c6_540 = arith.constant 6 : index
    %c0_541 = arith.constant 0 : index
    %c0_542 = arith.constant 0 : index
    %1243 = vector.load %arg12[%c6_540, %c0_541, %c0_542] : memref<8x16x512xf32, #tpu.memory_space<vmem>>, vector<1x16x512xf32>
    %1244 = vector.shape_cast %1243 : vector<1x16x512xf32> to vector<16x512xf32>
    %1245 = arith.truncf %1242 : vector<16x128xf32> to vector<16x128xbf16>
    %cst_543 = arith.constant dense<0.000000e+00> : vector<16x512xf32>
    %1246 = tpu.matmul %1245, %1022, %cst_543 {dimension_numbers = #tpu.dot_dimension_numbers<[1], [0], [0], [1], [0, 0, 1, 1], [], []>} : vector<16x128xbf16>, vector<128x512xbf16>, vector<16x512xf32> -> vector<16x512xf32>
    %1247 = arith.addf %1244, %1246 : vector<16x512xf32>
    %1248 = vector.extract_strided_slice %1247 {offsets = [0, 0], sizes = [16, 128], strides = [1, 1]} : vector<16x512xf32> to vector<16x128xf32>
    %cst_544 = arith.constant 5.000000e-01 : f32
    %1249 = vector.broadcast %cst_544 : f32 to vector<16x128xf32>
    %1250 = arith.mulf %1249, %1248 : vector<16x128xf32>
    %1251 = math.tanh %1250 : vector<16x128xf32>
    %cst_545 = arith.constant 5.000000e-01 : f32
    %1252 = vector.broadcast %cst_545 : f32 to vector<16x128xf32>
    %1253 = arith.mulf %1252, %1251 : vector<16x128xf32>
    %cst_546 = arith.constant 5.000000e-01 : f32
    %1254 = vector.broadcast %cst_546 : f32 to vector<16x128xf32>
    %1255 = arith.addf %1253, %1254 : vector<16x128xf32>
    %1256 = vector.extract_strided_slice %1247 {offsets = [0, 128], sizes = [16, 128], strides = [1, 1]} : vector<16x512xf32> to vector<16x128xf32>
    %cst_547 = arith.constant 5.000000e-01 : f32
    %1257 = vector.broadcast %cst_547 : f32 to vector<16x128xf32>
    %1258 = arith.mulf %1257, %1256 : vector<16x128xf32>
    %1259 = math.tanh %1258 : vector<16x128xf32>
    %cst_548 = arith.constant 5.000000e-01 : f32
    %1260 = vector.broadcast %cst_548 : f32 to vector<16x128xf32>
    %1261 = arith.mulf %1260, %1259 : vector<16x128xf32>
    %cst_549 = arith.constant 5.000000e-01 : f32
    %1262 = vector.broadcast %cst_549 : f32 to vector<16x128xf32>
    %1263 = arith.addf %1261, %1262 : vector<16x128xf32>
    %1264 = vector.extract_strided_slice %1247 {offsets = [0, 256], sizes = [16, 128], strides = [1, 1]} : vector<16x512xf32> to vector<16x128xf32>
    %1265 = math.tanh %1264 : vector<16x128xf32>
    %1266 = vector.extract_strided_slice %1247 {offsets = [0, 384], sizes = [16, 128], strides = [1, 1]} : vector<16x512xf32> to vector<16x128xf32>
    %cst_550 = arith.constant 5.000000e-01 : f32
    %1267 = vector.broadcast %cst_550 : f32 to vector<16x128xf32>
    %1268 = arith.mulf %1267, %1266 : vector<16x128xf32>
    %1269 = math.tanh %1268 : vector<16x128xf32>
    %cst_551 = arith.constant 5.000000e-01 : f32
    %1270 = vector.broadcast %cst_551 : f32 to vector<16x128xf32>
    %1271 = arith.mulf %1270, %1269 : vector<16x128xf32>
    %cst_552 = arith.constant 5.000000e-01 : f32
    %1272 = vector.broadcast %cst_552 : f32 to vector<16x128xf32>
    %1273 = arith.addf %1271, %1272 : vector<16x128xf32>
    %1274 = arith.mulf %1263, %1240 : vector<16x128xf32>
    %1275 = arith.mulf %1255, %1265 : vector<16x128xf32>
    %1276 = arith.addf %1274, %1275 : vector<16x128xf32>
    %1277 = math.tanh %1276 : vector<16x128xf32>
    %1278 = arith.mulf %1273, %1277 : vector<16x128xf32>
    %c7_553 = arith.constant 7 : index
    %c0_554 = arith.constant 0 : index
    %c0_555 = arith.constant 0 : index
    %1279 = vector.load %arg12[%c7_553, %c0_554, %c0_555] : memref<8x16x512xf32, #tpu.memory_space<vmem>>, vector<1x16x512xf32>
    %1280 = vector.shape_cast %1279 : vector<1x16x512xf32> to vector<16x512xf32>
    %1281 = arith.truncf %1278 : vector<16x128xf32> to vector<16x128xbf16>
    %cst_556 = arith.constant dense<0.000000e+00> : vector<16x512xf32>
    %1282 = tpu.matmul %1281, %1022, %cst_556 {dimension_numbers = #tpu.dot_dimension_numbers<[1], [0], [0], [1], [0, 0, 1, 1], [], []>} : vector<16x128xbf16>, vector<128x512xbf16>, vector<16x512xf32> -> vector<16x512xf32>
    %1283 = arith.addf %1280, %1282 : vector<16x512xf32>
    %1284 = vector.extract_strided_slice %1283 {offsets = [0, 0], sizes = [16, 128], strides = [1, 1]} : vector<16x512xf32> to vector<16x128xf32>
    %cst_557 = arith.constant 5.000000e-01 : f32
    %1285 = vector.broadcast %cst_557 : f32 to vector<16x128xf32>
    %1286 = arith.mulf %1285, %1284 : vector<16x128xf32>
    %1287 = math.tanh %1286 : vector<16x128xf32>
    %cst_558 = arith.constant 5.000000e-01 : f32
    %1288 = vector.broadcast %cst_558 : f32 to vector<16x128xf32>
    %1289 = arith.mulf %1288, %1287 : vector<16x128xf32>
    %cst_559 = arith.constant 5.000000e-01 : f32
    %1290 = vector.broadcast %cst_559 : f32 to vector<16x128xf32>
    %1291 = arith.addf %1289, %1290 : vector<16x128xf32>
    %1292 = vector.extract_strided_slice %1283 {offsets = [0, 128], sizes = [16, 128], strides = [1, 1]} : vector<16x512xf32> to vector<16x128xf32>
    %cst_560 = arith.constant 5.000000e-01 : f32
    %1293 = vector.broadcast %cst_560 : f32 to vector<16x128xf32>
    %1294 = arith.mulf %1293, %1292 : vector<16x128xf32>
    %1295 = math.tanh %1294 : vector<16x128xf32>
    %cst_561 = arith.constant 5.000000e-01 : f32
    %1296 = vector.broadcast %cst_561 : f32 to vector<16x128xf32>
    %1297 = arith.mulf %1296, %1295 : vector<16x128xf32>
    %cst_562 = arith.constant 5.000000e-01 : f32
    %1298 = vector.broadcast %cst_562 : f32 to vector<16x128xf32>
    %1299 = arith.addf %1297, %1298 : vector<16x128xf32>
    %1300 = vector.extract_strided_slice %1283 {offsets = [0, 256], sizes = [16, 128], strides = [1, 1]} : vector<16x512xf32> to vector<16x128xf32>
    %1301 = math.tanh %1300 : vector<16x128xf32>
    %1302 = vector.extract_strided_slice %1283 {offsets = [0, 384], sizes = [16, 128], strides = [1, 1]} : vector<16x512xf32> to vector<16x128xf32>
    %cst_563 = arith.constant 5.000000e-01 : f32
    %1303 = vector.broadcast %cst_563 : f32 to vector<16x128xf32>
    %1304 = arith.mulf %1303, %1302 : vector<16x128xf32>
    %1305 = math.tanh %1304 : vector<16x128xf32>
    %cst_564 = arith.constant 5.000000e-01 : f32
    %1306 = vector.broadcast %cst_564 : f32 to vector<16x128xf32>
    %1307 = arith.mulf %1306, %1305 : vector<16x128xf32>
    %cst_565 = arith.constant 5.000000e-01 : f32
    %1308 = vector.broadcast %cst_565 : f32 to vector<16x128xf32>
    %1309 = arith.addf %1307, %1308 : vector<16x128xf32>
    %1310 = arith.mulf %1299, %1276 : vector<16x128xf32>
    %1311 = arith.mulf %1291, %1301 : vector<16x128xf32>
    %1312 = arith.addf %1310, %1311 : vector<16x128xf32>
    %1313 = math.tanh %1312 : vector<16x128xf32>
    %1314 = arith.mulf %1309, %1313 : vector<16x128xf32>
    %1315 = arith.truncf %1314 : vector<16x128xf32> to vector<16x128xbf16>
    %c0_566 = arith.constant 0 : index
    %c0_567 = arith.constant 0 : index
    %1316 = vector.load %arg8[%c0_566, %c0_567] : memref<128x128xbf16, #tpu.memory_space<vmem>>, vector<128x128xbf16>
    %cst_568 = arith.constant dense<0.000000e+00> : vector<16x128xf32>
    %1317 = tpu.matmul %1315, %1316, %cst_568 {dimension_numbers = #tpu.dot_dimension_numbers<[1], [0], [0], [1], [0, 0, 1, 1], [], []>} : vector<16x128xbf16>, vector<128x128xbf16>, vector<16x128xf32> -> vector<16x128xf32>
    %c0_569 = arith.constant 0 : index
    %c0_570 = arith.constant 0 : index
    %1318 = vector.load %arg9[%c0_569, %c0_570] : memref<1x128xf32, #tpu.memory_space<vmem>>, vector<1x128xf32>
    %1319 = vector.broadcast %1318 : vector<1x128xf32> to vector<16x128xf32>
    %1320 = arith.addf %1317, %1319 : vector<16x128xf32>
    %c0_571 = arith.constant 0 : index
    %c0_572 = arith.constant 0 : index
    %1321 = vector.load %arg10[%c0_571, %c0_572] : memref<16x128xf32, #tpu.memory_space<vmem>>, vector<16x128xf32>
    tpu.vector_store %arg10[%c0_571, %c0_572], %1320 {strides = array<i32>} : memref<16x128xf32, #tpu.memory_space<vmem>>, vector<16x128xf32>,
    return
  }
  func.func @transform_0(%arg0: i32) -> (i32, i32, i32) {
    %c0_i32 = arith.constant 0 : i32
    %c0_i32_0 = arith.constant 0 : i32
    %c0_i32_1 = arith.constant 0 : i32
    return %c0_i32, %arg0, %c0_i32_0 : i32, i32, i32
  }
  func.func @transform_1(%arg0: i32) -> (i32, i32) {
    %c0_i32 = arith.constant 0 : i32
    %c0_i32_0 = arith.constant 0 : i32
    %c0_i32_1 = arith.constant 0 : i32
    return %c0_i32, %c0_i32_0 : i32, i32
  }
  func.func @transform_2(%arg0: i32) -> (i32, i32, i32) {
    %c0_i32 = arith.constant 0 : i32
    %c0_i32_0 = arith.constant 0 : i32
    %c0_i32_1 = arith.constant 0 : i32
    %c0_i32_2 = arith.constant 0 : i32
    return %c0_i32, %c0_i32_0, %c0_i32_1 : i32, i32, i32
  }
  func.func @transform_3(%arg0: i32) -> (i32, i32, i32) {
    %c0_i32 = arith.constant 0 : i32
    %c0_i32_0 = arith.constant 0 : i32
    %c0_i32_1 = arith.constant 0 : i32
    %c0_i32_2 = arith.constant 0 : i32
    return %c0_i32, %c0_i32_0, %c0_i32_1 : i32, i32, i32
  }
  func.func @transform_4(%arg0: i32) -> (i32, i32, i32) {
    %c0_i32 = arith.constant 0 : i32
    %c0_i32_0 = arith.constant 0 : i32
    %c0_i32_1 = arith.constant 0 : i32
    %c0_i32_2 = arith.constant 0 : i32
    return %c0_i32, %c0_i32_0, %c0_i32_1 : i32, i32, i32
  }
  func.func @transform_5(%arg0: i32) -> (i32, i32, i32) {
    %c0_i32 = arith.constant 0 : i32
    %c0_i32_0 = arith.constant 0 : i32
    %c0_i32_1 = arith.constant 0 : i32
    return %c0_i32, %arg0, %c0_i32_0 : i32, i32, i32
  }
  func.func @transform_6(%arg0: i32) -> (i32, i32, i32) {
    %c0_i32 = arith.constant 0 : i32
    %c0_i32_0 = arith.constant 0 : i32
    %c0_i32_1 = arith.constant 0 : i32
    return %c0_i32, %arg0, %c0_i32_0 : i32, i32, i32
  }
  func.func @transform_7(%arg0: i32) -> (i32, i32) {
    %c0_i32 = arith.constant 0 : i32
    %c0_i32_0 = arith.constant 0 : i32
    %c0_i32_1 = arith.constant 0 : i32
    return %c0_i32, %c0_i32_0 : i32, i32
  }
  func.func @transform_8(%arg0: i32) -> (i32, i32) {
    %c0_i32 = arith.constant 0 : i32
    %c0_i32_0 = arith.constant 0 : i32
    %c0_i32_1 = arith.constant 0 : i32
    return %c0_i32, %c0_i32_0 : i32, i32
  }
  func.func @transform_9(%arg0: i32) -> (i32, i32) {
    %c0_i32 = arith.constant 0 : i32
    %c0_i32_0 = arith.constant 0 : i32
    return %arg0, %c0_i32 : i32, i32
  }
}

</mosaic_0001>

<llo_original>
// kernel: tpu_custom_call.1
$region0: #{tpu_custom_call.1}
  #allocation0 [shape = 'u32[]', space=smem, size = 0x4, offset = 0x4, fixed_abs, tag = 'smem constant byte address 0x4 - core index']
  #allocation1 [shape = 'u32[144,128]{1,0:T(1,128)}', space=vmem, size = 0x12000, scoped, tag = 'internal scratch']
  #allocation2 [shape = 'bf16[8,16,128]{2,1,0:T(8,128)(2,1)}', space=vmem, size = 0x8000, scoped, tag = 'scratch operand']
  #allocation3 [shape = 'f32[8,16,512]{2,1,0:T(8,128)}', space=vmem, size = 0x40000, scoped, tag = 'scratch operand']
  %s0 = inlined_call_operand.hbm [shape: bf16[8,16,128], index: 0, kind: input, shape index: {}]
  %s1 = inlined_call_operand.hbm [shape: bf16[128,512], index: 1, kind: input, shape index: {}]
  %s2 = inlined_call_operand.hbm [shape: bf16[3,128,512], index: 2, kind: input, shape index: {}]
  %s3 = inlined_call_operand.hbm [shape: bf16[4,128,512], index: 3, kind: input, shape index: {}]
  %s4 = inlined_call_operand.hbm [shape: f32[4,1,512], index: 4, kind: input, shape index: {}]
  %s5 = inlined_call_operand.hbm [shape: f32[4,16,128], index: 5, kind: input, shape index: {}]
  %s6 = inlined_call_operand.hbm [shape: f32[4,16,128], index: 6, kind: input, shape index: {}]
  %s7 = inlined_call_operand.hbm [shape: bf16[128,128], index: 7, kind: input, shape index: {}]
  %s8 = inlined_call_operand.vmem [shape: f32[1,128], index: 8, kind: input, shape index: {}]
  %s9 = inlined_call_operand.hbm [shape: f32[16,128], index: 9, kind: output, shape index: {}]
  %s10 = sld [smem:[#allocation0]]
  $region78: #{tpu_custom_call.1} parent=0
    _
  %s12 = ssub.s32 1, %s10
  %s13 = scalar_select 0, %s12, %s10
  $region1: #{tpu_custom_call.1} parent=0
    #allocation4 [shape = 'u8[32768]{0}', space=vmem, size = 0x8000, scoped, tag = 'input window, operand 0, single buffered']
    #allocation5 [shape = 's32[1]{0}', space=sflag, size = 0x4, scoped, tag = 'scoped memory for tpu_custom_call.1']
    #allocation6 [shape = 's32[1]{0}', space=sflag, size = 0x4, scoped, tag = 'scoped memory for tpu_custom_call.1']
    #allocation7 [shape = 'u8[131072]{0}', space=vmem, size = 0x20000, scoped, tag = 'input window, operand 1, single buffered']
    #allocation8 [shape = 's32[1]{0}', space=sflag, size = 0x4, scoped, tag = 'scoped memory for tpu_custom_call.1']
    #allocation9 [shape = 'u8[393216]{0}', space=vmem, size = 0x60000, scoped, tag = 'input window, operand 2, single buffered']
    #allocation10 [shape = 'u8[524288]{0}', space=vmem, size = 0x80000, scoped, tag = 'input window, operand 3, single buffered']
    #allocation11 [shape = 's32[1]{0}', space=sflag, size = 0x4, scoped, tag = 'scoped memory for tpu_custom_call.1']
    #allocation12 [shape = 'u8[8192]{0}', space=vmem, size = 0x2000, scoped, tag = 'input window, operand 4, single buffered']
    #allocation13 [shape = 'u8[32768]{0}', space=vmem, size = 0x8000, scoped, tag = 'input window, operand 5, single buffered']
    #allocation14 [shape = 's32[1]{0}', space=sflag, size = 0x4, scoped, tag = 'scoped memory for tpu_custom_call.1']
    #allocation15 [shape = 'u8[32768]{0}', space=vmem, size = 0x8000, scoped, tag = 'input window, operand 6, single buffered']
    #allocation16 [shape = 'u8[32768]{0}', space=vmem, size = 0x8000, scoped, tag = 'input window, operand 7, single buffered']
    #allocation17 [shape = 's32[1]{0}', space=sflag, size = 0x4, scoped, tag = 'scoped memory for tpu_custom_call.1']
    #allocation18 [shape = 'u8[8192]{0}', space=vmem, size = 0x2000, scoped, tag = 'output window, operand 0, single buffered']
    %14 = vsyncpa [#allocation5], 0
    %15 = vsyncpa [#allocation8], 0
    %16 = vsyncpa [#allocation11], 0
    %17 = vsyncpa [#allocation14], 0
    %18 = vsyncpa [#allocation17], 0
    %19 = vsyncpa [#allocation6], 0
    // Predicated region
    $region2: #{tpu_custom_call.1} parent=1 // pred_check
      _
    $region3: #{tpu_custom_call.1} parent=1 // pred_check_branch
      %21 = sbr.rel (0) target = $region5
    $region4: #{tpu_custom_call.1} parent=1 // pred_region
      %s23 = ssub.s32 1024, 1024
      %24 = vsyncadd [#allocation5], %s23
      %s25 = sshll.u32 [#allocation4], 4
      %s26 = int_to_ptr.vmem [resolvable:$true] %s25
      %31 = dma.hbm_to_vmem [thread:$0]  %s0, 1024, %s26, [#allocation5], 64, 64, 4
    $region5: #{tpu_custom_call.1} parent=1 // pred_fallthru
      _
    // Predicated region
    $region6: #{tpu_custom_call.1} parent=1 // pred_check
      _
    $region7: #{tpu_custom_call.1} parent=1 // pred_check_branch
      %33 = sbr.rel (0) target = $region9
    $region8: #{tpu_custom_call.1} parent=1 // pred_region
      %s35 = ssub.s32 4096, 4096
      %36 = vsyncadd [#allocation8], %s35
      %s37 = sshll.u32 [#allocation7], 4
      %s38 = int_to_ptr.vmem [resolvable:$true] %s37
      %43 = dma.hbm_to_vmem [thread:$0]  %s1, 4096, %s38, [#allocation8], 256, 256, 16
    $region9: #{tpu_custom_call.1} parent=1 // pred_fallthru
      _
    // Predicated region
    $region10: #{tpu_custom_call.1} parent=1 // pred_check
      _
    $region11: #{tpu_custom_call.1} parent=1 // pred_check_branch
      %45 = sbr.rel (0) target = $region13
    $region12: #{tpu_custom_call.1} parent=1 // pred_region
      %s47 = ssub.s32 12288, 12288
      %48 = vsyncadd [#allocation8], %s47
      %s49 = sshll.u32 [#allocation9], 4
      %s50 = int_to_ptr.vmem [resolvable:$true] %s49
      %55 = dma.hbm_to_vmem [thread:$0]  %s2, 12288, %s50, [#allocation8], 256, 256, 16
    $region13: #{tpu_custom_call.1} parent=1 // pred_fallthru
      _
    // Predicated region
    $region14: #{tpu_custom_call.1} parent=1 // pred_check
      _
    $region15: #{tpu_custom_call.1} parent=1 // pred_check_branch
      %57 = sbr.rel (0) target = $region17
    $region16: #{tpu_custom_call.1} parent=1 // pred_region
      %s59 = ssub.s32 16384, 16384
      %60 = vsyncadd [#allocation11], %s59
      %s61 = sshll.u32 [#allocation10], 4
      %s62 = int_to_ptr.vmem [resolvable:$true] %s61
      %67 = dma.hbm_to_vmem [thread:$0]  %s3, 16384, %s62, [#allocation11], 256, 256, 16
    $region17: #{tpu_custom_call.1} parent=1 // pred_fallthru
      _
    // Predicated region
    $region18: #{tpu_custom_call.1} parent=1 // pred_check
      _
    $region19: #{tpu_custom_call.1} parent=1 // pred_check_branch
      %69 = sbr.rel (0) target = $region21
    $region20: #{tpu_custom_call.1} parent=1 // pred_region
      %s71 = ssub.s32 256, 256
      %72 = vsyncadd [#allocation11], %s71
      %s73 = sshll.u32 [#allocation12], 4
      %s74 = int_to_ptr.vmem [resolvable:$true] %s73
      %79 = dma.hbm_to_vmem [thread:$0]  %s4, 256, %s74, [#allocation11], 64, 64, 4
    $region21: #{tpu_custom_call.1} parent=1 // pred_fallthru
      _
    // Predicated region
    $region22: #{tpu_custom_call.1} parent=1 // pred_check
      _
    $region23: #{tpu_custom_call.1} parent=1 // pred_check_branch
      %81 = sbr.rel (0) target = $region25
    $region24: #{tpu_custom_call.1} parent=1 // pred_region
      %s83 = ssub.s32 1024, 1024
      %84 = vsyncadd [#allocation14], %s83
      %s85 = sshll.u32 [#allocation13], 4
      %s86 = int_to_ptr.vmem [resolvable:$true] %s85
      %91 = dma.hbm_to_vmem [thread:$0]  %s5, 1024, %s86, [#allocation14], 128, 128, 8
    $region25: #{tpu_custom_call.1} parent=1 // pred_fallthru
      _
    // Predicated region
    $region26: #{tpu_custom_call.1} parent=1 // pred_check
      _
    $region27: #{tpu_custom_call.1} parent=1 // pred_check_branch
      %93 = sbr.rel (0) target = $region29
    $region28: #{tpu_custom_call.1} parent=1 // pred_region
      %s95 = ssub.s32 1024, 1024
      %96 = vsyncadd [#allocation14], %s95
      %s97 = sshll.u32 [#allocation15], 4
      %s98 = int_to_ptr.vmem [resolvable:$true] %s97
      %103 = dma.hbm_to_vmem [thread:$0]  %s6, 1024, %s98, [#allocation14], 128, 128, 8
    $region29: #{tpu_custom_call.1} parent=1 // pred_fallthru
      _
    // Predicated region
    $region30: #{tpu_custom_call.1} parent=1 // pred_check
      _
    $region31: #{tpu_custom_call.1} parent=1 // pred_check_branch
      %105 = sbr.rel (0) target = $region33
    $region32: #{tpu_custom_call.1} parent=1 // pred_region
      %s107 = ssub.s32 1024, 1024
      %108 = vsyncadd [#allocation17], %s107
      %s109 = sshll.u32 [#allocation16], 4
      %s110 = int_to_ptr.vmem [resolvable:$true] %s109
      %115 = dma.hbm_to_vmem [thread:$0]  %s7, 1024, %s110, [#allocation17], 64, 64, 4
    $region33: #{tpu_custom_call.1} parent=1 // pred_fallthru
      _
    // Predicated region
    $region34: #{tpu_custom_call.1} parent=1 // pred_check
      _
    $region35: #{tpu_custom_call.1} parent=1 // pred_check_branch
      %117 = sbr.rel (0) target = $region37
    $region36: #{tpu_custom_call.1} parent=1 // pred_region
      _
    $region37: #{tpu_custom_call.1} parent=1 // pred_fallthru
      _
    // Predicated region
    $region38: #{tpu_custom_call.1} parent=1 // pred_check
      _
    $region39: #{tpu_custom_call.1} parent=1 // pred_check_branch
      %119 = sbr.rel (0) target = $region41
    $region40: #{tpu_custom_call.1} parent=1 // pred_region
      %120 = dma.done [#allocation5], 1024
    $region41: #{tpu_custom_call.1} parent=1 // pred_fallthru
      _
    // Predicated region
    $region42: #{tpu_custom_call.1} parent=1 // pred_check
      _
    $region43: #{tpu_custom_call.1} parent=1 // pred_check_branch
      %122 = sbr.rel (0) target = $region45
    $region44: #{tpu_custom_call.1} parent=1 // pred_region
      %123 = dma.done [#allocation8], 4096
    $region45: #{tpu_custom_call.1} parent=1 // pred_fallthru
      _
    // Predicated region
    $region46: #{tpu_custom_call.1} parent=1 // pred_check
      _
    $region47: #{tpu_custom_call.1} parent=1 // pred_check_branch
      %125 = sbr.rel (0) target = $region49
    $region48: #{tpu_custom_call.1} parent=1 // pred_region
      %126 = dma.done [#allocation8], 12288
    $region49: #{tpu_custom_call.1} parent=1 // pred_fallthru
      _
    // Predicated region
    $region50: #{tpu_custom_call.1} parent=1 // pred_check
      _
    $region51: #{tpu_custom_call.1} parent=1 // pred_check_branch
      %128 = sbr.rel (0) target = $region53
    $region52: #{tpu_custom_call.1} parent=1 // pred_region
      %129 = dma.done [#allocation11], 16384
    $region53: #{tpu_custom_call.1} parent=1 // pred_fallthru
      _
    // Predicated region
    $region54: #{tpu_custom_call.1} parent=1 // pred_check
      _
    $region55: #{tpu_custom_call.1} parent=1 // pred_check_branch
      %131 = sbr.rel (0) target = $region57
    $region56: #{tpu_custom_call.1} parent=1 // pred_region
      %132 = dma.done [#allocation11], 256
    $region57: #{tpu_custom_call.1} parent=1 // pred_fallthru
      _
    // Predicated region
    $region58: #{tpu_custom_call.1} parent=1 // pred_check
      _
    $region59: #{tpu_custom_call.1} parent=1 // pred_check_branch
      %134 = sbr.rel (0) target = $region61
    $region60: #{tpu_custom_call.1} parent=1 // pred_region
      %135 = dma.done [#allocation14], 1024
    $region61: #{tpu_custom_call.1} parent=1 // pred_fallthru
      _
    // Predicated region
    $region62: #{tpu_custom_call.1} parent=1 // pred_check
      _
    $region63: #{tpu_custom_call.1} parent=1 // pred_check_branch
      %137 = sbr.rel (0) target = $region65
    $region64: #{tpu_custom_call.1} parent=1 // pred_region
      %138 = dma.done [#allocation14], 1024
    $region65: #{tpu_custom_call.1} parent=1 // pred_fallthru
      _
    // Predicated region
    $region66: #{tpu_custom_call.1} parent=1 // pred_check
      _
    $region67: #{tpu_custom_call.1} parent=1 // pred_check_branch
      %140 = sbr.rel (0) target = $region69
    $region68: #{tpu_custom_call.1} parent=1 // pred_region
      %141 = dma.done [#allocation17], 1024
    $region69: #{tpu_custom_call.1} parent=1 // pred_fallthru
      _
    %v143 = vld [vmem:[#allocation4] sm:$0xf]
    %v144 = vld [vmem:[#allocation4 + $0x4] sm:$0xf]
    %v145 = vld [vmem:[#allocation4 + $0x8] sm:$0xf]
    %v146 = vld [vmem:[#allocation4 + $0xc] sm:$0xf]
    %v147 = vld [vmem:[#allocation4 + $0x10] sm:$0xf]
    %v148 = vld [vmem:[#allocation4 + $0x14] sm:$0xf]
    %v149 = vld [vmem:[#allocation4 + $0x18] sm:$0xf]
    %v150 = vld [vmem:[#allocation4 + $0x1c] sm:$0xf]
    %v151 = vld [vmem:[#allocation4 + $0x20] sm:$0xf]
    %v152 = vld [vmem:[#allocation4 + $0x24] sm:$0xf]
    %v153 = vld [vmem:[#allocation4 + $0x28] sm:$0xf]
    %v154 = vld [vmem:[#allocation4 + $0x2c] sm:$0xf]
    %v155 = vld [vmem:[#allocation4 + $0x30] sm:$0xf]
    %v156 = vld [vmem:[#allocation4 + $0x34] sm:$0xf]
    %v157 = vld [vmem:[#allocation4 + $0x38] sm:$0xf]
    %v158 = vld [vmem:[#allocation4 + $0x3c] sm:$0xf]
    %v159 = vld [vmem:[#allocation7] sm:$0xff]
    %v160 = vld [vmem:[#allocation7 + $0x8] sm:$0xff]
    %v161 = vld [vmem:[#allocation7 + $0x10] sm:$0xff]
    %v162 = vld [vmem:[#allocation7 + $0x18] sm:$0xff]
    %v163 = vld [vmem:[#allocation7 + $0x20] sm:$0xff]
    %v164 = vld [vmem:[#allocation7 + $0x28] sm:$0xff]
    %v165 = vld [vmem:[#allocation7 + $0x30] sm:$0xff]
    %v166 = vld [vmem:[#allocation7 + $0x38] sm:$0xff]
    %v167 = vld [vmem:[#allocation7 + $0x40] sm:$0xff]
    %v168 = vld [vmem:[#allocation7 + $0x48] sm:$0xff]
    %v169 = vld [vmem:[#allocation7 + $0x50] sm:$0xff]
    %v170 = vld [vmem:[#allocation7 + $0x58] sm:$0xff]
    %v171 = vld [vmem:[#allocation7 + $0x60] sm:$0xff]
    %v172 = vld [vmem:[#allocation7 + $0x68] sm:$0xff]
    %v173 = vld [vmem:[#allocation7 + $0x70] sm:$0xff]
    %v174 = vld [vmem:[#allocation7 + $0x78] sm:$0xff]
    %v175 = vld [vmem:[#allocation7 + $0x80] sm:$0xff]
    %v176 = vld [vmem:[#allocation7 + $0x88] sm:$0xff]
    %v177 = vld [vmem:[#allocation7 + $0x90] sm:$0xff]
    %v178 = vld [vmem:[#allocation7 + $0x98] sm:$0xff]
    %v179 = vld [vmem:[#allocation7 + $0xa0] sm:$0xff]
    %v180 = vld [vmem:[#allocation7 + $0xa8] sm:$0xff]
    %v181 = vld [vmem:[#allocation7 + $0xb0] sm:$0xff]
    %v182 = vld [vmem:[#allocation7 + $0xb8] sm:$0xff]
    %v183 = vld [vmem:[#allocation7 + $0xc0] sm:$0xff]
    %v184 = vld [vmem:[#allocation7 + $0xc8] sm:$0xff]
    %v185 = vld [vmem:[#allocation7 + $0xd0] sm:$0xff]
    %v186 = vld [vmem:[#allocation7 + $0xd8] sm:$0xff]
    %v187 = vld [vmem:[#allocation7 + $0xe0] sm:$0xff]
    %v188 = vld [vmem:[#allocation7 + $0xe8] sm:$0xff]
    %v189 = vld [vmem:[#allocation7 + $0xf0] sm:$0xff]
    %v190 = vld [vmem:[#allocation7 + $0xf8] sm:$0xff]
    %v191 = vld [vmem:[#allocation12] sm:$0xf]
    %v193 = vlaneseq
    %v194 = vshrl.u32 %v193, 7
    %v195 = vsub.s32 0, %v194
    %v196 = vrot.slane %v191, %v195
    %v197 = vlaneseq
    %v198 = vshrl.u32 %v197, 7
    %v199 = vsub.s32 1, %v198
    %v200 = vrot.slane %v191, %v199
    %v201 = vlaneseq
    %v202 = vshrl.u32 %v201, 7
    %v203 = vsub.s32 2, %v202
    %v204 = vrot.slane %v191, %v203
    %v205 = vlaneseq
    %v206 = vshrl.u32 %v205, 7
    %v207 = vsub.s32 3, %v206
    %v208 = vrot.slane %v191, %v207
    %v229 = vunpack.c.l.b16 %v143
    %v230 = vunpack.c.l.b16 %v144
    %v231 = vunpack.c.l.b16 %v145
    %v232 = vunpack.c.l.b16 %v146
    %v233 = vunpack.c.l.b16 %v147
    %v234 = vunpack.c.l.b16 %v148
    %v235 = vunpack.c.l.b16 %v149
    %v236 = vunpack.c.l.b16 %v150
    %v237 = vunpack.c.l.b16 %v151
    %v238 = vunpack.c.l.b16 %v152
    %v239 = vunpack.c.l.b16 %v153
    %v240 = vunpack.c.l.b16 %v154
    %v241 = vunpack.c.l.b16 %v155
    %v242 = vunpack.c.l.b16 %v156
    %v243 = vunpack.c.l.b16 %v157
    %v244 = vunpack.c.l.b16 %v158
    %v245 = vpack.c.b16 %v230, %v229
    %v246 = vpack.c.b16 %v232, %v231
    %v247 = vpack.c.b16 %v234, %v233
    %v248 = vpack.c.b16 %v236, %v235
    %v249 = vpack.c.b16 %v238, %v237
    %v250 = vpack.c.b16 %v240, %v239
    %v251 = vpack.c.b16 %v242, %v241
    %v252 = vpack.c.b16 %v244, %v243
    %v293 = vunpack.c.l.b16 %v159
    %v294 = vunpack.c.h.b16 %v159
    %v295 = vunpack.c.l.b16 %v160
    %v296 = vunpack.c.h.b16 %v160
    %v297 = vunpack.c.l.b16 %v161
    %v298 = vunpack.c.h.b16 %v161
    %v299 = vunpack.c.l.b16 %v162
    %v300 = vunpack.c.h.b16 %v162
    %v301 = vunpack.c.l.b16 %v163
    %v302 = vunpack.c.h.b16 %v163
    %v303 = vunpack.c.l.b16 %v164
    %v304 = vunpack.c.h.b16 %v164
    %v305 = vunpack.c.l.b16 %v165
    %v306 = vunpack.c.h.b16 %v165
    %v307 = vunpack.c.l.b16 %v166
    %v308 = vunpack.c.h.b16 %v166
    %v309 = vunpack.c.l.b16 %v167
    %v310 = vunpack.c.h.b16 %v167
    %v311 = vunpack.c.l.b16 %v168
    %v312 = vunpack.c.h.b16 %v168
    %v313 = vunpack.c.l.b16 %v169
    %v314 = vunpack.c.h.b16 %v169
    %v315 = vunpack.c.l.b16 %v170
    %v316 = vunpack.c.h.b16 %v170
    %v317 = vunpack.c.l.b16 %v171
    %v318 = vunpack.c.h.b16 %v171
    %v319 = vunpack.c.l.b16 %v172
    %v320 = vunpack.c.h.b16 %v172
    %v321 = vunpack.c.l.b16 %v173
    %v322 = vunpack.c.h.b16 %v173
    %v323 = vunpack.c.l.b16 %v174
    %v324 = vunpack.c.h.b16 %v174
    %v325 = vunpack.c.l.b16 %v175
    %v326 = vunpack.c.h.b16 %v175
    %v327 = vunpack.c.l.b16 %v176
    %v328 = vunpack.c.h.b16 %v176
    %v329 = vunpack.c.l.b16 %v177
    %v330 = vunpack.c.h.b16 %v177
    %v331 = vunpack.c.l.b16 %v178
    %v332 = vunpack.c.h.b16 %v178
    %v333 = vunpack.c.l.b16 %v179
    %v334 = vunpack.c.h.b16 %v179
    %v335 = vunpack.c.l.b16 %v180
    %v336 = vunpack.c.h.b16 %v180
    %v337 = vunpack.c.l.b16 %v181
    %v338 = vunpack.c.h.b16 %v181
    %v339 = vunpack.c.l.b16 %v182
    %v340 = vunpack.c.h.b16 %v182
    %v341 = vunpack.c.l.b16 %v183
    %v342 = vunpack.c.h.b16 %v183
    %v343 = vunpack.c.l.b16 %v184
    %v344 = vunpack.c.h.b16 %v184
    %v345 = vunpack.c.l.b16 %v185
    %v346 = vunpack.c.h.b16 %v185
    %v347 = vunpack.c.l.b16 %v186
    %v348 = vunpack.c.h.b16 %v186
    %v349 = vunpack.c.l.b16 %v187
    %v350 = vunpack.c.h.b16 %v187
    %v351 = vunpack.c.l.b16 %v188
    %v352 = vunpack.c.h.b16 %v188
    %v353 = vunpack.c.l.b16 %v189
    %v354 = vunpack.c.h.b16 %v189
    %v355 = vunpack.c.l.b16 %v190
    %v356 = vunpack.c.h.b16 %v190
    %v357 = vpack.c.b16 %v297, %v293
    %v358 = vpack.c.b16 %v298, %v294
    %v359 = vpack.c.b16 %v299, %v295
    %v360 = vpack.c.b16 %v300, %v296
    %v361 = vpack.c.b16 %v305, %v301
    %v362 = vpack.c.b16 %v306, %v302
    %v363 = vpack.c.b16 %v307, %v303
    %v364 = vpack.c.b16 %v308, %v304
    %v365 = vpack.c.b16 %v313, %v309
    %v366 = vpack.c.b16 %v314, %v310
    %v367 = vpack.c.b16 %v315, %v311
    %v368 = vpack.c.b16 %v316, %v312
    %v369 = vpack.c.b16 %v321, %v317
    %v370 = vpack.c.b16 %v322, %v318
    %v371 = vpack.c.b16 %v323, %v319
    %v372 = vpack.c.b16 %v324, %v320
    %v373 = vpack.c.b16 %v329, %v325
    %v374 = vpack.c.b16 %v330, %v326
    %v375 = vpack.c.b16 %v331, %v327
    %v376 = vpack.c.b16 %v332, %v328
    %v377 = vpack.c.b16 %v337, %v333
    %v378 = vpack.c.b16 %v338, %v334
    %v379 = vpack.c.b16 %v339, %v335
    %v380 = vpack.c.b16 %v340, %v336
    %v381 = vpack.c.b16 %v345, %v341
    %v382 = vpack.c.b16 %v346, %v342
    %v383 = vpack.c.b16 %v347, %v343
    %v384 = vpack.c.b16 %v348, %v344
    %v385 = vpack.c.b16 %v353, %v349
    %v386 = vpack.c.b16 %v354, %v350
    %v387 = vpack.c.b16 %v355, %v351
    %v388 = vpack.c.b16 %v356, %v352
    %421 = vmatprep.subr.bf16.mxu0 %v386
    %422 = vmatpush1.bf16.msra.mxu0 %v385
    %423 = vmatprep.subr.bf16.mxu0 %v382
    %424 = vmatpush1.bf16.msra.mxu0 %v381
    %425 = vmatprep.subr.bf16.mxu0 %v378
    %426 = vmatpush1.bf16.msra.mxu0 %v377
    %427 = vmatprep.subr.bf16.mxu0 %v374
    %428 = vmatpush1.bf16.msra.mxu0 %v373
    %429 = vmatprep.subr.bf16.mxu0 %v370
    %430 = vmatpush1.bf16.msra.mxu0 %v369
    %431 = vmatprep.subr.bf16.mxu0 %v366
    %432 = vmatpush1.bf16.msra.mxu0 %v365
    %433 = vmatprep.subr.bf16.mxu0 %v362
    %434 = vmatpush1.bf16.msra.mxu0 %v361
    %435 = vmatprep.subr.bf16.mxu0 %v358
    %436 = vmatpush1.bf16.msra.mxu0 %v357
    %437 = vmatprep.subr.bf16.mxu0 0
    %438 = vmatpush2.bf16.msra.mxu0 0
    %439 = vmatprep.subr.bf16.mxu0 0
    %440 = vmatpush2.bf16.msra.mxu0 0
    %441 = vmatprep.subr.bf16.mxu0 0
    %442 = vmatpush2.bf16.msra.mxu0 0
    %443 = vmatprep.subr.bf16.mxu0 0
    %444 = vmatpush2.bf16.msra.mxu0 0
    %445 = vmatprep.subr.bf16.mxu0 0
    %446 = vmatpush2.bf16.msra.mxu0 0
    %447 = vmatprep.subr.bf16.mxu0 0
    %448 = vmatpush2.bf16.msra.mxu0 0
    %449 = vmatprep.subr.bf16.mxu0 0
    %450 = vmatpush2.bf16.msra.mxu0 0
    %451 = vmatprep.subr.bf16.mxu0 0
    %452 = vmatpush2.bf16.msra.mxu0 0
    %453 = vmatprep.mubr.bf16.mxu0 0
    %454 = vmatmul.mubr.bf16.gmra.mxu0 %v245
    %v455 = vpop.f32.mrf.mxu0
    %v456 = vadd.f32 %v196, %v455
    %v457 = vpop.f32.mrf.mxu0
    %v458 = vadd.f32 %v200, %v457
    %v459 = vpop.f32.mrf.mxu0
    %v460 = vadd.f32 %v196, %v459
    %v461 = vpop.f32.mrf.mxu0
    %v462 = vadd.f32 %v200, %v461
    %463 = vmatprep.mubr.bf16.mxu0 0
    %464 = vmatmul.mubr.bf16.gmra.mxu0 %v246
    %v465 = vpop.f32.mrf.mxu0
    %v466 = vadd.f32 %v196, %v465
    %v467 = vpop.f32.mrf.mxu0
    %v468 = vadd.f32 %v200, %v467
    %v469 = vpop.f32.mrf.mxu0
    %v470 = vadd.f32 %v196, %v469
    %v471 = vpop.f32.mrf.mxu0
    %v472 = vadd.f32 %v200, %v471
    %473 = vmatprep.mubr.bf16.mxu0 0
    %474 = vmatmul.mubr.bf16.gmra.mxu0 %v247
    %v475 = vpop.f32.mrf.mxu0
    %v476 = vadd.f32 %v196, %v475
    %v477 = vpop.f32.mrf.mxu0
    %v478 = vadd.f32 %v200, %v477
    %v479 = vpop.f32.mrf.mxu0
    %v480 = vadd.f32 %v196, %v479
    %v481 = vpop.f32.mrf.mxu0
    %v482 = vadd.f32 %v200, %v481
    %483 = vmatprep.mubr.bf16.mxu0 0
    %484 = vmatmul.mubr.bf16.gmra.mxu0 %v248
    %v485 = vpop.f32.mrf.mxu0
    %v486 = vadd.f32 %v196, %v485
    %v487 = vpop.f32.mrf.mxu0
    %v488 = vadd.f32 %v200, %v487
    %v489 = vpop.f32.mrf.mxu0
    %v490 = vadd.f32 %v196, %v489
    %v491 = vpop.f32.mrf.mxu0
    %v492 = vadd.f32 %v200, %v491
    %493 = vmatprep.mubr.bf16.mxu0 0
    %494 = vmatmul.mubr.bf16.gmra.mxu0 %v249
    %v495 = vpop.f32.mrf.mxu0
    %v496 = vadd.f32 %v196, %v495
    %v497 = vpop.f32.mrf.mxu0
    %v498 = vadd.f32 %v200, %v497
    %v499 = vpop.f32.mrf.mxu0
    %v500 = vadd.f32 %v196, %v499
    %v501 = vpop.f32.mrf.mxu0
    %v502 = vadd.f32 %v200, %v501
    %503 = vmatprep.mubr.bf16.mxu0 0
    %504 = vmatmul.mubr.bf16.gmra.mxu0 %v250
    %v505 = vpop.f32.mrf.mxu0
    %v506 = vadd.f32 %v196, %v505
    %v507 = vpop.f32.mrf.mxu0
    %v508 = vadd.f32 %v200, %v507
    %v509 = vpop.f32.mrf.mxu0
    %v510 = vadd.f32 %v196, %v509
    %v511 = vpop.f32.mrf.mxu0
    %v512 = vadd.f32 %v200, %v511
    %513 = vmatprep.mubr.bf16.mxu0 0
    %514 = vmatmul.mubr.bf16.gmra.mxu0 %v251
    %v515 = vpop.f32.mrf.mxu0
    %v516 = vadd.f32 %v196, %v515
    %v517 = vpop.f32.mrf.mxu0
    %v518 = vadd.f32 %v200, %v517
    %v519 = vpop.f32.mrf.mxu0
    %v520 = vadd.f32 %v196, %v519
    %v521 = vpop.f32.mrf.mxu0
    %v522 = vadd.f32 %v200, %v521
    %523 = vmatprep.mubr.bf16.mxu0 0
    %524 = vmatmul.mubr.bf16.gmra.mxu0 %v252
    %v525 = vpop.f32.mrf.mxu0
    %v526 = vadd.f32 %v196, %v525
    %v527 = vpop.f32.mrf.mxu0
    %v528 = vadd.f32 %v200, %v527
    %v529 = vpop.f32.mrf.mxu0
    %v530 = vadd.f32 %v196, %v529
    %v531 = vpop.f32.mrf.mxu0
    %v532 = vadd.f32 %v200, %v531
    %533 = vdwg.mxu0
    %534 = vmatprep.subr.bf16.mxu0 %v388
    %535 = vmatpush1.bf16.msra.mxu0 %v387
    %536 = vmatprep.subr.bf16.mxu0 %v384
    %537 = vmatpush1.bf16.msra.mxu0 %v383
    %538 = vmatprep.subr.bf16.mxu0 %v380
    %539 = vmatpush1.bf16.msra.mxu0 %v379
    %540 = vmatprep.subr.bf16.mxu0 %v376
    %541 = vmatpush1.bf16.msra.mxu0 %v375
    %542 = vmatprep.subr.bf16.mxu0 %v372
    %543 = vmatpush1.bf16.msra.mxu0 %v371
    %544 = vmatprep.subr.bf16.mxu0 %v368
    %545 = vmatpush1.bf16.msra.mxu0 %v367
    %546 = vmatprep.subr.bf16.mxu0 %v364
    %547 = vmatpush1.bf16.msra.mxu0 %v363
    %548 = vmatprep.subr.bf16.mxu0 %v360
    %549 = vmatpush1.bf16.msra.mxu0 %v359
    %550 = vmatprep.subr.bf16.mxu0 0
    %551 = vmatpush2.bf16.msra.mxu0 0
    %552 = vmatprep.subr.bf16.mxu0 0
    %553 = vmatpush2.bf16.msra.mxu0 0
    %554 = vmatprep.subr.bf16.mxu0 0
    %555 = vmatpush2.bf16.msra.mxu0 0
    %556 = vmatprep.subr.bf16.mxu0 0
    %557 = vmatpush2.bf16.msra.mxu0 0
    %558 = vmatprep.subr.bf16.mxu0 0
    %559 = vmatpush2.bf16.msra.mxu0 0
    %560 = vmatprep.subr.bf16.mxu0 0
    %561 = vmatpush2.bf16.msra.mxu0 0
    %562 = vmatprep.subr.bf16.mxu0 0
    %563 = vmatpush2.bf16.msra.mxu0 0
    %564 = vmatprep.subr.bf16.mxu0 0
    %565 = vmatpush2.bf16.msra.mxu0 0
    %566 = vmatprep.mubr.bf16.mxu0 0
    %567 = vmatmul.mubr.bf16.gmra.mxu0 %v245
    %v568 = vpop.f32.mrf.mxu0
    %v569 = vadd.f32 %v204, %v568
    %v570 = vpop.f32.mrf.mxu0
    %v571 = vadd.f32 %v208, %v570
    %v572 = vpop.f32.mrf.mxu0
    %v573 = vadd.f32 %v204, %v572
    %v574 = vpop.f32.mrf.mxu0
    %v575 = vadd.f32 %v208, %v574
    %576 = vmatprep.mubr.bf16.mxu0 0
    %577 = vmatmul.mubr.bf16.gmra.mxu0 %v246
    %v578 = vpop.f32.mrf.mxu0
    %v579 = vadd.f32 %v204, %v578
    %v580 = vpop.f32.mrf.mxu0
    %v581 = vadd.f32 %v208, %v580
    %v582 = vpop.f32.mrf.mxu0
    %v583 = vadd.f32 %v204, %v582
    %v584 = vpop.f32.mrf.mxu0
    %v585 = vadd.f32 %v208, %v584
    %586 = vmatprep.mubr.bf16.mxu0 0
    %587 = vmatmul.mubr.bf16.gmra.mxu0 %v247
    %v588 = vpop.f32.mrf.mxu0
    %v589 = vadd.f32 %v204, %v588
    %v590 = vpop.f32.mrf.mxu0
    %v591 = vadd.f32 %v208, %v590
    %v592 = vpop.f32.mrf.mxu0
    %v593 = vadd.f32 %v204, %v592
    %v594 = vpop.f32.mrf.mxu0
    %v595 = vadd.f32 %v208, %v594
    %596 = vmatprep.mubr.bf16.mxu0 0
    %597 = vmatmul.mubr.bf16.gmra.mxu0 %v248
    %v598 = vpop.f32.mrf.mxu0
    %v599 = vadd.f32 %v204, %v598
    %v600 = vpop.f32.mrf.mxu0
    %v601 = vadd.f32 %v208, %v600
    %v602 = vpop.f32.mrf.mxu0
    %v603 = vadd.f32 %v204, %v602
    %v604 = vpop.f32.mrf.mxu0
    %v605 = vadd.f32 %v208, %v604
    %606 = vmatprep.mubr.bf16.mxu0 0
    %607 = vmatmul.mubr.bf16.gmra.mxu0 %v249
    %v608 = vpop.f32.mrf.mxu0
    %v609 = vadd.f32 %v204, %v608
    %v610 = vpop.f32.mrf.mxu0
    %v611 = vadd.f32 %v208, %v610
    %v612 = vpop.f32.mrf.mxu0
    %v613 = vadd.f32 %v204, %v612
    %v614 = vpop.f32.mrf.mxu0
    %v615 = vadd.f32 %v208, %v614
    %616 = vmatprep.mubr.bf16.mxu0 0
    %617 = vmatmul.mubr.bf16.gmra.mxu0 %v250
    %v618 = vpop.f32.mrf.mxu0
    %v619 = vadd.f32 %v204, %v618
    %v620 = vpop.f32.mrf.mxu0
    %v621 = vadd.f32 %v208, %v620
    %v622 = vpop.f32.mrf.mxu0
    %v623 = vadd.f32 %v204, %v622
    %v624 = vpop.f32.mrf.mxu0
    %v625 = vadd.f32 %v208, %v624
    %626 = vmatprep.mubr.bf16.mxu0 0
    %627 = vmatmul.mubr.bf16.gmra.mxu0 %v251
    %v628 = vpop.f32.mrf.mxu0
    %v629 = vadd.f32 %v204, %v628
    %v630 = vpop.f32.mrf.mxu0
    %v631 = vadd.f32 %v208, %v630
    %v632 = vpop.f32.mrf.mxu0
    %v633 = vadd.f32 %v204, %v632
    %v634 = vpop.f32.mrf.mxu0
    %v635 = vadd.f32 %v208, %v634
    %636 = vmatprep.mubr.bf16.mxu0 0
    %637 = vmatmul.mubr.bf16.gmra.mxu0 %v252
    %v638 = vpop.f32.mrf.mxu0
    %v639 = vadd.f32 %v204, %v638
    %v640 = vpop.f32.mrf.mxu0
    %v641 = vadd.f32 %v208, %v640
    %v642 = vpop.f32.mrf.mxu0
    %v643 = vadd.f32 %v204, %v642
    %v644 = vpop.f32.mrf.mxu0
    %v645 = vadd.f32 %v208, %v644
    %646 = vdwg.mxu0
    %647 = vst [vmem:[#allocation3] sm:$0xff] %v456
    %648 = vst [vmem:[#allocation3 + $0x8] sm:$0xff] %v458
    %649 = vst [vmem:[#allocation3 + $0x10] sm:$0xff] %v569
    %650 = vst [vmem:[#allocation3 + $0x18] sm:$0xff] %v571
    %651 = vst [vmem:[#allocation3 + $0x20] sm:$0xff] %v460
    %652 = vst [vmem:[#allocation3 + $0x28] sm:$0xff] %v462
    %653 = vst [vmem:[#allocation3 + $0x30] sm:$0xff] %v573
    %654 = vst [vmem:[#allocation3 + $0x38] sm:$0xff] %v575
    %655 = vst [vmem:[#allocation3 + $0x40] sm:$0xff] %v466
    %656 = vst [vmem:[#allocation3 + $0x48] sm:$0xff] %v468
    %657 = vst [vmem:[#allocation3 + $0x50] sm:$0xff] %v579
    %658 = vst [vmem:[#allocation3 + $0x58] sm:$0xff] %v581
    %659 = vst [vmem:[#allocation3 + $0x60] sm:$0xff] %v470
    %660 = vst [vmem:[#allocation3 + $0x68] sm:$0xff] %v472
    %661 = vst [vmem:[#allocation3 + $0x70] sm:$0xff] %v583
    %662 = vst [vmem:[#allocation3 + $0x78] sm:$0xff] %v585
    %663 = vst [vmem:[#allocation3 + $0x80] sm:$0xff] %v476
    %664 = vst [vmem:[#allocation3 + $0x88] sm:$0xff] %v478
    %665 = vst [vmem:[#allocation3 + $0x90] sm:$0xff] %v589
    %666 = vst [vmem:[#allocation3 + $0x98] sm:$0xff] %v591
    %667 = vst [vmem:[#allocation3 + $0xa0] sm:$0xff] %v480
    %668 = vst [vmem:[#allocation3 + $0xa8] sm:$0xff] %v482
    %669 = vst [vmem:[#allocation3 + $0xb0] sm:$0xff] %v593
    %670 = vst [vmem:[#allocation3 + $0xb8] sm:$0xff] %v595
    %671 = vst [vmem:[#allocation3 + $0xc0] sm:$0xff] %v486
    %672 = vst [vmem:[#allocation3 + $0xc8] sm:$0xff] %v488
    %673 = vst [vmem:[#allocation3 + $0xd0] sm:$0xff] %v599
    %674 = vst [vmem:[#allocation3 + $0xd8] sm:$0xff] %v601
    %675 = vst [vmem:[#allocation3 + $0xe0] sm:$0xff] %v490
    %676 = vst [vmem:[#allocation3 + $0xe8] sm:$0xff] %v492
    %677 = vst [vmem:[#allocation3 + $0xf0] sm:$0xff] %v603
    %678 = vst [vmem:[#allocation3 + $0xf8] sm:$0xff] %v605
    %679 = vst [vmem:[#allocation3 + $0x100] sm:$0xff] %v496
    %680 = vst [vmem:[#allocation3 + $0x108] sm:$0xff] %v498
    %681 = vst [vmem:[#allocation3 + $0x110] sm:$0xff] %v609
    %682 = vst [vmem:[#allocation3 + $0x118] sm:$0xff] %v611
    %683 = vst [vmem:[#allocation3 + $0x120] sm:$0xff] %v500
    %684 = vst [vmem:[#allocation3 + $0x128] sm:$0xff] %v502
    %685 = vst [vmem:[#allocation3 + $0x130] sm:$0xff] %v613
    %686 = vst [vmem:[#allocation3 + $0x138] sm:$0xff] %v615
    %687 = vst [vmem:[#allocation3 + $0x140] sm:$0xff] %v506
    %688 = vst [vmem:[#allocation3 + $0x148] sm:$0xff] %v508
    %689 = vst [vmem:[#allocation3 + $0x150] sm:$0xff] %v619
    %690 = vst [vmem:[#allocation3 + $0x158] sm:$0xff] %v621
    %691 = vst [vmem:[#allocation3 + $0x160] sm:$0xff] %v510
    %692 = vst [vmem:[#allocation3 + $0x168] sm:$0xff] %v512
    %693 = vst [vmem:[#allocation3 + $0x170] sm:$0xff] %v623
    %694 = vst [vmem:[#allocation3 + $0x178] sm:$0xff] %v625
    %695 = vst [vmem:[#allocation3 + $0x180] sm:$0xff] %v516
    %696 = vst [vmem:[#allocation3 + $0x188] sm:$0xff] %v518
    %697 = vst [vmem:[#allocation3 + $0x190] sm:$0xff] %v629
    %698 = vst [vmem:[#allocation3 + $0x198] sm:$0xff] %v631
    %699 = vst [vmem:[#allocation3 + $0x1a0] sm:$0xff] %v520
    %700 = vst [vmem:[#allocation3 + $0x1a8] sm:$0xff] %v522
    %701 = vst [vmem:[#allocation3 + $0x1b0] sm:$0xff] %v633
    %702 = vst [vmem:[#allocation3 + $0x1b8] sm:$0xff] %v635
    %703 = vst [vmem:[#allocation3 + $0x1c0] sm:$0xff] %v526
    %704 = vst [vmem:[#allocation3 + $0x1c8] sm:$0xff] %v528
    %705 = vst [vmem:[#allocation3 + $0x1d0] sm:$0xff] %v639
    %706 = vst [vmem:[#allocation3 + $0x1d8] sm:$0xff] %v641
    %707 = vst [vmem:[#allocation3 + $0x1e0] sm:$0xff] %v530
    %708 = vst [vmem:[#allocation3 + $0x1e8] sm:$0xff] %v532
    %709 = vst [vmem:[#allocation3 + $0x1f0] sm:$0xff] %v643
    %710 = vst [vmem:[#allocation3 + $0x1f8] sm:$0xff] %v645
    %v711 = vld [vmem:[#allocation10] sm:$0xff]
    %v712 = vld [vmem:[#allocation10 + $0x8] sm:$0xff]
    %v713 = vld [vmem:[#allocation10 + $0x10] sm:$0xff]
    %v714 = vld [vmem:[#allocation10 + $0x18] sm:$0xff]
    %v715 = vld [vmem:[#allocation10 + $0x20] sm:$0xff]
    %v716 = vld [vmem:[#allocation10 + $0x28] sm:$0xff]
    %v717 = vld [vmem:[#allocation10 + $0x30] sm:$0xff]
    %v718 = vld [vmem:[#allocation10 + $0x38] sm:$0xff]
    %v719 = vld [vmem:[#allocation10 + $0x40] sm:$0xff]
    %v720 = vld [vmem:[#allocation10 + $0x48] sm:$0xff]
    %v721 = vld [vmem:[#allocation10 + $0x50] sm:$0xff]
    %v722 = vld [vmem:[#allocation10 + $0x58] sm:$0xff]
    %v723 = vld [vmem:[#allocation10 + $0x60] sm:$0xff]
    %v724 = vld [vmem:[#allocation10 + $0x68] sm:$0xff]
    %v725 = vld [vmem:[#allocation10 + $0x70] sm:$0xff]
    %v726 = vld [vmem:[#allocation10 + $0x78] sm:$0xff]
    %v727 = vld [vmem:[#allocation10 + $0x80] sm:$0xff]
    %v728 = vld [vmem:[#allocation10 + $0x88] sm:$0xff]
    %v729 = vld [vmem:[#allocation10 + $0x90] sm:$0xff]
    %v730 = vld [vmem:[#allocation10 + $0x98] sm:$0xff]
    %v731 = vld [vmem:[#allocation10 + $0xa0] sm:$0xff]
    %v732 = vld [vmem:[#allocation10 + $0xa8] sm:$0xff]
    %v733 = vld [vmem:[#allocation10 + $0xb0] sm:$0xff]
    %v734 = vld [vmem:[#allocation10 + $0xb8] sm:$0xff]
    %v735 = vld [vmem:[#allocation10 + $0xc0] sm:$0xff]
    %v736 = vld [vmem:[#allocation10 + $0xc8] sm:$0xff]
    %v737 = vld [vmem:[#allocation10 + $0xd0] sm:$0xff]
    %v738 = vld [vmem:[#allocation10 + $0xd8] sm:$0xff]
    %v739 = vld [vmem:[#allocation10 + $0xe0] sm:$0xff]
    %v740 = vld [vmem:[#allocation10 + $0xe8] sm:$0xff]
    %v741 = vld [vmem:[#allocation10 + $0xf0] sm:$0xff]
    %v742 = vld [vmem:[#allocation10 + $0xf8] sm:$0xff]
    %v743 = vld [vmem:[#allocation13] sm:$0xff]
    %v744 = vld [vmem:[#allocation13 + $0x8] sm:$0xff]
    %v745 = vld [vmem:[#allocation15] sm:$0xff]
    %v746 = vld [vmem:[#allocation15 + $0x8] sm:$0xff]
    %v747 = vld [vmem:[#allocation3] sm:$0xff]
    %v748 = vld [vmem:[#allocation3 + $0x8] sm:$0xff]
    %v749 = vld [vmem:[#allocation3 + $0x10] sm:$0xff]
    %v750 = vld [vmem:[#allocation3 + $0x18] sm:$0xff]
    %v751 = vld [vmem:[#allocation3 + $0x20] sm:$0xff]
    %v752 = vld [vmem:[#allocation3 + $0x28] sm:$0xff]
    %v753 = vld [vmem:[#allocation3 + $0x30] sm:$0xff]
    %v754 = vld [vmem:[#allocation3 + $0x38] sm:$0xff]
    %v755 = vpack.c.bf16 %v744, %v743
    %v788 = vunpack.c.l.b16 %v711
    %v789 = vunpack.c.h.b16 %v711
    %v790 = vunpack.c.l.b16 %v712
    %v791 = vunpack.c.h.b16 %v712
    %v792 = vunpack.c.l.b16 %v713
    %v793 = vunpack.c.h.b16 %v713
    %v794 = vunpack.c.l.b16 %v714
    %v795 = vunpack.c.h.b16 %v714
    %v796 = vunpack.c.l.b16 %v715
    %v797 = vunpack.c.h.b16 %v715
    %v798 = vunpack.c.l.b16 %v716
    %v799 = vunpack.c.h.b16 %v716
    %v800 = vunpack.c.l.b16 %v717
    %v801 = vunpack.c.h.b16 %v717
    %v802 = vunpack.c.l.b16 %v718
    %v803 = vunpack.c.h.b16 %v718
    %v804 = vunpack.c.l.b16 %v719
    %v805 = vunpack.c.h.b16 %v719
    %v806 = vunpack.c.l.b16 %v720
    %v807 = vunpack.c.h.b16 %v720
    %v808 = vunpack.c.l.b16 %v721
    %v809 = vunpack.c.h.b16 %v721
    %v810 = vunpack.c.l.b16 %v722
    %v811 = vunpack.c.h.b16 %v722
    %v812 = vunpack.c.l.b16 %v723
    %v813 = vunpack.c.h.b16 %v723
    %v814 = vunpack.c.l.b16 %v724
    %v815 = vunpack.c.h.b16 %v724
    %v816 = vunpack.c.l.b16 %v725
    %v817 = vunpack.c.h.b16 %v725
    %v818 = vunpack.c.l.b16 %v726
    %v819 = vunpack.c.h.b16 %v726
    %v820 = vunpack.c.l.b16 %v727
    %v821 = vunpack.c.h.b16 %v727
    %v822 = vunpack.c.l.b16 %v728
    %v823 = vunpack.c.h.b16 %v728
    %v824 = vunpack.c.l.b16 %v729
    %v825 = vunpack.c.h.b16 %v729
    %v826 = vunpack.c.l.b16 %v730
    %v827 = vunpack.c.h.b16 %v730
    %v828 = vunpack.c.l.b16 %v731
    %v829 = vunpack.c.h.b16 %v731
    %v830 = vunpack.c.l.b16 %v732
    %v831 = vunpack.c.h.b16 %v732
    %v832 = vunpack.c.l.b16 %v733
    %v833 = vunpack.c.h.b16 %v733
    %v834 = vunpack.c.l.b16 %v734
    %v835 = vunpack.c.h.b16 %v734
    %v836 = vunpack.c.l.b16 %v735
    %v837 = vunpack.c.h.b16 %v735
    %v838 = vunpack.c.l.b16 %v736
    %v839 = vunpack.c.h.b16 %v736
    %v840 = vunpack.c.l.b16 %v737
    %v841 = vunpack.c.h.b16 %v737
    %v842 = vunpack.c.l.b16 %v738
    %v843 = vunpack.c.h.b16 %v738
    %v844 = vunpack.c.l.b16 %v739
    %v845 = vunpack.c.h.b16 %v739
    %v846 = vunpack.c.l.b16 %v740
    %v847 = vunpack.c.h.b16 %v740
    %v848 = vunpack.c.l.b16 %v741
    %v849 = vunpack.c.h.b16 %v741
    %v850 = vunpack.c.l.b16 %v742
    %v851 = vunpack.c.h.b16 %v742
    %v852 = vpack.c.b16 %v792, %v788
    %v853 = vpack.c.b16 %v793, %v789
    %v854 = vpack.c.b16 %v794, %v790
    %v855 = vpack.c.b16 %v795, %v791
    %v856 = vpack.c.b16 %v800, %v796
    %v857 = vpack.c.b16 %v801, %v797
    %v858 = vpack.c.b16 %v802, %v798
    %v859 = vpack.c.b16 %v803, %v799
    %v860 = vpack.c.b16 %v808, %v804
    %v861 = vpack.c.b16 %v809, %v805
    %v862 = vpack.c.b16 %v810, %v806
    %v863 = vpack.c.b16 %v811, %v807
    %v864 = vpack.c.b16 %v816, %v812
    %v865 = vpack.c.b16 %v817, %v813
    %v866 = vpack.c.b16 %v818, %v814
    %v867 = vpack.c.b16 %v819, %v815
    %v868 = vpack.c.b16 %v824, %v820
    %v869 = vpack.c.b16 %v825, %v821
    %v870 = vpack.c.b16 %v826, %v822
    %v871 = vpack.c.b16 %v827, %v823
    %v872 = vpack.c.b16 %v832, %v828
    %v873 = vpack.c.b16 %v833, %v829
    %v874 = vpack.c.b16 %v834, %v830
    %v875 = vpack.c.b16 %v835, %v831
    %v876 = vpack.c.b16 %v840, %v836
    %v877 = vpack.c.b16 %v841, %v837
    %v878 = vpack.c.b16 %v842, %v838
    %v879 = vpack.c.b16 %v843, %v839
    %v880 = vpack.c.b16 %v848, %v844
    %v881 = vpack.c.b16 %v849, %v845
    %v882 = vpack.c.b16 %v850, %v846
    %v883 = vpack.c.b16 %v851, %v847
    %916 = vmatprep.subr.bf16.mxu0 %v881
    %917 = vmatpush1.bf16.msra.mxu0 %v880
    %918 = vmatprep.subr.bf16.mxu0 %v877
    %919 = vmatpush1.bf16.msra.mxu0 %v876
    %920 = vmatprep.subr.bf16.mxu0 %v873
    %921 = vmatpush1.bf16.msra.mxu0 %v872
    %922 = vmatprep.subr.bf16.mxu0 %v869
    %923 = vmatpush1.bf16.msra.mxu0 %v868
    %924 = vmatprep.subr.bf16.mxu0 %v865
    %925 = vmatpush1.bf16.msra.mxu0 %v864
    %926 = vmatprep.subr.bf16.mxu0 %v861
    %927 = vmatpush1.bf16.msra.mxu0 %v860
    %928 = vmatprep.subr.bf16.mxu0 %v857
    %929 = vmatpush1.bf16.msra.mxu0 %v856
    %930 = vmatprep.subr.bf16.mxu0 %v853
    %931 = vmatpush1.bf16.msra.mxu0 %v852
    %932 = vmatprep.subr.bf16.mxu0 0
    %933 = vmatpush2.bf16.msra.mxu0 0
    %934 = vmatprep.subr.bf16.mxu0 0
    %935 = vmatpush2.bf16.msra.mxu0 0
    %936 = vmatprep.subr.bf16.mxu0 0
    %937 = vmatpush2.bf16.msra.mxu0 0
    %938 = vmatprep.subr.bf16.mxu0 0
    %939 = vmatpush2.bf16.msra.mxu0 0
    %940 = vmatprep.subr.bf16.mxu0 0
    %941 = vmatpush2.bf16.msra.mxu0 0
    %942 = vmatprep.subr.bf16.mxu0 0
    %943 = vmatpush2.bf16.msra.mxu0 0
    %944 = vmatprep.subr.bf16.mxu0 0
    %945 = vmatpush2.bf16.msra.mxu0 0
    %946 = vmatprep.subr.bf16.mxu0 0
    %947 = vmatpush2.bf16.msra.mxu0 0
    %948 = vmatprep.mubr.bf16.mxu0 0
    %949 = vmatmul.mubr.bf16.gmra.mxu0 %v755
    %v950 = vpop.f32.mrf.mxu0
    %v951 = vadd.f32 0.0, %v950
    %v952 = vpop.f32.mrf.mxu0
    %v953 = vadd.f32 0.0, %v952
    %v954 = vpop.f32.mrf.mxu0
    %v955 = vadd.f32 0.0, %v954
    %v956 = vpop.f32.mrf.mxu0
    %v957 = vadd.f32 0.0, %v956
    %958 = vdwg.mxu0
    %959 = vmatprep.subr.bf16.mxu0 %v883
    %960 = vmatpush1.bf16.msra.mxu0 %v882
    %961 = vmatprep.subr.bf16.mxu0 %v879
    %962 = vmatpush1.bf16.msra.mxu0 %v878
    %963 = vmatprep.subr.bf16.mxu0 %v875
    %964 = vmatpush1.bf16.msra.mxu0 %v874
    %965 = vmatprep.subr.bf16.mxu0 %v871
    %966 = vmatpush1.bf16.msra.mxu0 %v870
    %967 = vmatprep.subr.bf16.mxu0 %v867
    %968 = vmatpush1.bf16.msra.mxu0 %v866
    %969 = vmatprep.subr.bf16.mxu0 %v863
    %970 = vmatpush1.bf16.msra.mxu0 %v862
    %971 = vmatprep.subr.bf16.mxu0 %v859
    %972 = vmatpush1.bf16.msra.mxu0 %v858
    %973 = vmatprep.subr.bf16.mxu0 %v855
    %974 = vmatpush1.bf16.msra.mxu0 %v854
    %975 = vmatprep.subr.bf16.mxu0 0
    %976 = vmatpush2.bf16.msra.mxu0 0
    %977 = vmatprep.subr.bf16.mxu0 0
    %978 = vmatpush2.bf16.msra.mxu0 0
    %979 = vmatprep.subr.bf16.mxu0 0
    %980 = vmatpush2.bf16.msra.mxu0 0
    %981 = vmatprep.subr.bf16.mxu0 0
    %982 = vmatpush2.bf16.msra.mxu0 0
    %983 = vmatprep.subr.bf16.mxu0 0
    %984 = vmatpush2.bf16.msra.mxu0 0
    %985 = vmatprep.subr.bf16.mxu0 0
    %986 = vmatpush2.bf16.msra.mxu0 0
    %987 = vmatprep.subr.bf16.mxu0 0
    %988 = vmatpush2.bf16.msra.mxu0 0
    %989 = vmatprep.subr.bf16.mxu0 0
    %990 = vmatpush2.bf16.msra.mxu0 0
    %991 = vmatprep.mubr.bf16.mxu0 0
    %992 = vmatmul.mubr.bf16.gmra.mxu0 %v755
    %v993 = vpop.f32.mrf.mxu0
    %v994 = vadd.f32 0.0, %v993
    %v995 = vpop.f32.mrf.mxu0
    %v996 = vadd.f32 0.0, %v995
    %v997 = vpop.f32.mrf.mxu0
    %v998 = vadd.f32 0.0, %v997
    %v999 = vpop.f32.mrf.mxu0
    %v1000 = vadd.f32 0.0, %v999
    %1001 = vdwg.mxu0
    %v1002 = vadd.f32 %v747, %v951
    %v1003 = vadd.f32 %v748, %v953
    %v1004 = vadd.f32 %v749, %v994
    %v1005 = vadd.f32 %v750, %v996
    %v1006 = vadd.f32 %v751, %v955
    %v1007 = vadd.f32 %v752, %v957
    %v1008 = vadd.f32 %v753, %v998
    %v1009 = vadd.f32 %v754, %v1000
    %v1010 = vmul.f32 %v1002, 0.5
    %v1011 = vmul.f32 %v1006, 0.5
    %v1012 = vtanh.pop %v1010
    %v1013 = vtanh.pop %v1011
    %v1014 = vmul.f32 %v1012, 0.5
    %v1015 = vmul.f32 %v1013, 0.5
    %v1016 = vadd.f32 %v1014, 0.5
    %v1017 = vadd.f32 %v1015, 0.5
    %v1018 = vmul.f32 %v1003, 0.5
    %v1019 = vmul.f32 %v1007, 0.5
    %v1020 = vtanh.pop %v1018
    %v1021 = vtanh.pop %v1019
    %v1022 = vmul.f32 %v1020, 0.5
    %v1023 = vmul.f32 %v1021, 0.5
    %v1024 = vadd.f32 %v1022, 0.5
    %v1025 = vadd.f32 %v1023, 0.5
    %v1026 = vtanh.pop %v1004
    %v1027 = vtanh.pop %v1008
    %v1028 = vmul.f32 %v1005, 0.5
    %v1029 = vmul.f32 %v1009, 0.5
    %v1030 = vtanh.pop %v1028
    %v1031 = vtanh.pop %v1029
    %v1032 = vmul.f32 %v1030, 0.5
    %v1033 = vmul.f32 %v1031, 0.5
    %v1034 = vadd.f32 %v1032, 0.5
    %v1035 = vadd.f32 %v1033, 0.5
    %v1036 = vmul.f32 %v1024, %v745
    %v1037 = vmul.f32 %v1025, %v746
    %v1038 = vmul.f32 %v1016, %v1026
    %v1039 = vmul.f32 %v1017, %v1027
    %v1040 = vadd.f32 %v1036, %v1038
    %v1041 = vadd.f32 %v1037, %v1039
    %v1042 = vtanh.pop %v1040
    %v1043 = vtanh.pop %v1041
    %v1044 = vmul.f32 %v1034, %v1042
    %v1045 = vmul.f32 %v1035, %v1043
    %v1046 = vpack.c.bf16 %v1045, %v1044
    %v1048 = vunpack.c.l.b16 %v1046
    %v1049 = vunpack.c.h.b16 %v1046
    %v1050 = vpack.c.b16 %v1048, %v1048
    %v1051 = vpack.c.b16 %v1049, %v1049
    %1054 = vst [vmem:[#allocation2] sm:$0xf] %v1050
    %1055 = vst [vmem:[#allocation2 + $0x4] sm:$0xf] %v1051
    %s1056 = scalar_lea.vmem [#allocation3], 64
    %v1057 = vld [vmem:[%s1056] sm:$0xff]
    %v1058 = vld [vmem:[%s1056 + $0x8] sm:$0xff]
    %v1059 = vld [vmem:[%s1056 + $0x10] sm:$0xff]
    %v1060 = vld [vmem:[%s1056 + $0x18] sm:$0xff]
    %v1061 = vld [vmem:[%s1056 + $0x20] sm:$0xff]
    %v1062 = vld [vmem:[%s1056 + $0x28] sm:$0xff]
    %v1063 = vld [vmem:[%s1056 + $0x30] sm:$0xff]
    %v1064 = vld [vmem:[%s1056 + $0x38] sm:$0xff]
    %1065 = vmatprep.subr.bf16.mxu0 %v881
    %1066 = vmatpush1.bf16.msra.mxu0 %v880
    %1067 = vmatprep.subr.bf16.mxu0 %v877
    %1068 = vmatpush1.bf16.msra.mxu0 %v876
    %1069 = vmatprep.subr.bf16.mxu0 %v873
    %1070 = vmatpush1.bf16.msra.mxu0 %v872
    %1071 = vmatprep.subr.bf16.mxu0 %v869
    %1072 = vmatpush1.bf16.msra.mxu0 %v868
    %1073 = vmatprep.subr.bf16.mxu0 %v865
    %1074 = vmatpush1.bf16.msra.mxu0 %v864
    %1075 = vmatprep.subr.bf16.mxu0 %v861
    %1076 = vmatpush1.bf16.msra.mxu0 %v860
    %1077 = vmatprep.subr.bf16.mxu0 %v857
    %1078 = vmatpush1.bf16.msra.mxu0 %v856
    %1079 = vmatprep.subr.bf16.mxu0 %v853
    %1080 = vmatpush1.bf16.msra.mxu0 %v852
    %1081 = vmatprep.subr.bf16.mxu0 0
    %1082 = vmatpush2.bf16.msra.mxu0 0
    %1083 = vmatprep.subr.bf16.mxu0 0
    %1084 = vmatpush2.bf16.msra.mxu0 0
    %1085 = vmatprep.subr.bf16.mxu0 0
    %1086 = vmatpush2.bf16.msra.mxu0 0
    %1087 = vmatprep.subr.bf16.mxu0 0
    %1088 = vmatpush2.bf16.msra.mxu0 0
    %1089 = vmatprep.subr.bf16.mxu0 0
    %1090 = vmatpush2.bf16.msra.mxu0 0
    %1091 = vmatprep.subr.bf16.mxu0 0
    %1092 = vmatpush2.bf16.msra.mxu0 0
    %1093 = vmatprep.subr.bf16.mxu0 0
    %1094 = vmatpush2.bf16.msra.mxu0 0
    %1095 = vmatprep.subr.bf16.mxu0 0
    %1096 = vmatpush2.bf16.msra.mxu0 0
    %1097 = vmatprep.mubr.bf16.mxu0 0
    %1098 = vmatmul.mubr.bf16.gmra.mxu0 %v1046
    %v1099 = vpop.f32.mrf.mxu0
    %v1100 = vadd.f32 0.0, %v1099
    %v1101 = vpop.f32.mrf.mxu0
    %v1102 = vadd.f32 0.0, %v1101
    %v1103 = vpop.f32.mrf.mxu0
    %v1104 = vadd.f32 0.0, %v1103
    %v1105 = vpop.f32.mrf.mxu0
    %v1106 = vadd.f32 0.0, %v1105
    %1107 = vdwg.mxu0
    %1108 = vmatprep.subr.bf16.mxu0 %v883
    %1109 = vmatpush1.bf16.msra.mxu0 %v882
    %1110 = vmatprep.subr.bf16.mxu0 %v879
    %1111 = vmatpush1.bf16.msra.mxu0 %v878
    %1112 = vmatprep.subr.bf16.mxu0 %v875
    %1113 = vmatpush1.bf16.msra.mxu0 %v874
    %1114 = vmatprep.subr.bf16.mxu0 %v871
    %1115 = vmatpush1.bf16.msra.mxu0 %v870
    %1116 = vmatprep.subr.bf16.mxu0 %v867
    %1117 = vmatpush1.bf16.msra.mxu0 %v866
    %1118 = vmatprep.subr.bf16.mxu0 %v863
    %1119 = vmatpush1.bf16.msra.mxu0 %v862
    %1120 = vmatprep.subr.bf16.mxu0 %v859
    %1121 = vmatpush1.bf16.msra.mxu0 %v858
    %1122 = vmatprep.subr.bf16.mxu0 %v855
    %1123 = vmatpush1.bf16.msra.mxu0 %v854
    %1124 = vmatprep.subr.bf16.mxu0 0
    %1125 = vmatpush2.bf16.msra.mxu0 0
    %1126 = vmatprep.subr.bf16.mxu0 0
    %1127 = vmatpush2.bf16.msra.mxu0 0
    %1128 = vmatprep.subr.bf16.mxu0 0
    %1129 = vmatpush2.bf16.msra.mxu0 0
    %1130 = vmatprep.subr.bf16.mxu0 0
    %1131 = vmatpush2.bf16.msra.mxu0 0
    %1132 = vmatprep.subr.bf16.mxu0 0
    %1133 = vmatpush2.bf16.msra.mxu0 0
    %1134 = vmatprep.subr.bf16.mxu0 0
    %1135 = vmatpush2.bf16.msra.mxu0 0
    %1136 = vmatprep.subr.bf16.mxu0 0
    %1137 = vmatpush2.bf16.msra.mxu0 0
    %1138 = vmatprep.subr.bf16.mxu0 0
    %1139 = vmatpush2.bf16.msra.mxu0 0
    %1140 = vmatprep.mubr.bf16.mxu0 0
    %1141 = vmatmul.mubr.bf16.gmra.mxu0 %v1046
    %v1142 = vpop.f32.mrf.mxu0
    %v1143 = vadd.f32 0.0, %v1142
    %v1144 = vpop.f32.mrf.mxu0
    %v1145 = vadd.f32 0.0, %v1144
    %v1146 = vpop.f32.mrf.mxu0
    %v1147 = vadd.f32 0.0, %v1146
    %v1148 = vpop.f32.mrf.mxu0
    %v1149 = vadd.f32 0.0, %v1148
    %1150 = vdwg.mxu0
    %v1151 = vadd.f32 %v1057, %v1100
    %v1152 = vadd.f32 %v1058, %v1102
    %v1153 = vadd.f32 %v1059, %v1143
    %v1154 = vadd.f32 %v1060, %v1145
    %v1155 = vadd.f32 %v1061, %v1104
    %v1156 = vadd.f32 %v1062, %v1106
    %v1157 = vadd.f32 %v1063, %v1147
    %v1158 = vadd.f32 %v1064, %v1149
    %v1159 = vmul.f32 %v1151, 0.5
    %v1160 = vmul.f32 %v1155, 0.5
    %v1161 = vtanh.pop %v1159
    %v1162 = vtanh.pop %v1160
    %v1163 = vmul.f32 %v1161, 0.5
    %v1164 = vmul.f32 %v1162, 0.5
    %v1165 = vadd.f32 %v1163, 0.5
    %v1166 = vadd.f32 %v1164, 0.5
    %v1167 = vmul.f32 %v1152, 0.5
    %v1168 = vmul.f32 %v1156, 0.5
    %v1169 = vtanh.pop %v1167
    %v1170 = vtanh.pop %v1168
    %v1171 = vmul.f32 %v1169, 0.5
    %v1172 = vmul.f32 %v1170, 0.5
    %v1173 = vadd.f32 %v1171, 0.5
    %v1174 = vadd.f32 %v1172, 0.5
    %v1175 = vtanh.pop %v1153
    %v1176 = vtanh.pop %v1157
    %v1177 = vmul.f32 %v1154, 0.5
    %v1178 = vmul.f32 %v1158, 0.5
    %v1179 = vtanh.pop %v1177
    %v1180 = vtanh.pop %v1178
    %v1181 = vmul.f32 %v1179, 0.5
    %v1182 = vmul.f32 %v1180, 0.5
    %v1183 = vadd.f32 %v1181, 0.5
    %v1184 = vadd.f32 %v1182, 0.5
    %v1185 = vmul.f32 %v1173, %v1040
    %v1186 = vmul.f32 %v1174, %v1041
    %v1187 = vmul.f32 %v1165, %v1175
    %v1188 = vmul.f32 %v1166, %v1176
    %v1189 = vadd.f32 %v1185, %v1187
    %v1190 = vadd.f32 %v1186, %v1188
    %v1191 = vtanh.pop %v1189
    %v1192 = vtanh.pop %v1190
    %v1193 = vmul.f32 %v1183, %v1191
    %v1194 = vmul.f32 %v1184, %v1192
    %v1195 = vpack.c.bf16 %v1194, %v1193
    %v1197 = vunpack.c.l.b16 %v1195
    %v1198 = vunpack.c.h.b16 %v1195
    %v1199 = vpack.c.b16 %v1197, %v1197
    %v1200 = vpack.c.b16 %v1198, %v1198
    %s1203 = scalar_lea.vmem [#allocation2], 8
    %1204 = vst [vmem:[%s1203] sm:$0xf] %v1199
    %1205 = vst [vmem:[%s1203 + $0x4] sm:$0xf] %v1200
    %s1206 = scalar_lea.vmem [#allocation3], 128
    %v1207 = vld [vmem:[%s1206] sm:$0xff]
    %v1208 = vld [vmem:[%s1206 + $0x8] sm:$0xff]
    %v1209 = vld [vmem:[%s1206 + $0x10] sm:$0xff]
    %v1210 = vld [vmem:[%s1206 + $0x18] sm:$0xff]
    %v1211 = vld [vmem:[%s1206 + $0x20] sm:$0xff]
    %v1212 = vld [vmem:[%s1206 + $0x28] sm:$0xff]
    %v1213 = vld [vmem:[%s1206 + $0x30] sm:$0xff]
    %v1214 = vld [vmem:[%s1206 + $0x38] sm:$0xff]
    %1215 = vmatprep.subr.bf16.mxu0 %v881
    %1216 = vmatpush1.bf16.msra.mxu0 %v880
    %1217 = vmatprep.subr.bf16.mxu0 %v877
    %1218 = vmatpush1.bf16.msra.mxu0 %v876
    %1219 = vmatprep.subr.bf16.mxu0 %v873
    %1220 = vmatpush1.bf16.msra.mxu0 %v872
    %1221 = vmatprep.subr.bf16.mxu0 %v869
    %1222 = vmatpush1.bf16.msra.mxu0 %v868
    %1223 = vmatprep.subr.bf16.mxu0 %v865
    %1224 = vmatpush1.bf16.msra.mxu0 %v864
    %1225 = vmatprep.subr.bf16.mxu0 %v861
    %1226 = vmatpush1.bf16.msra.mxu0 %v860
    %1227 = vmatprep.subr.bf16.mxu0 %v857
    %1228 = vmatpush1.bf16.msra.mxu0 %v856
    %1229 = vmatprep.subr.bf16.mxu0 %v853
    %1230 = vmatpush1.bf16.msra.mxu0 %v852
    %1231 = vmatprep.subr.bf16.mxu0 0
    %1232 = vmatpush2.bf16.msra.mxu0 0
    %1233 = vmatprep.subr.bf16.mxu0 0
    %1234 = vmatpush2.bf16.msra.mxu0 0
    %1235 = vmatprep.subr.bf16.mxu0 0
    %1236 = vmatpush2.bf16.msra.mxu0 0
    %1237 = vmatprep.subr.bf16.mxu0 0
    %1238 = vmatpush2.bf16.msra.mxu0 0
    %1239 = vmatprep.subr.bf16.mxu0 0
    %1240 = vmatpush2.bf16.msra.mxu0 0
    %1241 = vmatprep.subr.bf16.mxu0 0
    %1242 = vmatpush2.bf16.msra.mxu0 0
    %1243 = vmatprep.subr.bf16.mxu0 0
    %1244 = vmatpush2.bf16.msra.mxu0 0
    %1245 = vmatprep.subr.bf16.mxu0 0
    %1246 = vmatpush2.bf16.msra.mxu0 0
    %1247 = vmatprep.mubr.bf16.mxu0 0
    %1248 = vmatmul.mubr.bf16.gmra.mxu0 %v1195
    %v1249 = vpop.f32.mrf.mxu0
    %v1250 = vadd.f32 0.0, %v1249
    %v1251 = vpop.f32.mrf.mxu0
    %v1252 = vadd.f32 0.0, %v1251
    %v1253 = vpop.f32.mrf.mxu0
    %v1254 = vadd.f32 0.0, %v1253
    %v1255 = vpop.f32.mrf.mxu0
    %v1256 = vadd.f32 0.0, %v1255
    %1257 = vdwg.mxu0
    %1258 = vmatprep.subr.bf16.mxu0 %v883
    %1259 = vmatpush1.bf16.msra.mxu0 %v882
    %1260 = vmatprep.subr.bf16.mxu0 %v879
    %1261 = vmatpush1.bf16.msra.mxu0 %v878
    %1262 = vmatprep.subr.bf16.mxu0 %v875
    %1263 = vmatpush1.bf16.msra.mxu0 %v874
    %1264 = vmatprep.subr.bf16.mxu0 %v871
    %1265 = vmatpush1.bf16.msra.mxu0 %v870
    %1266 = vmatprep.subr.bf16.mxu0 %v867
    %1267 = vmatpush1.bf16.msra.mxu0 %v866
    %1268 = vmatprep.subr.bf16.mxu0 %v863
    %1269 = vmatpush1.bf16.msra.mxu0 %v862
    %1270 = vmatprep.subr.bf16.mxu0 %v859
    %1271 = vmatpush1.bf16.msra.mxu0 %v858
    %1272 = vmatprep.subr.bf16.mxu0 %v855
    %1273 = vmatpush1.bf16.msra.mxu0 %v854
    %1274 = vmatprep.subr.bf16.mxu0 0
    %1275 = vmatpush2.bf16.msra.mxu0 0
    %1276 = vmatprep.subr.bf16.mxu0 0
    %1277 = vmatpush2.bf16.msra.mxu0 0
    %1278 = vmatprep.subr.bf16.mxu0 0
    %1279 = vmatpush2.bf16.msra.mxu0 0
    %1280 = vmatprep.subr.bf16.mxu0 0
    %1281 = vmatpush2.bf16.msra.mxu0 0
    %1282 = vmatprep.subr.bf16.mxu0 0
    %1283 = vmatpush2.bf16.msra.mxu0 0
    %1284 = vmatprep.subr.bf16.mxu0 0
    %1285 = vmatpush2.bf16.msra.mxu0 0
    %1286 = vmatprep.subr.bf16.mxu0 0
    %1287 = vmatpush2.bf16.msra.mxu0 0
    %1288 = vmatprep.subr.bf16.mxu0 0
    %1289 = vmatpush2.bf16.msra.mxu0 0
    %1290 = vmatprep.mubr.bf16.mxu0 0
    %1291 = vmatmul.mubr.bf16.gmra.mxu0 %v1195
    %v1292 = vpop.f32.mrf.mxu0
    %v1293 = vadd.f32 0.0, %v1292
    %v1294 = vpop.f32.mrf.mxu0
    %v1295 = vadd.f32 0.0, %v1294
    %v1296 = vpop.f32.mrf.mxu0
    %v1297 = vadd.f32 0.0, %v1296
    %v1298 = vpop.f32.mrf.mxu0
    %v1299 = vadd.f32 0.0, %v1298
    %1300 = vdwg.mxu0
    %v1301 = vadd.f32 %v1207, %v1250
    %v1302 = vadd.f32 %v1208, %v1252
    %v1303 = vadd.f32 %v1209, %v1293
    %v1304 = vadd.f32 %v1210, %v1295
    %v1305 = vadd.f32 %v1211, %v1254
    %v1306 = vadd.f32 %v1212, %v1256
    %v1307 = vadd.f32 %v1213, %v1297
    %v1308 = vadd.f32 %v1214, %v1299
    %v1309 = vmul.f32 %v1301, 0.5
    %v1310 = vmul.f32 %v1305, 0.5
    %v1311 = vtanh.pop %v1309
    %v1312 = vtanh.pop %v1310
    %v1313 = vmul.f32 %v1311, 0.5
    %v1314 = vmul.f32 %v1312, 0.5
    %v1315 = vadd.f32 %v1313, 0.5
    %v1316 = vadd.f32 %v1314, 0.5
    %v1317 = vmul.f32 %v1302, 0.5
    %v1318 = vmul.f32 %v1306, 0.5
    %v1319 = vtanh.pop %v1317
    %v1320 = vtanh.pop %v1318
    %v1321 = vmul.f32 %v1319, 0.5
    %v1322 = vmul.f32 %v1320, 0.5
    %v1323 = vadd.f32 %v1321, 0.5
    %v1324 = vadd.f32 %v1322, 0.5
    %v1325 = vtanh.pop %v1303
    %v1326 = vtanh.pop %v1307
    %v1327 = vmul.f32 %v1304, 0.5
    %v1328 = vmul.f32 %v1308, 0.5
    %v1329 = vtanh.pop %v1327
    %v1330 = vtanh.pop %v1328
    %v1331 = vmul.f32 %v1329, 0.5
    %v1332 = vmul.f32 %v1330, 0.5
    %v1333 = vadd.f32 %v1331, 0.5
    %v1334 = vadd.f32 %v1332, 0.5
    %v1335 = vmul.f32 %v1323, %v1189
    %v1336 = vmul.f32 %v1324, %v1190
    %v1337 = vmul.f32 %v1315, %v1325
    %v1338 = vmul.f32 %v1316, %v1326
    %v1339 = vadd.f32 %v1335, %v1337
    %v1340 = vadd.f32 %v1336, %v1338
    %v1341 = vtanh.pop %v1339
    %v1342 = vtanh.pop %v1340
    %v1343 = vmul.f32 %v1333, %v1341
    %v1344 = vmul.f32 %v1334, %v1342
    %v1345 = vpack.c.bf16 %v1344, %v1343
    %v1347 = vunpack.c.l.b16 %v1345
    %v1348 = vunpack.c.h.b16 %v1345
    %v1349 = vpack.c.b16 %v1347, %v1347
    %v1350 = vpack.c.b16 %v1348, %v1348
    %s1353 = scalar_lea.vmem [#allocation2], 16
    %1354 = vst [vmem:[%s1353] sm:$0xf] %v1349
    %1355 = vst [vmem:[%s1353 + $0x4] sm:$0xf] %v1350
    %s1356 = scalar_lea.vmem [#allocation3], 192
    %v1357 = vld [vmem:[%s1356] sm:$0xff]
    %v1358 = vld [vmem:[%s1356 + $0x8] sm:$0xff]
    %v1359 = vld [vmem:[%s1356 + $0x10] sm:$0xff]
    %v1360 = vld [vmem:[%s1356 + $0x18] sm:$0xff]
    %v1361 = vld [vmem:[%s1356 + $0x20] sm:$0xff]
    %v1362 = vld [vmem:[%s1356 + $0x28] sm:$0xff]
    %v1363 = vld [vmem:[%s1356 + $0x30] sm:$0xff]
    %v1364 = vld [vmem:[%s1356 + $0x38] sm:$0xff]
    %1365 = vmatprep.subr.bf16.mxu0 %v881
    %1366 = vmatpush1.bf16.msra.mxu0 %v880
    %1367 = vmatprep.subr.bf16.mxu0 %v877
    %1368 = vmatpush1.bf16.msra.mxu0 %v876
    %1369 = vmatprep.subr.bf16.mxu0 %v873
    %1370 = vmatpush1.bf16.msra.mxu0 %v872
    %1371 = vmatprep.subr.bf16.mxu0 %v869
    %1372 = vmatpush1.bf16.msra.mxu0 %v868
    %1373 = vmatprep.subr.bf16.mxu0 %v865
    %1374 = vmatpush1.bf16.msra.mxu0 %v864
    %1375 = vmatprep.subr.bf16.mxu0 %v861
    %1376 = vmatpush1.bf16.msra.mxu0 %v860
    %1377 = vmatprep.subr.bf16.mxu0 %v857
    %1378 = vmatpush1.bf16.msra.mxu0 %v856
    %1379 = vmatprep.subr.bf16.mxu0 %v853
    %1380 = vmatpush1.bf16.msra.mxu0 %v852
    %1381 = vmatprep.subr.bf16.mxu0 0
    %1382 = vmatpush2.bf16.msra.mxu0 0
    %1383 = vmatprep.subr.bf16.mxu0 0
    %1384 = vmatpush2.bf16.msra.mxu0 0
    %1385 = vmatprep.subr.bf16.mxu0 0
    %1386 = vmatpush2.bf16.msra.mxu0 0
    %1387 = vmatprep.subr.bf16.mxu0 0
    %1388 = vmatpush2.bf16.msra.mxu0 0
    %1389 = vmatprep.subr.bf16.mxu0 0
    %1390 = vmatpush2.bf16.msra.mxu0 0
    %1391 = vmatprep.subr.bf16.mxu0 0
    %1392 = vmatpush2.bf16.msra.mxu0 0
    %1393 = vmatprep.subr.bf16.mxu0 0
    %1394 = vmatpush2.bf16.msra.mxu0 0
    %1395 = vmatprep.subr.bf16.mxu0 0
    %1396 = vmatpush2.bf16.msra.mxu0 0
    %1397 = vmatprep.mubr.bf16.mxu0 0
    %1398 = vmatmul.mubr.bf16.gmra.mxu0 %v1345
    %v1399 = vpop.f32.mrf.mxu0
    %v1400 = vadd.f32 0.0, %v1399
    %v1401 = vpop.f32.mrf.mxu0
    %v1402 = vadd.f32 0.0, %v1401
    %v1403 = vpop.f32.mrf.mxu0
    %v1404 = vadd.f32 0.0, %v1403
    %v1405 = vpop.f32.mrf.mxu0
    %v1406 = vadd.f32 0.0, %v1405
    %1407 = vdwg.mxu0
    %1408 = vmatprep.subr.bf16.mxu0 %v883
    %1409 = vmatpush1.bf16.msra.mxu0 %v882
    %1410 = vmatprep.subr.bf16.mxu0 %v879
    %1411 = vmatpush1.bf16.msra.mxu0 %v878
    %1412 = vmatprep.subr.bf16.mxu0 %v875
    %1413 = vmatpush1.bf16.msra.mxu0 %v874
    %1414 = vmatprep.subr.bf16.mxu0 %v871
    %1415 = vmatpush1.bf16.msra.mxu0 %v870
    %1416 = vmatprep.subr.bf16.mxu0 %v867
    %1417 = vmatpush1.bf16.msra.mxu0 %v866
    %1418 = vmatprep.subr.bf16.mxu0 %v863
    %1419 = vmatpush1.bf16.msra.mxu0 %v862
    %1420 = vmatprep.subr.bf16.mxu0 %v859
    %1421 = vmatpush1.bf16.msra.mxu0 %v858
    %1422 = vmatprep.subr.bf16.mxu0 %v855
    %1423 = vmatpush1.bf16.msra.mxu0 %v854
    %1424 = vmatprep.subr.bf16.mxu0 0
    %1425 = vmatpush2.bf16.msra.mxu0 0
    %1426 = vmatprep.subr.bf16.mxu0 0
    %1427 = vmatpush2.bf16.msra.mxu0 0
    %1428 = vmatprep.subr.bf16.mxu0 0
    %1429 = vmatpush2.bf16.msra.mxu0 0
    %1430 = vmatprep.subr.bf16.mxu0 0
    %1431 = vmatpush2.bf16.msra.mxu0 0
    %1432 = vmatprep.subr.bf16.mxu0 0
    %1433 = vmatpush2.bf16.msra.mxu0 0
    %1434 = vmatprep.subr.bf16.mxu0 0
    %1435 = vmatpush2.bf16.msra.mxu0 0
    %1436 = vmatprep.subr.bf16.mxu0 0
    %1437 = vmatpush2.bf16.msra.mxu0 0
    %1438 = vmatprep.subr.bf16.mxu0 0
    %1439 = vmatpush2.bf16.msra.mxu0 0
    %1440 = vmatprep.mubr.bf16.mxu0 0
    %1441 = vmatmul.mubr.bf16.gmra.mxu0 %v1345
    %v1442 = vpop.f32.mrf.mxu0
    %v1443 = vadd.f32 0.0, %v1442
    %v1444 = vpop.f32.mrf.mxu0
    %v1445 = vadd.f32 0.0, %v1444
    %v1446 = vpop.f32.mrf.mxu0
    %v1447 = vadd.f32 0.0, %v1446
    %v1448 = vpop.f32.mrf.mxu0
    %v1449 = vadd.f32 0.0, %v1448
    %1450 = vdwg.mxu0
    %v1451 = vadd.f32 %v1357, %v1400
    %v1452 = vadd.f32 %v1358, %v1402
    %v1453 = vadd.f32 %v1359, %v1443
    %v1454 = vadd.f32 %v1360, %v1445
    %v1455 = vadd.f32 %v1361, %v1404
    %v1456 = vadd.f32 %v1362, %v1406
    %v1457 = vadd.f32 %v1363, %v1447
    %v1458 = vadd.f32 %v1364, %v1449
    %v1459 = vmul.f32 %v1451, 0.5
    %v1460 = vmul.f32 %v1455, 0.5
    %v1461 = vtanh.pop %v1459
    %v1462 = vtanh.pop %v1460
    %v1463 = vmul.f32 %v1461, 0.5
    %v1464 = vmul.f32 %v1462, 0.5
    %v1465 = vadd.f32 %v1463, 0.5
    %v1466 = vadd.f32 %v1464, 0.5
    %v1467 = vmul.f32 %v1452, 0.5
    %v1468 = vmul.f32 %v1456, 0.5
    %v1469 = vtanh.pop %v1467
    %v1470 = vtanh.pop %v1468
    %v1471 = vmul.f32 %v1469, 0.5
    %v1472 = vmul.f32 %v1470, 0.5
    %v1473 = vadd.f32 %v1471, 0.5
    %v1474 = vadd.f32 %v1472, 0.5
    %v1475 = vtanh.pop %v1453
    %v1476 = vtanh.pop %v1457
    %v1477 = vmul.f32 %v1454, 0.5
    %v1478 = vmul.f32 %v1458, 0.5
    %v1479 = vtanh.pop %v1477
    %v1480 = vtanh.pop %v1478
    %v1481 = vmul.f32 %v1479, 0.5
    %v1482 = vmul.f32 %v1480, 0.5
    %v1483 = vadd.f32 %v1481, 0.5
    %v1484 = vadd.f32 %v1482, 0.5
    %v1485 = vmul.f32 %v1473, %v1339
    %v1486 = vmul.f32 %v1474, %v1340
    %v1487 = vmul.f32 %v1465, %v1475
    %v1488 = vmul.f32 %v1466, %v1476
    %v1489 = vadd.f32 %v1485, %v1487
    %v1490 = vadd.f32 %v1486, %v1488
    %v1491 = vtanh.pop %v1489
    %v1492 = vtanh.pop %v1490
    %v1493 = vmul.f32 %v1483, %v1491
    %v1494 = vmul.f32 %v1484, %v1492
    %v1495 = vpack.c.bf16 %v1494, %v1493
    %v1497 = vunpack.c.l.b16 %v1495
    %v1498 = vunpack.c.h.b16 %v1495
    %v1499 = vpack.c.b16 %v1497, %v1497
    %v1500 = vpack.c.b16 %v1498, %v1498
    %s1503 = scalar_lea.vmem [#allocation2], 24
    %1504 = vst [vmem:[%s1503] sm:$0xf] %v1499
    %1505 = vst [vmem:[%s1503 + $0x4] sm:$0xf] %v1500
    %s1506 = scalar_lea.vmem [#allocation3], 256
    %v1507 = vld [vmem:[%s1506] sm:$0xff]
    %v1508 = vld [vmem:[%s1506 + $0x8] sm:$0xff]
    %v1509 = vld [vmem:[%s1506 + $0x10] sm:$0xff]
    %v1510 = vld [vmem:[%s1506 + $0x18] sm:$0xff]
    %v1511 = vld [vmem:[%s1506 + $0x20] sm:$0xff]
    %v1512 = vld [vmem:[%s1506 + $0x28] sm:$0xff]
    %v1513 = vld [vmem:[%s1506 + $0x30] sm:$0xff]
    %v1514 = vld [vmem:[%s1506 + $0x38] sm:$0xff]
    %1515 = vmatprep.subr.bf16.mxu0 %v881
    %1516 = vmatpush1.bf16.msra.mxu0 %v880
    %1517 = vmatprep.subr.bf16.mxu0 %v877
    %1518 = vmatpush1.bf16.msra.mxu0 %v876
    %1519 = vmatprep.subr.bf16.mxu0 %v873
    %1520 = vmatpush1.bf16.msra.mxu0 %v872
    %1521 = vmatprep.subr.bf16.mxu0 %v869
    %1522 = vmatpush1.bf16.msra.mxu0 %v868
    %1523 = vmatprep.subr.bf16.mxu0 %v865
    %1524 = vmatpush1.bf16.msra.mxu0 %v864
    %1525 = vmatprep.subr.bf16.mxu0 %v861
    %1526 = vmatpush1.bf16.msra.mxu0 %v860
    %1527 = vmatprep.subr.bf16.mxu0 %v857
    %1528 = vmatpush1.bf16.msra.mxu0 %v856
    %1529 = vmatprep.subr.bf16.mxu0 %v853
    %1530 = vmatpush1.bf16.msra.mxu0 %v852
    %1531 = vmatprep.subr.bf16.mxu0 0
    %1532 = vmatpush2.bf16.msra.mxu0 0
    %1533 = vmatprep.subr.bf16.mxu0 0
    %1534 = vmatpush2.bf16.msra.mxu0 0
    %1535 = vmatprep.subr.bf16.mxu0 0
    %1536 = vmatpush2.bf16.msra.mxu0 0
    %1537 = vmatprep.subr.bf16.mxu0 0
    %1538 = vmatpush2.bf16.msra.mxu0 0
    %1539 = vmatprep.subr.bf16.mxu0 0
    %1540 = vmatpush2.bf16.msra.mxu0 0
    %1541 = vmatprep.subr.bf16.mxu0 0
    %1542 = vmatpush2.bf16.msra.mxu0 0
    %1543 = vmatprep.subr.bf16.mxu0 0
    %1544 = vmatpush2.bf16.msra.mxu0 0
    %1545 = vmatprep.subr.bf16.mxu0 0
    %1546 = vmatpush2.bf16.msra.mxu0 0
    %1547 = vmatprep.mubr.bf16.mxu0 0
    %1548 = vmatmul.mubr.bf16.gmra.mxu0 %v1495
    %v1549 = vpop.f32.mrf.mxu0
    %v1550 = vadd.f32 0.0, %v1549
    %v1551 = vpop.f32.mrf.mxu0
    %v1552 = vadd.f32 0.0, %v1551
    %v1553 = vpop.f32.mrf.mxu0
    %v1554 = vadd.f32 0.0, %v1553
    %v1555 = vpop.f32.mrf.mxu0
    %v1556 = vadd.f32 0.0, %v1555
    %1557 = vdwg.mxu0
    %1558 = vmatprep.subr.bf16.mxu0 %v883
    %1559 = vmatpush1.bf16.msra.mxu0 %v882
    %1560 = vmatprep.subr.bf16.mxu0 %v879
    %1561 = vmatpush1.bf16.msra.mxu0 %v878
    %1562 = vmatprep.subr.bf16.mxu0 %v875
    %1563 = vmatpush1.bf16.msra.mxu0 %v874
    %1564 = vmatprep.subr.bf16.mxu0 %v871
    %1565 = vmatpush1.bf16.msra.mxu0 %v870
    %1566 = vmatprep.subr.bf16.mxu0 %v867
    %1567 = vmatpush1.bf16.msra.mxu0 %v866
    %1568 = vmatprep.subr.bf16.mxu0 %v863
    %1569 = vmatpush1.bf16.msra.mxu0 %v862
    %1570 = vmatprep.subr.bf16.mxu0 %v859
    %1571 = vmatpush1.bf16.msra.mxu0 %v858
    %1572 = vmatprep.subr.bf16.mxu0 %v855
    %1573 = vmatpush1.bf16.msra.mxu0 %v854
    %1574 = vmatprep.subr.bf16.mxu0 0
    %1575 = vmatpush2.bf16.msra.mxu0 0
    %1576 = vmatprep.subr.bf16.mxu0 0
    %1577 = vmatpush2.bf16.msra.mxu0 0
    %1578 = vmatprep.subr.bf16.mxu0 0
    %1579 = vmatpush2.bf16.msra.mxu0 0
    %1580 = vmatprep.subr.bf16.mxu0 0
    %1581 = vmatpush2.bf16.msra.mxu0 0
    %1582 = vmatprep.subr.bf16.mxu0 0
    %1583 = vmatpush2.bf16.msra.mxu0 0
    %1584 = vmatprep.subr.bf16.mxu0 0
    %1585 = vmatpush2.bf16.msra.mxu0 0
    %1586 = vmatprep.subr.bf16.mxu0 0
    %1587 = vmatpush2.bf16.msra.mxu0 0
    %1588 = vmatprep.subr.bf16.mxu0 0
    %1589 = vmatpush2.bf16.msra.mxu0 0
    %1590 = vmatprep.mubr.bf16.mxu0 0
    %1591 = vmatmul.mubr.bf16.gmra.mxu0 %v1495
    %v1592 = vpop.f32.mrf.mxu0
    %v1593 = vadd.f32 0.0, %v1592
    %v1594 = vpop.f32.mrf.mxu0
    %v1595 = vadd.f32 0.0, %v1594
    %v1596 = vpop.f32.mrf.mxu0
    %v1597 = vadd.f32 0.0, %v1596
    %v1598 = vpop.f32.mrf.mxu0
    %v1599 = vadd.f32 0.0, %v1598
    %1600 = vdwg.mxu0
    %v1601 = vadd.f32 %v1507, %v1550
    %v1602 = vadd.f32 %v1508, %v1552
    %v1603 = vadd.f32 %v1509, %v1593
    %v1604 = vadd.f32 %v1510, %v1595
    %v1605 = vadd.f32 %v1511, %v1554
    %v1606 = vadd.f32 %v1512, %v1556
    %v1607 = vadd.f32 %v1513, %v1597
    %v1608 = vadd.f32 %v1514, %v1599
    %v1609 = vmul.f32 %v1601, 0.5
    %v1610 = vmul.f32 %v1605, 0.5
    %v1611 = vtanh.pop %v1609
    %v1612 = vtanh.pop %v1610
    %v1613 = vmul.f32 %v1611, 0.5
    %v1614 = vmul.f32 %v1612, 0.5
    %v1615 = vadd.f32 %v1613, 0.5
    %v1616 = vadd.f32 %v1614, 0.5
    %v1617 = vmul.f32 %v1602, 0.5
    %v1618 = vmul.f32 %v1606, 0.5
    %v1619 = vtanh.pop %v1617
    %v1620 = vtanh.pop %v1618
    %v1621 = vmul.f32 %v1619, 0.5
    %v1622 = vmul.f32 %v1620, 0.5
    %v1623 = vadd.f32 %v1621, 0.5
    %v1624 = vadd.f32 %v1622, 0.5
    %v1625 = vtanh.pop %v1603
    %v1626 = vtanh.pop %v1607
    %v1627 = vmul.f32 %v1604, 0.5
    %v1628 = vmul.f32 %v1608, 0.5
    %v1629 = vtanh.pop %v1627
    %v1630 = vtanh.pop %v1628
    %v1631 = vmul.f32 %v1629, 0.5
    %v1632 = vmul.f32 %v1630, 0.5
    %v1633 = vadd.f32 %v1631, 0.5
    %v1634 = vadd.f32 %v1632, 0.5
    %v1635 = vmul.f32 %v1623, %v1489
    %v1636 = vmul.f32 %v1624, %v1490
    %v1637 = vmul.f32 %v1615, %v1625
    %v1638 = vmul.f32 %v1616, %v1626
    %v1639 = vadd.f32 %v1635, %v1637
    %v1640 = vadd.f32 %v1636, %v1638
    %v1641 = vtanh.pop %v1639
    %v1642 = vtanh.pop %v1640
    %v1643 = vmul.f32 %v1633, %v1641
    %v1644 = vmul.f32 %v1634, %v1642
    %v1645 = vpack.c.bf16 %v1644, %v1643
    %v1647 = vunpack.c.l.b16 %v1645
    %v1648 = vunpack.c.h.b16 %v1645
    %v1649 = vpack.c.b16 %v1647, %v1647
    %v1650 = vpack.c.b16 %v1648, %v1648
    %s1653 = scalar_lea.vmem [#allocation2], 32
    %1654 = vst [vmem:[%s1653] sm:$0xf] %v1649
    %1655 = vst [vmem:[%s1653 + $0x4] sm:$0xf] %v1650
    %s1656 = scalar_lea.vmem [#allocation3], 320
    %v1657 = vld [vmem:[%s1656] sm:$0xff]
    %v1658 = vld [vmem:[%s1656 + $0x8] sm:$0xff]
    %v1659 = vld [vmem:[%s1656 + $0x10] sm:$0xff]
    %v1660 = vld [vmem:[%s1656 + $0x18] sm:$0xff]
    %v1661 = vld [vmem:[%s1656 + $0x20] sm:$0xff]
    %v1662 = vld [vmem:[%s1656 + $0x28] sm:$0xff]
    %v1663 = vld [vmem:[%s1656 + $0x30] sm:$0xff]
    %v1664 = vld [vmem:[%s1656 + $0x38] sm:$0xff]
    %1665 = vmatprep.subr.bf16.mxu0 %v881
    %1666 = vmatpush1.bf16.msra.mxu0 %v880
    %1667 = vmatprep.subr.bf16.mxu0 %v877
    %1668 = vmatpush1.bf16.msra.mxu0 %v876
    %1669 = vmatprep.subr.bf16.mxu0 %v873
    %1670 = vmatpush1.bf16.msra.mxu0 %v872
    %1671 = vmatprep.subr.bf16.mxu0 %v869
    %1672 = vmatpush1.bf16.msra.mxu0 %v868
    %1673 = vmatprep.subr.bf16.mxu0 %v865
    %1674 = vmatpush1.bf16.msra.mxu0 %v864
    %1675 = vmatprep.subr.bf16.mxu0 %v861
    %1676 = vmatpush1.bf16.msra.mxu0 %v860
    %1677 = vmatprep.subr.bf16.mxu0 %v857
    %1678 = vmatpush1.bf16.msra.mxu0 %v856
    %1679 = vmatprep.subr.bf16.mxu0 %v853
    %1680 = vmatpush1.bf16.msra.mxu0 %v852
    %1681 = vmatprep.subr.bf16.mxu0 0
    %1682 = vmatpush2.bf16.msra.mxu0 0
    %1683 = vmatprep.subr.bf16.mxu0 0
    %1684 = vmatpush2.bf16.msra.mxu0 0
    %1685 = vmatprep.subr.bf16.mxu0 0
    %1686 = vmatpush2.bf16.msra.mxu0 0
    %1687 = vmatprep.subr.bf16.mxu0 0
    %1688 = vmatpush2.bf16.msra.mxu0 0
    %1689 = vmatprep.subr.bf16.mxu0 0
    %1690 = vmatpush2.bf16.msra.mxu0 0
    %1691 = vmatprep.subr.bf16.mxu0 0
    %1692 = vmatpush2.bf16.msra.mxu0 0
    %1693 = vmatprep.subr.bf16.mxu0 0
    %1694 = vmatpush2.bf16.msra.mxu0 0
    %1695 = vmatprep.subr.bf16.mxu0 0
    %1696 = vmatpush2.bf16.msra.mxu0 0
    %1697 = vmatprep.mubr.bf16.mxu0 0
    %1698 = vmatmul.mubr.bf16.gmra.mxu0 %v1645
    %v1699 = vpop.f32.mrf.mxu0
    %v1700 = vadd.f32 0.0, %v1699
    %v1701 = vpop.f32.mrf.mxu0
    %v1702 = vadd.f32 0.0, %v1701
    %v1703 = vpop.f32.mrf.mxu0
    %v1704 = vadd.f32 0.0, %v1703
    %v1705 = vpop.f32.mrf.mxu0
    %v1706 = vadd.f32 0.0, %v1705
    %1707 = vdwg.mxu0
    %1708 = vmatprep.subr.bf16.mxu0 %v883
    %1709 = vmatpush1.bf16.msra.mxu0 %v882
    %1710 = vmatprep.subr.bf16.mxu0 %v879
    %1711 = vmatpush1.bf16.msra.mxu0 %v878
    %1712 = vmatprep.subr.bf16.mxu0 %v875
    %1713 = vmatpush1.bf16.msra.mxu0 %v874
    %1714 = vmatprep.subr.bf16.mxu0 %v871
    %1715 = vmatpush1.bf16.msra.mxu0 %v870
    %1716 = vmatprep.subr.bf16.mxu0 %v867
    %1717 = vmatpush1.bf16.msra.mxu0 %v866
    %1718 = vmatprep.subr.bf16.mxu0 %v863
    %1719 = vmatpush1.bf16.msra.mxu0 %v862
    %1720 = vmatprep.subr.bf16.mxu0 %v859
    %1721 = vmatpush1.bf16.msra.mxu0 %v858
    %1722 = vmatprep.subr.bf16.mxu0 %v855
    %1723 = vmatpush1.bf16.msra.mxu0 %v854
    %1724 = vmatprep.subr.bf16.mxu0 0
    %1725 = vmatpush2.bf16.msra.mxu0 0
    %1726 = vmatprep.subr.bf16.mxu0 0
    %1727 = vmatpush2.bf16.msra.mxu0 0
    %1728 = vmatprep.subr.bf16.mxu0 0
    %1729 = vmatpush2.bf16.msra.mxu0 0
    %1730 = vmatprep.subr.bf16.mxu0 0
    %1731 = vmatpush2.bf16.msra.mxu0 0
    %1732 = vmatprep.subr.bf16.mxu0 0
    %1733 = vmatpush2.bf16.msra.mxu0 0
    %1734 = vmatprep.subr.bf16.mxu0 0
    %1735 = vmatpush2.bf16.msra.mxu0 0
    %1736 = vmatprep.subr.bf16.mxu0 0
    %1737 = vmatpush2.bf16.msra.mxu0 0
    %1738 = vmatprep.subr.bf16.mxu0 0
    %1739 = vmatpush2.bf16.msra.mxu0 0
    %1740 = vmatprep.mubr.bf16.mxu0 0
    %1741 = vmatmul.mubr.bf16.gmra.mxu0 %v1645
    %v1742 = vpop.f32.mrf.mxu0
    %v1743 = vadd.f32 0.0, %v1742
    %v1744 = vpop.f32.mrf.mxu0
    %v1745 = vadd.f32 0.0, %v1744
    %v1746 = vpop.f32.mrf.mxu0
    %v1747 = vadd.f32 0.0, %v1746
    %v1748 = vpop.f32.mrf.mxu0
    %v1749 = vadd.f32 0.0, %v1748
    %1750 = vdwg.mxu0
    %v1751 = vadd.f32 %v1657, %v1700
    %v1752 = vadd.f32 %v1658, %v1702
    %v1753 = vadd.f32 %v1659, %v1743
    %v1754 = vadd.f32 %v1660, %v1745
    %v1755 = vadd.f32 %v1661, %v1704
    %v1756 = vadd.f32 %v1662, %v1706
    %v1757 = vadd.f32 %v1663, %v1747
    %v1758 = vadd.f32 %v1664, %v1749
    %v1759 = vmul.f32 %v1751, 0.5
    %v1760 = vmul.f32 %v1755, 0.5
    %v1761 = vtanh.pop %v1759
    %v1762 = vtanh.pop %v1760
    %v1763 = vmul.f32 %v1761, 0.5
    %v1764 = vmul.f32 %v1762, 0.5
    %v1765 = vadd.f32 %v1763, 0.5
    %v1766 = vadd.f32 %v1764, 0.5
    %v1767 = vmul.f32 %v1752, 0.5
    %v1768 = vmul.f32 %v1756, 0.5
    %v1769 = vtanh.pop %v1767
    %v1770 = vtanh.pop %v1768
    %v1771 = vmul.f32 %v1769, 0.5
    %v1772 = vmul.f32 %v1770, 0.5
    %v1773 = vadd.f32 %v1771, 0.5
    %v1774 = vadd.f32 %v1772, 0.5
    %v1775 = vtanh.pop %v1753
    %v1776 = vtanh.pop %v1757
    %v1777 = vmul.f32 %v1754, 0.5
    %v1778 = vmul.f32 %v1758, 0.5
    %v1779 = vtanh.pop %v1777
    %v1780 = vtanh.pop %v1778
    %v1781 = vmul.f32 %v1779, 0.5
    %v1782 = vmul.f32 %v1780, 0.5
    %v1783 = vadd.f32 %v1781, 0.5
    %v1784 = vadd.f32 %v1782, 0.5
    %v1785 = vmul.f32 %v1773, %v1639
    %v1786 = vmul.f32 %v1774, %v1640
    %v1787 = vmul.f32 %v1765, %v1775
    %v1788 = vmul.f32 %v1766, %v1776
    %v1789 = vadd.f32 %v1785, %v1787
    %v1790 = vadd.f32 %v1786, %v1788
    %v1791 = vtanh.pop %v1789
    %v1792 = vtanh.pop %v1790
    %v1793 = vmul.f32 %v1783, %v1791
    %v1794 = vmul.f32 %v1784, %v1792
    %v1795 = vpack.c.bf16 %v1794, %v1793
    %v1797 = vunpack.c.l.b16 %v1795
    %v1798 = vunpack.c.h.b16 %v1795
    %v1799 = vpack.c.b16 %v1797, %v1797
    %v1800 = vpack.c.b16 %v1798, %v1798
    %s1803 = scalar_lea.vmem [#allocation2], 40
    %1804 = vst [vmem:[%s1803] sm:$0xf] %v1799
    %1805 = vst [vmem:[%s1803 + $0x4] sm:$0xf] %v1800
    %s1806 = scalar_lea.vmem [#allocation3], 384
    %v1807 = vld [vmem:[%s1806] sm:$0xff]
    %v1808 = vld [vmem:[%s1806 + $0x8] sm:$0xff]
    %v1809 = vld [vmem:[%s1806 + $0x10] sm:$0xff]
    %v1810 = vld [vmem:[%s1806 + $0x18] sm:$0xff]
    %v1811 = vld [vmem:[%s1806 + $0x20] sm:$0xff]
    %v1812 = vld [vmem:[%s1806 + $0x28] sm:$0xff]
    %v1813 = vld [vmem:[%s1806 + $0x30] sm:$0xff]
    %v1814 = vld [vmem:[%s1806 + $0x38] sm:$0xff]
    %1815 = vmatprep.subr.bf16.mxu0 %v881
    %1816 = vmatpush1.bf16.msra.mxu0 %v880
    %1817 = vmatprep.subr.bf16.mxu0 %v877
    %1818 = vmatpush1.bf16.msra.mxu0 %v876
    %1819 = vmatprep.subr.bf16.mxu0 %v873
    %1820 = vmatpush1.bf16.msra.mxu0 %v872
    %1821 = vmatprep.subr.bf16.mxu0 %v869
    %1822 = vmatpush1.bf16.msra.mxu0 %v868
    %1823 = vmatprep.subr.bf16.mxu0 %v865
    %1824 = vmatpush1.bf16.msra.mxu0 %v864
    %1825 = vmatprep.subr.bf16.mxu0 %v861
    %1826 = vmatpush1.bf16.msra.mxu0 %v860
    %1827 = vmatprep.subr.bf16.mxu0 %v857
    %1828 = vmatpush1.bf16.msra.mxu0 %v856
    %1829 = vmatprep.subr.bf16.mxu0 %v853
    %1830 = vmatpush1.bf16.msra.mxu0 %v852
    %1831 = vmatprep.subr.bf16.mxu0 0
    %1832 = vmatpush2.bf16.msra.mxu0 0
    %1833 = vmatprep.subr.bf16.mxu0 0
    %1834 = vmatpush2.bf16.msra.mxu0 0
    %1835 = vmatprep.subr.bf16.mxu0 0
    %1836 = vmatpush2.bf16.msra.mxu0 0
    %1837 = vmatprep.subr.bf16.mxu0 0
    %1838 = vmatpush2.bf16.msra.mxu0 0
    %1839 = vmatprep.subr.bf16.mxu0 0
    %1840 = vmatpush2.bf16.msra.mxu0 0
    %1841 = vmatprep.subr.bf16.mxu0 0
    %1842 = vmatpush2.bf16.msra.mxu0 0
    %1843 = vmatprep.subr.bf16.mxu0 0
    %1844 = vmatpush2.bf16.msra.mxu0 0
    %1845 = vmatprep.subr.bf16.mxu0 0
    %1846 = vmatpush2.bf16.msra.mxu0 0
    %1847 = vmatprep.mubr.bf16.mxu0 0
    %1848 = vmatmul.mubr.bf16.gmra.mxu0 %v1795
    %v1849 = vpop.f32.mrf.mxu0
    %v1850 = vadd.f32 0.0, %v1849
    %v1851 = vpop.f32.mrf.mxu0
    %v1852 = vadd.f32 0.0, %v1851
    %v1853 = vpop.f32.mrf.mxu0
    %v1854 = vadd.f32 0.0, %v1853
    %v1855 = vpop.f32.mrf.mxu0
    %v1856 = vadd.f32 0.0, %v1855
    %1857 = vdwg.mxu0
    %1858 = vmatprep.subr.bf16.mxu0 %v883
    %1859 = vmatpush1.bf16.msra.mxu0 %v882
    %1860 = vmatprep.subr.bf16.mxu0 %v879
    %1861 = vmatpush1.bf16.msra.mxu0 %v878
    %1862 = vmatprep.subr.bf16.mxu0 %v875
    %1863 = vmatpush1.bf16.msra.mxu0 %v874
    %1864 = vmatprep.subr.bf16.mxu0 %v871
    %1865 = vmatpush1.bf16.msra.mxu0 %v870
    %1866 = vmatprep.subr.bf16.mxu0 %v867
    %1867 = vmatpush1.bf16.msra.mxu0 %v866
    %1868 = vmatprep.subr.bf16.mxu0 %v863
    %1869 = vmatpush1.bf16.msra.mxu0 %v862
    %1870 = vmatprep.subr.bf16.mxu0 %v859
    %1871 = vmatpush1.bf16.msra.mxu0 %v858
    %1872 = vmatprep.subr.bf16.mxu0 %v855
    %1873 = vmatpush1.bf16.msra.mxu0 %v854
    %1874 = vmatprep.subr.bf16.mxu0 0
    %1875 = vmatpush2.bf16.msra.mxu0 0
    %1876 = vmatprep.subr.bf16.mxu0 0
    %1877 = vmatpush2.bf16.msra.mxu0 0
    %1878 = vmatprep.subr.bf16.mxu0 0
    %1879 = vmatpush2.bf16.msra.mxu0 0
    %1880 = vmatprep.subr.bf16.mxu0 0
    %1881 = vmatpush2.bf16.msra.mxu0 0
    %1882 = vmatprep.subr.bf16.mxu0 0
    %1883 = vmatpush2.bf16.msra.mxu0 0
    %1884 = vmatprep.subr.bf16.mxu0 0
    %1885 = vmatpush2.bf16.msra.mxu0 0
    %1886 = vmatprep.subr.bf16.mxu0 0
    %1887 = vmatpush2.bf16.msra.mxu0 0
    %1888 = vmatprep.subr.bf16.mxu0 0
    %1889 = vmatpush2.bf16.msra.mxu0 0
    %1890 = vmatprep.mubr.bf16.mxu0 0
    %1891 = vmatmul.mubr.bf16.gmra.mxu0 %v1795
    %v1892 = vpop.f32.mrf.mxu0
    %v1893 = vadd.f32 0.0, %v1892
    %v1894 = vpop.f32.mrf.mxu0
    %v1895 = vadd.f32 0.0, %v1894
    %v1896 = vpop.f32.mrf.mxu0
    %v1897 = vadd.f32 0.0, %v1896
    %v1898 = vpop.f32.mrf.mxu0
    %v1899 = vadd.f32 0.0, %v1898
    %1900 = vdwg.mxu0
    %v1901 = vadd.f32 %v1807, %v1850
    %v1902 = vadd.f32 %v1808, %v1852
    %v1903 = vadd.f32 %v1809, %v1893
    %v1904 = vadd.f32 %v1810, %v1895
    %v1905 = vadd.f32 %v1811, %v1854
    %v1906 = vadd.f32 %v1812, %v1856
    %v1907 = vadd.f32 %v1813, %v1897
    %v1908 = vadd.f32 %v1814, %v1899
    %v1909 = vmul.f32 %v1901, 0.5
    %v1910 = vmul.f32 %v1905, 0.5
    %v1911 = vtanh.pop %v1909
    %v1912 = vtanh.pop %v1910
    %v1913 = vmul.f32 %v1911, 0.5
    %v1914 = vmul.f32 %v1912, 0.5
    %v1915 = vadd.f32 %v1913, 0.5
    %v1916 = vadd.f32 %v1914, 0.5
    %v1917 = vmul.f32 %v1902, 0.5
    %v1918 = vmul.f32 %v1906, 0.5
    %v1919 = vtanh.pop %v1917
    %v1920 = vtanh.pop %v1918
    %v1921 = vmul.f32 %v1919, 0.5
    %v1922 = vmul.f32 %v1920, 0.5
    %v1923 = vadd.f32 %v1921, 0.5
    %v1924 = vadd.f32 %v1922, 0.5
    %v1925 = vtanh.pop %v1903
    %v1926 = vtanh.pop %v1907
    %v1927 = vmul.f32 %v1904, 0.5
    %v1928 = vmul.f32 %v1908, 0.5
    %v1929 = vtanh.pop %v1927
    %v1930 = vtanh.pop %v1928
    %v1931 = vmul.f32 %v1929, 0.5
    %v1932 = vmul.f32 %v1930, 0.5
    %v1933 = vadd.f32 %v1931, 0.5
    %v1934 = vadd.f32 %v1932, 0.5
    %v1935 = vmul.f32 %v1923, %v1789
    %v1936 = vmul.f32 %v1924, %v1790
    %v1937 = vmul.f32 %v1915, %v1925
    %v1938 = vmul.f32 %v1916, %v1926
    %v1939 = vadd.f32 %v1935, %v1937
    %v1940 = vadd.f32 %v1936, %v1938
    %v1941 = vtanh.pop %v1939
    %v1942 = vtanh.pop %v1940
    %v1943 = vmul.f32 %v1933, %v1941
    %v1944 = vmul.f32 %v1934, %v1942
    %v1945 = vpack.c.bf16 %v1944, %v1943
    %v1947 = vunpack.c.l.b16 %v1945
    %v1948 = vunpack.c.h.b16 %v1945
    %v1949 = vpack.c.b16 %v1947, %v1947
    %v1950 = vpack.c.b16 %v1948, %v1948
    %s1953 = scalar_lea.vmem [#allocation2], 48
    %1954 = vst [vmem:[%s1953] sm:$0xf] %v1949
    %1955 = vst [vmem:[%s1953 + $0x4] sm:$0xf] %v1950
    %s1956 = scalar_lea.vmem [#allocation3], 448
    %v1957 = vld [vmem:[%s1956] sm:$0xff]
    %v1958 = vld [vmem:[%s1956 + $0x8] sm:$0xff]
    %v1959 = vld [vmem:[%s1956 + $0x10] sm:$0xff]
    %v1960 = vld [vmem:[%s1956 + $0x18] sm:$0xff]
    %v1961 = vld [vmem:[%s1956 + $0x20] sm:$0xff]
    %v1962 = vld [vmem:[%s1956 + $0x28] sm:$0xff]
    %v1963 = vld [vmem:[%s1956 + $0x30] sm:$0xff]
    %v1964 = vld [vmem:[%s1956 + $0x38] sm:$0xff]
    %1965 = vmatprep.subr.bf16.mxu0 %v881
    %1966 = vmatpush1.bf16.msra.mxu0 %v880
    %1967 = vmatprep.subr.bf16.mxu0 %v877
    %1968 = vmatpush1.bf16.msra.mxu0 %v876
    %1969 = vmatprep.subr.bf16.mxu0 %v873
    %1970 = vmatpush1.bf16.msra.mxu0 %v872
    %1971 = vmatprep.subr.bf16.mxu0 %v869
    %1972 = vmatpush1.bf16.msra.mxu0 %v868
    %1973 = vmatprep.subr.bf16.mxu0 %v865
    %1974 = vmatpush1.bf16.msra.mxu0 %v864
    %1975 = vmatprep.subr.bf16.mxu0 %v861
    %1976 = vmatpush1.bf16.msra.mxu0 %v860
    %1977 = vmatprep.subr.bf16.mxu0 %v857
    %1978 = vmatpush1.bf16.msra.mxu0 %v856
    %1979 = vmatprep.subr.bf16.mxu0 %v853
    %1980 = vmatpush1.bf16.msra.mxu0 %v852
    %1981 = vmatprep.subr.bf16.mxu0 0
    %1982 = vmatpush2.bf16.msra.mxu0 0
    %1983 = vmatprep.subr.bf16.mxu0 0
    %1984 = vmatpush2.bf16.msra.mxu0 0
    %1985 = vmatprep.subr.bf16.mxu0 0
    %1986 = vmatpush2.bf16.msra.mxu0 0
    %1987 = vmatprep.subr.bf16.mxu0 0
    %1988 = vmatpush2.bf16.msra.mxu0 0
    %1989 = vmatprep.subr.bf16.mxu0 0
    %1990 = vmatpush2.bf16.msra.mxu0 0
    %1991 = vmatprep.subr.bf16.mxu0 0
    %1992 = vmatpush2.bf16.msra.mxu0 0
    %1993 = vmatprep.subr.bf16.mxu0 0
    %1994 = vmatpush2.bf16.msra.mxu0 0
    %1995 = vmatprep.subr.bf16.mxu0 0
    %1996 = vmatpush2.bf16.msra.mxu0 0
    %1997 = vmatprep.mubr.bf16.mxu0 0
    %1998 = vmatmul.mubr.bf16.gmra.mxu0 %v1945
    %v1999 = vpop.f32.mrf.mxu0
    %v2000 = vadd.f32 0.0, %v1999
    %v2001 = vpop.f32.mrf.mxu0
    %v2002 = vadd.f32 0.0, %v2001
    %v2003 = vpop.f32.mrf.mxu0
    %v2004 = vadd.f32 0.0, %v2003
    %v2005 = vpop.f32.mrf.mxu0
    %v2006 = vadd.f32 0.0, %v2005
    %2007 = vdwg.mxu0
    %2008 = vmatprep.subr.bf16.mxu0 %v883
    %2009 = vmatpush1.bf16.msra.mxu0 %v882
    %2010 = vmatprep.subr.bf16.mxu0 %v879
    %2011 = vmatpush1.bf16.msra.mxu0 %v878
    %2012 = vmatprep.subr.bf16.mxu0 %v875
    %2013 = vmatpush1.bf16.msra.mxu0 %v874
    %2014 = vmatprep.subr.bf16.mxu0 %v871
    %2015 = vmatpush1.bf16.msra.mxu0 %v870
    %2016 = vmatprep.subr.bf16.mxu0 %v867
    %2017 = vmatpush1.bf16.msra.mxu0 %v866
    %2018 = vmatprep.subr.bf16.mxu0 %v863
    %2019 = vmatpush1.bf16.msra.mxu0 %v862
    %2020 = vmatprep.subr.bf16.mxu0 %v859
    %2021 = vmatpush1.bf16.msra.mxu0 %v858
    %2022 = vmatprep.subr.bf16.mxu0 %v855
    %2023 = vmatpush1.bf16.msra.mxu0 %v854
    %2024 = vmatprep.subr.bf16.mxu0 0
    %2025 = vmatpush2.bf16.msra.mxu0 0
    %2026 = vmatprep.subr.bf16.mxu0 0
    %2027 = vmatpush2.bf16.msra.mxu0 0
    %2028 = vmatprep.subr.bf16.mxu0 0
    %2029 = vmatpush2.bf16.msra.mxu0 0
    %2030 = vmatprep.subr.bf16.mxu0 0
    %2031 = vmatpush2.bf16.msra.mxu0 0
    %2032 = vmatprep.subr.bf16.mxu0 0
    %2033 = vmatpush2.bf16.msra.mxu0 0
    %2034 = vmatprep.subr.bf16.mxu0 0
    %2035 = vmatpush2.bf16.msra.mxu0 0
    %2036 = vmatprep.subr.bf16.mxu0 0
    %2037 = vmatpush2.bf16.msra.mxu0 0
    %2038 = vmatprep.subr.bf16.mxu0 0
    %2039 = vmatpush2.bf16.msra.mxu0 0
    %2040 = vmatprep.mubr.bf16.mxu0 0
    %2041 = vmatmul.mubr.bf16.gmra.mxu0 %v1945
    %v2042 = vpop.f32.mrf.mxu0
    %v2043 = vadd.f32 0.0, %v2042
    %v2044 = vpop.f32.mrf.mxu0
    %v2045 = vadd.f32 0.0, %v2044
    %v2046 = vpop.f32.mrf.mxu0
    %v2047 = vadd.f32 0.0, %v2046
    %v2048 = vpop.f32.mrf.mxu0
    %v2049 = vadd.f32 0.0, %v2048
    %2050 = vdwg.mxu0
    %v2051 = vadd.f32 %v1957, %v2000
    %v2052 = vadd.f32 %v1958, %v2002
    %v2053 = vadd.f32 %v1959, %v2043
    %v2054 = vadd.f32 %v1960, %v2045
    %v2055 = vadd.f32 %v1961, %v2004
    %v2056 = vadd.f32 %v1962, %v2006
    %v2057 = vadd.f32 %v1963, %v2047
    %v2058 = vadd.f32 %v1964, %v2049
    %v2059 = vmul.f32 %v2051, 0.5
    %v2060 = vmul.f32 %v2055, 0.5
    %v2061 = vtanh.pop %v2059
    %v2062 = vtanh.pop %v2060
    %v2063 = vmul.f32 %v2061, 0.5
    %v2064 = vmul.f32 %v2062, 0.5
    %v2065 = vadd.f32 %v2063, 0.5
    %v2066 = vadd.f32 %v2064, 0.5
    %v2067 = vmul.f32 %v2052, 0.5
    %v2068 = vmul.f32 %v2056, 0.5
    %v2069 = vtanh.pop %v2067
    %v2070 = vtanh.pop %v2068
    %v2071 = vmul.f32 %v2069, 0.5
    %v2072 = vmul.f32 %v2070, 0.5
    %v2073 = vadd.f32 %v2071, 0.5
    %v2074 = vadd.f32 %v2072, 0.5
    %v2075 = vtanh.pop %v2053
    %v2076 = vtanh.pop %v2057
    %v2077 = vmul.f32 %v2054, 0.5
    %v2078 = vmul.f32 %v2058, 0.5
    %v2079 = vtanh.pop %v2077
    %v2080 = vtanh.pop %v2078
    %v2081 = vmul.f32 %v2079, 0.5
    %v2082 = vmul.f32 %v2080, 0.5
    %v2083 = vadd.f32 %v2081, 0.5
    %v2084 = vadd.f32 %v2082, 0.5
    %v2085 = vmul.f32 %v2073, %v1939
    %v2086 = vmul.f32 %v2074, %v1940
    %v2087 = vmul.f32 %v2065, %v2075
    %v2088 = vmul.f32 %v2066, %v2076
    %v2089 = vadd.f32 %v2085, %v2087
    %v2090 = vadd.f32 %v2086, %v2088
    %v2091 = vtanh.pop %v2089
    %v2092 = vtanh.pop %v2090
    %v2093 = vmul.f32 %v2083, %v2091
    %v2094 = vmul.f32 %v2084, %v2092
    %v2095 = vpack.c.bf16 %v2094, %v2093
    %v2097 = vunpack.c.l.b16 %v2095
    %v2098 = vunpack.c.h.b16 %v2095
    %v2099 = vpack.c.b16 %v2097, %v2097
    %v2100 = vpack.c.b16 %v2098, %v2098
    %s2103 = scalar_lea.vmem [#allocation2], 56
    %2104 = vst [vmem:[%s2103] sm:$0xf] %v2099
    %2105 = vst [vmem:[%s2103 + $0x4] sm:$0xf] %v2100
    %v2106 = vld [vmem:[#allocation2] sm:$0xf]
    %v2107 = vld [vmem:[#allocation2 + $0x4] sm:$0xf]
    %v2108 = vld [vmem:[#allocation2 + $0x8] sm:$0xf]
    %v2109 = vld [vmem:[#allocation2 + $0xc] sm:$0xf]
    %v2110 = vld [vmem:[#allocation2 + $0x10] sm:$0xf]
    %v2111 = vld [vmem:[#allocation2 + $0x14] sm:$0xf]
    %v2112 = vld [vmem:[#allocation2 + $0x18] sm:$0xf]
    %v2113 = vld [vmem:[#allocation2 + $0x1c] sm:$0xf]
    %v2114 = vld [vmem:[#allocation2 + $0x20] sm:$0xf]
    %v2115 = vld [vmem:[#allocation2 + $0x24] sm:$0xf]
    %v2116 = vld [vmem:[#allocation2 + $0x28] sm:$0xf]
    %v2117 = vld [vmem:[#allocation2 + $0x2c] sm:$0xf]
    %v2118 = vld [vmem:[#allocation2 + $0x30] sm:$0xf]
    %v2119 = vld [vmem:[#allocation2 + $0x34] sm:$0xf]
    %v2120 = vld [vmem:[#allocation2 + $0x38] sm:$0xf]
    %v2121 = vld [vmem:[#allocation2 + $0x3c] sm:$0xf]
    %v2122 = vld [vmem:[#allocation9] sm:$0xff]
    %v2123 = vld [vmem:[#allocation9 + $0x8] sm:$0xff]
    %v2124 = vld [vmem:[#allocation9 + $0x10] sm:$0xff]
    %v2125 = vld [vmem:[#allocation9 + $0x18] sm:$0xff]
    %v2126 = vld [vmem:[#allocation9 + $0x20] sm:$0xff]
    %v2127 = vld [vmem:[#allocation9 + $0x28] sm:$0xff]
    %v2128 = vld [vmem:[#allocation9 + $0x30] sm:$0xff]
    %v2129 = vld [vmem:[#allocation9 + $0x38] sm:$0xff]
    %v2130 = vld [vmem:[#allocation9 + $0x40] sm:$0xff]
    %v2131 = vld [vmem:[#allocation9 + $0x48] sm:$0xff]
    %v2132 = vld [vmem:[#allocation9 + $0x50] sm:$0xff]
    %v2133 = vld [vmem:[#allocation9 + $0x58] sm:$0xff]
    %v2134 = vld [vmem:[#allocation9 + $0x60] sm:$0xff]
    %v2135 = vld [vmem:[#allocation9 + $0x68] sm:$0xff]
    %v2136 = vld [vmem:[#allocation9 + $0x70] sm:$0xff]
    %v2137 = vld [vmem:[#allocation9 + $0x78] sm:$0xff]
    %v2138 = vld [vmem:[#allocation9 + $0x80] sm:$0xff]
    %v2139 = vld [vmem:[#allocation9 + $0x88] sm:$0xff]
    %v2140 = vld [vmem:[#allocation9 + $0x90] sm:$0xff]
    %v2141 = vld [vmem:[#allocation9 + $0x98] sm:$0xff]
    %v2142 = vld [vmem:[#allocation9 + $0xa0] sm:$0xff]
    %v2143 = vld [vmem:[#allocation9 + $0xa8] sm:$0xff]
    %v2144 = vld [vmem:[#allocation9 + $0xb0] sm:$0xff]
    %v2145 = vld [vmem:[#allocation9 + $0xb8] sm:$0xff]
    %v2146 = vld [vmem:[#allocation9 + $0xc0] sm:$0xff]
    %v2147 = vld [vmem:[#allocation9 + $0xc8] sm:$0xff]
    %v2148 = vld [vmem:[#allocation9 + $0xd0] sm:$0xff]
    %v2149 = vld [vmem:[#allocation9 + $0xd8] sm:$0xff]
    %v2150 = vld [vmem:[#allocation9 + $0xe0] sm:$0xff]
    %v2151 = vld [vmem:[#allocation9 + $0xe8] sm:$0xff]
    %v2152 = vld [vmem:[#allocation9 + $0xf0] sm:$0xff]
    %v2153 = vld [vmem:[#allocation9 + $0xf8] sm:$0xff]
    %s2154 = scalar_lea.vmem [#allocation12], 4
    %v2155 = vld [vmem:[%s2154] sm:$0xf]
    %v2157 = vlaneseq
    %v2158 = vshrl.u32 %v2157, 7
    %v2159 = vsub.s32 0, %v2158
    %v2160 = vrot.slane %v2155, %v2159
    %v2161 = vlaneseq
    %v2162 = vshrl.u32 %v2161, 7
    %v2163 = vsub.s32 1, %v2162
    %v2164 = vrot.slane %v2155, %v2163
    %v2165 = vlaneseq
    %v2166 = vshrl.u32 %v2165, 7
    %v2167 = vsub.s32 2, %v2166
    %v2168 = vrot.slane %v2155, %v2167
    %v2169 = vlaneseq
    %v2170 = vshrl.u32 %v2169, 7
    %v2171 = vsub.s32 3, %v2170
    %v2172 = vrot.slane %v2155, %v2171
    %v2193 = vunpack.c.l.b16 %v2106
    %v2194 = vunpack.c.l.b16 %v2107
    %v2195 = vunpack.c.l.b16 %v2108
    %v2196 = vunpack.c.l.b16 %v2109
    %v2197 = vunpack.c.l.b16 %v2110
    %v2198 = vunpack.c.l.b16 %v2111
    %v2199 = vunpack.c.l.b16 %v2112
    %v2200 = vunpack.c.l.b16 %v2113
    %v2201 = vunpack.c.l.b16 %v2114
    %v2202 = vunpack.c.l.b16 %v2115
    %v2203 = vunpack.c.l.b16 %v2116
    %v2204 = vunpack.c.l.b16 %v2117
    %v2205 = vunpack.c.l.b16 %v2118
    %v2206 = vunpack.c.l.b16 %v2119
    %v2207 = vunpack.c.l.b16 %v2120
    %v2208 = vunpack.c.l.b16 %v2121
    %v2209 = vpack.c.b16 %v2194, %v2193
    %v2210 = vpack.c.b16 %v2196, %v2195
    %v2211 = vpack.c.b16 %v2198, %v2197
    %v2212 = vpack.c.b16 %v2200, %v2199
    %v2213 = vpack.c.b16 %v2202, %v2201
    %v2214 = vpack.c.b16 %v2204, %v2203
    %v2215 = vpack.c.b16 %v2206, %v2205
    %v2216 = vpack.c.b16 %v2208, %v2207
    %v2257 = vunpack.c.l.b16 %v2122
    %v2258 = vunpack.c.h.b16 %v2122
    %v2259 = vunpack.c.l.b16 %v2123
    %v2260 = vunpack.c.h.b16 %v2123
    %v2261 = vunpack.c.l.b16 %v2124
    %v2262 = vunpack.c.h.b16 %v2124
    %v2263 = vunpack.c.l.b16 %v2125
    %v2264 = vunpack.c.h.b16 %v2125
    %v2265 = vunpack.c.l.b16 %v2126
    %v2266 = vunpack.c.h.b16 %v2126
    %v2267 = vunpack.c.l.b16 %v2127
    %v2268 = vunpack.c.h.b16 %v2127
    %v2269 = vunpack.c.l.b16 %v2128
    %v2270 = vunpack.c.h.b16 %v2128
    %v2271 = vunpack.c.l.b16 %v2129
    %v2272 = vunpack.c.h.b16 %v2129
    %v2273 = vunpack.c.l.b16 %v2130
    %v2274 = vunpack.c.h.b16 %v2130
    %v2275 = vunpack.c.l.b16 %v2131
    %v2276 = vunpack.c.h.b16 %v2131
    %v2277 = vunpack.c.l.b16 %v2132
    %v2278 = vunpack.c.h.b16 %v2132
    %v2279 = vunpack.c.l.b16 %v2133
    %v2280 = vunpack.c.h.b16 %v2133
    %v2281 = vunpack.c.l.b16 %v2134
    %v2282 = vunpack.c.h.b16 %v2134
    %v2283 = vunpack.c.l.b16 %v2135
    %v2284 = vunpack.c.h.b16 %v2135
    %v2285 = vunpack.c.l.b16 %v2136
    %v2286 = vunpack.c.h.b16 %v2136
    %v2287 = vunpack.c.l.b16 %v2137
    %v2288 = vunpack.c.h.b16 %v2137
    %v2289 = vunpack.c.l.b16 %v2138
    %v2290 = vunpack.c.h.b16 %v2138
    %v2291 = vunpack.c.l.b16 %v2139
    %v2292 = vunpack.c.h.b16 %v2139
    %v2293 = vunpack.c.l.b16 %v2140
    %v2294 = vunpack.c.h.b16 %v2140
    %v2295 = vunpack.c.l.b16 %v2141
    %v2296 = vunpack.c.h.b16 %v2141
    %v2297 = vunpack.c.l.b16 %v2142
    %v2298 = vunpack.c.h.b16 %v2142
    %v2299 = vunpack.c.l.b16 %v2143
    %v2300 = vunpack.c.h.b16 %v2143
    %v2301 = vunpack.c.l.b16 %v2144
    %v2302 = vunpack.c.h.b16 %v2144
    %v2303 = vunpack.c.l.b16 %v2145
    %v2304 = vunpack.c.h.b16 %v2145
    %v2305 = vunpack.c.l.b16 %v2146
    %v2306 = vunpack.c.h.b16 %v2146
    %v2307 = vunpack.c.l.b16 %v2147
    %v2308 = vunpack.c.h.b16 %v2147
    %v2309 = vunpack.c.l.b16 %v2148
    %v2310 = vunpack.c.h.b16 %v2148
    %v2311 = vunpack.c.l.b16 %v2149
    %v2312 = vunpack.c.h.b16 %v2149
    %v2313 = vunpack.c.l.b16 %v2150
    %v2314 = vunpack.c.h.b16 %v2150
    %v2315 = vunpack.c.l.b16 %v2151
    %v2316 = vunpack.c.h.b16 %v2151
    %v2317 = vunpack.c.l.b16 %v2152
    %v2318 = vunpack.c.h.b16 %v2152
    %v2319 = vunpack.c.l.b16 %v2153
    %v2320 = vunpack.c.h.b16 %v2153
    %v2321 = vpack.c.b16 %v2261, %v2257
    %v2322 = vpack.c.b16 %v2262, %v2258
    %v2323 = vpack.c.b16 %v2263, %v2259
    %v2324 = vpack.c.b16 %v2264, %v2260
    %v2325 = vpack.c.b16 %v2269, %v2265
    %v2326 = vpack.c.b16 %v2270, %v2266
    %v2327 = vpack.c.b16 %v2271, %v2267
    %v2328 = vpack.c.b16 %v2272, %v2268
    %v2329 = vpack.c.b16 %v2277, %v2273
    %v2330 = vpack.c.b16 %v2278, %v2274
    %v2331 = vpack.c.b16 %v2279, %v2275
    %v2332 = vpack.c.b16 %v2280, %v2276
    %v2333 = vpack.c.b16 %v2285, %v2281
    %v2334 = vpack.c.b16 %v2286, %v2282
    %v2335 = vpack.c.b16 %v2287, %v2283
    %v2336 = vpack.c.b16 %v2288, %v2284
    %v2337 = vpack.c.b16 %v2293, %v2289
    %v2338 = vpack.c.b16 %v2294, %v2290
    %v2339 = vpack.c.b16 %v2295, %v2291
    %v2340 = vpack.c.b16 %v2296, %v2292
    %v2341 = vpack.c.b16 %v2301, %v2297
    %v2342 = vpack.c.b16 %v2302, %v2298
    %v2343 = vpack.c.b16 %v2303, %v2299
    %v2344 = vpack.c.b16 %v2304, %v2300
    %v2345 = vpack.c.b16 %v2309, %v2305
    %v2346 = vpack.c.b16 %v2310, %v2306
    %v2347 = vpack.c.b16 %v2311, %v2307
    %v2348 = vpack.c.b16 %v2312, %v2308
    %v2349 = vpack.c.b16 %v2317, %v2313
    %v2350 = vpack.c.b16 %v2318, %v2314
    %v2351 = vpack.c.b16 %v2319, %v2315
    %v2352 = vpack.c.b16 %v2320, %v2316
    %2385 = vmatprep.subr.bf16.mxu0 %v2350
    %2386 = vmatpush1.bf16.msra.mxu0 %v2349
    %2387 = vmatprep.subr.bf16.mxu0 %v2346
    %2388 = vmatpush1.bf16.msra.mxu0 %v2345
    %2389 = vmatprep.subr.bf16.mxu0 %v2342
    %2390 = vmatpush1.bf16.msra.mxu0 %v2341
    %2391 = vmatprep.subr.bf16.mxu0 %v2338
    %2392 = vmatpush1.bf16.msra.mxu0 %v2337
    %2393 = vmatprep.subr.bf16.mxu0 %v2334
    %2394 = vmatpush1.bf16.msra.mxu0 %v2333
    %2395 = vmatprep.subr.bf16.mxu0 %v2330
    %2396 = vmatpush1.bf16.msra.mxu0 %v2329
    %2397 = vmatprep.subr.bf16.mxu0 %v2326
    %2398 = vmatpush1.bf16.msra.mxu0 %v2325
    %2399 = vmatprep.subr.bf16.mxu0 %v2322
    %2400 = vmatpush1.bf16.msra.mxu0 %v2321
    %2401 = vmatprep.subr.bf16.mxu0 0
    %2402 = vmatpush2.bf16.msra.mxu0 0
    %2403 = vmatprep.subr.bf16.mxu0 0
    %2404 = vmatpush2.bf16.msra.mxu0 0
    %2405 = vmatprep.subr.bf16.mxu0 0
    %2406 = vmatpush2.bf16.msra.mxu0 0
    %2407 = vmatprep.subr.bf16.mxu0 0
    %2408 = vmatpush2.bf16.msra.mxu0 0
    %2409 = vmatprep.subr.bf16.mxu0 0
    %2410 = vmatpush2.bf16.msra.mxu0 0
    %2411 = vmatprep.subr.bf16.mxu0 0
    %2412 = vmatpush2.bf16.msra.mxu0 0
    %2413 = vmatprep.subr.bf16.mxu0 0
    %2414 = vmatpush2.bf16.msra.mxu0 0
    %2415 = vmatprep.subr.bf16.mxu0 0
    %2416 = vmatpush2.bf16.msra.mxu0 0
    %2417 = vmatprep.mubr.bf16.mxu0 0
    %2418 = vmatmul.mubr.bf16.gmra.mxu0 %v2209
    %v2419 = vpop.f32.mrf.mxu0
    %v2420 = vadd.f32 %v2160, %v2419
    %v2421 = vpop.f32.mrf.mxu0
    %v2422 = vadd.f32 %v2164, %v2421
    %v2423 = vpop.f32.mrf.mxu0
    %v2424 = vadd.f32 %v2160, %v2423
    %v2425 = vpop.f32.mrf.mxu0
    %v2426 = vadd.f32 %v2164, %v2425
    %2427 = vmatprep.mubr.bf16.mxu0 0
    %2428 = vmatmul.mubr.bf16.gmra.mxu0 %v2210
    %v2429 = vpop.f32.mrf.mxu0
    %v2430 = vadd.f32 %v2160, %v2429
    %v2431 = vpop.f32.mrf.mxu0
    %v2432 = vadd.f32 %v2164, %v2431
    %v2433 = vpop.f32.mrf.mxu0
    %v2434 = vadd.f32 %v2160, %v2433
    %v2435 = vpop.f32.mrf.mxu0
    %v2436 = vadd.f32 %v2164, %v2435
    %2437 = vmatprep.mubr.bf16.mxu0 0
    %2438 = vmatmul.mubr.bf16.gmra.mxu0 %v2211
    %v2439 = vpop.f32.mrf.mxu0
    %v2440 = vadd.f32 %v2160, %v2439
    %v2441 = vpop.f32.mrf.mxu0
    %v2442 = vadd.f32 %v2164, %v2441
    %v2443 = vpop.f32.mrf.mxu0
    %v2444 = vadd.f32 %v2160, %v2443
    %v2445 = vpop.f32.mrf.mxu0
    %v2446 = vadd.f32 %v2164, %v2445
    %2447 = vmatprep.mubr.bf16.mxu0 0
    %2448 = vmatmul.mubr.bf16.gmra.mxu0 %v2212
    %v2449 = vpop.f32.mrf.mxu0
    %v2450 = vadd.f32 %v2160, %v2449
    %v2451 = vpop.f32.mrf.mxu0
    %v2452 = vadd.f32 %v2164, %v2451
    %v2453 = vpop.f32.mrf.mxu0
    %v2454 = vadd.f32 %v2160, %v2453
    %v2455 = vpop.f32.mrf.mxu0
    %v2456 = vadd.f32 %v2164, %v2455
    %2457 = vmatprep.mubr.bf16.mxu0 0
    %2458 = vmatmul.mubr.bf16.gmra.mxu0 %v2213
    %v2459 = vpop.f32.mrf.mxu0
    %v2460 = vadd.f32 %v2160, %v2459
    %v2461 = vpop.f32.mrf.mxu0
    %v2462 = vadd.f32 %v2164, %v2461
    %v2463 = vpop.f32.mrf.mxu0
    %v2464 = vadd.f32 %v2160, %v2463
    %v2465 = vpop.f32.mrf.mxu0
    %v2466 = vadd.f32 %v2164, %v2465
    %2467 = vmatprep.mubr.bf16.mxu0 0
    %2468 = vmatmul.mubr.bf16.gmra.mxu0 %v2214
    %v2469 = vpop.f32.mrf.mxu0
    %v2470 = vadd.f32 %v2160, %v2469
    %v2471 = vpop.f32.mrf.mxu0
    %v2472 = vadd.f32 %v2164, %v2471
    %v2473 = vpop.f32.mrf.mxu0
    %v2474 = vadd.f32 %v2160, %v2473
    %v2475 = vpop.f32.mrf.mxu0
    %v2476 = vadd.f32 %v2164, %v2475
    %2477 = vmatprep.mubr.bf16.mxu0 0
    %2478 = vmatmul.mubr.bf16.gmra.mxu0 %v2215
    %v2479 = vpop.f32.mrf.mxu0
    %v2480 = vadd.f32 %v2160, %v2479
    %v2481 = vpop.f32.mrf.mxu0
    %v2482 = vadd.f32 %v2164, %v2481
    %v2483 = vpop.f32.mrf.mxu0
    %v2484 = vadd.f32 %v2160, %v2483
    %v2485 = vpop.f32.mrf.mxu0
    %v2486 = vadd.f32 %v2164, %v2485
    %2487 = vmatprep.mubr.bf16.mxu0 0
    %2488 = vmatmul.mubr.bf16.gmra.mxu0 %v2216
    %v2489 = vpop.f32.mrf.mxu0
    %v2490 = vadd.f32 %v2160, %v2489
    %v2491 = vpop.f32.mrf.mxu0
    %v2492 = vadd.f32 %v2164, %v2491
    %v2493 = vpop.f32.mrf.mxu0
    %v2494 = vadd.f32 %v2160, %v2493
    %v2495 = vpop.f32.mrf.mxu0
    %v2496 = vadd.f32 %v2164, %v2495
    %2497 = vdwg.mxu0
    %2498 = vmatprep.subr.bf16.mxu0 %v2352
    %2499 = vmatpush1.bf16.msra.mxu0 %v2351
    %2500 = vmatprep.subr.bf16.mxu0 %v2348
    %2501 = vmatpush1.bf16.msra.mxu0 %v2347
    %2502 = vmatprep.subr.bf16.mxu0 %v2344
    %2503 = vmatpush1.bf16.msra.mxu0 %v2343
    %2504 = vmatprep.subr.bf16.mxu0 %v2340
    %2505 = vmatpush1.bf16.msra.mxu0 %v2339
    %2506 = vmatprep.subr.bf16.mxu0 %v2336
    %2507 = vmatpush1.bf16.msra.mxu0 %v2335
    %2508 = vmatprep.subr.bf16.mxu0 %v2332
    %2509 = vmatpush1.bf16.msra.mxu0 %v2331
    %2510 = vmatprep.subr.bf16.mxu0 %v2328
    %2511 = vmatpush1.bf16.msra.mxu0 %v2327
    %2512 = vmatprep.subr.bf16.mxu0 %v2324
    %2513 = vmatpush1.bf16.msra.mxu0 %v2323
    %2514 = vmatprep.subr.bf16.mxu0 0
    %2515 = vmatpush2.bf16.msra.mxu0 0
    %2516 = vmatprep.subr.bf16.mxu0 0
    %2517 = vmatpush2.bf16.msra.mxu0 0
    %2518 = vmatprep.subr.bf16.mxu0 0
    %2519 = vmatpush2.bf16.msra.mxu0 0
    %2520 = vmatprep.subr.bf16.mxu0 0
    %2521 = vmatpush2.bf16.msra.mxu0 0
    %2522 = vmatprep.subr.bf16.mxu0 0
    %2523 = vmatpush2.bf16.msra.mxu0 0
    %2524 = vmatprep.subr.bf16.mxu0 0
    %2525 = vmatpush2.bf16.msra.mxu0 0
    %2526 = vmatprep.subr.bf16.mxu0 0
    %2527 = vmatpush2.bf16.msra.mxu0 0
    %2528 = vmatprep.subr.bf16.mxu0 0
    %2529 = vmatpush2.bf16.msra.mxu0 0
    %2530 = vmatprep.mubr.bf16.mxu0 0
    %2531 = vmatmul.mubr.bf16.gmra.mxu0 %v2209
    %v2532 = vpop.f32.mrf.mxu0
    %v2533 = vadd.f32 %v2168, %v2532
    %v2534 = vpop.f32.mrf.mxu0
    %v2535 = vadd.f32 %v2172, %v2534
    %v2536 = vpop.f32.mrf.mxu0
    %v2537 = vadd.f32 %v2168, %v2536
    %v2538 = vpop.f32.mrf.mxu0
    %v2539 = vadd.f32 %v2172, %v2538
    %2540 = vmatprep.mubr.bf16.mxu0 0
    %2541 = vmatmul.mubr.bf16.gmra.mxu0 %v2210
    %v2542 = vpop.f32.mrf.mxu0
    %v2543 = vadd.f32 %v2168, %v2542
    %v2544 = vpop.f32.mrf.mxu0
    %v2545 = vadd.f32 %v2172, %v2544
    %v2546 = vpop.f32.mrf.mxu0
    %v2547 = vadd.f32 %v2168, %v2546
    %v2548 = vpop.f32.mrf.mxu0
    %v2549 = vadd.f32 %v2172, %v2548
    %2550 = vmatprep.mubr.bf16.mxu0 0
    %2551 = vmatmul.mubr.bf16.gmra.mxu0 %v2211
    %v2552 = vpop.f32.mrf.mxu0
    %v2553 = vadd.f32 %v2168, %v2552
    %v2554 = vpop.f32.mrf.mxu0
    %v2555 = vadd.f32 %v2172, %v2554
    %v2556 = vpop.f32.mrf.mxu0
    %v2557 = vadd.f32 %v2168, %v2556
    %v2558 = vpop.f32.mrf.mxu0
    %v2559 = vadd.f32 %v2172, %v2558
    %2560 = vmatprep.mubr.bf16.mxu0 0
    %2561 = vmatmul.mubr.bf16.gmra.mxu0 %v2212
    %v2562 = vpop.f32.mrf.mxu0
    %v2563 = vadd.f32 %v2168, %v2562
    %v2564 = vpop.f32.mrf.mxu0
    %v2565 = vadd.f32 %v2172, %v2564
    %v2566 = vpop.f32.mrf.mxu0
    %v2567 = vadd.f32 %v2168, %v2566
    %v2568 = vpop.f32.mrf.mxu0
    %v2569 = vadd.f32 %v2172, %v2568
    %2570 = vmatprep.mubr.bf16.mxu0 0
    %2571 = vmatmul.mubr.bf16.gmra.mxu0 %v2213
    %v2572 = vpop.f32.mrf.mxu0
    %v2573 = vadd.f32 %v2168, %v2572
    %v2574 = vpop.f32.mrf.mxu0
    %v2575 = vadd.f32 %v2172, %v2574
    %v2576 = vpop.f32.mrf.mxu0
    %v2577 = vadd.f32 %v2168, %v2576
    %v2578 = vpop.f32.mrf.mxu0
    %v2579 = vadd.f32 %v2172, %v2578
    %2580 = vmatprep.mubr.bf16.mxu0 0
    %2581 = vmatmul.mubr.bf16.gmra.mxu0 %v2214
    %v2582 = vpop.f32.mrf.mxu0
    %v2583 = vadd.f32 %v2168, %v2582
    %v2584 = vpop.f32.mrf.mxu0
    %v2585 = vadd.f32 %v2172, %v2584
    %v2586 = vpop.f32.mrf.mxu0
    %v2587 = vadd.f32 %v2168, %v2586
    %v2588 = vpop.f32.mrf.mxu0
    %v2589 = vadd.f32 %v2172, %v2588
    %2590 = vmatprep.mubr.bf16.mxu0 0
    %2591 = vmatmul.mubr.bf16.gmra.mxu0 %v2215
    %v2592 = vpop.f32.mrf.mxu0
    %v2593 = vadd.f32 %v2168, %v2592
    %v2594 = vpop.f32.mrf.mxu0
    %v2595 = vadd.f32 %v2172, %v2594
    %v2596 = vpop.f32.mrf.mxu0
    %v2597 = vadd.f32 %v2168, %v2596
    %v2598 = vpop.f32.mrf.mxu0
    %v2599 = vadd.f32 %v2172, %v2598
    %2600 = vmatprep.mubr.bf16.mxu0 0
    %2601 = vmatmul.mubr.bf16.gmra.mxu0 %v2216
    %v2602 = vpop.f32.mrf.mxu0
    %v2603 = vadd.f32 %v2168, %v2602
    %v2604 = vpop.f32.mrf.mxu0
    %v2605 = vadd.f32 %v2172, %v2604
    %v2606 = vpop.f32.mrf.mxu0
    %v2607 = vadd.f32 %v2168, %v2606
    %v2608 = vpop.f32.mrf.mxu0
    %v2609 = vadd.f32 %v2172, %v2608
    %2610 = vdwg.mxu0
    %2611 = vst [vmem:[#allocation3] sm:$0xff] %v2420
    %2612 = vst [vmem:[#allocation3 + $0x8] sm:$0xff] %v2422
    %2613 = vst [vmem:[#allocation3 + $0x10] sm:$0xff] %v2533
    %2614 = vst [vmem:[#allocation3 + $0x18] sm:$0xff] %v2535
    %2615 = vst [vmem:[#allocation3 + $0x20] sm:$0xff] %v2424
    %2616 = vst [vmem:[#allocation3 + $0x28] sm:$0xff] %v2426
    %2617 = vst [vmem:[#allocation3 + $0x30] sm:$0xff] %v2537
    %2618 = vst [vmem:[#allocation3 + $0x38] sm:$0xff] %v2539
    %2619 = vst [vmem:[#allocation3 + $0x40] sm:$0xff] %v2430
    %2620 = vst [vmem:[#allocation3 + $0x48] sm:$0xff] %v2432
    %2621 = vst [vmem:[#allocation3 + $0x50] sm:$0xff] %v2543
    %2622 = vst [vmem:[#allocation3 + $0x58] sm:$0xff] %v2545
    %2623 = vst [vmem:[#allocation3 + $0x60] sm:$0xff] %v2434
    %2624 = vst [vmem:[#allocation3 + $0x68] sm:$0xff] %v2436
    %2625 = vst [vmem:[#allocation3 + $0x70] sm:$0xff] %v2547
    %2626 = vst [vmem:[#allocation3 + $0x78] sm:$0xff] %v2549
    %2627 = vst [vmem:[#allocation3 + $0x80] sm:$0xff] %v2440
    %2628 = vst [vmem:[#allocation3 + $0x88] sm:$0xff] %v2442
    %2629 = vst [vmem:[#allocation3 + $0x90] sm:$0xff] %v2553
    %2630 = vst [vmem:[#allocation3 + $0x98] sm:$0xff] %v2555
    %2631 = vst [vmem:[#allocation3 + $0xa0] sm:$0xff] %v2444
    %2632 = vst [vmem:[#allocation3 + $0xa8] sm:$0xff] %v2446
    %2633 = vst [vmem:[#allocation3 + $0xb0] sm:$0xff] %v2557
    %2634 = vst [vmem:[#allocation3 + $0xb8] sm:$0xff] %v2559
    %2635 = vst [vmem:[#allocation3 + $0xc0] sm:$0xff] %v2450
    %2636 = vst [vmem:[#allocation3 + $0xc8] sm:$0xff] %v2452
    %2637 = vst [vmem:[#allocation3 + $0xd0] sm:$0xff] %v2563
    %2638 = vst [vmem:[#allocation3 + $0xd8] sm:$0xff] %v2565
    %2639 = vst [vmem:[#allocation3 + $0xe0] sm:$0xff] %v2454
    %2640 = vst [vmem:[#allocation3 + $0xe8] sm:$0xff] %v2456
    %2641 = vst [vmem:[#allocation3 + $0xf0] sm:$0xff] %v2567
    %2642 = vst [vmem:[#allocation3 + $0xf8] sm:$0xff] %v2569
    %2643 = vst [vmem:[#allocation3 + $0x100] sm:$0xff] %v2460
    %2644 = vst [vmem:[#allocation3 + $0x108] sm:$0xff] %v2462
    %2645 = vst [vmem:[#allocation3 + $0x110] sm:$0xff] %v2573
    %2646 = vst [vmem:[#allocation3 + $0x118] sm:$0xff] %v2575
    %2647 = vst [vmem:[#allocation3 + $0x120] sm:$0xff] %v2464
    %2648 = vst [vmem:[#allocation3 + $0x128] sm:$0xff] %v2466
    %2649 = vst [vmem:[#allocation3 + $0x130] sm:$0xff] %v2577
    %2650 = vst [vmem:[#allocation3 + $0x138] sm:$0xff] %v2579
    %2651 = vst [vmem:[#allocation3 + $0x140] sm:$0xff] %v2470
    %2652 = vst [vmem:[#allocation3 + $0x148] sm:$0xff] %v2472
    %2653 = vst [vmem:[#allocation3 + $0x150] sm:$0xff] %v2583
    %2654 = vst [vmem:[#allocation3 + $0x158] sm:$0xff] %v2585
    %2655 = vst [vmem:[#allocation3 + $0x160] sm:$0xff] %v2474
    %2656 = vst [vmem:[#allocation3 + $0x168] sm:$0xff] %v2476
    %2657 = vst [vmem:[#allocation3 + $0x170] sm:$0xff] %v2587
    %2658 = vst [vmem:[#allocation3 + $0x178] sm:$0xff] %v2589
    %2659 = vst [vmem:[#allocation3 + $0x180] sm:$0xff] %v2480
    %2660 = vst [vmem:[#allocation3 + $0x188] sm:$0xff] %v2482
    %2661 = vst [vmem:[#allocation3 + $0x190] sm:$0xff] %v2593
    %2662 = vst [vmem:[#allocation3 + $0x198] sm:$0xff] %v2595
    %2663 = vst [vmem:[#allocation3 + $0x1a0] sm:$0xff] %v2484
    %2664 = vst [vmem:[#allocation3 + $0x1a8] sm:$0xff] %v2486
    %2665 = vst [vmem:[#allocation3 + $0x1b0] sm:$0xff] %v2597
    %2666 = vst [vmem:[#allocation3 + $0x1b8] sm:$0xff] %v2599
    %2667 = vst [vmem:[#allocation3 + $0x1c0] sm:$0xff] %v2490
    %2668 = vst [vmem:[#allocation3 + $0x1c8] sm:$0xff] %v2492
    %2669 = vst [vmem:[#allocation3 + $0x1d0] sm:$0xff] %v2603
    %2670 = vst [vmem:[#allocation3 + $0x1d8] sm:$0xff] %v2605
    %2671 = vst [vmem:[#allocation3 + $0x1e0] sm:$0xff] %v2494
    %2672 = vst [vmem:[#allocation3 + $0x1e8] sm:$0xff] %v2496
    %2673 = vst [vmem:[#allocation3 + $0x1f0] sm:$0xff] %v2607
    %2674 = vst [vmem:[#allocation3 + $0x1f8] sm:$0xff] %v2609
    %s2675 = scalar_lea.vmem [#allocation10], 256
    %v2676 = vld [vmem:[%s2675] sm:$0xff]
    %v2677 = vld [vmem:[%s2675 + $0x8] sm:$0xff]
    %v2678 = vld [vmem:[%s2675 + $0x10] sm:$0xff]
    %v2679 = vld [vmem:[%s2675 + $0x18] sm:$0xff]
    %v2680 = vld [vmem:[%s2675 + $0x20] sm:$0xff]
    %v2681 = vld [vmem:[%s2675 + $0x28] sm:$0xff]
    %v2682 = vld [vmem:[%s2675 + $0x30] sm:$0xff]
    %v2683 = vld [vmem:[%s2675 + $0x38] sm:$0xff]
    %v2684 = vld [vmem:[%s2675 + $0x40] sm:$0xff]
    %v2685 = vld [vmem:[%s2675 + $0x48] sm:$0xff]
    %v2686 = vld [vmem:[%s2675 + $0x50] sm:$0xff]
    %v2687 = vld [vmem:[%s2675 + $0x58] sm:$0xff]
    %v2688 = vld [vmem:[%s2675 + $0x60] sm:$0xff]
    %v2689 = vld [vmem:[%s2675 + $0x68] sm:$0xff]
    %v2690 = vld [vmem:[%s2675 + $0x70] sm:$0xff]
    %v2691 = vld [vmem:[%s2675 + $0x78] sm:$0xff]
    %v2692 = vld [vmem:[%s2675 + $0x80] sm:$0xff]
    %v2693 = vld [vmem:[%s2675 + $0x88] sm:$0xff]
    %v2694 = vld [vmem:[%s2675 + $0x90] sm:$0xff]
    %v2695 = vld [vmem:[%s2675 + $0x98] sm:$0xff]
    %v2696 = vld [vmem:[%s2675 + $0xa0] sm:$0xff]
    %v2697 = vld [vmem:[%s2675 + $0xa8] sm:$0xff]
    %v2698 = vld [vmem:[%s2675 + $0xb0] sm:$0xff]
    %v2699 = vld [vmem:[%s2675 + $0xb8] sm:$0xff]
    %v2700 = vld [vmem:[%s2675 + $0xc0] sm:$0xff]
    %v2701 = vld [vmem:[%s2675 + $0xc8] sm:$0xff]
    %v2702 = vld [vmem:[%s2675 + $0xd0] sm:$0xff]
    %v2703 = vld [vmem:[%s2675 + $0xd8] sm:$0xff]
    %v2704 = vld [vmem:[%s2675 + $0xe0] sm:$0xff]
    %v2705 = vld [vmem:[%s2675 + $0xe8] sm:$0xff]
    %v2706 = vld [vmem:[%s2675 + $0xf0] sm:$0xff]
    %v2707 = vld [vmem:[%s2675 + $0xf8] sm:$0xff]
    %s2708 = scalar_lea.vmem [#allocation13], 16
    %v2709 = vld [vmem:[%s2708] sm:$0xff]
    %v2710 = vld [vmem:[%s2708 + $0x8] sm:$0xff]
    %s2711 = scalar_lea.vmem [#allocation15], 16
    %v2712 = vld [vmem:[%s2711] sm:$0xff]
    %v2713 = vld [vmem:[%s2711 + $0x8] sm:$0xff]
    %v2714 = vld [vmem:[#allocation3] sm:$0xff]
    %v2715 = vld [vmem:[#allocation3 + $0x8] sm:$0xff]
    %v2716 = vld [vmem:[#allocation3 + $0x10] sm:$0xff]
    %v2717 = vld [vmem:[#allocation3 + $0x18] sm:$0xff]
    %v2718 = vld [vmem:[#allocation3 + $0x20] sm:$0xff]
    %v2719 = vld [vmem:[#allocation3 + $0x28] sm:$0xff]
    %v2720 = vld [vmem:[#allocation3 + $0x30] sm:$0xff]
    %v2721 = vld [vmem:[#allocation3 + $0x38] sm:$0xff]
    %v2722 = vpack.c.bf16 %v2710, %v2709
    %v2755 = vunpack.c.l.b16 %v2676
    %v2756 = vunpack.c.h.b16 %v2676
    %v2757 = vunpack.c.l.b16 %v2677
    %v2758 = vunpack.c.h.b16 %v2677
    %v2759 = vunpack.c.l.b16 %v2678
    %v2760 = vunpack.c.h.b16 %v2678
    %v2761 = vunpack.c.l.b16 %v2679
    %v2762 = vunpack.c.h.b16 %v2679
    %v2763 = vunpack.c.l.b16 %v2680
    %v2764 = vunpack.c.h.b16 %v2680
    %v2765 = vunpack.c.l.b16 %v2681
    %v2766 = vunpack.c.h.b16 %v2681
    %v2767 = vunpack.c.l.b16 %v2682
    %v2768 = vunpack.c.h.b16 %v2682
    %v2769 = vunpack.c.l.b16 %v2683
    %v2770 = vunpack.c.h.b16 %v2683
    %v2771 = vunpack.c.l.b16 %v2684
    %v2772 = vunpack.c.h.b16 %v2684
    %v2773 = vunpack.c.l.b16 %v2685
    %v2774 = vunpack.c.h.b16 %v2685
    %v2775 = vunpack.c.l.b16 %v2686
    %v2776 = vunpack.c.h.b16 %v2686
    %v2777 = vunpack.c.l.b16 %v2687
    %v2778 = vunpack.c.h.b16 %v2687
    %v2779 = vunpack.c.l.b16 %v2688
    %v2780 = vunpack.c.h.b16 %v2688
    %v2781 = vunpack.c.l.b16 %v2689
    %v2782 = vunpack.c.h.b16 %v2689
    %v2783 = vunpack.c.l.b16 %v2690
    %v2784 = vunpack.c.h.b16 %v2690
    %v2785 = vunpack.c.l.b16 %v2691
    %v2786 = vunpack.c.h.b16 %v2691
    %v2787 = vunpack.c.l.b16 %v2692
    %v2788 = vunpack.c.h.b16 %v2692
    %v2789 = vunpack.c.l.b16 %v2693
    %v2790 = vunpack.c.h.b16 %v2693
    %v2791 = vunpack.c.l.b16 %v2694
    %v2792 = vunpack.c.h.b16 %v2694
    %v2793 = vunpack.c.l.b16 %v2695
    %v2794 = vunpack.c.h.b16 %v2695
    %v2795 = vunpack.c.l.b16 %v2696
    %v2796 = vunpack.c.h.b16 %v2696
    %v2797 = vunpack.c.l.b16 %v2697
    %v2798 = vunpack.c.h.b16 %v2697
    %v2799 = vunpack.c.l.b16 %v2698
    %v2800 = vunpack.c.h.b16 %v2698
    %v2801 = vunpack.c.l.b16 %v2699
    %v2802 = vunpack.c.h.b16 %v2699
    %v2803 = vunpack.c.l.b16 %v2700
    %v2804 = vunpack.c.h.b16 %v2700
    %v2805 = vunpack.c.l.b16 %v2701
    %v2806 = vunpack.c.h.b16 %v2701
    %v2807 = vunpack.c.l.b16 %v2702
    %v2808 = vunpack.c.h.b16 %v2702
    %v2809 = vunpack.c.l.b16 %v2703
    %v2810 = vunpack.c.h.b16 %v2703
    %v2811 = vunpack.c.l.b16 %v2704
    %v2812 = vunpack.c.h.b16 %v2704
    %v2813 = vunpack.c.l.b16 %v2705
    %v2814 = vunpack.c.h.b16 %v2705
    %v2815 = vunpack.c.l.b16 %v2706
    %v2816 = vunpack.c.h.b16 %v2706
    %v2817 = vunpack.c.l.b16 %v2707
    %v2818 = vunpack.c.h.b16 %v2707
    %v2819 = vpack.c.b16 %v2759, %v2755
    %v2820 = vpack.c.b16 %v2760, %v2756
    %v2821 = vpack.c.b16 %v2761, %v2757
    %v2822 = vpack.c.b16 %v2762, %v2758
    %v2823 = vpack.c.b16 %v2767, %v2763
    %v2824 = vpack.c.b16 %v2768, %v2764
    %v2825 = vpack.c.b16 %v2769, %v2765
    %v2826 = vpack.c.b16 %v2770, %v2766
    %v2827 = vpack.c.b16 %v2775, %v2771
    %v2828 = vpack.c.b16 %v2776, %v2772
    %v2829 = vpack.c.b16 %v2777, %v2773
    %v2830 = vpack.c.b16 %v2778, %v2774
    %v2831 = vpack.c.b16 %v2783, %v2779
    %v2832 = vpack.c.b16 %v2784, %v2780
    %v2833 = vpack.c.b16 %v2785, %v2781
    %v2834 = vpack.c.b16 %v2786, %v2782
    %v2835 = vpack.c.b16 %v2791, %v2787
    %v2836 = vpack.c.b16 %v2792, %v2788
    %v2837 = vpack.c.b16 %v2793, %v2789
    %v2838 = vpack.c.b16 %v2794, %v2790
    %v2839 = vpack.c.b16 %v2799, %v2795
    %v2840 = vpack.c.b16 %v2800, %v2796
    %v2841 = vpack.c.b16 %v2801, %v2797
    %v2842 = vpack.c.b16 %v2802, %v2798
    %v2843 = vpack.c.b16 %v2807, %v2803
    %v2844 = vpack.c.b16 %v2808, %v2804
    %v2845 = vpack.c.b16 %v2809, %v2805
    %v2846 = vpack.c.b16 %v2810, %v2806
    %v2847 = vpack.c.b16 %v2815, %v2811
    %v2848 = vpack.c.b16 %v2816, %v2812
    %v2849 = vpack.c.b16 %v2817, %v2813
    %v2850 = vpack.c.b16 %v2818, %v2814
    %2883 = vmatprep.subr.bf16.mxu0 %v2848
    %2884 = vmatpush1.bf16.msra.mxu0 %v2847
    %2885 = vmatprep.subr.bf16.mxu0 %v2844
    %2886 = vmatpush1.bf16.msra.mxu0 %v2843
    %2887 = vmatprep.subr.bf16.mxu0 %v2840
    %2888 = vmatpush1.bf16.msra.mxu0 %v2839
    %2889 = vmatprep.subr.bf16.mxu0 %v2836
    %2890 = vmatpush1.bf16.msra.mxu0 %v2835
    %2891 = vmatprep.subr.bf16.mxu0 %v2832
    %2892 = vmatpush1.bf16.msra.mxu0 %v2831
    %2893 = vmatprep.subr.bf16.mxu0 %v2828
    %2894 = vmatpush1.bf16.msra.mxu0 %v2827
    %2895 = vmatprep.subr.bf16.mxu0 %v2824
    %2896 = vmatpush1.bf16.msra.mxu0 %v2823
    %2897 = vmatprep.subr.bf16.mxu0 %v2820
    %2898 = vmatpush1.bf16.msra.mxu0 %v2819
    %2899 = vmatprep.subr.bf16.mxu0 0
    %2900 = vmatpush2.bf16.msra.mxu0 0
    %2901 = vmatprep.subr.bf16.mxu0 0
    %2902 = vmatpush2.bf16.msra.mxu0 0
    %2903 = vmatprep.subr.bf16.mxu0 0
    %2904 = vmatpush2.bf16.msra.mxu0 0
    %2905 = vmatprep.subr.bf16.mxu0 0
    %2906 = vmatpush2.bf16.msra.mxu0 0
    %2907 = vmatprep.subr.bf16.mxu0 0
    %2908 = vmatpush2.bf16.msra.mxu0 0
    %2909 = vmatprep.subr.bf16.mxu0 0
    %2910 = vmatpush2.bf16.msra.mxu0 0
    %2911 = vmatprep.subr.bf16.mxu0 0
    %2912 = vmatpush2.bf16.msra.mxu0 0
    %2913 = vmatprep.subr.bf16.mxu0 0
    %2914 = vmatpush2.bf16.msra.mxu0 0
    %2915 = vmatprep.mubr.bf16.mxu0 0
    %2916 = vmatmul.mubr.bf16.gmra.mxu0 %v2722
    %v2917 = vpop.f32.mrf.mxu0
    %v2918 = vadd.f32 0.0, %v2917
    %v2919 = vpop.f32.mrf.mxu0
    %v2920 = vadd.f32 0.0, %v2919
    %v2921 = vpop.f32.mrf.mxu0
    %v2922 = vadd.f32 0.0, %v2921
    %v2923 = vpop.f32.mrf.mxu0
    %v2924 = vadd.f32 0.0, %v2923
    %2925 = vdwg.mxu0
    %2926 = vmatprep.subr.bf16.mxu0 %v2850
    %2927 = vmatpush1.bf16.msra.mxu0 %v2849
    %2928 = vmatprep.subr.bf16.mxu0 %v2846
    %2929 = vmatpush1.bf16.msra.mxu0 %v2845
    %2930 = vmatprep.subr.bf16.mxu0 %v2842
    %2931 = vmatpush1.bf16.msra.mxu0 %v2841
    %2932 = vmatprep.subr.bf16.mxu0 %v2838
    %2933 = vmatpush1.bf16.msra.mxu0 %v2837
    %2934 = vmatprep.subr.bf16.mxu0 %v2834
    %2935 = vmatpush1.bf16.msra.mxu0 %v2833
    %2936 = vmatprep.subr.bf16.mxu0 %v2830
    %2937 = vmatpush1.bf16.msra.mxu0 %v2829
    %2938 = vmatprep.subr.bf16.mxu0 %v2826
    %2939 = vmatpush1.bf16.msra.mxu0 %v2825
    %2940 = vmatprep.subr.bf16.mxu0 %v2822
    %2941 = vmatpush1.bf16.msra.mxu0 %v2821
    %2942 = vmatprep.subr.bf16.mxu0 0
    %2943 = vmatpush2.bf16.msra.mxu0 0
    %2944 = vmatprep.subr.bf16.mxu0 0
    %2945 = vmatpush2.bf16.msra.mxu0 0
    %2946 = vmatprep.subr.bf16.mxu0 0
    %2947 = vmatpush2.bf16.msra.mxu0 0
    %2948 = vmatprep.subr.bf16.mxu0 0
    %2949 = vmatpush2.bf16.msra.mxu0 0
    %2950 = vmatprep.subr.bf16.mxu0 0
    %2951 = vmatpush2.bf16.msra.mxu0 0
    %2952 = vmatprep.subr.bf16.mxu0 0
    %2953 = vmatpush2.bf16.msra.mxu0 0
    %2954 = vmatprep.subr.bf16.mxu0 0
    %2955 = vmatpush2.bf16.msra.mxu0 0
    %2956 = vmatprep.subr.bf16.mxu0 0
    %2957 = vmatpush2.bf16.msra.mxu0 0
    %2958 = vmatprep.mubr.bf16.mxu0 0
    %2959 = vmatmul.mubr.bf16.gmra.mxu0 %v2722
    %v2960 = vpop.f32.mrf.mxu0
    %v2961 = vadd.f32 0.0, %v2960
    %v2962 = vpop.f32.mrf.mxu0
    %v2963 = vadd.f32 0.0, %v2962
    %v2964 = vpop.f32.mrf.mxu0
    %v2965 = vadd.f32 0.0, %v2964
    %v2966 = vpop.f32.mrf.mxu0
    %v2967 = vadd.f32 0.0, %v2966
    %2968 = vdwg.mxu0
    %v2969 = vadd.f32 %v2714, %v2918
    %v2970 = vadd.f32 %v2715, %v2920
    %v2971 = vadd.f32 %v2716, %v2961
    %v2972 = vadd.f32 %v2717, %v2963
    %v2973 = vadd.f32 %v2718, %v2922
    %v2974 = vadd.f32 %v2719, %v2924
    %v2975 = vadd.f32 %v2720, %v2965
    %v2976 = vadd.f32 %v2721, %v2967
    %v2977 = vmul.f32 %v2969, 0.5
    %v2978 = vmul.f32 %v2973, 0.5
    %v2979 = vtanh.pop %v2977
    %v2980 = vtanh.pop %v2978
    %v2981 = vmul.f32 %v2979, 0.5
    %v2982 = vmul.f32 %v2980, 0.5
    %v2983 = vadd.f32 %v2981, 0.5
    %v2984 = vadd.f32 %v2982, 0.5
    %v2985 = vmul.f32 %v2970, 0.5
    %v2986 = vmul.f32 %v2974, 0.5
    %v2987 = vtanh.pop %v2985
    %v2988 = vtanh.pop %v2986
    %v2989 = vmul.f32 %v2987, 0.5
    %v2990 = vmul.f32 %v2988, 0.5
    %v2991 = vadd.f32 %v2989, 0.5
    %v2992 = vadd.f32 %v2990, 0.5
    %v2993 = vtanh.pop %v2971
    %v2994 = vtanh.pop %v2975
    %v2995 = vmul.f32 %v2972, 0.5
    %v2996 = vmul.f32 %v2976, 0.5
    %v2997 = vtanh.pop %v2995
    %v2998 = vtanh.pop %v2996
    %v2999 = vmul.f32 %v2997, 0.5
    %v3000 = vmul.f32 %v2998, 0.5
    %v3001 = vadd.f32 %v2999, 0.5
    %v3002 = vadd.f32 %v3000, 0.5
    %v3003 = vmul.f32 %v2991, %v2712
    %v3004 = vmul.f32 %v2992, %v2713
    %v3005 = vmul.f32 %v2983, %v2993
    %v3006 = vmul.f32 %v2984, %v2994
    %v3007 = vadd.f32 %v3003, %v3005
    %v3008 = vadd.f32 %v3004, %v3006
    %v3009 = vtanh.pop %v3007
    %v3010 = vtanh.pop %v3008
    %v3011 = vmul.f32 %v3001, %v3009
    %v3012 = vmul.f32 %v3002, %v3010
    %v3013 = vpack.c.bf16 %v3012, %v3011
    %v3015 = vunpack.c.l.b16 %v3013
    %v3016 = vunpack.c.h.b16 %v3013
    %v3017 = vpack.c.b16 %v3015, %v3015
    %v3018 = vpack.c.b16 %v3016, %v3016
    %3021 = vst [vmem:[#allocation2] sm:$0xf] %v3017
    %3022 = vst [vmem:[#allocation2 + $0x4] sm:$0xf] %v3018
    %v3023 = vld [vmem:[%s1056] sm:$0xff]
    %v3024 = vld [vmem:[%s1056 + $0x8] sm:$0xff]
    %v3025 = vld [vmem:[%s1056 + $0x10] sm:$0xff]
    %v3026 = vld [vmem:[%s1056 + $0x18] sm:$0xff]
    %v3027 = vld [vmem:[%s1056 + $0x20] sm:$0xff]
    %v3028 = vld [vmem:[%s1056 + $0x28] sm:$0xff]
    %v3029 = vld [vmem:[%s1056 + $0x30] sm:$0xff]
    %v3030 = vld [vmem:[%s1056 + $0x38] sm:$0xff]
    %3031 = vmatprep.subr.bf16.mxu0 %v2848
    %3032 = vmatpush1.bf16.msra.mxu0 %v2847
    %3033 = vmatprep.subr.bf16.mxu0 %v2844
    %3034 = vmatpush1.bf16.msra.mxu0 %v2843
    %3035 = vmatprep.subr.bf16.mxu0 %v2840
    %3036 = vmatpush1.bf16.msra.mxu0 %v2839
    %3037 = vmatprep.subr.bf16.mxu0 %v2836
    %3038 = vmatpush1.bf16.msra.mxu0 %v2835
    %3039 = vmatprep.subr.bf16.mxu0 %v2832
    %3040 = vmatpush1.bf16.msra.mxu0 %v2831
    %3041 = vmatprep.subr.bf16.mxu0 %v2828
    %3042 = vmatpush1.bf16.msra.mxu0 %v2827
    %3043 = vmatprep.subr.bf16.mxu0 %v2824
    %3044 = vmatpush1.bf16.msra.mxu0 %v2823
    %3045 = vmatprep.subr.bf16.mxu0 %v2820
    %3046 = vmatpush1.bf16.msra.mxu0 %v2819
    %3047 = vmatprep.subr.bf16.mxu0 0
    %3048 = vmatpush2.bf16.msra.mxu0 0
    %3049 = vmatprep.subr.bf16.mxu0 0
    %3050 = vmatpush2.bf16.msra.mxu0 0
    %3051 = vmatprep.subr.bf16.mxu0 0
    %3052 = vmatpush2.bf16.msra.mxu0 0
    %3053 = vmatprep.subr.bf16.mxu0 0
    %3054 = vmatpush2.bf16.msra.mxu0 0
    %3055 = vmatprep.subr.bf16.mxu0 0
    %3056 = vmatpush2.bf16.msra.mxu0 0
    %3057 = vmatprep.subr.bf16.mxu0 0
    %3058 = vmatpush2.bf16.msra.mxu0 0
    %3059 = vmatprep.subr.bf16.mxu0 0
    %3060 = vmatpush2.bf16.msra.mxu0 0
    %3061 = vmatprep.subr.bf16.mxu0 0
    %3062 = vmatpush2.bf16.msra.mxu0 0
    %3063 = vmatprep.mubr.bf16.mxu0 0
    %3064 = vmatmul.mubr.bf16.gmra.mxu0 %v3013
    %v3065 = vpop.f32.mrf.mxu0
    %v3066 = vadd.f32 0.0, %v3065
    %v3067 = vpop.f32.mrf.mxu0
    %v3068 = vadd.f32 0.0, %v3067
    %v3069 = vpop.f32.mrf.mxu0
    %v3070 = vadd.f32 0.0, %v3069
    %v3071 = vpop.f32.mrf.mxu0
    %v3072 = vadd.f32 0.0, %v3071
    %3073 = vdwg.mxu0
    %3074 = vmatprep.subr.bf16.mxu0 %v2850
    %3075 = vmatpush1.bf16.msra.mxu0 %v2849
    %3076 = vmatprep.subr.bf16.mxu0 %v2846
    %3077 = vmatpush1.bf16.msra.mxu0 %v2845
    %3078 = vmatprep.subr.bf16.mxu0 %v2842
    %3079 = vmatpush1.bf16.msra.mxu0 %v2841
    %3080 = vmatprep.subr.bf16.mxu0 %v2838
    %3081 = vmatpush1.bf16.msra.mxu0 %v2837
    %3082 = vmatprep.subr.bf16.mxu0 %v2834
    %3083 = vmatpush1.bf16.msra.mxu0 %v2833
    %3084 = vmatprep.subr.bf16.mxu0 %v2830
    %3085 = vmatpush1.bf16.msra.mxu0 %v2829
    %3086 = vmatprep.subr.bf16.mxu0 %v2826
    %3087 = vmatpush1.bf16.msra.mxu0 %v2825
    %3088 = vmatprep.subr.bf16.mxu0 %v2822
    %3089 = vmatpush1.bf16.msra.mxu0 %v2821
    %3090 = vmatprep.subr.bf16.mxu0 0
    %3091 = vmatpush2.bf16.msra.mxu0 0
    %3092 = vmatprep.subr.bf16.mxu0 0
    %3093 = vmatpush2.bf16.msra.mxu0 0
    %3094 = vmatprep.subr.bf16.mxu0 0
    %3095 = vmatpush2.bf16.msra.mxu0 0
    %3096 = vmatprep.subr.bf16.mxu0 0
    %3097 = vmatpush2.bf16.msra.mxu0 0
    %3098 = vmatprep.subr.bf16.mxu0 0
    %3099 = vmatpush2.bf16.msra.mxu0 0
    %3100 = vmatprep.subr.bf16.mxu0 0
    %3101 = vmatpush2.bf16.msra.mxu0 0
    %3102 = vmatprep.subr.bf16.mxu0 0
    %3103 = vmatpush2.bf16.msra.mxu0 0
    %3104 = vmatprep.subr.bf16.mxu0 0
    %3105 = vmatpush2.bf16.msra.mxu0 0
    %3106 = vmatprep.mubr.bf16.mxu0 0
    %3107 = vmatmul.mubr.bf16.gmra.mxu0 %v3013
    %v3108 = vpop.f32.mrf.mxu0
    %v3109 = vadd.f32 0.0, %v3108
    %v3110 = vpop.f32.mrf.mxu0
    %v3111 = vadd.f32 0.0, %v3110
    %v3112 = vpop.f32.mrf.mxu0
    %v3113 = vadd.f32 0.0, %v3112
    %v3114 = vpop.f32.mrf.mxu0
    %v3115 = vadd.f32 0.0, %v3114
    %3116 = vdwg.mxu0
    %v3117 = vadd.f32 %v3023, %v3066
    %v3118 = vadd.f32 %v3024, %v3068
    %v3119 = vadd.f32 %v3025, %v3109
    %v3120 = vadd.f32 %v3026, %v3111
    %v3121 = vadd.f32 %v3027, %v3070
    %v3122 = vadd.f32 %v3028, %v3072
    %v3123 = vadd.f32 %v3029, %v3113
    %v3124 = vadd.f32 %v3030, %v3115
    %v3125 = vmul.f32 %v3117, 0.5
    %v3126 = vmul.f32 %v3121, 0.5
    %v3127 = vtanh.pop %v3125
    %v3128 = vtanh.pop %v3126
    %v3129 = vmul.f32 %v3127, 0.5
    %v3130 = vmul.f32 %v3128, 0.5
    %v3131 = vadd.f32 %v3129, 0.5
    %v3132 = vadd.f32 %v3130, 0.5
    %v3133 = vmul.f32 %v3118, 0.5
    %v3134 = vmul.f32 %v3122, 0.5
    %v3135 = vtanh.pop %v3133
    %v3136 = vtanh.pop %v3134
    %v3137 = vmul.f32 %v3135, 0.5
    %v3138 = vmul.f32 %v3136, 0.5
    %v3139 = vadd.f32 %v3137, 0.5
    %v3140 = vadd.f32 %v3138, 0.5
    %v3141 = vtanh.pop %v3119
    %v3142 = vtanh.pop %v3123
    %v3143 = vmul.f32 %v3120, 0.5
    %v3144 = vmul.f32 %v3124, 0.5
    %v3145 = vtanh.pop %v3143
    %v3146 = vtanh.pop %v3144
    %v3147 = vmul.f32 %v3145, 0.5
    %v3148 = vmul.f32 %v3146, 0.5
    %v3149 = vadd.f32 %v3147, 0.5
    %v3150 = vadd.f32 %v3148, 0.5
    %v3151 = vmul.f32 %v3139, %v3007
    %v3152 = vmul.f32 %v3140, %v3008
    %v3153 = vmul.f32 %v3131, %v3141
    %v3154 = vmul.f32 %v3132, %v3142
    %v3155 = vadd.f32 %v3151, %v3153
    %v3156 = vadd.f32 %v3152, %v3154
    %v3157 = vtanh.pop %v3155
    %v3158 = vtanh.pop %v3156
    %v3159 = vmul.f32 %v3149, %v3157
    %v3160 = vmul.f32 %v3150, %v3158
    %v3161 = vpack.c.bf16 %v3160, %v3159
    %v3163 = vunpack.c.l.b16 %v3161
    %v3164 = vunpack.c.h.b16 %v3161
    %v3165 = vpack.c.b16 %v3163, %v3163
    %v3166 = vpack.c.b16 %v3164, %v3164
    %3169 = vst [vmem:[%s1203] sm:$0xf] %v3165
    %3170 = vst [vmem:[%s1203 + $0x4] sm:$0xf] %v3166
    %v3171 = vld [vmem:[%s1206] sm:$0xff]
    %v3172 = vld [vmem:[%s1206 + $0x8] sm:$0xff]
    %v3173 = vld [vmem:[%s1206 + $0x10] sm:$0xff]
    %v3174 = vld [vmem:[%s1206 + $0x18] sm:$0xff]
    %v3175 = vld [vmem:[%s1206 + $0x20] sm:$0xff]
    %v3176 = vld [vmem:[%s1206 + $0x28] sm:$0xff]
    %v3177 = vld [vmem:[%s1206 + $0x30] sm:$0xff]
    %v3178 = vld [vmem:[%s1206 + $0x38] sm:$0xff]
    %3179 = vmatprep.subr.bf16.mxu0 %v2848
    %3180 = vmatpush1.bf16.msra.mxu0 %v2847
    %3181 = vmatprep.subr.bf16.mxu0 %v2844
    %3182 = vmatpush1.bf16.msra.mxu0 %v2843
    %3183 = vmatprep.subr.bf16.mxu0 %v2840
    %3184 = vmatpush1.bf16.msra.mxu0 %v2839
    %3185 = vmatprep.subr.bf16.mxu0 %v2836
    %3186 = vmatpush1.bf16.msra.mxu0 %v2835
    %3187 = vmatprep.subr.bf16.mxu0 %v2832
    %3188 = vmatpush1.bf16.msra.mxu0 %v2831
    %3189 = vmatprep.subr.bf16.mxu0 %v2828
    %3190 = vmatpush1.bf16.msra.mxu0 %v2827
    %3191 = vmatprep.subr.bf16.mxu0 %v2824
    %3192 = vmatpush1.bf16.msra.mxu0 %v2823
    %3193 = vmatprep.subr.bf16.mxu0 %v2820
    %3194 = vmatpush1.bf16.msra.mxu0 %v2819
    %3195 = vmatprep.subr.bf16.mxu0 0
    %3196 = vmatpush2.bf16.msra.mxu0 0
    %3197 = vmatprep.subr.bf16.mxu0 0
    %3198 = vmatpush2.bf16.msra.mxu0 0
    %3199 = vmatprep.subr.bf16.mxu0 0
    %3200 = vmatpush2.bf16.msra.mxu0 0
    %3201 = vmatprep.subr.bf16.mxu0 0
    %3202 = vmatpush2.bf16.msra.mxu0 0
    %3203 = vmatprep.subr.bf16.mxu0 0
    %3204 = vmatpush2.bf16.msra.mxu0 0
    %3205 = vmatprep.subr.bf16.mxu0 0
    %3206 = vmatpush2.bf16.msra.mxu0 0
    %3207 = vmatprep.subr.bf16.mxu0 0
    %3208 = vmatpush2.bf16.msra.mxu0 0
    %3209 = vmatprep.subr.bf16.mxu0 0
    %3210 = vmatpush2.bf16.msra.mxu0 0
    %3211 = vmatprep.mubr.bf16.mxu0 0
    %3212 = vmatmul.mubr.bf16.gmra.mxu0 %v3161
    %v3213 = vpop.f32.mrf.mxu0
    %v3214 = vadd.f32 0.0, %v3213
    %v3215 = vpop.f32.mrf.mxu0
    %v3216 = vadd.f32 0.0, %v3215
    %v3217 = vpop.f32.mrf.mxu0
    %v3218 = vadd.f32 0.0, %v3217
    %v3219 = vpop.f32.mrf.mxu0
    %v3220 = vadd.f32 0.0, %v3219
    %3221 = vdwg.mxu0
    %3222 = vmatprep.subr.bf16.mxu0 %v2850
    %3223 = vmatpush1.bf16.msra.mxu0 %v2849
    %3224 = vmatprep.subr.bf16.mxu0 %v2846
    %3225 = vmatpush1.bf16.msra.mxu0 %v2845
    %3226 = vmatprep.subr.bf16.mxu0 %v2842
    %3227 = vmatpush1.bf16.msra.mxu0 %v2841
    %3228 = vmatprep.subr.bf16.mxu0 %v2838
    %3229 = vmatpush1.bf16.msra.mxu0 %v2837
    %3230 = vmatprep.subr.bf16.mxu0 %v2834
    %3231 = vmatpush1.bf16.msra.mxu0 %v2833
    %3232 = vmatprep.subr.bf16.mxu0 %v2830
    %3233 = vmatpush1.bf16.msra.mxu0 %v2829
    %3234 = vmatprep.subr.bf16.mxu0 %v2826
    %3235 = vmatpush1.bf16.msra.mxu0 %v2825
    %3236 = vmatprep.subr.bf16.mxu0 %v2822
    %3237 = vmatpush1.bf16.msra.mxu0 %v2821
    %3238 = vmatprep.subr.bf16.mxu0 0
    %3239 = vmatpush2.bf16.msra.mxu0 0
    %3240 = vmatprep.subr.bf16.mxu0 0
    %3241 = vmatpush2.bf16.msra.mxu0 0
    %3242 = vmatprep.subr.bf16.mxu0 0
    %3243 = vmatpush2.bf16.msra.mxu0 0
    %3244 = vmatprep.subr.bf16.mxu0 0
    %3245 = vmatpush2.bf16.msra.mxu0 0
    %3246 = vmatprep.subr.bf16.mxu0 0
    %3247 = vmatpush2.bf16.msra.mxu0 0
    %3248 = vmatprep.subr.bf16.mxu0 0
    %3249 = vmatpush2.bf16.msra.mxu0 0
    %3250 = vmatprep.subr.bf16.mxu0 0
    %3251 = vmatpush2.bf16.msra.mxu0 0
    %3252 = vmatprep.subr.bf16.mxu0 0
    %3253 = vmatpush2.bf16.msra.mxu0 0
    %3254 = vmatprep.mubr.bf16.mxu0 0
    %3255 = vmatmul.mubr.bf16.gmra.mxu0 %v3161
    %v3256 = vpop.f32.mrf.mxu0
    %v3257 = vadd.f32 0.0, %v3256
    %v3258 = vpop.f32.mrf.mxu0
    %v3259 = vadd.f32 0.0, %v3258
    %v3260 = vpop.f32.mrf.mxu0
    %v3261 = vadd.f32 0.0, %v3260
    %v3262 = vpop.f32.mrf.mxu0
    %v3263 = vadd.f32 0.0, %v3262
    %3264 = vdwg.mxu0
    %v3265 = vadd.f32 %v3171, %v3214
    %v3266 = vadd.f32 %v3172, %v3216
    %v3267 = vadd.f32 %v3173, %v3257
    %v3268 = vadd.f32 %v3174, %v3259
    %v3269 = vadd.f32 %v3175, %v3218
    %v3270 = vadd.f32 %v3176, %v3220
    %v3271 = vadd.f32 %v3177, %v3261
    %v3272 = vadd.f32 %v3178, %v3263
    %v3273 = vmul.f32 %v3265, 0.5
    %v3274 = vmul.f32 %v3269, 0.5
    %v3275 = vtanh.pop %v3273
    %v3276 = vtanh.pop %v3274
    %v3277 = vmul.f32 %v3275, 0.5
    %v3278 = vmul.f32 %v3276, 0.5
    %v3279 = vadd.f32 %v3277, 0.5
    %v3280 = vadd.f32 %v3278, 0.5
    %v3281 = vmul.f32 %v3266, 0.5
    %v3282 = vmul.f32 %v3270, 0.5
    %v3283 = vtanh.pop %v3281
    %v3284 = vtanh.pop %v3282
    %v3285 = vmul.f32 %v3283, 0.5
    %v3286 = vmul.f32 %v3284, 0.5
    %v3287 = vadd.f32 %v3285, 0.5
    %v3288 = vadd.f32 %v3286, 0.5
    %v3289 = vtanh.pop %v3267
    %v3290 = vtanh.pop %v3271
    %v3291 = vmul.f32 %v3268, 0.5
    %v3292 = vmul.f32 %v3272, 0.5
    %v3293 = vtanh.pop %v3291
    %v3294 = vtanh.pop %v3292
    %v3295 = vmul.f32 %v3293, 0.5
    %v3296 = vmul.f32 %v3294, 0.5
    %v3297 = vadd.f32 %v3295, 0.5
    %v3298 = vadd.f32 %v3296, 0.5
    %v3299 = vmul.f32 %v3287, %v3155
    %v3300 = vmul.f32 %v3288, %v3156
    %v3301 = vmul.f32 %v3279, %v3289
    %v3302 = vmul.f32 %v3280, %v3290
    %v3303 = vadd.f32 %v3299, %v3301
    %v3304 = vadd.f32 %v3300, %v3302
    %v3305 = vtanh.pop %v3303
    %v3306 = vtanh.pop %v3304
    %v3307 = vmul.f32 %v3297, %v3305
    %v3308 = vmul.f32 %v3298, %v3306
    %v3309 = vpack.c.bf16 %v3308, %v3307
    %v3311 = vunpack.c.l.b16 %v3309
    %v3312 = vunpack.c.h.b16 %v3309
    %v3313 = vpack.c.b16 %v3311, %v3311
    %v3314 = vpack.c.b16 %v3312, %v3312
    %3317 = vst [vmem:[%s1353] sm:$0xf] %v3313
    %3318 = vst [vmem:[%s1353 + $0x4] sm:$0xf] %v3314
    %v3319 = vld [vmem:[%s1356] sm:$0xff]
    %v3320 = vld [vmem:[%s1356 + $0x8] sm:$0xff]
    %v3321 = vld [vmem:[%s1356 + $0x10] sm:$0xff]
    %v3322 = vld [vmem:[%s1356 + $0x18] sm:$0xff]
    %v3323 = vld [vmem:[%s1356 + $0x20] sm:$0xff]
    %v3324 = vld [vmem:[%s1356 + $0x28] sm:$0xff]
    %v3325 = vld [vmem:[%s1356 + $0x30] sm:$0xff]
    %v3326 = vld [vmem:[%s1356 + $0x38] sm:$0xff]
    %3327 = vmatprep.subr.bf16.mxu0 %v2848
    %3328 = vmatpush1.bf16.msra.mxu0 %v2847
    %3329 = vmatprep.subr.bf16.mxu0 %v2844
    %3330 = vmatpush1.bf16.msra.mxu0 %v2843
    %3331 = vmatprep.subr.bf16.mxu0 %v2840
    %3332 = vmatpush1.bf16.msra.mxu0 %v2839
    %3333 = vmatprep.subr.bf16.mxu0 %v2836
    %3334 = vmatpush1.bf16.msra.mxu0 %v2835
    %3335 = vmatprep.subr.bf16.mxu0 %v2832
    %3336 = vmatpush1.bf16.msra.mxu0 %v2831
    %3337 = vmatprep.subr.bf16.mxu0 %v2828
    %3338 = vmatpush1.bf16.msra.mxu0 %v2827
    %3339 = vmatprep.subr.bf16.mxu0 %v2824
    %3340 = vmatpush1.bf16.msra.mxu0 %v2823
    %3341 = vmatprep.subr.bf16.mxu0 %v2820
    %3342 = vmatpush1.bf16.msra.mxu0 %v2819
    %3343 = vmatprep.subr.bf16.mxu0 0
    %3344 = vmatpush2.bf16.msra.mxu0 0
    %3345 = vmatprep.subr.bf16.mxu0 0
    %3346 = vmatpush2.bf16.msra.mxu0 0
    %3347 = vmatprep.subr.bf16.mxu0 0
    %3348 = vmatpush2.bf16.msra.mxu0 0
    %3349 = vmatprep.subr.bf16.mxu0 0
    %3350 = vmatpush2.bf16.msra.mxu0 0
    %3351 = vmatprep.subr.bf16.mxu0 0
    %3352 = vmatpush2.bf16.msra.mxu0 0
    %3353 = vmatprep.subr.bf16.mxu0 0
    %3354 = vmatpush2.bf16.msra.mxu0 0
    %3355 = vmatprep.subr.bf16.mxu0 0
    %3356 = vmatpush2.bf16.msra.mxu0 0
    %3357 = vmatprep.subr.bf16.mxu0 0
    %3358 = vmatpush2.bf16.msra.mxu0 0
    %3359 = vmatprep.mubr.bf16.mxu0 0
    %3360 = vmatmul.mubr.bf16.gmra.mxu0 %v3309
    %v3361 = vpop.f32.mrf.mxu0
    %v3362 = vadd.f32 0.0, %v3361
    %v3363 = vpop.f32.mrf.mxu0
    %v3364 = vadd.f32 0.0, %v3363
    %v3365 = vpop.f32.mrf.mxu0
    %v3366 = vadd.f32 0.0, %v3365
    %v3367 = vpop.f32.mrf.mxu0
    %v3368 = vadd.f32 0.0, %v3367
    %3369 = vdwg.mxu0
    %3370 = vmatprep.subr.bf16.mxu0 %v2850
    %3371 = vmatpush1.bf16.msra.mxu0 %v2849
    %3372 = vmatprep.subr.bf16.mxu0 %v2846
    %3373 = vmatpush1.bf16.msra.mxu0 %v2845
    %3374 = vmatprep.subr.bf16.mxu0 %v2842
    %3375 = vmatpush1.bf16.msra.mxu0 %v2841
    %3376 = vmatprep.subr.bf16.mxu0 %v2838
    %3377 = vmatpush1.bf16.msra.mxu0 %v2837
    %3378 = vmatprep.subr.bf16.mxu0 %v2834
    %3379 = vmatpush1.bf16.msra.mxu0 %v2833
    %3380 = vmatprep.subr.bf16.mxu0 %v2830
    %3381 = vmatpush1.bf16.msra.mxu0 %v2829
    %3382 = vmatprep.subr.bf16.mxu0 %v2826
    %3383 = vmatpush1.bf16.msra.mxu0 %v2825
    %3384 = vmatprep.subr.bf16.mxu0 %v2822
    %3385 = vmatpush1.bf16.msra.mxu0 %v2821
    %3386 = vmatprep.subr.bf16.mxu0 0
    %3387 = vmatpush2.bf16.msra.mxu0 0
    %3388 = vmatprep.subr.bf16.mxu0 0
    %3389 = vmatpush2.bf16.msra.mxu0 0
    %3390 = vmatprep.subr.bf16.mxu0 0
    %3391 = vmatpush2.bf16.msra.mxu0 0
    %3392 = vmatprep.subr.bf16.mxu0 0
    %3393 = vmatpush2.bf16.msra.mxu0 0
    %3394 = vmatprep.subr.bf16.mxu0 0
    %3395 = vmatpush2.bf16.msra.mxu0 0
    %3396 = vmatprep.subr.bf16.mxu0 0
    %3397 = vmatpush2.bf16.msra.mxu0 0
    %3398 = vmatprep.subr.bf16.mxu0 0
    %3399 = vmatpush2.bf16.msra.mxu0 0
    %3400 = vmatprep.subr.bf16.mxu0 0
    %3401 = vmatpush2.bf16.msra.mxu0 0
    %3402 = vmatprep.mubr.bf16.mxu0 0
    %3403 = vmatmul.mubr.bf16.gmra.mxu0 %v3309
    %v3404 = vpop.f32.mrf.mxu0
    %v3405 = vadd.f32 0.0, %v3404
    %v3406 = vpop.f32.mrf.mxu0
    %v3407 = vadd.f32 0.0, %v3406
    %v3408 = vpop.f32.mrf.mxu0
    %v3409 = vadd.f32 0.0, %v3408
    %v3410 = vpop.f32.mrf.mxu0
    %v3411 = vadd.f32 0.0, %v3410
    %3412 = vdwg.mxu0
    %v3413 = vadd.f32 %v3319, %v3362
    %v3414 = vadd.f32 %v3320, %v3364
    %v3415 = vadd.f32 %v3321, %v3405
    %v3416 = vadd.f32 %v3322, %v3407
    %v3417 = vadd.f32 %v3323, %v3366
    %v3418 = vadd.f32 %v3324, %v3368
    %v3419 = vadd.f32 %v3325, %v3409
    %v3420 = vadd.f32 %v3326, %v3411
    %v3421 = vmul.f32 %v3413, 0.5
    %v3422 = vmul.f32 %v3417, 0.5
    %v3423 = vtanh.pop %v3421
    %v3424 = vtanh.pop %v3422
    %v3425 = vmul.f32 %v3423, 0.5
    %v3426 = vmul.f32 %v3424, 0.5
    %v3427 = vadd.f32 %v3425, 0.5
    %v3428 = vadd.f32 %v3426, 0.5
    %v3429 = vmul.f32 %v3414, 0.5
    %v3430 = vmul.f32 %v3418, 0.5
    %v3431 = vtanh.pop %v3429
    %v3432 = vtanh.pop %v3430
    %v3433 = vmul.f32 %v3431, 0.5
    %v3434 = vmul.f32 %v3432, 0.5
    %v3435 = vadd.f32 %v3433, 0.5
    %v3436 = vadd.f32 %v3434, 0.5
    %v3437 = vtanh.pop %v3415
    %v3438 = vtanh.pop %v3419
    %v3439 = vmul.f32 %v3416, 0.5
    %v3440 = vmul.f32 %v3420, 0.5
    %v3441 = vtanh.pop %v3439
    %v3442 = vtanh.pop %v3440
    %v3443 = vmul.f32 %v3441, 0.5
    %v3444 = vmul.f32 %v3442, 0.5
    %v3445 = vadd.f32 %v3443, 0.5
    %v3446 = vadd.f32 %v3444, 0.5
    %v3447 = vmul.f32 %v3435, %v3303
    %v3448 = vmul.f32 %v3436, %v3304
    %v3449 = vmul.f32 %v3427, %v3437
    %v3450 = vmul.f32 %v3428, %v3438
    %v3451 = vadd.f32 %v3447, %v3449
    %v3452 = vadd.f32 %v3448, %v3450
    %v3453 = vtanh.pop %v3451
    %v3454 = vtanh.pop %v3452
    %v3455 = vmul.f32 %v3445, %v3453
    %v3456 = vmul.f32 %v3446, %v3454
    %v3457 = vpack.c.bf16 %v3456, %v3455
    %v3459 = vunpack.c.l.b16 %v3457
    %v3460 = vunpack.c.h.b16 %v3457
    %v3461 = vpack.c.b16 %v3459, %v3459
    %v3462 = vpack.c.b16 %v3460, %v3460
    %3465 = vst [vmem:[%s1503] sm:$0xf] %v3461
    %3466 = vst [vmem:[%s1503 + $0x4] sm:$0xf] %v3462
    %v3467 = vld [vmem:[%s1506] sm:$0xff]
    %v3468 = vld [vmem:[%s1506 + $0x8] sm:$0xff]
    %v3469 = vld [vmem:[%s1506 + $0x10] sm:$0xff]
    %v3470 = vld [vmem:[%s1506 + $0x18] sm:$0xff]
    %v3471 = vld [vmem:[%s1506 + $0x20] sm:$0xff]
    %v3472 = vld [vmem:[%s1506 + $0x28] sm:$0xff]
    %v3473 = vld [vmem:[%s1506 + $0x30] sm:$0xff]
    %v3474 = vld [vmem:[%s1506 + $0x38] sm:$0xff]
    %3475 = vmatprep.subr.bf16.mxu0 %v2848
    %3476 = vmatpush1.bf16.msra.mxu0 %v2847
    %3477 = vmatprep.subr.bf16.mxu0 %v2844
    %3478 = vmatpush1.bf16.msra.mxu0 %v2843
    %3479 = vmatprep.subr.bf16.mxu0 %v2840
    %3480 = vmatpush1.bf16.msra.mxu0 %v2839
    %3481 = vmatprep.subr.bf16.mxu0 %v2836
    %3482 = vmatpush1.bf16.msra.mxu0 %v2835
    %3483 = vmatprep.subr.bf16.mxu0 %v2832
    %3484 = vmatpush1.bf16.msra.mxu0 %v2831
    %3485 = vmatprep.subr.bf16.mxu0 %v2828
    %3486 = vmatpush1.bf16.msra.mxu0 %v2827
    %3487 = vmatprep.subr.bf16.mxu0 %v2824
    %3488 = vmatpush1.bf16.msra.mxu0 %v2823
    %3489 = vmatprep.subr.bf16.mxu0 %v2820
    %3490 = vmatpush1.bf16.msra.mxu0 %v2819
    %3491 = vmatprep.subr.bf16.mxu0 0
    %3492 = vmatpush2.bf16.msra.mxu0 0
    %3493 = vmatprep.subr.bf16.mxu0 0
    %3494 = vmatpush2.bf16.msra.mxu0 0
    %3495 = vmatprep.subr.bf16.mxu0 0
    %3496 = vmatpush2.bf16.msra.mxu0 0
    %3497 = vmatprep.subr.bf16.mxu0 0
    %3498 = vmatpush2.bf16.msra.mxu0 0
    %3499 = vmatprep.subr.bf16.mxu0 0
    %3500 = vmatpush2.bf16.msra.mxu0 0
    %3501 = vmatprep.subr.bf16.mxu0 0
    %3502 = vmatpush2.bf16.msra.mxu0 0
    %3503 = vmatprep.subr.bf16.mxu0 0
    %3504 = vmatpush2.bf16.msra.mxu0 0
    %3505 = vmatprep.subr.bf16.mxu0 0
    %3506 = vmatpush2.bf16.msra.mxu0 0
    %3507 = vmatprep.mubr.bf16.mxu0 0
    %3508 = vmatmul.mubr.bf16.gmra.mxu0 %v3457
    %v3509 = vpop.f32.mrf.mxu0
    %v3510 = vadd.f32 0.0, %v3509
    %v3511 = vpop.f32.mrf.mxu0
    %v3512 = vadd.f32 0.0, %v3511
    %v3513 = vpop.f32.mrf.mxu0
    %v3514 = vadd.f32 0.0, %v3513
    %v3515 = vpop.f32.mrf.mxu0
    %v3516 = vadd.f32 0.0, %v3515
    %3517 = vdwg.mxu0
    %3518 = vmatprep.subr.bf16.mxu0 %v2850
    %3519 = vmatpush1.bf16.msra.mxu0 %v2849
    %3520 = vmatprep.subr.bf16.mxu0 %v2846
    %3521 = vmatpush1.bf16.msra.mxu0 %v2845
    %3522 = vmatprep.subr.bf16.mxu0 %v2842
    %3523 = vmatpush1.bf16.msra.mxu0 %v2841
    %3524 = vmatprep.subr.bf16.mxu0 %v2838
    %3525 = vmatpush1.bf16.msra.mxu0 %v2837
    %3526 = vmatprep.subr.bf16.mxu0 %v2834
    %3527 = vmatpush1.bf16.msra.mxu0 %v2833
    %3528 = vmatprep.subr.bf16.mxu0 %v2830
    %3529 = vmatpush1.bf16.msra.mxu0 %v2829
    %3530 = vmatprep.subr.bf16.mxu0 %v2826
    %3531 = vmatpush1.bf16.msra.mxu0 %v2825
    %3532 = vmatprep.subr.bf16.mxu0 %v2822
    %3533 = vmatpush1.bf16.msra.mxu0 %v2821
    %3534 = vmatprep.subr.bf16.mxu0 0
    %3535 = vmatpush2.bf16.msra.mxu0 0
    %3536 = vmatprep.subr.bf16.mxu0 0
    %3537 = vmatpush2.bf16.msra.mxu0 0
    %3538 = vmatprep.subr.bf16.mxu0 0
    %3539 = vmatpush2.bf16.msra.mxu0 0
    %3540 = vmatprep.subr.bf16.mxu0 0
    %3541 = vmatpush2.bf16.msra.mxu0 0
    %3542 = vmatprep.subr.bf16.mxu0 0
    %3543 = vmatpush2.bf16.msra.mxu0 0
    %3544 = vmatprep.subr.bf16.mxu0 0
    %3545 = vmatpush2.bf16.msra.mxu0 0
    %3546 = vmatprep.subr.bf16.mxu0 0
    %3547 = vmatpush2.bf16.msra.mxu0 0
    %3548 = vmatprep.subr.bf16.mxu0 0
    %3549 = vmatpush2.bf16.msra.mxu0 0
    %3550 = vmatprep.mubr.bf16.mxu0 0
    %3551 = vmatmul.mubr.bf16.gmra.mxu0 %v3457
    %v3552 = vpop.f32.mrf.mxu0
    %v3553 = vadd.f32 0.0, %v3552
    %v3554 = vpop.f32.mrf.mxu0
    %v3555 = vadd.f32 0.0, %v3554
    %v3556 = vpop.f32.mrf.mxu0
    %v3557 = vadd.f32 0.0, %v3556
    %v3558 = vpop.f32.mrf.mxu0
    %v3559 = vadd.f32 0.0, %v3558
    %3560 = vdwg.mxu0
    %v3561 = vadd.f32 %v3467, %v3510
    %v3562 = vadd.f32 %v3468, %v3512
    %v3563 = vadd.f32 %v3469, %v3553
    %v3564 = vadd.f32 %v3470, %v3555
    %v3565 = vadd.f32 %v3471, %v3514
    %v3566 = vadd.f32 %v3472, %v3516
    %v3567 = vadd.f32 %v3473, %v3557
    %v3568 = vadd.f32 %v3474, %v3559
    %v3569 = vmul.f32 %v3561, 0.5
    %v3570 = vmul.f32 %v3565, 0.5
    %v3571 = vtanh.pop %v3569
    %v3572 = vtanh.pop %v3570
    %v3573 = vmul.f32 %v3571, 0.5
    %v3574 = vmul.f32 %v3572, 0.5
    %v3575 = vadd.f32 %v3573, 0.5
    %v3576 = vadd.f32 %v3574, 0.5
    %v3577 = vmul.f32 %v3562, 0.5
    %v3578 = vmul.f32 %v3566, 0.5
    %v3579 = vtanh.pop %v3577
    %v3580 = vtanh.pop %v3578
    %v3581 = vmul.f32 %v3579, 0.5
    %v3582 = vmul.f32 %v3580, 0.5
    %v3583 = vadd.f32 %v3581, 0.5
    %v3584 = vadd.f32 %v3582, 0.5
    %v3585 = vtanh.pop %v3563
    %v3586 = vtanh.pop %v3567
    %v3587 = vmul.f32 %v3564, 0.5
    %v3588 = vmul.f32 %v3568, 0.5
    %v3589 = vtanh.pop %v3587
    %v3590 = vtanh.pop %v3588
    %v3591 = vmul.f32 %v3589, 0.5
    %v3592 = vmul.f32 %v3590, 0.5
    %v3593 = vadd.f32 %v3591, 0.5
    %v3594 = vadd.f32 %v3592, 0.5
    %v3595 = vmul.f32 %v3583, %v3451
    %v3596 = vmul.f32 %v3584, %v3452
    %v3597 = vmul.f32 %v3575, %v3585
    %v3598 = vmul.f32 %v3576, %v3586
    %v3599 = vadd.f32 %v3595, %v3597
    %v3600 = vadd.f32 %v3596, %v3598
    %v3601 = vtanh.pop %v3599
    %v3602 = vtanh.pop %v3600
    %v3603 = vmul.f32 %v3593, %v3601
    %v3604 = vmul.f32 %v3594, %v3602
    %v3605 = vpack.c.bf16 %v3604, %v3603
    %v3607 = vunpack.c.l.b16 %v3605
    %v3608 = vunpack.c.h.b16 %v3605
    %v3609 = vpack.c.b16 %v3607, %v3607
    %v3610 = vpack.c.b16 %v3608, %v3608
    %3613 = vst [vmem:[%s1653] sm:$0xf] %v3609
    %3614 = vst [vmem:[%s1653 + $0x4] sm:$0xf] %v3610
    %v3615 = vld [vmem:[%s1656] sm:$0xff]
    %v3616 = vld [vmem:[%s1656 + $0x8] sm:$0xff]
    %v3617 = vld [vmem:[%s1656 + $0x10] sm:$0xff]
    %v3618 = vld [vmem:[%s1656 + $0x18] sm:$0xff]
    %v3619 = vld [vmem:[%s1656 + $0x20] sm:$0xff]
    %v3620 = vld [vmem:[%s1656 + $0x28] sm:$0xff]
    %v3621 = vld [vmem:[%s1656 + $0x30] sm:$0xff]
    %v3622 = vld [vmem:[%s1656 + $0x38] sm:$0xff]
    %3623 = vmatprep.subr.bf16.mxu0 %v2848
    %3624 = vmatpush1.bf16.msra.mxu0 %v2847
    %3625 = vmatprep.subr.bf16.mxu0 %v2844
    %3626 = vmatpush1.bf16.msra.mxu0 %v2843
    %3627 = vmatprep.subr.bf16.mxu0 %v2840
    %3628 = vmatpush1.bf16.msra.mxu0 %v2839
    %3629 = vmatprep.subr.bf16.mxu0 %v2836
    %3630 = vmatpush1.bf16.msra.mxu0 %v2835
    %3631 = vmatprep.subr.bf16.mxu0 %v2832
    %3632 = vmatpush1.bf16.msra.mxu0 %v2831
    %3633 = vmatprep.subr.bf16.mxu0 %v2828
    %3634 = vmatpush1.bf16.msra.mxu0 %v2827
    %3635 = vmatprep.subr.bf16.mxu0 %v2824
    %3636 = vmatpush1.bf16.msra.mxu0 %v2823
    %3637 = vmatprep.subr.bf16.mxu0 %v2820
    %3638 = vmatpush1.bf16.msra.mxu0 %v2819
    %3639 = vmatprep.subr.bf16.mxu0 0
    %3640 = vmatpush2.bf16.msra.mxu0 0
    %3641 = vmatprep.subr.bf16.mxu0 0
    %3642 = vmatpush2.bf16.msra.mxu0 0
    %3643 = vmatprep.subr.bf16.mxu0 0
    %3644 = vmatpush2.bf16.msra.mxu0 0
    %3645 = vmatprep.subr.bf16.mxu0 0
    %3646 = vmatpush2.bf16.msra.mxu0 0
    %3647 = vmatprep.subr.bf16.mxu0 0
    %3648 = vmatpush2.bf16.msra.mxu0 0
    %3649 = vmatprep.subr.bf16.mxu0 0
    %3650 = vmatpush2.bf16.msra.mxu0 0
    %3651 = vmatprep.subr.bf16.mxu0 0
    %3652 = vmatpush2.bf16.msra.mxu0 0
    %3653 = vmatprep.subr.bf16.mxu0 0
    %3654 = vmatpush2.bf16.msra.mxu0 0
    %3655 = vmatprep.mubr.bf16.mxu0 0
    %3656 = vmatmul.mubr.bf16.gmra.mxu0 %v3605
    %v3657 = vpop.f32.mrf.mxu0
    %v3658 = vadd.f32 0.0, %v3657
    %v3659 = vpop.f32.mrf.mxu0
    %v3660 = vadd.f32 0.0, %v3659
    %v3661 = vpop.f32.mrf.mxu0
    %v3662 = vadd.f32 0.0, %v3661
    %v3663 = vpop.f32.mrf.mxu0
    %v3664 = vadd.f32 0.0, %v3663
    %3665 = vdwg.mxu0
    %3666 = vmatprep.subr.bf16.mxu0 %v2850
    %3667 = vmatpush1.bf16.msra.mxu0 %v2849
    %3668 = vmatprep.subr.bf16.mxu0 %v2846
    %3669 = vmatpush1.bf16.msra.mxu0 %v2845
    %3670 = vmatprep.subr.bf16.mxu0 %v2842
    %3671 = vmatpush1.bf16.msra.mxu0 %v2841
    %3672 = vmatprep.subr.bf16.mxu0 %v2838
    %3673 = vmatpush1.bf16.msra.mxu0 %v2837
    %3674 = vmatprep.subr.bf16.mxu0 %v2834
    %3675 = vmatpush1.bf16.msra.mxu0 %v2833
    %3676 = vmatprep.subr.bf16.mxu0 %v2830
    %3677 = vmatpush1.bf16.msra.mxu0 %v2829
    %3678 = vmatprep.subr.bf16.mxu0 %v2826
    %3679 = vmatpush1.bf16.msra.mxu0 %v2825
    %3680 = vmatprep.subr.bf16.mxu0 %v2822
    %3681 = vmatpush1.bf16.msra.mxu0 %v2821
    %3682 = vmatprep.subr.bf16.mxu0 0
    %3683 = vmatpush2.bf16.msra.mxu0 0
    %3684 = vmatprep.subr.bf16.mxu0 0
    %3685 = vmatpush2.bf16.msra.mxu0 0
    %3686 = vmatprep.subr.bf16.mxu0 0
    %3687 = vmatpush2.bf16.msra.mxu0 0
    %3688 = vmatprep.subr.bf16.mxu0 0
    %3689 = vmatpush2.bf16.msra.mxu0 0
    %3690 = vmatprep.subr.bf16.mxu0 0
    %3691 = vmatpush2.bf16.msra.mxu0 0
    %3692 = vmatprep.subr.bf16.mxu0 0
    %3693 = vmatpush2.bf16.msra.mxu0 0
    %3694 = vmatprep.subr.bf16.mxu0 0
    %3695 = vmatpush2.bf16.msra.mxu0 0
    %3696 = vmatprep.subr.bf16.mxu0 0
    %3697 = vmatpush2.bf16.msra.mxu0 0
    %3698 = vmatprep.mubr.bf16.mxu0 0
    %3699 = vmatmul.mubr.bf16.gmra.mxu0 %v3605
    %v3700 = vpop.f32.mrf.mxu0
    %v3701 = vadd.f32 0.0, %v3700
    %v3702 = vpop.f32.mrf.mxu0
    %v3703 = vadd.f32 0.0, %v3702
    %v3704 = vpop.f32.mrf.mxu0
    %v3705 = vadd.f32 0.0, %v3704
    %v3706 = vpop.f32.mrf.mxu0
    %v3707 = vadd.f32 0.0, %v3706
    %3708 = vdwg.mxu0
    %v3709 = vadd.f32 %v3615, %v3658
    %v3710 = vadd.f32 %v3616, %v3660
    %v3711 = vadd.f32 %v3617, %v3701
    %v3712 = vadd.f32 %v3618, %v3703
    %v3713 = vadd.f32 %v3619, %v3662
    %v3714 = vadd.f32 %v3620, %v3664
    %v3715 = vadd.f32 %v3621, %v3705
    %v3716 = vadd.f32 %v3622, %v3707
    %v3717 = vmul.f32 %v3709, 0.5
    %v3718 = vmul.f32 %v3713, 0.5
    %v3719 = vtanh.pop %v3717
    %v3720 = vtanh.pop %v3718
    %v3721 = vmul.f32 %v3719, 0.5
    %v3722 = vmul.f32 %v3720, 0.5
    %v3723 = vadd.f32 %v3721, 0.5
    %v3724 = vadd.f32 %v3722, 0.5
    %v3725 = vmul.f32 %v3710, 0.5
    %v3726 = vmul.f32 %v3714, 0.5
    %v3727 = vtanh.pop %v3725
    %v3728 = vtanh.pop %v3726
    %v3729 = vmul.f32 %v3727, 0.5
    %v3730 = vmul.f32 %v3728, 0.5
    %v3731 = vadd.f32 %v3729, 0.5
    %v3732 = vadd.f32 %v3730, 0.5
    %v3733 = vtanh.pop %v3711
    %v3734 = vtanh.pop %v3715
    %v3735 = vmul.f32 %v3712, 0.5
    %v3736 = vmul.f32 %v3716, 0.5
    %v3737 = vtanh.pop %v3735
    %v3738 = vtanh.pop %v3736
    %v3739 = vmul.f32 %v3737, 0.5
    %v3740 = vmul.f32 %v3738, 0.5
    %v3741 = vadd.f32 %v3739, 0.5
    %v3742 = vadd.f32 %v3740, 0.5
    %v3743 = vmul.f32 %v3731, %v3599
    %v3744 = vmul.f32 %v3732, %v3600
    %v3745 = vmul.f32 %v3723, %v3733
    %v3746 = vmul.f32 %v3724, %v3734
    %v3747 = vadd.f32 %v3743, %v3745
    %v3748 = vadd.f32 %v3744, %v3746
    %v3749 = vtanh.pop %v3747
    %v3750 = vtanh.pop %v3748
    %v3751 = vmul.f32 %v3741, %v3749
    %v3752 = vmul.f32 %v3742, %v3750
    %v3753 = vpack.c.bf16 %v3752, %v3751
    %v3755 = vunpack.c.l.b16 %v3753
    %v3756 = vunpack.c.h.b16 %v3753
    %v3757 = vpack.c.b16 %v3755, %v3755
    %v3758 = vpack.c.b16 %v3756, %v3756
    %3761 = vst [vmem:[%s1803] sm:$0xf] %v3757
    %3762 = vst [vmem:[%s1803 + $0x4] sm:$0xf] %v3758
    %v3763 = vld [vmem:[%s1806] sm:$0xff]
    %v3764 = vld [vmem:[%s1806 + $0x8] sm:$0xff]
    %v3765 = vld [vmem:[%s1806 + $0x10] sm:$0xff]
    %v3766 = vld [vmem:[%s1806 + $0x18] sm:$0xff]
    %v3767 = vld [vmem:[%s1806 + $0x20] sm:$0xff]
    %v3768 = vld [vmem:[%s1806 + $0x28] sm:$0xff]
    %v3769 = vld [vmem:[%s1806 + $0x30] sm:$0xff]
    %v3770 = vld [vmem:[%s1806 + $0x38] sm:$0xff]
    %3771 = vmatprep.subr.bf16.mxu0 %v2848
    %3772 = vmatpush1.bf16.msra.mxu0 %v2847
    %3773 = vmatprep.subr.bf16.mxu0 %v2844
    %3774 = vmatpush1.bf16.msra.mxu0 %v2843
    %3775 = vmatprep.subr.bf16.mxu0 %v2840
    %3776 = vmatpush1.bf16.msra.mxu0 %v2839
    %3777 = vmatprep.subr.bf16.mxu0 %v2836
    %3778 = vmatpush1.bf16.msra.mxu0 %v2835
    %3779 = vmatprep.subr.bf16.mxu0 %v2832
    %3780 = vmatpush1.bf16.msra.mxu0 %v2831
    %3781 = vmatprep.subr.bf16.mxu0 %v2828
    %3782 = vmatpush1.bf16.msra.mxu0 %v2827
    %3783 = vmatprep.subr.bf16.mxu0 %v2824
    %3784 = vmatpush1.bf16.msra.mxu0 %v2823
    %3785 = vmatprep.subr.bf16.mxu0 %v2820
    %3786 = vmatpush1.bf16.msra.mxu0 %v2819
    %3787 = vmatprep.subr.bf16.mxu0 0
    %3788 = vmatpush2.bf16.msra.mxu0 0
    %3789 = vmatprep.subr.bf16.mxu0 0
    %3790 = vmatpush2.bf16.msra.mxu0 0
    %3791 = vmatprep.subr.bf16.mxu0 0
    %3792 = vmatpush2.bf16.msra.mxu0 0
    %3793 = vmatprep.subr.bf16.mxu0 0
    %3794 = vmatpush2.bf16.msra.mxu0 0
    %3795 = vmatprep.subr.bf16.mxu0 0
    %3796 = vmatpush2.bf16.msra.mxu0 0
    %3797 = vmatprep.subr.bf16.mxu0 0
    %3798 = vmatpush2.bf16.msra.mxu0 0
    %3799 = vmatprep.subr.bf16.mxu0 0
    %3800 = vmatpush2.bf16.msra.mxu0 0
    %3801 = vmatprep.subr.bf16.mxu0 0
    %3802 = vmatpush2.bf16.msra.mxu0 0
    %3803 = vmatprep.mubr.bf16.mxu0 0
    %3804 = vmatmul.mubr.bf16.gmra.mxu0 %v3753
    %v3805 = vpop.f32.mrf.mxu0
    %v3806 = vadd.f32 0.0, %v3805
    %v3807 = vpop.f32.mrf.mxu0
    %v3808 = vadd.f32 0.0, %v3807
    %v3809 = vpop.f32.mrf.mxu0
    %v3810 = vadd.f32 0.0, %v3809
    %v3811 = vpop.f32.mrf.mxu0
    %v3812 = vadd.f32 0.0, %v3811
    %3813 = vdwg.mxu0
    %3814 = vmatprep.subr.bf16.mxu0 %v2850
    %3815 = vmatpush1.bf16.msra.mxu0 %v2849
    %3816 = vmatprep.subr.bf16.mxu0 %v2846
    %3817 = vmatpush1.bf16.msra.mxu0 %v2845
    %3818 = vmatprep.subr.bf16.mxu0 %v2842
    %3819 = vmatpush1.bf16.msra.mxu0 %v2841
    %3820 = vmatprep.subr.bf16.mxu0 %v2838
    %3821 = vmatpush1.bf16.msra.mxu0 %v2837
    %3822 = vmatprep.subr.bf16.mxu0 %v2834
    %3823 = vmatpush1.bf16.msra.mxu0 %v2833
    %3824 = vmatprep.subr.bf16.mxu0 %v2830
    %3825 = vmatpush1.bf16.msra.mxu0 %v2829
    %3826 = vmatprep.subr.bf16.mxu0 %v2826
    %3827 = vmatpush1.bf16.msra.mxu0 %v2825
    %3828 = vmatprep.subr.bf16.mxu0 %v2822
    %3829 = vmatpush1.bf16.msra.mxu0 %v2821
    %3830 = vmatprep.subr.bf16.mxu0 0
    %3831 = vmatpush2.bf16.msra.mxu0 0
    %3832 = vmatprep.subr.bf16.mxu0 0
    %3833 = vmatpush2.bf16.msra.mxu0 0
    %3834 = vmatprep.subr.bf16.mxu0 0
    %3835 = vmatpush2.bf16.msra.mxu0 0
    %3836 = vmatprep.subr.bf16.mxu0 0
    %3837 = vmatpush2.bf16.msra.mxu0 0
    %3838 = vmatprep.subr.bf16.mxu0 0
    %3839 = vmatpush2.bf16.msra.mxu0 0
    %3840 = vmatprep.subr.bf16.mxu0 0
    %3841 = vmatpush2.bf16.msra.mxu0 0
    %3842 = vmatprep.subr.bf16.mxu0 0
    %3843 = vmatpush2.bf16.msra.mxu0 0
    %3844 = vmatprep.subr.bf16.mxu0 0
    %3845 = vmatpush2.bf16.msra.mxu0 0
    %3846 = vmatprep.mubr.bf16.mxu0 0
    %3847 = vmatmul.mubr.bf16.gmra.mxu0 %v3753
    %v3848 = vpop.f32.mrf.mxu0
    %v3849 = vadd.f32 0.0, %v3848
    %v3850 = vpop.f32.mrf.mxu0
    %v3851 = vadd.f32 0.0, %v3850
    %v3852 = vpop.f32.mrf.mxu0
    %v3853 = vadd.f32 0.0, %v3852
    %v3854 = vpop.f32.mrf.mxu0
    %v3855 = vadd.f32 0.0, %v3854
    %3856 = vdwg.mxu0
    %v3857 = vadd.f32 %v3763, %v3806
    %v3858 = vadd.f32 %v3764, %v3808
    %v3859 = vadd.f32 %v3765, %v3849
    %v3860 = vadd.f32 %v3766, %v3851
    %v3861 = vadd.f32 %v3767, %v3810
    %v3862 = vadd.f32 %v3768, %v3812
    %v3863 = vadd.f32 %v3769, %v3853
    %v3864 = vadd.f32 %v3770, %v3855
    %v3865 = vmul.f32 %v3857, 0.5
    %v3866 = vmul.f32 %v3861, 0.5
    %v3867 = vtanh.pop %v3865
    %v3868 = vtanh.pop %v3866
    %v3869 = vmul.f32 %v3867, 0.5
    %v3870 = vmul.f32 %v3868, 0.5
    %v3871 = vadd.f32 %v3869, 0.5
    %v3872 = vadd.f32 %v3870, 0.5
    %v3873 = vmul.f32 %v3858, 0.5
    %v3874 = vmul.f32 %v3862, 0.5
    %v3875 = vtanh.pop %v3873
    %v3876 = vtanh.pop %v3874
    %v3877 = vmul.f32 %v3875, 0.5
    %v3878 = vmul.f32 %v3876, 0.5
    %v3879 = vadd.f32 %v3877, 0.5
    %v3880 = vadd.f32 %v3878, 0.5
    %v3881 = vtanh.pop %v3859
    %v3882 = vtanh.pop %v3863
    %v3883 = vmul.f32 %v3860, 0.5
    %v3884 = vmul.f32 %v3864, 0.5
    %v3885 = vtanh.pop %v3883
    %v3886 = vtanh.pop %v3884
    %v3887 = vmul.f32 %v3885, 0.5
    %v3888 = vmul.f32 %v3886, 0.5
    %v3889 = vadd.f32 %v3887, 0.5
    %v3890 = vadd.f32 %v3888, 0.5
    %v3891 = vmul.f32 %v3879, %v3747
    %v3892 = vmul.f32 %v3880, %v3748
    %v3893 = vmul.f32 %v3871, %v3881
    %v3894 = vmul.f32 %v3872, %v3882
    %v3895 = vadd.f32 %v3891, %v3893
    %v3896 = vadd.f32 %v3892, %v3894
    %v3897 = vtanh.pop %v3895
    %v3898 = vtanh.pop %v3896
    %v3899 = vmul.f32 %v3889, %v3897
    %v3900 = vmul.f32 %v3890, %v3898
    %v3901 = vpack.c.bf16 %v3900, %v3899
    %v3903 = vunpack.c.l.b16 %v3901
    %v3904 = vunpack.c.h.b16 %v3901
    %v3905 = vpack.c.b16 %v3903, %v3903
    %v3906 = vpack.c.b16 %v3904, %v3904
    %3909 = vst [vmem:[%s1953] sm:$0xf] %v3905
    %3910 = vst [vmem:[%s1953 + $0x4] sm:$0xf] %v3906
    %v3911 = vld [vmem:[%s1956] sm:$0xff]
    %v3912 = vld [vmem:[%s1956 + $0x8] sm:$0xff]
    %v3913 = vld [vmem:[%s1956 + $0x10] sm:$0xff]
    %v3914 = vld [vmem:[%s1956 + $0x18] sm:$0xff]
    %v3915 = vld [vmem:[%s1956 + $0x20] sm:$0xff]
    %v3916 = vld [vmem:[%s1956 + $0x28] sm:$0xff]
    %v3917 = vld [vmem:[%s1956 + $0x30] sm:$0xff]
    %v3918 = vld [vmem:[%s1956 + $0x38] sm:$0xff]
    %3919 = vmatprep.subr.bf16.mxu0 %v2848
    %3920 = vmatpush1.bf16.msra.mxu0 %v2847
    %3921 = vmatprep.subr.bf16.mxu0 %v2844
    %3922 = vmatpush1.bf16.msra.mxu0 %v2843
    %3923 = vmatprep.subr.bf16.mxu0 %v2840
    %3924 = vmatpush1.bf16.msra.mxu0 %v2839
    %3925 = vmatprep.subr.bf16.mxu0 %v2836
    %3926 = vmatpush1.bf16.msra.mxu0 %v2835
    %3927 = vmatprep.subr.bf16.mxu0 %v2832
    %3928 = vmatpush1.bf16.msra.mxu0 %v2831
    %3929 = vmatprep.subr.bf16.mxu0 %v2828
    %3930 = vmatpush1.bf16.msra.mxu0 %v2827
    %3931 = vmatprep.subr.bf16.mxu0 %v2824
    %3932 = vmatpush1.bf16.msra.mxu0 %v2823
    %3933 = vmatprep.subr.bf16.mxu0 %v2820
    %3934 = vmatpush1.bf16.msra.mxu0 %v2819
    %3935 = vmatprep.subr.bf16.mxu0 0
    %3936 = vmatpush2.bf16.msra.mxu0 0
    %3937 = vmatprep.subr.bf16.mxu0 0
    %3938 = vmatpush2.bf16.msra.mxu0 0
    %3939 = vmatprep.subr.bf16.mxu0 0
    %3940 = vmatpush2.bf16.msra.mxu0 0
    %3941 = vmatprep.subr.bf16.mxu0 0
    %3942 = vmatpush2.bf16.msra.mxu0 0
    %3943 = vmatprep.subr.bf16.mxu0 0
    %3944 = vmatpush2.bf16.msra.mxu0 0
    %3945 = vmatprep.subr.bf16.mxu0 0
    %3946 = vmatpush2.bf16.msra.mxu0 0
    %3947 = vmatprep.subr.bf16.mxu0 0
    %3948 = vmatpush2.bf16.msra.mxu0 0
    %3949 = vmatprep.subr.bf16.mxu0 0
    %3950 = vmatpush2.bf16.msra.mxu0 0
    %3951 = vmatprep.mubr.bf16.mxu0 0
    %3952 = vmatmul.mubr.bf16.gmra.mxu0 %v3901
    %v3953 = vpop.f32.mrf.mxu0
    %v3954 = vadd.f32 0.0, %v3953
    %v3955 = vpop.f32.mrf.mxu0
    %v3956 = vadd.f32 0.0, %v3955
    %v3957 = vpop.f32.mrf.mxu0
    %v3958 = vadd.f32 0.0, %v3957
    %v3959 = vpop.f32.mrf.mxu0
    %v3960 = vadd.f32 0.0, %v3959
    %3961 = vdwg.mxu0
    %3962 = vmatprep.subr.bf16.mxu0 %v2850
    %3963 = vmatpush1.bf16.msra.mxu0 %v2849
    %3964 = vmatprep.subr.bf16.mxu0 %v2846
    %3965 = vmatpush1.bf16.msra.mxu0 %v2845
    %3966 = vmatprep.subr.bf16.mxu0 %v2842
    %3967 = vmatpush1.bf16.msra.mxu0 %v2841
    %3968 = vmatprep.subr.bf16.mxu0 %v2838
    %3969 = vmatpush1.bf16.msra.mxu0 %v2837
    %3970 = vmatprep.subr.bf16.mxu0 %v2834
    %3971 = vmatpush1.bf16.msra.mxu0 %v2833
    %3972 = vmatprep.subr.bf16.mxu0 %v2830
    %3973 = vmatpush1.bf16.msra.mxu0 %v2829
    %3974 = vmatprep.subr.bf16.mxu0 %v2826
    %3975 = vmatpush1.bf16.msra.mxu0 %v2825
    %3976 = vmatprep.subr.bf16.mxu0 %v2822
    %3977 = vmatpush1.bf16.msra.mxu0 %v2821
    %3978 = vmatprep.subr.bf16.mxu0 0
    %3979 = vmatpush2.bf16.msra.mxu0 0
    %3980 = vmatprep.subr.bf16.mxu0 0
    %3981 = vmatpush2.bf16.msra.mxu0 0
    %3982 = vmatprep.subr.bf16.mxu0 0
    %3983 = vmatpush2.bf16.msra.mxu0 0
    %3984 = vmatprep.subr.bf16.mxu0 0
    %3985 = vmatpush2.bf16.msra.mxu0 0
    %3986 = vmatprep.subr.bf16.mxu0 0
    %3987 = vmatpush2.bf16.msra.mxu0 0
    %3988 = vmatprep.subr.bf16.mxu0 0
    %3989 = vmatpush2.bf16.msra.mxu0 0
    %3990 = vmatprep.subr.bf16.mxu0 0
    %3991 = vmatpush2.bf16.msra.mxu0 0
    %3992 = vmatprep.subr.bf16.mxu0 0
    %3993 = vmatpush2.bf16.msra.mxu0 0
    %3994 = vmatprep.mubr.bf16.mxu0 0
    %3995 = vmatmul.mubr.bf16.gmra.mxu0 %v3901
    %v3996 = vpop.f32.mrf.mxu0
    %v3997 = vadd.f32 0.0, %v3996
    %v3998 = vpop.f32.mrf.mxu0
    %v3999 = vadd.f32 0.0, %v3998
    %v4000 = vpop.f32.mrf.mxu0
    %v4001 = vadd.f32 0.0, %v4000
    %v4002 = vpop.f32.mrf.mxu0
    %v4003 = vadd.f32 0.0, %v4002
    %4004 = vdwg.mxu0
    %v4005 = vadd.f32 %v3911, %v3954
    %v4006 = vadd.f32 %v3912, %v3956
    %v4007 = vadd.f32 %v3913, %v3997
    %v4008 = vadd.f32 %v3914, %v3999
    %v4009 = vadd.f32 %v3915, %v3958
    %v4010 = vadd.f32 %v3916, %v3960
    %v4011 = vadd.f32 %v3917, %v4001
    %v4012 = vadd.f32 %v3918, %v4003
    %v4013 = vmul.f32 %v4005, 0.5
    %v4014 = vmul.f32 %v4009, 0.5
    %v4015 = vtanh.pop %v4013
    %v4016 = vtanh.pop %v4014
    %v4017 = vmul.f32 %v4015, 0.5
    %v4018 = vmul.f32 %v4016, 0.5
    %v4019 = vadd.f32 %v4017, 0.5
    %v4020 = vadd.f32 %v4018, 0.5
    %v4021 = vmul.f32 %v4006, 0.5
    %v4022 = vmul.f32 %v4010, 0.5
    %v4023 = vtanh.pop %v4021
    %v4024 = vtanh.pop %v4022
    %v4025 = vmul.f32 %v4023, 0.5
    %v4026 = vmul.f32 %v4024, 0.5
    %v4027 = vadd.f32 %v4025, 0.5
    %v4028 = vadd.f32 %v4026, 0.5
    %v4029 = vtanh.pop %v4007
    %v4030 = vtanh.pop %v4011
    %v4031 = vmul.f32 %v4008, 0.5
    %v4032 = vmul.f32 %v4012, 0.5
    %v4033 = vtanh.pop %v4031
    %v4034 = vtanh.pop %v4032
    %v4035 = vmul.f32 %v4033, 0.5
    %v4036 = vmul.f32 %v4034, 0.5
    %v4037 = vadd.f32 %v4035, 0.5
    %v4038 = vadd.f32 %v4036, 0.5
    %v4039 = vmul.f32 %v4027, %v3895
    %v4040 = vmul.f32 %v4028, %v3896
    %v4041 = vmul.f32 %v4019, %v4029
    %v4042 = vmul.f32 %v4020, %v4030
    %v4043 = vadd.f32 %v4039, %v4041
    %v4044 = vadd.f32 %v4040, %v4042
    %v4045 = vtanh.pop %v4043
    %v4046 = vtanh.pop %v4044
    %v4047 = vmul.f32 %v4037, %v4045
    %v4048 = vmul.f32 %v4038, %v4046
    %v4049 = vpack.c.bf16 %v4048, %v4047
    %v4051 = vunpack.c.l.b16 %v4049
    %v4052 = vunpack.c.h.b16 %v4049
    %v4053 = vpack.c.b16 %v4051, %v4051
    %v4054 = vpack.c.b16 %v4052, %v4052
    %4057 = vst [vmem:[%s2103] sm:$0xf] %v4053
    %4058 = vst [vmem:[%s2103 + $0x4] sm:$0xf] %v4054
    %v4059 = vld [vmem:[#allocation2] sm:$0xf]
    %v4060 = vld [vmem:[#allocation2 + $0x4] sm:$0xf]
    %v4061 = vld [vmem:[#allocation2 + $0x8] sm:$0xf]
    %v4062 = vld [vmem:[#allocation2 + $0xc] sm:$0xf]
    %v4063 = vld [vmem:[#allocation2 + $0x10] sm:$0xf]
    %v4064 = vld [vmem:[#allocation2 + $0x14] sm:$0xf]
    %v4065 = vld [vmem:[#allocation2 + $0x18] sm:$0xf]
    %v4066 = vld [vmem:[#allocation2 + $0x1c] sm:$0xf]
    %v4067 = vld [vmem:[#allocation2 + $0x20] sm:$0xf]
    %v4068 = vld [vmem:[#allocation2 + $0x24] sm:$0xf]
    %v4069 = vld [vmem:[#allocation2 + $0x28] sm:$0xf]
    %v4070 = vld [vmem:[#allocation2 + $0x2c] sm:$0xf]
    %v4071 = vld [vmem:[#allocation2 + $0x30] sm:$0xf]
    %v4072 = vld [vmem:[#allocation2 + $0x34] sm:$0xf]
    %v4073 = vld [vmem:[#allocation2 + $0x38] sm:$0xf]
    %v4074 = vld [vmem:[#allocation2 + $0x3c] sm:$0xf]
    %s4075 = scalar_lea.vmem [#allocation9], 256
    %v4076 = vld [vmem:[%s4075] sm:$0xff]
    %v4077 = vld [vmem:[%s4075 + $0x8] sm:$0xff]
    %v4078 = vld [vmem:[%s4075 + $0x10] sm:$0xff]
    %v4079 = vld [vmem:[%s4075 + $0x18] sm:$0xff]
    %v4080 = vld [vmem:[%s4075 + $0x20] sm:$0xff]
    %v4081 = vld [vmem:[%s4075 + $0x28] sm:$0xff]
    %v4082 = vld [vmem:[%s4075 + $0x30] sm:$0xff]
    %v4083 = vld [vmem:[%s4075 + $0x38] sm:$0xff]
    %v4084 = vld [vmem:[%s4075 + $0x40] sm:$0xff]
    %v4085 = vld [vmem:[%s4075 + $0x48] sm:$0xff]
    %v4086 = vld [vmem:[%s4075 + $0x50] sm:$0xff]
    %v4087 = vld [vmem:[%s4075 + $0x58] sm:$0xff]
    %v4088 = vld [vmem:[%s4075 + $0x60] sm:$0xff]
    %v4089 = vld [vmem:[%s4075 + $0x68] sm:$0xff]
    %v4090 = vld [vmem:[%s4075 + $0x70] sm:$0xff]
    %v4091 = vld [vmem:[%s4075 + $0x78] sm:$0xff]
    %v4092 = vld [vmem:[%s4075 + $0x80] sm:$0xff]
    %v4093 = vld [vmem:[%s4075 + $0x88] sm:$0xff]
    %v4094 = vld [vmem:[%s4075 + $0x90] sm:$0xff]
    %v4095 = vld [vmem:[%s4075 + $0x98] sm:$0xff]
    %v4096 = vld [vmem:[%s4075 + $0xa0] sm:$0xff]
    %v4097 = vld [vmem:[%s4075 + $0xa8] sm:$0xff]
    %v4098 = vld [vmem:[%s4075 + $0xb0] sm:$0xff]
    %v4099 = vld [vmem:[%s4075 + $0xb8] sm:$0xff]
    %v4100 = vld [vmem:[%s4075 + $0xc0] sm:$0xff]
    %v4101 = vld [vmem:[%s4075 + $0xc8] sm:$0xff]
    %v4102 = vld [vmem:[%s4075 + $0xd0] sm:$0xff]
    %v4103 = vld [vmem:[%s4075 + $0xd8] sm:$0xff]
    %v4104 = vld [vmem:[%s4075 + $0xe0] sm:$0xff]
    %v4105 = vld [vmem:[%s4075 + $0xe8] sm:$0xff]
    %v4106 = vld [vmem:[%s4075 + $0xf0] sm:$0xff]
    %v4107 = vld [vmem:[%s4075 + $0xf8] sm:$0xff]
    %s4108 = scalar_lea.vmem [#allocation12], 8
    %v4109 = vld [vmem:[%s4108] sm:$0xf]
    %v4111 = vlaneseq
    %v4112 = vshrl.u32 %v4111, 7
    %v4113 = vsub.s32 0, %v4112
    %v4114 = vrot.slane %v4109, %v4113
    %v4115 = vlaneseq
    %v4116 = vshrl.u32 %v4115, 7
    %v4117 = vsub.s32 1, %v4116
    %v4118 = vrot.slane %v4109, %v4117
    %v4119 = vlaneseq
    %v4120 = vshrl.u32 %v4119, 7
    %v4121 = vsub.s32 2, %v4120
    %v4122 = vrot.slane %v4109, %v4121
    %v4123 = vlaneseq
    %v4124 = vshrl.u32 %v4123, 7
    %v4125 = vsub.s32 3, %v4124
    %v4126 = vrot.slane %v4109, %v4125
    %v4147 = vunpack.c.l.b16 %v4059
    %v4148 = vunpack.c.l.b16 %v4060
    %v4149 = vunpack.c.l.b16 %v4061
    %v4150 = vunpack.c.l.b16 %v4062
    %v4151 = vunpack.c.l.b16 %v4063
    %v4152 = vunpack.c.l.b16 %v4064
    %v4153 = vunpack.c.l.b16 %v4065
    %v4154 = vunpack.c.l.b16 %v4066
    %v4155 = vunpack.c.l.b16 %v4067
    %v4156 = vunpack.c.l.b16 %v4068
    %v4157 = vunpack.c.l.b16 %v4069
    %v4158 = vunpack.c.l.b16 %v4070
    %v4159 = vunpack.c.l.b16 %v4071
    %v4160 = vunpack.c.l.b16 %v4072
    %v4161 = vunpack.c.l.b16 %v4073
    %v4162 = vunpack.c.l.b16 %v4074
    %v4163 = vpack.c.b16 %v4148, %v4147
    %v4164 = vpack.c.b16 %v4150, %v4149
    %v4165 = vpack.c.b16 %v4152, %v4151
    %v4166 = vpack.c.b16 %v4154, %v4153
    %v4167 = vpack.c.b16 %v4156, %v4155
    %v4168 = vpack.c.b16 %v4158, %v4157
    %v4169 = vpack.c.b16 %v4160, %v4159
    %v4170 = vpack.c.b16 %v4162, %v4161
    %v4211 = vunpack.c.l.b16 %v4076
    %v4212 = vunpack.c.h.b16 %v4076
    %v4213 = vunpack.c.l.b16 %v4077
    %v4214 = vunpack.c.h.b16 %v4077
    %v4215 = vunpack.c.l.b16 %v4078
    %v4216 = vunpack.c.h.b16 %v4078
    %v4217 = vunpack.c.l.b16 %v4079
    %v4218 = vunpack.c.h.b16 %v4079
    %v4219 = vunpack.c.l.b16 %v4080
    %v4220 = vunpack.c.h.b16 %v4080
    %v4221 = vunpack.c.l.b16 %v4081
    %v4222 = vunpack.c.h.b16 %v4081
    %v4223 = vunpack.c.l.b16 %v4082
    %v4224 = vunpack.c.h.b16 %v4082
    %v4225 = vunpack.c.l.b16 %v4083
    %v4226 = vunpack.c.h.b16 %v4083
    %v4227 = vunpack.c.l.b16 %v4084
    %v4228 = vunpack.c.h.b16 %v4084
    %v4229 = vunpack.c.l.b16 %v4085
    %v4230 = vunpack.c.h.b16 %v4085
    %v4231 = vunpack.c.l.b16 %v4086
    %v4232 = vunpack.c.h.b16 %v4086
    %v4233 = vunpack.c.l.b16 %v4087
    %v4234 = vunpack.c.h.b16 %v4087
    %v4235 = vunpack.c.l.b16 %v4088
    %v4236 = vunpack.c.h.b16 %v4088
    %v4237 = vunpack.c.l.b16 %v4089
    %v4238 = vunpack.c.h.b16 %v4089
    %v4239 = vunpack.c.l.b16 %v4090
    %v4240 = vunpack.c.h.b16 %v4090
    %v4241 = vunpack.c.l.b16 %v4091
    %v4242 = vunpack.c.h.b16 %v4091
    %v4243 = vunpack.c.l.b16 %v4092
    %v4244 = vunpack.c.h.b16 %v4092
    %v4245 = vunpack.c.l.b16 %v4093
    %v4246 = vunpack.c.h.b16 %v4093
    %v4247 = vunpack.c.l.b16 %v4094
    %v4248 = vunpack.c.h.b16 %v4094
    %v4249 = vunpack.c.l.b16 %v4095
    %v4250 = vunpack.c.h.b16 %v4095
    %v4251 = vunpack.c.l.b16 %v4096
    %v4252 = vunpack.c.h.b16 %v4096
    %v4253 = vunpack.c.l.b16 %v4097
    %v4254 = vunpack.c.h.b16 %v4097
    %v4255 = vunpack.c.l.b16 %v4098
    %v4256 = vunpack.c.h.b16 %v4098
    %v4257 = vunpack.c.l.b16 %v4099
    %v4258 = vunpack.c.h.b16 %v4099
    %v4259 = vunpack.c.l.b16 %v4100
    %v4260 = vunpack.c.h.b16 %v4100
    %v4261 = vunpack.c.l.b16 %v4101
    %v4262 = vunpack.c.h.b16 %v4101
    %v4263 = vunpack.c.l.b16 %v4102
    %v4264 = vunpack.c.h.b16 %v4102
    %v4265 = vunpack.c.l.b16 %v4103
    %v4266 = vunpack.c.h.b16 %v4103
    %v4267 = vunpack.c.l.b16 %v4104
    %v4268 = vunpack.c.h.b16 %v4104
    %v4269 = vunpack.c.l.b16 %v4105
    %v4270 = vunpack.c.h.b16 %v4105
    %v4271 = vunpack.c.l.b16 %v4106
    %v4272 = vunpack.c.h.b16 %v4106
    %v4273 = vunpack.c.l.b16 %v4107
    %v4274 = vunpack.c.h.b16 %v4107
    %v4275 = vpack.c.b16 %v4215, %v4211
    %v4276 = vpack.c.b16 %v4216, %v4212
    %v4277 = vpack.c.b16 %v4217, %v4213
    %v4278 = vpack.c.b16 %v4218, %v4214
    %v4279 = vpack.c.b16 %v4223, %v4219
    %v4280 = vpack.c.b16 %v4224, %v4220
    %v4281 = vpack.c.b16 %v4225, %v4221
    %v4282 = vpack.c.b16 %v4226, %v4222
    %v4283 = vpack.c.b16 %v4231, %v4227
    %v4284 = vpack.c.b16 %v4232, %v4228
    %v4285 = vpack.c.b16 %v4233, %v4229
    %v4286 = vpack.c.b16 %v4234, %v4230
    %v4287 = vpack.c.b16 %v4239, %v4235
    %v4288 = vpack.c.b16 %v4240, %v4236
    %v4289 = vpack.c.b16 %v4241, %v4237
    %v4290 = vpack.c.b16 %v4242, %v4238
    %v4291 = vpack.c.b16 %v4247, %v4243
    %v4292 = vpack.c.b16 %v4248, %v4244
    %v4293 = vpack.c.b16 %v4249, %v4245
    %v4294 = vpack.c.b16 %v4250, %v4246
    %v4295 = vpack.c.b16 %v4255, %v4251
    %v4296 = vpack.c.b16 %v4256, %v4252
    %v4297 = vpack.c.b16 %v4257, %v4253
    %v4298 = vpack.c.b16 %v4258, %v4254
    %v4299 = vpack.c.b16 %v4263, %v4259
    %v4300 = vpack.c.b16 %v4264, %v4260
    %v4301 = vpack.c.b16 %v4265, %v4261
    %v4302 = vpack.c.b16 %v4266, %v4262
    %v4303 = vpack.c.b16 %v4271, %v4267
    %v4304 = vpack.c.b16 %v4272, %v4268
    %v4305 = vpack.c.b16 %v4273, %v4269
    %v4306 = vpack.c.b16 %v4274, %v4270
    %4339 = vmatprep.subr.bf16.mxu0 %v4304
    %4340 = vmatpush1.bf16.msra.mxu0 %v4303
    %4341 = vmatprep.subr.bf16.mxu0 %v4300
    %4342 = vmatpush1.bf16.msra.mxu0 %v4299
    %4343 = vmatprep.subr.bf16.mxu0 %v4296
    %4344 = vmatpush1.bf16.msra.mxu0 %v4295
    %4345 = vmatprep.subr.bf16.mxu0 %v4292
    %4346 = vmatpush1.bf16.msra.mxu0 %v4291
    %4347 = vmatprep.subr.bf16.mxu0 %v4288
    %4348 = vmatpush1.bf16.msra.mxu0 %v4287
    %4349 = vmatprep.subr.bf16.mxu0 %v4284
    %4350 = vmatpush1.bf16.msra.mxu0 %v4283
    %4351 = vmatprep.subr.bf16.mxu0 %v4280
    %4352 = vmatpush1.bf16.msra.mxu0 %v4279
    %4353 = vmatprep.subr.bf16.mxu0 %v4276
    %4354 = vmatpush1.bf16.msra.mxu0 %v4275
    %4355 = vmatprep.subr.bf16.mxu0 0
    %4356 = vmatpush2.bf16.msra.mxu0 0
    %4357 = vmatprep.subr.bf16.mxu0 0
    %4358 = vmatpush2.bf16.msra.mxu0 0
    %4359 = vmatprep.subr.bf16.mxu0 0
    %4360 = vmatpush2.bf16.msra.mxu0 0
    %4361 = vmatprep.subr.bf16.mxu0 0
    %4362 = vmatpush2.bf16.msra.mxu0 0
    %4363 = vmatprep.subr.bf16.mxu0 0
    %4364 = vmatpush2.bf16.msra.mxu0 0
    %4365 = vmatprep.subr.bf16.mxu0 0
    %4366 = vmatpush2.bf16.msra.mxu0 0
    %4367 = vmatprep.subr.bf16.mxu0 0
    %4368 = vmatpush2.bf16.msra.mxu0 0
    %4369 = vmatprep.subr.bf16.mxu0 0
    %4370 = vmatpush2.bf16.msra.mxu0 0
    %4371 = vmatprep.mubr.bf16.mxu0 0
    %4372 = vmatmul.mubr.bf16.gmra.mxu0 %v4163
    %v4373 = vpop.f32.mrf.mxu0
    %v4374 = vadd.f32 %v4114, %v4373
    %v4375 = vpop.f32.mrf.mxu0
    %v4376 = vadd.f32 %v4118, %v4375
    %v4377 = vpop.f32.mrf.mxu0
    %v4378 = vadd.f32 %v4114, %v4377
    %v4379 = vpop.f32.mrf.mxu0
    %v4380 = vadd.f32 %v4118, %v4379
    %4381 = vmatprep.mubr.bf16.mxu0 0
    %4382 = vmatmul.mubr.bf16.gmra.mxu0 %v4164
    %v4383 = vpop.f32.mrf.mxu0
    %v4384 = vadd.f32 %v4114, %v4383
    %v4385 = vpop.f32.mrf.mxu0
    %v4386 = vadd.f32 %v4118, %v4385
    %v4387 = vpop.f32.mrf.mxu0
    %v4388 = vadd.f32 %v4114, %v4387
    %v4389 = vpop.f32.mrf.mxu0
    %v4390 = vadd.f32 %v4118, %v4389
    %4391 = vmatprep.mubr.bf16.mxu0 0
    %4392 = vmatmul.mubr.bf16.gmra.mxu0 %v4165
    %v4393 = vpop.f32.mrf.mxu0
    %v4394 = vadd.f32 %v4114, %v4393
    %v4395 = vpop.f32.mrf.mxu0
    %v4396 = vadd.f32 %v4118, %v4395
    %v4397 = vpop.f32.mrf.mxu0
    %v4398 = vadd.f32 %v4114, %v4397
    %v4399 = vpop.f32.mrf.mxu0
    %v4400 = vadd.f32 %v4118, %v4399
    %4401 = vmatprep.mubr.bf16.mxu0 0
    %4402 = vmatmul.mubr.bf16.gmra.mxu0 %v4166
    %v4403 = vpop.f32.mrf.mxu0
    %v4404 = vadd.f32 %v4114, %v4403
    %v4405 = vpop.f32.mrf.mxu0
    %v4406 = vadd.f32 %v4118, %v4405
    %v4407 = vpop.f32.mrf.mxu0
    %v4408 = vadd.f32 %v4114, %v4407
    %v4409 = vpop.f32.mrf.mxu0
    %v4410 = vadd.f32 %v4118, %v4409
    %4411 = vmatprep.mubr.bf16.mxu0 0
    %4412 = vmatmul.mubr.bf16.gmra.mxu0 %v4167
    %v4413 = vpop.f32.mrf.mxu0
    %v4414 = vadd.f32 %v4114, %v4413
    %v4415 = vpop.f32.mrf.mxu0
    %v4416 = vadd.f32 %v4118, %v4415
    %v4417 = vpop.f32.mrf.mxu0
    %v4418 = vadd.f32 %v4114, %v4417
    %v4419 = vpop.f32.mrf.mxu0
    %v4420 = vadd.f32 %v4118, %v4419
    %4421 = vmatprep.mubr.bf16.mxu0 0
    %4422 = vmatmul.mubr.bf16.gmra.mxu0 %v4168
    %v4423 = vpop.f32.mrf.mxu0
    %v4424 = vadd.f32 %v4114, %v4423
    %v4425 = vpop.f32.mrf.mxu0
    %v4426 = vadd.f32 %v4118, %v4425
    %v4427 = vpop.f32.mrf.mxu0
    %v4428 = vadd.f32 %v4114, %v4427
    %v4429 = vpop.f32.mrf.mxu0
    %v4430 = vadd.f32 %v4118, %v4429
    %4431 = vmatprep.mubr.bf16.mxu0 0
    %4432 = vmatmul.mubr.bf16.gmra.mxu0 %v4169
    %v4433 = vpop.f32.mrf.mxu0
    %v4434 = vadd.f32 %v4114, %v4433
    %v4435 = vpop.f32.mrf.mxu0
    %v4436 = vadd.f32 %v4118, %v4435
    %v4437 = vpop.f32.mrf.mxu0
    %v4438 = vadd.f32 %v4114, %v4437
    %v4439 = vpop.f32.mrf.mxu0
    %v4440 = vadd.f32 %v4118, %v4439
    %4441 = vmatprep.mubr.bf16.mxu0 0
    %4442 = vmatmul.mubr.bf16.gmra.mxu0 %v4170
    %v4443 = vpop.f32.mrf.mxu0
    %v4444 = vadd.f32 %v4114, %v4443
    %v4445 = vpop.f32.mrf.mxu0
    %v4446 = vadd.f32 %v4118, %v4445
    %v4447 = vpop.f32.mrf.mxu0
    %v4448 = vadd.f32 %v4114, %v4447
    %v4449 = vpop.f32.mrf.mxu0
    %v4450 = vadd.f32 %v4118, %v4449
    %4451 = vdwg.mxu0
    %4452 = vmatprep.subr.bf16.mxu0 %v4306
    %4453 = vmatpush1.bf16.msra.mxu0 %v4305
    %4454 = vmatprep.subr.bf16.mxu0 %v4302
    %4455 = vmatpush1.bf16.msra.mxu0 %v4301
    %4456 = vmatprep.subr.bf16.mxu0 %v4298
    %4457 = vmatpush1.bf16.msra.mxu0 %v4297
    %4458 = vmatprep.subr.bf16.mxu0 %v4294
    %4459 = vmatpush1.bf16.msra.mxu0 %v4293
    %4460 = vmatprep.subr.bf16.mxu0 %v4290
    %4461 = vmatpush1.bf16.msra.mxu0 %v4289
    %4462 = vmatprep.subr.bf16.mxu0 %v4286
    %4463 = vmatpush1.bf16.msra.mxu0 %v4285
    %4464 = vmatprep.subr.bf16.mxu0 %v4282
    %4465 = vmatpush1.bf16.msra.mxu0 %v4281
    %4466 = vmatprep.subr.bf16.mxu0 %v4278
    %4467 = vmatpush1.bf16.msra.mxu0 %v4277
    %4468 = vmatprep.subr.bf16.mxu0 0
    %4469 = vmatpush2.bf16.msra.mxu0 0
    %4470 = vmatprep.subr.bf16.mxu0 0
    %4471 = vmatpush2.bf16.msra.mxu0 0
    %4472 = vmatprep.subr.bf16.mxu0 0
    %4473 = vmatpush2.bf16.msra.mxu0 0
    %4474 = vmatprep.subr.bf16.mxu0 0
    %4475 = vmatpush2.bf16.msra.mxu0 0
    %4476 = vmatprep.subr.bf16.mxu0 0
    %4477 = vmatpush2.bf16.msra.mxu0 0
    %4478 = vmatprep.subr.bf16.mxu0 0
    %4479 = vmatpush2.bf16.msra.mxu0 0
    %4480 = vmatprep.subr.bf16.mxu0 0
    %4481 = vmatpush2.bf16.msra.mxu0 0
    %4482 = vmatprep.subr.bf16.mxu0 0
    %4483 = vmatpush2.bf16.msra.mxu0 0
    %4484 = vmatprep.mubr.bf16.mxu0 0
    %4485 = vmatmul.mubr.bf16.gmra.mxu0 %v4163
    %v4486 = vpop.f32.mrf.mxu0
    %v4487 = vadd.f32 %v4122, %v4486
    %v4488 = vpop.f32.mrf.mxu0
    %v4489 = vadd.f32 %v4126, %v4488
    %v4490 = vpop.f32.mrf.mxu0
    %v4491 = vadd.f32 %v4122, %v4490
    %v4492 = vpop.f32.mrf.mxu0
    %v4493 = vadd.f32 %v4126, %v4492
    %4494 = vmatprep.mubr.bf16.mxu0 0
    %4495 = vmatmul.mubr.bf16.gmra.mxu0 %v4164
    %v4496 = vpop.f32.mrf.mxu0
    %v4497 = vadd.f32 %v4122, %v4496
    %v4498 = vpop.f32.mrf.mxu0
    %v4499 = vadd.f32 %v4126, %v4498
    %v4500 = vpop.f32.mrf.mxu0
    %v4501 = vadd.f32 %v4122, %v4500
    %v4502 = vpop.f32.mrf.mxu0
    %v4503 = vadd.f32 %v4126, %v4502
    %4504 = vmatprep.mubr.bf16.mxu0 0
    %4505 = vmatmul.mubr.bf16.gmra.mxu0 %v4165
    %v4506 = vpop.f32.mrf.mxu0
    %v4507 = vadd.f32 %v4122, %v4506
    %v4508 = vpop.f32.mrf.mxu0
    %v4509 = vadd.f32 %v4126, %v4508
    %v4510 = vpop.f32.mrf.mxu0
    %v4511 = vadd.f32 %v4122, %v4510
    %v4512 = vpop.f32.mrf.mxu0
    %v4513 = vadd.f32 %v4126, %v4512
    %4514 = vmatprep.mubr.bf16.mxu0 0
    %4515 = vmatmul.mubr.bf16.gmra.mxu0 %v4166
    %v4516 = vpop.f32.mrf.mxu0
    %v4517 = vadd.f32 %v4122, %v4516
    %v4518 = vpop.f32.mrf.mxu0
    %v4519 = vadd.f32 %v4126, %v4518
    %v4520 = vpop.f32.mrf.mxu0
    %v4521 = vadd.f32 %v4122, %v4520
    %v4522 = vpop.f32.mrf.mxu0
    %v4523 = vadd.f32 %v4126, %v4522
    %4524 = vmatprep.mubr.bf16.mxu0 0
    %4525 = vmatmul.mubr.bf16.gmra.mxu0 %v4167
    %v4526 = vpop.f32.mrf.mxu0
    %v4527 = vadd.f32 %v4122, %v4526
    %v4528 = vpop.f32.mrf.mxu0
    %v4529 = vadd.f32 %v4126, %v4528
    %v4530 = vpop.f32.mrf.mxu0
    %v4531 = vadd.f32 %v4122, %v4530
    %v4532 = vpop.f32.mrf.mxu0
    %v4533 = vadd.f32 %v4126, %v4532
    %4534 = vmatprep.mubr.bf16.mxu0 0
    %4535 = vmatmul.mubr.bf16.gmra.mxu0 %v4168
    %v4536 = vpop.f32.mrf.mxu0
    %v4537 = vadd.f32 %v4122, %v4536
    %v4538 = vpop.f32.mrf.mxu0
    %v4539 = vadd.f32 %v4126, %v4538
    %v4540 = vpop.f32.mrf.mxu0
    %v4541 = vadd.f32 %v4122, %v4540
    %v4542 = vpop.f32.mrf.mxu0
    %v4543 = vadd.f32 %v4126, %v4542
    %4544 = vmatprep.mubr.bf16.mxu0 0
    %4545 = vmatmul.mubr.bf16.gmra.mxu0 %v4169
    %v4546 = vpop.f32.mrf.mxu0
    %v4547 = vadd.f32 %v4122, %v4546
    %v4548 = vpop.f32.mrf.mxu0
    %v4549 = vadd.f32 %v4126, %v4548
    %v4550 = vpop.f32.mrf.mxu0
    %v4551 = vadd.f32 %v4122, %v4550
    %v4552 = vpop.f32.mrf.mxu0
    %v4553 = vadd.f32 %v4126, %v4552
    %4554 = vmatprep.mubr.bf16.mxu0 0
    %4555 = vmatmul.mubr.bf16.gmra.mxu0 %v4170
    %v4556 = vpop.f32.mrf.mxu0
    %v4557 = vadd.f32 %v4122, %v4556
    %v4558 = vpop.f32.mrf.mxu0
    %v4559 = vadd.f32 %v4126, %v4558
    %v4560 = vpop.f32.mrf.mxu0
    %v4561 = vadd.f32 %v4122, %v4560
    %v4562 = vpop.f32.mrf.mxu0
    %v4563 = vadd.f32 %v4126, %v4562
    %4564 = vdwg.mxu0
    %4565 = vst [vmem:[#allocation3] sm:$0xff] %v4374
    %4566 = vst [vmem:[#allocation3 + $0x8] sm:$0xff] %v4376
    %4567 = vst [vmem:[#allocation3 + $0x10] sm:$0xff] %v4487
    %4568 = vst [vmem:[#allocation3 + $0x18] sm:$0xff] %v4489
    %4569 = vst [vmem:[#allocation3 + $0x20] sm:$0xff] %v4378
    %4570 = vst [vmem:[#allocation3 + $0x28] sm:$0xff] %v4380
    %4571 = vst [vmem:[#allocation3 + $0x30] sm:$0xff] %v4491
    %4572 = vst [vmem:[#allocation3 + $0x38] sm:$0xff] %v4493
    %4573 = vst [vmem:[#allocation3 + $0x40] sm:$0xff] %v4384
    %4574 = vst [vmem:[#allocation3 + $0x48] sm:$0xff] %v4386
    %4575 = vst [vmem:[#allocation3 + $0x50] sm:$0xff] %v4497
    %4576 = vst [vmem:[#allocation3 + $0x58] sm:$0xff] %v4499
    %4577 = vst [vmem:[#allocation3 + $0x60] sm:$0xff] %v4388
    %4578 = vst [vmem:[#allocation3 + $0x68] sm:$0xff] %v4390
    %4579 = vst [vmem:[#allocation3 + $0x70] sm:$0xff] %v4501
    %4580 = vst [vmem:[#allocation3 + $0x78] sm:$0xff] %v4503
    %4581 = vst [vmem:[#allocation3 + $0x80] sm:$0xff] %v4394
    %4582 = vst [vmem:[#allocation3 + $0x88] sm:$0xff] %v4396
    %4583 = vst [vmem:[#allocation3 + $0x90] sm:$0xff] %v4507
    %4584 = vst [vmem:[#allocation3 + $0x98] sm:$0xff] %v4509
    %4585 = vst [vmem:[#allocation3 + $0xa0] sm:$0xff] %v4398
    %4586 = vst [vmem:[#allocation3 + $0xa8] sm:$0xff] %v4400
    %4587 = vst [vmem:[#allocation3 + $0xb0] sm:$0xff] %v4511
    %4588 = vst [vmem:[#allocation3 + $0xb8] sm:$0xff] %v4513
    %4589 = vst [vmem:[#allocation3 + $0xc0] sm:$0xff] %v4404
    %4590 = vst [vmem:[#allocation3 + $0xc8] sm:$0xff] %v4406
    %4591 = vst [vmem:[#allocation3 + $0xd0] sm:$0xff] %v4517
    %4592 = vst [vmem:[#allocation3 + $0xd8] sm:$0xff] %v4519
    %4593 = vst [vmem:[#allocation3 + $0xe0] sm:$0xff] %v4408
    %4594 = vst [vmem:[#allocation3 + $0xe8] sm:$0xff] %v4410
    %4595 = vst [vmem:[#allocation3 + $0xf0] sm:$0xff] %v4521
    %4596 = vst [vmem:[#allocation3 + $0xf8] sm:$0xff] %v4523
    %4597 = vst [vmem:[#allocation3 + $0x100] sm:$0xff] %v4414
    %4598 = vst [vmem:[#allocation3 + $0x108] sm:$0xff] %v4416
    %4599 = vst [vmem:[#allocation3 + $0x110] sm:$0xff] %v4527
    %4600 = vst [vmem:[#allocation3 + $0x118] sm:$0xff] %v4529
    %4601 = vst [vmem:[#allocation3 + $0x120] sm:$0xff] %v4418
    %4602 = vst [vmem:[#allocation3 + $0x128] sm:$0xff] %v4420
    %4603 = vst [vmem:[#allocation3 + $0x130] sm:$0xff] %v4531
    %4604 = vst [vmem:[#allocation3 + $0x138] sm:$0xff] %v4533
    %4605 = vst [vmem:[#allocation3 + $0x140] sm:$0xff] %v4424
    %4606 = vst [vmem:[#allocation3 + $0x148] sm:$0xff] %v4426
    %4607 = vst [vmem:[#allocation3 + $0x150] sm:$0xff] %v4537
    %4608 = vst [vmem:[#allocation3 + $0x158] sm:$0xff] %v4539
    %4609 = vst [vmem:[#allocation3 + $0x160] sm:$0xff] %v4428
    %4610 = vst [vmem:[#allocation3 + $0x168] sm:$0xff] %v4430
    %4611 = vst [vmem:[#allocation3 + $0x170] sm:$0xff] %v4541
    %4612 = vst [vmem:[#allocation3 + $0x178] sm:$0xff] %v4543
    %4613 = vst [vmem:[#allocation3 + $0x180] sm:$0xff] %v4434
    %4614 = vst [vmem:[#allocation3 + $0x188] sm:$0xff] %v4436
    %4615 = vst [vmem:[#allocation3 + $0x190] sm:$0xff] %v4547
    %4616 = vst [vmem:[#allocation3 + $0x198] sm:$0xff] %v4549
    %4617 = vst [vmem:[#allocation3 + $0x1a0] sm:$0xff] %v4438
    %4618 = vst [vmem:[#allocation3 + $0x1a8] sm:$0xff] %v4440
    %4619 = vst [vmem:[#allocation3 + $0x1b0] sm:$0xff] %v4551
    %4620 = vst [vmem:[#allocation3 + $0x1b8] sm:$0xff] %v4553
    %4621 = vst [vmem:[#allocation3 + $0x1c0] sm:$0xff] %v4444
    %4622 = vst [vmem:[#allocation3 + $0x1c8] sm:$0xff] %v4446
    %4623 = vst [vmem:[#allocation3 + $0x1d0] sm:$0xff] %v4557
    %4624 = vst [vmem:[#allocation3 + $0x1d8] sm:$0xff] %v4559
    %4625 = vst [vmem:[#allocation3 + $0x1e0] sm:$0xff] %v4448
    %4626 = vst [vmem:[#allocation3 + $0x1e8] sm:$0xff] %v4450
    %4627 = vst [vmem:[#allocation3 + $0x1f0] sm:$0xff] %v4561
    %4628 = vst [vmem:[#allocation3 + $0x1f8] sm:$0xff] %v4563
    %s4629 = scalar_lea.vmem [#allocation10], 512
    %v4630 = vld [vmem:[%s4629] sm:$0xff]
    %v4631 = vld [vmem:[%s4629 + $0x8] sm:$0xff]
    %v4632 = vld [vmem:[%s4629 + $0x10] sm:$0xff]
    %v4633 = vld [vmem:[%s4629 + $0x18] sm:$0xff]
    %v4634 = vld [vmem:[%s4629 + $0x20] sm:$0xff]
    %v4635 = vld [vmem:[%s4629 + $0x28] sm:$0xff]
    %v4636 = vld [vmem:[%s4629 + $0x30] sm:$0xff]
    %v4637 = vld [vmem:[%s4629 + $0x38] sm:$0xff]
    %v4638 = vld [vmem:[%s4629 + $0x40] sm:$0xff]
    %v4639 = vld [vmem:[%s4629 + $0x48] sm:$0xff]
    %v4640 = vld [vmem:[%s4629 + $0x50] sm:$0xff]
    %v4641 = vld [vmem:[%s4629 + $0x58] sm:$0xff]
    %v4642 = vld [vmem:[%s4629 + $0x60] sm:$0xff]
    %v4643 = vld [vmem:[%s4629 + $0x68] sm:$0xff]
    %v4644 = vld [vmem:[%s4629 + $0x70] sm:$0xff]
    %v4645 = vld [vmem:[%s4629 + $0x78] sm:$0xff]
    %v4646 = vld [vmem:[%s4629 + $0x80] sm:$0xff]
    %v4647 = vld [vmem:[%s4629 + $0x88] sm:$0xff]
    %v4648 = vld [vmem:[%s4629 + $0x90] sm:$0xff]
    %v4649 = vld [vmem:[%s4629 + $0x98] sm:$0xff]
    %v4650 = vld [vmem:[%s4629 + $0xa0] sm:$0xff]
    %v4651 = vld [vmem:[%s4629 + $0xa8] sm:$0xff]
    %v4652 = vld [vmem:[%s4629 + $0xb0] sm:$0xff]
    %v4653 = vld [vmem:[%s4629 + $0xb8] sm:$0xff]
    %v4654 = vld [vmem:[%s4629 + $0xc0] sm:$0xff]
    %v4655 = vld [vmem:[%s4629 + $0xc8] sm:$0xff]
    %v4656 = vld [vmem:[%s4629 + $0xd0] sm:$0xff]
    %v4657 = vld [vmem:[%s4629 + $0xd8] sm:$0xff]
    %v4658 = vld [vmem:[%s4629 + $0xe0] sm:$0xff]
    %v4659 = vld [vmem:[%s4629 + $0xe8] sm:$0xff]
    %v4660 = vld [vmem:[%s4629 + $0xf0] sm:$0xff]
    %v4661 = vld [vmem:[%s4629 + $0xf8] sm:$0xff]
    %s4662 = scalar_lea.vmem [#allocation13], 32
    %v4663 = vld [vmem:[%s4662] sm:$0xff]
    %v4664 = vld [vmem:[%s4662 + $0x8] sm:$0xff]
    %s4665 = scalar_lea.vmem [#allocation15], 32
    %v4666 = vld [vmem:[%s4665] sm:$0xff]
    %v4667 = vld [vmem:[%s4665 + $0x8] sm:$0xff]
    %v4668 = vld [vmem:[#allocation3] sm:$0xff]
    %v4669 = vld [vmem:[#allocation3 + $0x8] sm:$0xff]
    %v4670 = vld [vmem:[#allocation3 + $0x10] sm:$0xff]
    %v4671 = vld [vmem:[#allocation3 + $0x18] sm:$0xff]
    %v4672 = vld [vmem:[#allocation3 + $0x20] sm:$0xff]
    %v4673 = vld [vmem:[#allocation3 + $0x28] sm:$0xff]
    %v4674 = vld [vmem:[#allocation3 + $0x30] sm:$0xff]
    %v4675 = vld [vmem:[#allocation3 + $0x38] sm:$0xff]
    %v4676 = vpack.c.bf16 %v4664, %v4663
    %v4709 = vunpack.c.l.b16 %v4630
    %v4710 = vunpack.c.h.b16 %v4630
    %v4711 = vunpack.c.l.b16 %v4631
    %v4712 = vunpack.c.h.b16 %v4631
    %v4713 = vunpack.c.l.b16 %v4632
    %v4714 = vunpack.c.h.b16 %v4632
    %v4715 = vunpack.c.l.b16 %v4633
    %v4716 = vunpack.c.h.b16 %v4633
    %v4717 = vunpack.c.l.b16 %v4634
    %v4718 = vunpack.c.h.b16 %v4634
    %v4719 = vunpack.c.l.b16 %v4635
    %v4720 = vunpack.c.h.b16 %v4635
    %v4721 = vunpack.c.l.b16 %v4636
    %v4722 = vunpack.c.h.b16 %v4636
    %v4723 = vunpack.c.l.b16 %v4637
    %v4724 = vunpack.c.h.b16 %v4637
    %v4725 = vunpack.c.l.b16 %v4638
    %v4726 = vunpack.c.h.b16 %v4638
    %v4727 = vunpack.c.l.b16 %v4639
    %v4728 = vunpack.c.h.b16 %v4639
    %v4729 = vunpack.c.l.b16 %v4640
    %v4730 = vunpack.c.h.b16 %v4640
    %v4731 = vunpack.c.l.b16 %v4641
    %v4732 = vunpack.c.h.b16 %v4641
    %v4733 = vunpack.c.l.b16 %v4642
    %v4734 = vunpack.c.h.b16 %v4642
    %v4735 = vunpack.c.l.b16 %v4643
    %v4736 = vunpack.c.h.b16 %v4643
    %v4737 = vunpack.c.l.b16 %v4644
    %v4738 = vunpack.c.h.b16 %v4644
    %v4739 = vunpack.c.l.b16 %v4645
    %v4740 = vunpack.c.h.b16 %v4645
    %v4741 = vunpack.c.l.b16 %v4646
    %v4742 = vunpack.c.h.b16 %v4646
    %v4743 = vunpack.c.l.b16 %v4647
    %v4744 = vunpack.c.h.b16 %v4647
    %v4745 = vunpack.c.l.b16 %v4648
    %v4746 = vunpack.c.h.b16 %v4648
    %v4747 = vunpack.c.l.b16 %v4649
    %v4748 = vunpack.c.h.b16 %v4649
    %v4749 = vunpack.c.l.b16 %v4650
    %v4750 = vunpack.c.h.b16 %v4650
    %v4751 = vunpack.c.l.b16 %v4651
    %v4752 = vunpack.c.h.b16 %v4651
    %v4753 = vunpack.c.l.b16 %v4652
    %v4754 = vunpack.c.h.b16 %v4652
    %v4755 = vunpack.c.l.b16 %v4653
    %v4756 = vunpack.c.h.b16 %v4653
    %v4757 = vunpack.c.l.b16 %v4654
    %v4758 = vunpack.c.h.b16 %v4654
    %v4759 = vunpack.c.l.b16 %v4655
    %v4760 = vunpack.c.h.b16 %v4655
    %v4761 = vunpack.c.l.b16 %v4656
    %v4762 = vunpack.c.h.b16 %v4656
    %v4763 = vunpack.c.l.b16 %v4657
    %v4764 = vunpack.c.h.b16 %v4657
    %v4765 = vunpack.c.l.b16 %v4658
    %v4766 = vunpack.c.h.b16 %v4658
    %v4767 = vunpack.c.l.b16 %v4659
    %v4768 = vunpack.c.h.b16 %v4659
    %v4769 = vunpack.c.l.b16 %v4660
    %v4770 = vunpack.c.h.b16 %v4660
    %v4771 = vunpack.c.l.b16 %v4661
    %v4772 = vunpack.c.h.b16 %v4661
    %v4773 = vpack.c.b16 %v4713, %v4709
    %v4774 = vpack.c.b16 %v4714, %v4710
    %v4775 = vpack.c.b16 %v4715, %v4711
    %v4776 = vpack.c.b16 %v4716, %v4712
    %v4777 = vpack.c.b16 %v4721, %v4717
    %v4778 = vpack.c.b16 %v4722, %v4718
    %v4779 = vpack.c.b16 %v4723, %v4719
    %v4780 = vpack.c.b16 %v4724, %v4720
    %v4781 = vpack.c.b16 %v4729, %v4725
    %v4782 = vpack.c.b16 %v4730, %v4726
    %v4783 = vpack.c.b16 %v4731, %v4727
    %v4784 = vpack.c.b16 %v4732, %v4728
    %v4785 = vpack.c.b16 %v4737, %v4733
    %v4786 = vpack.c.b16 %v4738, %v4734
    %v4787 = vpack.c.b16 %v4739, %v4735
    %v4788 = vpack.c.b16 %v4740, %v4736
    %v4789 = vpack.c.b16 %v4745, %v4741
    %v4790 = vpack.c.b16 %v4746, %v4742
    %v4791 = vpack.c.b16 %v4747, %v4743
    %v4792 = vpack.c.b16 %v4748, %v4744
    %v4793 = vpack.c.b16 %v4753, %v4749
    %v4794 = vpack.c.b16 %v4754, %v4750
    %v4795 = vpack.c.b16 %v4755, %v4751
    %v4796 = vpack.c.b16 %v4756, %v4752
    %v4797 = vpack.c.b16 %v4761, %v4757
    %v4798 = vpack.c.b16 %v4762, %v4758
    %v4799 = vpack.c.b16 %v4763, %v4759
    %v4800 = vpack.c.b16 %v4764, %v4760
    %v4801 = vpack.c.b16 %v4769, %v4765
    %v4802 = vpack.c.b16 %v4770, %v4766
    %v4803 = vpack.c.b16 %v4771, %v4767
    %v4804 = vpack.c.b16 %v4772, %v4768
    %4837 = vmatprep.subr.bf16.mxu0 %v4802
    %4838 = vmatpush1.bf16.msra.mxu0 %v4801
    %4839 = vmatprep.subr.bf16.mxu0 %v4798
    %4840 = vmatpush1.bf16.msra.mxu0 %v4797
    %4841 = vmatprep.subr.bf16.mxu0 %v4794
    %4842 = vmatpush1.bf16.msra.mxu0 %v4793
    %4843 = vmatprep.subr.bf16.mxu0 %v4790
    %4844 = vmatpush1.bf16.msra.mxu0 %v4789
    %4845 = vmatprep.subr.bf16.mxu0 %v4786
    %4846 = vmatpush1.bf16.msra.mxu0 %v4785
    %4847 = vmatprep.subr.bf16.mxu0 %v4782
    %4848 = vmatpush1.bf16.msra.mxu0 %v4781
    %4849 = vmatprep.subr.bf16.mxu0 %v4778
    %4850 = vmatpush1.bf16.msra.mxu0 %v4777
    %4851 = vmatprep.subr.bf16.mxu0 %v4774
    %4852 = vmatpush1.bf16.msra.mxu0 %v4773
    %4853 = vmatprep.subr.bf16.mxu0 0
    %4854 = vmatpush2.bf16.msra.mxu0 0
    %4855 = vmatprep.subr.bf16.mxu0 0
    %4856 = vmatpush2.bf16.msra.mxu0 0
    %4857 = vmatprep.subr.bf16.mxu0 0
    %4858 = vmatpush2.bf16.msra.mxu0 0
    %4859 = vmatprep.subr.bf16.mxu0 0
    %4860 = vmatpush2.bf16.msra.mxu0 0
    %4861 = vmatprep.subr.bf16.mxu0 0
    %4862 = vmatpush2.bf16.msra.mxu0 0
    %4863 = vmatprep.subr.bf16.mxu0 0
    %4864 = vmatpush2.bf16.msra.mxu0 0
    %4865 = vmatprep.subr.bf16.mxu0 0
    %4866 = vmatpush2.bf16.msra.mxu0 0
    %4867 = vmatprep.subr.bf16.mxu0 0
    %4868 = vmatpush2.bf16.msra.mxu0 0
    %4869 = vmatprep.mubr.bf16.mxu0 0
    %4870 = vmatmul.mubr.bf16.gmra.mxu0 %v4676
    %v4871 = vpop.f32.mrf.mxu0
    %v4872 = vadd.f32 0.0, %v4871
    %v4873 = vpop.f32.mrf.mxu0
    %v4874 = vadd.f32 0.0, %v4873
    %v4875 = vpop.f32.mrf.mxu0
    %v4876 = vadd.f32 0.0, %v4875
    %v4877 = vpop.f32.mrf.mxu0
    %v4878 = vadd.f32 0.0, %v4877
    %4879 = vdwg.mxu0
    %4880 = vmatprep.subr.bf16.mxu0 %v4804
    %4881 = vmatpush1.bf16.msra.mxu0 %v4803
    %4882 = vmatprep.subr.bf16.mxu0 %v4800
    %4883 = vmatpush1.bf16.msra.mxu0 %v4799
    %4884 = vmatprep.subr.bf16.mxu0 %v4796
    %4885 = vmatpush1.bf16.msra.mxu0 %v4795
    %4886 = vmatprep.subr.bf16.mxu0 %v4792
    %4887 = vmatpush1.bf16.msra.mxu0 %v4791
    %4888 = vmatprep.subr.bf16.mxu0 %v4788
    %4889 = vmatpush1.bf16.msra.mxu0 %v4787
    %4890 = vmatprep.subr.bf16.mxu0 %v4784
    %4891 = vmatpush1.bf16.msra.mxu0 %v4783
    %4892 = vmatprep.subr.bf16.mxu0 %v4780
    %4893 = vmatpush1.bf16.msra.mxu0 %v4779
    %4894 = vmatprep.subr.bf16.mxu0 %v4776
    %4895 = vmatpush1.bf16.msra.mxu0 %v4775
    %4896 = vmatprep.subr.bf16.mxu0 0
    %4897 = vmatpush2.bf16.msra.mxu0 0
    %4898 = vmatprep.subr.bf16.mxu0 0
    %4899 = vmatpush2.bf16.msra.mxu0 0
    %4900 = vmatprep.subr.bf16.mxu0 0
    %4901 = vmatpush2.bf16.msra.mxu0 0
    %4902 = vmatprep.subr.bf16.mxu0 0
    %4903 = vmatpush2.bf16.msra.mxu0 0
    %4904 = vmatprep.subr.bf16.mxu0 0
    %4905 = vmatpush2.bf16.msra.mxu0 0
    %4906 = vmatprep.subr.bf16.mxu0 0
    %4907 = vmatpush2.bf16.msra.mxu0 0
    %4908 = vmatprep.subr.bf16.mxu0 0
    %4909 = vmatpush2.bf16.msra.mxu0 0
    %4910 = vmatprep.subr.bf16.mxu0 0
    %4911 = vmatpush2.bf16.msra.mxu0 0
    %4912 = vmatprep.mubr.bf16.mxu0 0
    %4913 = vmatmul.mubr.bf16.gmra.mxu0 %v4676
    %v4914 = vpop.f32.mrf.mxu0
    %v4915 = vadd.f32 0.0, %v4914
    %v4916 = vpop.f32.mrf.mxu0
    %v4917 = vadd.f32 0.0, %v4916
    %v4918 = vpop.f32.mrf.mxu0
    %v4919 = vadd.f32 0.0, %v4918
    %v4920 = vpop.f32.mrf.mxu0
    %v4921 = vadd.f32 0.0, %v4920
    %4922 = vdwg.mxu0
    %v4923 = vadd.f32 %v4668, %v4872
    %v4924 = vadd.f32 %v4669, %v4874
    %v4925 = vadd.f32 %v4670, %v4915
    %v4926 = vadd.f32 %v4671, %v4917
    %v4927 = vadd.f32 %v4672, %v4876
    %v4928 = vadd.f32 %v4673, %v4878
    %v4929 = vadd.f32 %v4674, %v4919
    %v4930 = vadd.f32 %v4675, %v4921
    %v4931 = vmul.f32 %v4923, 0.5
    %v4932 = vmul.f32 %v4927, 0.5
    %v4933 = vtanh.pop %v4931
    %v4934 = vtanh.pop %v4932
    %v4935 = vmul.f32 %v4933, 0.5
    %v4936 = vmul.f32 %v4934, 0.5
    %v4937 = vadd.f32 %v4935, 0.5
    %v4938 = vadd.f32 %v4936, 0.5
    %v4939 = vmul.f32 %v4924, 0.5
    %v4940 = vmul.f32 %v4928, 0.5
    %v4941 = vtanh.pop %v4939
    %v4942 = vtanh.pop %v4940
    %v4943 = vmul.f32 %v4941, 0.5
    %v4944 = vmul.f32 %v4942, 0.5
    %v4945 = vadd.f32 %v4943, 0.5
    %v4946 = vadd.f32 %v4944, 0.5
    %v4947 = vtanh.pop %v4925
    %v4948 = vtanh.pop %v4929
    %v4949 = vmul.f32 %v4926, 0.5
    %v4950 = vmul.f32 %v4930, 0.5
    %v4951 = vtanh.pop %v4949
    %v4952 = vtanh.pop %v4950
    %v4953 = vmul.f32 %v4951, 0.5
    %v4954 = vmul.f32 %v4952, 0.5
    %v4955 = vadd.f32 %v4953, 0.5
    %v4956 = vadd.f32 %v4954, 0.5
    %v4957 = vmul.f32 %v4945, %v4666
    %v4958 = vmul.f32 %v4946, %v4667
    %v4959 = vmul.f32 %v4937, %v4947
    %v4960 = vmul.f32 %v4938, %v4948
    %v4961 = vadd.f32 %v4957, %v4959
    %v4962 = vadd.f32 %v4958, %v4960
    %v4963 = vtanh.pop %v4961
    %v4964 = vtanh.pop %v4962
    %v4965 = vmul.f32 %v4955, %v4963
    %v4966 = vmul.f32 %v4956, %v4964
    %v4967 = vpack.c.bf16 %v4966, %v4965
    %v4969 = vunpack.c.l.b16 %v4967
    %v4970 = vunpack.c.h.b16 %v4967
    %v4971 = vpack.c.b16 %v4969, %v4969
    %v4972 = vpack.c.b16 %v4970, %v4970
    %4975 = vst [vmem:[#allocation2] sm:$0xf] %v4971
    %4976 = vst [vmem:[#allocation2 + $0x4] sm:$0xf] %v4972
    %v4977 = vld [vmem:[%s1056] sm:$0xff]
    %v4978 = vld [vmem:[%s1056 + $0x8] sm:$0xff]
    %v4979 = vld [vmem:[%s1056 + $0x10] sm:$0xff]
    %v4980 = vld [vmem:[%s1056 + $0x18] sm:$0xff]
    %v4981 = vld [vmem:[%s1056 + $0x20] sm:$0xff]
    %v4982 = vld [vmem:[%s1056 + $0x28] sm:$0xff]
    %v4983 = vld [vmem:[%s1056 + $0x30] sm:$0xff]
    %v4984 = vld [vmem:[%s1056 + $0x38] sm:$0xff]
    %4985 = vmatprep.subr.bf16.mxu0 %v4802
    %4986 = vmatpush1.bf16.msra.mxu0 %v4801
    %4987 = vmatprep.subr.bf16.mxu0 %v4798
    %4988 = vmatpush1.bf16.msra.mxu0 %v4797
    %4989 = vmatprep.subr.bf16.mxu0 %v4794
    %4990 = vmatpush1.bf16.msra.mxu0 %v4793
    %4991 = vmatprep.subr.bf16.mxu0 %v4790
    %4992 = vmatpush1.bf16.msra.mxu0 %v4789
    %4993 = vmatprep.subr.bf16.mxu0 %v4786
    %4994 = vmatpush1.bf16.msra.mxu0 %v4785
    %4995 = vmatprep.subr.bf16.mxu0 %v4782
    %4996 = vmatpush1.bf16.msra.mxu0 %v4781
    %4997 = vmatprep.subr.bf16.mxu0 %v4778
    %4998 = vmatpush1.bf16.msra.mxu0 %v4777
    %4999 = vmatprep.subr.bf16.mxu0 %v4774
    %5000 = vmatpush1.bf16.msra.mxu0 %v4773
    %5001 = vmatprep.subr.bf16.mxu0 0
    %5002 = vmatpush2.bf16.msra.mxu0 0
    %5003 = vmatprep.subr.bf16.mxu0 0
    %5004 = vmatpush2.bf16.msra.mxu0 0
    %5005 = vmatprep.subr.bf16.mxu0 0
    %5006 = vmatpush2.bf16.msra.mxu0 0
    %5007 = vmatprep.subr.bf16.mxu0 0
    %5008 = vmatpush2.bf16.msra.mxu0 0
    %5009 = vmatprep.subr.bf16.mxu0 0
    %5010 = vmatpush2.bf16.msra.mxu0 0
    %5011 = vmatprep.subr.bf16.mxu0 0
    %5012 = vmatpush2.bf16.msra.mxu0 0
    %5013 = vmatprep.subr.bf16.mxu0 0
    %5014 = vmatpush2.bf16.msra.mxu0 0
    %5015 = vmatprep.subr.bf16.mxu0 0
    %5016 = vmatpush2.bf16.msra.mxu0 0
    %5017 = vmatprep.mubr.bf16.mxu0 0
    %5018 = vmatmul.mubr.bf16.gmra.mxu0 %v4967
    %v5019 = vpop.f32.mrf.mxu0
    %v5020 = vadd.f32 0.0, %v5019
    %v5021 = vpop.f32.mrf.mxu0
    %v5022 = vadd.f32 0.0, %v5021
    %v5023 = vpop.f32.mrf.mxu0
    %v5024 = vadd.f32 0.0, %v5023
    %v5025 = vpop.f32.mrf.mxu0
    %v5026 = vadd.f32 0.0, %v5025
    %5027 = vdwg.mxu0
    %5028 = vmatprep.subr.bf16.mxu0 %v4804
    %5029 = vmatpush1.bf16.msra.mxu0 %v4803
    %5030 = vmatprep.subr.bf16.mxu0 %v4800
    %5031 = vmatpush1.bf16.msra.mxu0 %v4799
    %5032 = vmatprep.subr.bf16.mxu0 %v4796
    %5033 = vmatpush1.bf16.msra.mxu0 %v4795
    %5034 = vmatprep.subr.bf16.mxu0 %v4792
    %5035 = vmatpush1.bf16.msra.mxu0 %v4791
    %5036 = vmatprep.subr.bf16.mxu0 %v4788
    %5037 = vmatpush1.bf16.msra.mxu0 %v4787
    %5038 = vmatprep.subr.bf16.mxu0 %v4784
    %5039 = vmatpush1.bf16.msra.mxu0 %v4783
    %5040 = vmatprep.subr.bf16.mxu0 %v4780
    %5041 = vmatpush1.bf16.msra.mxu0 %v4779
    %5042 = vmatprep.subr.bf16.mxu0 %v4776
    %5043 = vmatpush1.bf16.msra.mxu0 %v4775
    %5044 = vmatprep.subr.bf16.mxu0 0
    %5045 = vmatpush2.bf16.msra.mxu0 0
    %5046 = vmatprep.subr.bf16.mxu0 0
    %5047 = vmatpush2.bf16.msra.mxu0 0
    %5048 = vmatprep.subr.bf16.mxu0 0
    %5049 = vmatpush2.bf16.msra.mxu0 0
    %5050 = vmatprep.subr.bf16.mxu0 0
    %5051 = vmatpush2.bf16.msra.mxu0 0
    %5052 = vmatprep.subr.bf16.mxu0 0
    %5053 = vmatpush2.bf16.msra.mxu0 0
    %5054 = vmatprep.subr.bf16.mxu0 0
    %5055 = vmatpush2.bf16.msra.mxu0 0
    %5056 = vmatprep.subr.bf16.mxu0 0
    %5057 = vmatpush2.bf16.msra.mxu0 0
    %5058 = vmatprep.subr.bf16.mxu0 0
    %5059 = vmatpush2.bf16.msra.mxu0 0
    %5060 = vmatprep.mubr.bf16.mxu0 0
    %5061 = vmatmul.mubr.bf16.gmra.mxu0 %v4967
    %v5062 = vpop.f32.mrf.mxu0
    %v5063 = vadd.f32 0.0, %v5062
    %v5064 = vpop.f32.mrf.mxu0
    %v5065 = vadd.f32 0.0, %v5064
    %v5066 = vpop.f32.mrf.mxu0
    %v5067 = vadd.f32 0.0, %v5066
    %v5068 = vpop.f32.mrf.mxu0
    %v5069 = vadd.f32 0.0, %v5068
    %5070 = vdwg.mxu0
    %v5071 = vadd.f32 %v4977, %v5020
    %v5072 = vadd.f32 %v4978, %v5022
    %v5073 = vadd.f32 %v4979, %v5063
    %v5074 = vadd.f32 %v4980, %v5065
    %v5075 = vadd.f32 %v4981, %v5024
    %v5076 = vadd.f32 %v4982, %v5026
    %v5077 = vadd.f32 %v4983, %v5067
    %v5078 = vadd.f32 %v4984, %v5069
    %v5079 = vmul.f32 %v5071, 0.5
    %v5080 = vmul.f32 %v5075, 0.5
    %v5081 = vtanh.pop %v5079
    %v5082 = vtanh.pop %v5080
    %v5083 = vmul.f32 %v5081, 0.5
    %v5084 = vmul.f32 %v5082, 0.5
    %v5085 = vadd.f32 %v5083, 0.5
    %v5086 = vadd.f32 %v5084, 0.5
    %v5087 = vmul.f32 %v5072, 0.5
    %v5088 = vmul.f32 %v5076, 0.5
    %v5089 = vtanh.pop %v5087
    %v5090 = vtanh.pop %v5088
    %v5091 = vmul.f32 %v5089, 0.5
    %v5092 = vmul.f32 %v5090, 0.5
    %v5093 = vadd.f32 %v5091, 0.5
    %v5094 = vadd.f32 %v5092, 0.5
    %v5095 = vtanh.pop %v5073
    %v5096 = vtanh.pop %v5077
    %v5097 = vmul.f32 %v5074, 0.5
    %v5098 = vmul.f32 %v5078, 0.5
    %v5099 = vtanh.pop %v5097
    %v5100 = vtanh.pop %v5098
    %v5101 = vmul.f32 %v5099, 0.5
    %v5102 = vmul.f32 %v5100, 0.5
    %v5103 = vadd.f32 %v5101, 0.5
    %v5104 = vadd.f32 %v5102, 0.5
    %v5105 = vmul.f32 %v5093, %v4961
    %v5106 = vmul.f32 %v5094, %v4962
    %v5107 = vmul.f32 %v5085, %v5095
    %v5108 = vmul.f32 %v5086, %v5096
    %v5109 = vadd.f32 %v5105, %v5107
    %v5110 = vadd.f32 %v5106, %v5108
    %v5111 = vtanh.pop %v5109
    %v5112 = vtanh.pop %v5110
    %v5113 = vmul.f32 %v5103, %v5111
    %v5114 = vmul.f32 %v5104, %v5112
    %v5115 = vpack.c.bf16 %v5114, %v5113
    %v5117 = vunpack.c.l.b16 %v5115
    %v5118 = vunpack.c.h.b16 %v5115
    %v5119 = vpack.c.b16 %v5117, %v5117
    %v5120 = vpack.c.b16 %v5118, %v5118
    %5123 = vst [vmem:[%s1203] sm:$0xf] %v5119
    %5124 = vst [vmem:[%s1203 + $0x4] sm:$0xf] %v5120
    %v5125 = vld [vmem:[%s1206] sm:$0xff]
    %v5126 = vld [vmem:[%s1206 + $0x8] sm:$0xff]
    %v5127 = vld [vmem:[%s1206 + $0x10] sm:$0xff]
    %v5128 = vld [vmem:[%s1206 + $0x18] sm:$0xff]
    %v5129 = vld [vmem:[%s1206 + $0x20] sm:$0xff]
    %v5130 = vld [vmem:[%s1206 + $0x28] sm:$0xff]
    %v5131 = vld [vmem:[%s1206 + $0x30] sm:$0xff]
    %v5132 = vld [vmem:[%s1206 + $0x38] sm:$0xff]
    %5133 = vmatprep.subr.bf16.mxu0 %v4802
    %5134 = vmatpush1.bf16.msra.mxu0 %v4801
    %5135 = vmatprep.subr.bf16.mxu0 %v4798
    %5136 = vmatpush1.bf16.msra.mxu0 %v4797
    %5137 = vmatprep.subr.bf16.mxu0 %v4794
    %5138 = vmatpush1.bf16.msra.mxu0 %v4793
    %5139 = vmatprep.subr.bf16.mxu0 %v4790
    %5140 = vmatpush1.bf16.msra.mxu0 %v4789
    %5141 = vmatprep.subr.bf16.mxu0 %v4786
    %5142 = vmatpush1.bf16.msra.mxu0 %v4785
    %5143 = vmatprep.subr.bf16.mxu0 %v4782
    %5144 = vmatpush1.bf16.msra.mxu0 %v4781
    %5145 = vmatprep.subr.bf16.mxu0 %v4778
    %5146 = vmatpush1.bf16.msra.mxu0 %v4777
    %5147 = vmatprep.subr.bf16.mxu0 %v4774
    %5148 = vmatpush1.bf16.msra.mxu0 %v4773
    %5149 = vmatprep.subr.bf16.mxu0 0
    %5150 = vmatpush2.bf16.msra.mxu0 0
    %5151 = vmatprep.subr.bf16.mxu0 0
    %5152 = vmatpush2.bf16.msra.mxu0 0
    %5153 = vmatprep.subr.bf16.mxu0 0
    %5154 = vmatpush2.bf16.msra.mxu0 0
    %5155 = vmatprep.subr.bf16.mxu0 0
    %5156 = vmatpush2.bf16.msra.mxu0 0
    %5157 = vmatprep.subr.bf16.mxu0 0
    %5158 = vmatpush2.bf16.msra.mxu0 0
    %5159 = vmatprep.subr.bf16.mxu0 0
    %5160 = vmatpush2.bf16.msra.mxu0 0
    %5161 = vmatprep.subr.bf16.mxu0 0
    %5162 = vmatpush2.bf16.msra.mxu0 0
    %5163 = vmatprep.subr.bf16.mxu0 0
    %5164 = vmatpush2.bf16.msra.mxu0 0
    %5165 = vmatprep.mubr.bf16.mxu0 0
    %5166 = vmatmul.mubr.bf16.gmra.mxu0 %v5115
    %v5167 = vpop.f32.mrf.mxu0
    %v5168 = vadd.f32 0.0, %v5167
    %v5169 = vpop.f32.mrf.mxu0
    %v5170 = vadd.f32 0.0, %v5169
    %v5171 = vpop.f32.mrf.mxu0
    %v5172 = vadd.f32 0.0, %v5171
    %v5173 = vpop.f32.mrf.mxu0
    %v5174 = vadd.f32 0.0, %v5173
    %5175 = vdwg.mxu0
    %5176 = vmatprep.subr.bf16.mxu0 %v4804
    %5177 = vmatpush1.bf16.msra.mxu0 %v4803
    %5178 = vmatprep.subr.bf16.mxu0 %v4800
    %5179 = vmatpush1.bf16.msra.mxu0 %v4799
    %5180 = vmatprep.subr.bf16.mxu0 %v4796
    %5181 = vmatpush1.bf16.msra.mxu0 %v4795
    %5182 = vmatprep.subr.bf16.mxu0 %v4792
    %5183 = vmatpush1.bf16.msra.mxu0 %v4791
    %5184 = vmatprep.subr.bf16.mxu0 %v4788
    %5185 = vmatpush1.bf16.msra.mxu0 %v4787
    %5186 = vmatprep.subr.bf16.mxu0 %v4784
    %5187 = vmatpush1.bf16.msra.mxu0 %v4783
    %5188 = vmatprep.subr.bf16.mxu0 %v4780
    %5189 = vmatpush1.bf16.msra.mxu0 %v4779
    %5190 = vmatprep.subr.bf16.mxu0 %v4776
    %5191 = vmatpush1.bf16.msra.mxu0 %v4775
    %5192 = vmatprep.subr.bf16.mxu0 0
    %5193 = vmatpush2.bf16.msra.mxu0 0
    %5194 = vmatprep.subr.bf16.mxu0 0
    %5195 = vmatpush2.bf16.msra.mxu0 0
    %5196 = vmatprep.subr.bf16.mxu0 0
    %5197 = vmatpush2.bf16.msra.mxu0 0
    %5198 = vmatprep.subr.bf16.mxu0 0
    %5199 = vmatpush2.bf16.msra.mxu0 0
    %5200 = vmatprep.subr.bf16.mxu0 0
    %5201 = vmatpush2.bf16.msra.mxu0 0
    %5202 = vmatprep.subr.bf16.mxu0 0
    %5203 = vmatpush2.bf16.msra.mxu0 0
    %5204 = vmatprep.subr.bf16.mxu0 0
    %5205 = vmatpush2.bf16.msra.mxu0 0
    %5206 = vmatprep.subr.bf16.mxu0 0
    %5207 = vmatpush2.bf16.msra.mxu0 0
    %5208 = vmatprep.mubr.bf16.mxu0 0
    %5209 = vmatmul.mubr.bf16.gmra.mxu0 %v5115
    %v5210 = vpop.f32.mrf.mxu0
    %v5211 = vadd.f32 0.0, %v5210
    %v5212 = vpop.f32.mrf.mxu0
    %v5213 = vadd.f32 0.0, %v5212
    %v5214 = vpop.f32.mrf.mxu0
    %v5215 = vadd.f32 0.0, %v5214
    %v5216 = vpop.f32.mrf.mxu0
    %v5217 = vadd.f32 0.0, %v5216
    %5218 = vdwg.mxu0
    %v5219 = vadd.f32 %v5125, %v5168
    %v5220 = vadd.f32 %v5126, %v5170
    %v5221 = vadd.f32 %v5127, %v5211
    %v5222 = vadd.f32 %v5128, %v5213
    %v5223 = vadd.f32 %v5129, %v5172
    %v5224 = vadd.f32 %v5130, %v5174
    %v5225 = vadd.f32 %v5131, %v5215
    %v5226 = vadd.f32 %v5132, %v5217
    %v5227 = vmul.f32 %v5219, 0.5
    %v5228 = vmul.f32 %v5223, 0.5
    %v5229 = vtanh.pop %v5227
    %v5230 = vtanh.pop %v5228
    %v5231 = vmul.f32 %v5229, 0.5
    %v5232 = vmul.f32 %v5230, 0.5
    %v5233 = vadd.f32 %v5231, 0.5
    %v5234 = vadd.f32 %v5232, 0.5
    %v5235 = vmul.f32 %v5220, 0.5
    %v5236 = vmul.f32 %v5224, 0.5
    %v5237 = vtanh.pop %v5235
    %v5238 = vtanh.pop %v5236
    %v5239 = vmul.f32 %v5237, 0.5
    %v5240 = vmul.f32 %v5238, 0.5
    %v5241 = vadd.f32 %v5239, 0.5
    %v5242 = vadd.f32 %v5240, 0.5
    %v5243 = vtanh.pop %v5221
    %v5244 = vtanh.pop %v5225
    %v5245 = vmul.f32 %v5222, 0.5
    %v5246 = vmul.f32 %v5226, 0.5
    %v5247 = vtanh.pop %v5245
    %v5248 = vtanh.pop %v5246
    %v5249 = vmul.f32 %v5247, 0.5
    %v5250 = vmul.f32 %v5248, 0.5
    %v5251 = vadd.f32 %v5249, 0.5
    %v5252 = vadd.f32 %v5250, 0.5
    %v5253 = vmul.f32 %v5241, %v5109
    %v5254 = vmul.f32 %v5242, %v5110
    %v5255 = vmul.f32 %v5233, %v5243
    %v5256 = vmul.f32 %v5234, %v5244
    %v5257 = vadd.f32 %v5253, %v5255
    %v5258 = vadd.f32 %v5254, %v5256
    %v5259 = vtanh.pop %v5257
    %v5260 = vtanh.pop %v5258
    %v5261 = vmul.f32 %v5251, %v5259
    %v5262 = vmul.f32 %v5252, %v5260
    %v5263 = vpack.c.bf16 %v5262, %v5261
    %v5265 = vunpack.c.l.b16 %v5263
    %v5266 = vunpack.c.h.b16 %v5263
    %v5267 = vpack.c.b16 %v5265, %v5265
    %v5268 = vpack.c.b16 %v5266, %v5266
    %5271 = vst [vmem:[%s1353] sm:$0xf] %v5267
    %5272 = vst [vmem:[%s1353 + $0x4] sm:$0xf] %v5268
    %v5273 = vld [vmem:[%s1356] sm:$0xff]
    %v5274 = vld [vmem:[%s1356 + $0x8] sm:$0xff]
    %v5275 = vld [vmem:[%s1356 + $0x10] sm:$0xff]
    %v5276 = vld [vmem:[%s1356 + $0x18] sm:$0xff]
    %v5277 = vld [vmem:[%s1356 + $0x20] sm:$0xff]
    %v5278 = vld [vmem:[%s1356 + $0x28] sm:$0xff]
    %v5279 = vld [vmem:[%s1356 + $0x30] sm:$0xff]
    %v5280 = vld [vmem:[%s1356 + $0x38] sm:$0xff]
    %5281 = vmatprep.subr.bf16.mxu0 %v4802
    %5282 = vmatpush1.bf16.msra.mxu0 %v4801
    %5283 = vmatprep.subr.bf16.mxu0 %v4798
    %5284 = vmatpush1.bf16.msra.mxu0 %v4797
    %5285 = vmatprep.subr.bf16.mxu0 %v4794
    %5286 = vmatpush1.bf16.msra.mxu0 %v4793
    %5287 = vmatprep.subr.bf16.mxu0 %v4790
    %5288 = vmatpush1.bf16.msra.mxu0 %v4789
    %5289 = vmatprep.subr.bf16.mxu0 %v4786
    %5290 = vmatpush1.bf16.msra.mxu0 %v4785
    %5291 = vmatprep.subr.bf16.mxu0 %v4782
    %5292 = vmatpush1.bf16.msra.mxu0 %v4781
    %5293 = vmatprep.subr.bf16.mxu0 %v4778
    %5294 = vmatpush1.bf16.msra.mxu0 %v4777
    %5295 = vmatprep.subr.bf16.mxu0 %v4774
    %5296 = vmatpush1.bf16.msra.mxu0 %v4773
    %5297 = vmatprep.subr.bf16.mxu0 0
    %5298 = vmatpush2.bf16.msra.mxu0 0
    %5299 = vmatprep.subr.bf16.mxu0 0
    %5300 = vmatpush2.bf16.msra.mxu0 0
    %5301 = vmatprep.subr.bf16.mxu0 0
    %5302 = vmatpush2.bf16.msra.mxu0 0
    %5303 = vmatprep.subr.bf16.mxu0 0
    %5304 = vmatpush2.bf16.msra.mxu0 0
    %5305 = vmatprep.subr.bf16.mxu0 0
    %5306 = vmatpush2.bf16.msra.mxu0 0
    %5307 = vmatprep.subr.bf16.mxu0 0
    %5308 = vmatpush2.bf16.msra.mxu0 0
    %5309 = vmatprep.subr.bf16.mxu0 0
    %5310 = vmatpush2.bf16.msra.mxu0 0
    %5311 = vmatprep.subr.bf16.mxu0 0
    %5312 = vmatpush2.bf16.msra.mxu0 0
    %5313 = vmatprep.mubr.bf16.mxu0 0
    %5314 = vmatmul.mubr.bf16.gmra.mxu0 %v5263
    %v5315 = vpop.f32.mrf.mxu0
    %v5316 = vadd.f32 0.0, %v5315
    %v5317 = vpop.f32.mrf.mxu0
    %v5318 = vadd.f32 0.0, %v5317
    %v5319 = vpop.f32.mrf.mxu0
    %v5320 = vadd.f32 0.0, %v5319
    %v5321 = vpop.f32.mrf.mxu0
    %v5322 = vadd.f32 0.0, %v5321
    %5323 = vdwg.mxu0
    %5324 = vmatprep.subr.bf16.mxu0 %v4804
    %5325 = vmatpush1.bf16.msra.mxu0 %v4803
    %5326 = vmatprep.subr.bf16.mxu0 %v4800
    %5327 = vmatpush1.bf16.msra.mxu0 %v4799
    %5328 = vmatprep.subr.bf16.mxu0 %v4796
    %5329 = vmatpush1.bf16.msra.mxu0 %v4795
    %5330 = vmatprep.subr.bf16.mxu0 %v4792
    %5331 = vmatpush1.bf16.msra.mxu0 %v4791
    %5332 = vmatprep.subr.bf16.mxu0 %v4788
    %5333 = vmatpush1.bf16.msra.mxu0 %v4787
    %5334 = vmatprep.subr.bf16.mxu0 %v4784
    %5335 = vmatpush1.bf16.msra.mxu0 %v4783
    %5336 = vmatprep.subr.bf16.mxu0 %v4780
    %5337 = vmatpush1.bf16.msra.mxu0 %v4779
    %5338 = vmatprep.subr.bf16.mxu0 %v4776
    %5339 = vmatpush1.bf16.msra.mxu0 %v4775
    %5340 = vmatprep.subr.bf16.mxu0 0
    %5341 = vmatpush2.bf16.msra.mxu0 0
    %5342 = vmatprep.subr.bf16.mxu0 0
    %5343 = vmatpush2.bf16.msra.mxu0 0
    %5344 = vmatprep.subr.bf16.mxu0 0
    %5345 = vmatpush2.bf16.msra.mxu0 0
    %5346 = vmatprep.subr.bf16.mxu0 0
    %5347 = vmatpush2.bf16.msra.mxu0 0
    %5348 = vmatprep.subr.bf16.mxu0 0
    %5349 = vmatpush2.bf16.msra.mxu0 0
    %5350 = vmatprep.subr.bf16.mxu0 0
    %5351 = vmatpush2.bf16.msra.mxu0 0
    %5352 = vmatprep.subr.bf16.mxu0 0
    %5353 = vmatpush2.bf16.msra.mxu0 0
    %5354 = vmatprep.subr.bf16.mxu0 0
    %5355 = vmatpush2.bf16.msra.mxu0 0
    %5356 = vmatprep.mubr.bf16.mxu0 0
    %5357 = vmatmul.mubr.bf16.gmra.mxu0 %v5263
    %v5358 = vpop.f32.mrf.mxu0
    %v5359 = vadd.f32 0.0, %v5358
    %v5360 = vpop.f32.mrf.mxu0
    %v5361 = vadd.f32 0.0, %v5360
    %v5362 = vpop.f32.mrf.mxu0
    %v5363 = vadd.f32 0.0, %v5362
    %v5364 = vpop.f32.mrf.mxu0
    %v5365 = vadd.f32 0.0, %v5364
    %5366 = vdwg.mxu0
    %v5367 = vadd.f32 %v5273, %v5316
    %v5368 = vadd.f32 %v5274, %v5318
    %v5369 = vadd.f32 %v5275, %v5359
    %v5370 = vadd.f32 %v5276, %v5361
    %v5371 = vadd.f32 %v5277, %v5320
    %v5372 = vadd.f32 %v5278, %v5322
    %v5373 = vadd.f32 %v5279, %v5363
    %v5374 = vadd.f32 %v5280, %v5365
    %v5375 = vmul.f32 %v5367, 0.5
    %v5376 = vmul.f32 %v5371, 0.5
    %v5377 = vtanh.pop %v5375
    %v5378 = vtanh.pop %v5376
    %v5379 = vmul.f32 %v5377, 0.5
    %v5380 = vmul.f32 %v5378, 0.5
    %v5381 = vadd.f32 %v5379, 0.5
    %v5382 = vadd.f32 %v5380, 0.5
    %v5383 = vmul.f32 %v5368, 0.5
    %v5384 = vmul.f32 %v5372, 0.5
    %v5385 = vtanh.pop %v5383
    %v5386 = vtanh.pop %v5384
    %v5387 = vmul.f32 %v5385, 0.5
    %v5388 = vmul.f32 %v5386, 0.5
    %v5389 = vadd.f32 %v5387, 0.5
    %v5390 = vadd.f32 %v5388, 0.5
    %v5391 = vtanh.pop %v5369
    %v5392 = vtanh.pop %v5373
    %v5393 = vmul.f32 %v5370, 0.5
    %v5394 = vmul.f32 %v5374, 0.5
    %v5395 = vtanh.pop %v5393
    %v5396 = vtanh.pop %v5394
    %v5397 = vmul.f32 %v5395, 0.5
    %v5398 = vmul.f32 %v5396, 0.5
    %v5399 = vadd.f32 %v5397, 0.5
    %v5400 = vadd.f32 %v5398, 0.5
    %v5401 = vmul.f32 %v5389, %v5257
    %v5402 = vmul.f32 %v5390, %v5258
    %v5403 = vmul.f32 %v5381, %v5391
    %v5404 = vmul.f32 %v5382, %v5392
    %v5405 = vadd.f32 %v5401, %v5403
    %v5406 = vadd.f32 %v5402, %v5404
    %v5407 = vtanh.pop %v5405
    %v5408 = vtanh.pop %v5406
    %v5409 = vmul.f32 %v5399, %v5407
    %v5410 = vmul.f32 %v5400, %v5408
    %v5411 = vpack.c.bf16 %v5410, %v5409
    %v5413 = vunpack.c.l.b16 %v5411
    %v5414 = vunpack.c.h.b16 %v5411
    %v5415 = vpack.c.b16 %v5413, %v5413
    %v5416 = vpack.c.b16 %v5414, %v5414
    %5419 = vst [vmem:[%s1503] sm:$0xf] %v5415
    %5420 = vst [vmem:[%s1503 + $0x4] sm:$0xf] %v5416
    %v5421 = vld [vmem:[%s1506] sm:$0xff]
    %v5422 = vld [vmem:[%s1506 + $0x8] sm:$0xff]
    %v5423 = vld [vmem:[%s1506 + $0x10] sm:$0xff]
    %v5424 = vld [vmem:[%s1506 + $0x18] sm:$0xff]
    %v5425 = vld [vmem:[%s1506 + $0x20] sm:$0xff]
    %v5426 = vld [vmem:[%s1506 + $0x28] sm:$0xff]
    %v5427 = vld [vmem:[%s1506 + $0x30] sm:$0xff]
    %v5428 = vld [vmem:[%s1506 + $0x38] sm:$0xff]
    %5429 = vmatprep.subr.bf16.mxu0 %v4802
    %5430 = vmatpush1.bf16.msra.mxu0 %v4801
    %5431 = vmatprep.subr.bf16.mxu0 %v4798
    %5432 = vmatpush1.bf16.msra.mxu0 %v4797
    %5433 = vmatprep.subr.bf16.mxu0 %v4794
    %5434 = vmatpush1.bf16.msra.mxu0 %v4793
    %5435 = vmatprep.subr.bf16.mxu0 %v4790
    %5436 = vmatpush1.bf16.msra.mxu0 %v4789
    %5437 = vmatprep.subr.bf16.mxu0 %v4786
    %5438 = vmatpush1.bf16.msra.mxu0 %v4785
    %5439 = vmatprep.subr.bf16.mxu0 %v4782
    %5440 = vmatpush1.bf16.msra.mxu0 %v4781
    %5441 = vmatprep.subr.bf16.mxu0 %v4778
    %5442 = vmatpush1.bf16.msra.mxu0 %v4777
    %5443 = vmatprep.subr.bf16.mxu0 %v4774
    %5444 = vmatpush1.bf16.msra.mxu0 %v4773
    %5445 = vmatprep.subr.bf16.mxu0 0
    %5446 = vmatpush2.bf16.msra.mxu0 0
    %5447 = vmatprep.subr.bf16.mxu0 0
    %5448 = vmatpush2.bf16.msra.mxu0 0
    %5449 = vmatprep.subr.bf16.mxu0 0
    %5450 = vmatpush2.bf16.msra.mxu0 0
    %5451 = vmatprep.subr.bf16.mxu0 0
    %5452 = vmatpush2.bf16.msra.mxu0 0
    %5453 = vmatprep.subr.bf16.mxu0 0
    %5454 = vmatpush2.bf16.msra.mxu0 0
    %5455 = vmatprep.subr.bf16.mxu0 0
    %5456 = vmatpush2.bf16.msra.mxu0 0
    %5457 = vmatprep.subr.bf16.mxu0 0
    %5458 = vmatpush2.bf16.msra.mxu0 0
    %5459 = vmatprep.subr.bf16.mxu0 0
    %5460 = vmatpush2.bf16.msra.mxu0 0
    %5461 = vmatprep.mubr.bf16.mxu0 0
    %5462 = vmatmul.mubr.bf16.gmra.mxu0 %v5411
    %v5463 = vpop.f32.mrf.mxu0
    %v5464 = vadd.f32 0.0, %v5463
    %v5465 = vpop.f32.mrf.mxu0
    %v5466 = vadd.f32 0.0, %v5465
    %v5467 = vpop.f32.mrf.mxu0
    %v5468 = vadd.f32 0.0, %v5467
    %v5469 = vpop.f32.mrf.mxu0
    %v5470 = vadd.f32 0.0, %v5469
    %5471 = vdwg.mxu0
    %5472 = vmatprep.subr.bf16.mxu0 %v4804
    %5473 = vmatpush1.bf16.msra.mxu0 %v4803
    %5474 = vmatprep.subr.bf16.mxu0 %v4800
    %5475 = vmatpush1.bf16.msra.mxu0 %v4799
    %5476 = vmatprep.subr.bf16.mxu0 %v4796
    %5477 = vmatpush1.bf16.msra.mxu0 %v4795
    %5478 = vmatprep.subr.bf16.mxu0 %v4792
    %5479 = vmatpush1.bf16.msra.mxu0 %v4791
    %5480 = vmatprep.subr.bf16.mxu0 %v4788
    %5481 = vmatpush1.bf16.msra.mxu0 %v4787
    %5482 = vmatprep.subr.bf16.mxu0 %v4784
    %5483 = vmatpush1.bf16.msra.mxu0 %v4783
    %5484 = vmatprep.subr.bf16.mxu0 %v4780
    %5485 = vmatpush1.bf16.msra.mxu0 %v4779
    %5486 = vmatprep.subr.bf16.mxu0 %v4776
    %5487 = vmatpush1.bf16.msra.mxu0 %v4775
    %5488 = vmatprep.subr.bf16.mxu0 0
    %5489 = vmatpush2.bf16.msra.mxu0 0
    %5490 = vmatprep.subr.bf16.mxu0 0
    %5491 = vmatpush2.bf16.msra.mxu0 0
    %5492 = vmatprep.subr.bf16.mxu0 0
    %5493 = vmatpush2.bf16.msra.mxu0 0
    %5494 = vmatprep.subr.bf16.mxu0 0
    %5495 = vmatpush2.bf16.msra.mxu0 0
    %5496 = vmatprep.subr.bf16.mxu0 0
    %5497 = vmatpush2.bf16.msra.mxu0 0
    %5498 = vmatprep.subr.bf16.mxu0 0
    %5499 = vmatpush2.bf16.msra.mxu0 0
    %5500 = vmatprep.subr.bf16.mxu0 0
    %5501 = vmatpush2.bf16.msra.mxu0 0
    %5502 = vmatprep.subr.bf16.mxu0 0
    %5503 = vmatpush2.bf16.msra.mxu0 0
    %5504 = vmatprep.mubr.bf16.mxu0 0
    %5505 = vmatmul.mubr.bf16.gmra.mxu0 %v5411
    %v5506 = vpop.f32.mrf.mxu0
    %v5507 = vadd.f32 0.0, %v5506
    %v5508 = vpop.f32.mrf.mxu0
    %v5509 = vadd.f32 0.0, %v5508
    %v5510 = vpop.f32.mrf.mxu0
    %v5511 = vadd.f32 0.0, %v5510
    %v5512 = vpop.f32.mrf.mxu0
    %v5513 = vadd.f32 0.0, %v5512
    %5514 = vdwg.mxu0
    %v5515 = vadd.f32 %v5421, %v5464
    %v5516 = vadd.f32 %v5422, %v5466
    %v5517 = vadd.f32 %v5423, %v5507
    %v5518 = vadd.f32 %v5424, %v5509
    %v5519 = vadd.f32 %v5425, %v5468
    %v5520 = vadd.f32 %v5426, %v5470
    %v5521 = vadd.f32 %v5427, %v5511
    %v5522 = vadd.f32 %v5428, %v5513
    %v5523 = vmul.f32 %v5515, 0.5
    %v5524 = vmul.f32 %v5519, 0.5
    %v5525 = vtanh.pop %v5523
    %v5526 = vtanh.pop %v5524
    %v5527 = vmul.f32 %v5525, 0.5
    %v5528 = vmul.f32 %v5526, 0.5
    %v5529 = vadd.f32 %v5527, 0.5
    %v5530 = vadd.f32 %v5528, 0.5
    %v5531 = vmul.f32 %v5516, 0.5
    %v5532 = vmul.f32 %v5520, 0.5
    %v5533 = vtanh.pop %v5531
    %v5534 = vtanh.pop %v5532
    %v5535 = vmul.f32 %v5533, 0.5
    %v5536 = vmul.f32 %v5534, 0.5
    %v5537 = vadd.f32 %v5535, 0.5
    %v5538 = vadd.f32 %v5536, 0.5
    %v5539 = vtanh.pop %v5517
    %v5540 = vtanh.pop %v5521
    %v5541 = vmul.f32 %v5518, 0.5
    %v5542 = vmul.f32 %v5522, 0.5
    %v5543 = vtanh.pop %v5541
    %v5544 = vtanh.pop %v5542
    %v5545 = vmul.f32 %v5543, 0.5
    %v5546 = vmul.f32 %v5544, 0.5
    %v5547 = vadd.f32 %v5545, 0.5
    %v5548 = vadd.f32 %v5546, 0.5
    %v5549 = vmul.f32 %v5537, %v5405
    %v5550 = vmul.f32 %v5538, %v5406
    %v5551 = vmul.f32 %v5529, %v5539
    %v5552 = vmul.f32 %v5530, %v5540
    %v5553 = vadd.f32 %v5549, %v5551
    %v5554 = vadd.f32 %v5550, %v5552
    %v5555 = vtanh.pop %v5553
    %v5556 = vtanh.pop %v5554
    %v5557 = vmul.f32 %v5547, %v5555
    %v5558 = vmul.f32 %v5548, %v5556
    %v5559 = vpack.c.bf16 %v5558, %v5557
    %v5561 = vunpack.c.l.b16 %v5559
    %v5562 = vunpack.c.h.b16 %v5559
    %v5563 = vpack.c.b16 %v5561, %v5561
    %v5564 = vpack.c.b16 %v5562, %v5562
    %5567 = vst [vmem:[%s1653] sm:$0xf] %v5563
    %5568 = vst [vmem:[%s1653 + $0x4] sm:$0xf] %v5564
    %v5569 = vld [vmem:[%s1656] sm:$0xff]
    %v5570 = vld [vmem:[%s1656 + $0x8] sm:$0xff]
    %v5571 = vld [vmem:[%s1656 + $0x10] sm:$0xff]
    %v5572 = vld [vmem:[%s1656 + $0x18] sm:$0xff]
    %v5573 = vld [vmem:[%s1656 + $0x20] sm:$0xff]
    %v5574 = vld [vmem:[%s1656 + $0x28] sm:$0xff]
    %v5575 = vld [vmem:[%s1656 + $0x30] sm:$0xff]
    %v5576 = vld [vmem:[%s1656 + $0x38] sm:$0xff]
    %5577 = vmatprep.subr.bf16.mxu0 %v4802
    %5578 = vmatpush1.bf16.msra.mxu0 %v4801
    %5579 = vmatprep.subr.bf16.mxu0 %v4798
    %5580 = vmatpush1.bf16.msra.mxu0 %v4797
    %5581 = vmatprep.subr.bf16.mxu0 %v4794
    %5582 = vmatpush1.bf16.msra.mxu0 %v4793
    %5583 = vmatprep.subr.bf16.mxu0 %v4790
    %5584 = vmatpush1.bf16.msra.mxu0 %v4789
    %5585 = vmatprep.subr.bf16.mxu0 %v4786
    %5586 = vmatpush1.bf16.msra.mxu0 %v4785
    %5587 = vmatprep.subr.bf16.mxu0 %v4782
    %5588 = vmatpush1.bf16.msra.mxu0 %v4781
    %5589 = vmatprep.subr.bf16.mxu0 %v4778
    %5590 = vmatpush1.bf16.msra.mxu0 %v4777
    %5591 = vmatprep.subr.bf16.mxu0 %v4774
    %5592 = vmatpush1.bf16.msra.mxu0 %v4773
    %5593 = vmatprep.subr.bf16.mxu0 0
    %5594 = vmatpush2.bf16.msra.mxu0 0
    %5595 = vmatprep.subr.bf16.mxu0 0
    %5596 = vmatpush2.bf16.msra.mxu0 0
    %5597 = vmatprep.subr.bf16.mxu0 0
    %5598 = vmatpush2.bf16.msra.mxu0 0
    %5599 = vmatprep.subr.bf16.mxu0 0
    %5600 = vmatpush2.bf16.msra.mxu0 0
    %5601 = vmatprep.subr.bf16.mxu0 0
    %5602 = vmatpush2.bf16.msra.mxu0 0
    %5603 = vmatprep.subr.bf16.mxu0 0
    %5604 = vmatpush2.bf16.msra.mxu0 0
    %5605 = vmatprep.subr.bf16.mxu0 0
    %5606 = vmatpush2.bf16.msra.mxu0 0
    %5607 = vmatprep.subr.bf16.mxu0 0
    %5608 = vmatpush2.bf16.msra.mxu0 0
    %5609 = vmatprep.mubr.bf16.mxu0 0
    %5610 = vmatmul.mubr.bf16.gmra.mxu0 %v5559
    %v5611 = vpop.f32.mrf.mxu0
    %v5612 = vadd.f32 0.0, %v5611
    %v5613 = vpop.f32.mrf.mxu0
    %v5614 = vadd.f32 0.0, %v5613
    %v5615 = vpop.f32.mrf.mxu0
    %v5616 = vadd.f32 0.0, %v5615
    %v5617 = vpop.f32.mrf.mxu0
    %v5618 = vadd.f32 0.0, %v5617
    %5619 = vdwg.mxu0
    %5620 = vmatprep.subr.bf16.mxu0 %v4804
    %5621 = vmatpush1.bf16.msra.mxu0 %v4803
    %5622 = vmatprep.subr.bf16.mxu0 %v4800
    %5623 = vmatpush1.bf16.msra.mxu0 %v4799
    %5624 = vmatprep.subr.bf16.mxu0 %v4796
    %5625 = vmatpush1.bf16.msra.mxu0 %v4795
    %5626 = vmatprep.subr.bf16.mxu0 %v4792
    %5627 = vmatpush1.bf16.msra.mxu0 %v4791
    %5628 = vmatprep.subr.bf16.mxu0 %v4788
    %5629 = vmatpush1.bf16.msra.mxu0 %v4787
    %5630 = vmatprep.subr.bf16.mxu0 %v4784
    %5631 = vmatpush1.bf16.msra.mxu0 %v4783
    %5632 = vmatprep.subr.bf16.mxu0 %v4780
    %5633 = vmatpush1.bf16.msra.mxu0 %v4779
    %5634 = vmatprep.subr.bf16.mxu0 %v4776
    %5635 = vmatpush1.bf16.msra.mxu0 %v4775
    %5636 = vmatprep.subr.bf16.mxu0 0
    %5637 = vmatpush2.bf16.msra.mxu0 0
    %5638 = vmatprep.subr.bf16.mxu0 0
    %5639 = vmatpush2.bf16.msra.mxu0 0
    %5640 = vmatprep.subr.bf16.mxu0 0
    %5641 = vmatpush2.bf16.msra.mxu0 0
    %5642 = vmatprep.subr.bf16.mxu0 0
    %5643 = vmatpush2.bf16.msra.mxu0 0
    %5644 = vmatprep.subr.bf16.mxu0 0
    %5645 = vmatpush2.bf16.msra.mxu0 0
    %5646 = vmatprep.subr.bf16.mxu0 0
    %5647 = vmatpush2.bf16.msra.mxu0 0
    %5648 = vmatprep.subr.bf16.mxu0 0
    %5649 = vmatpush2.bf16.msra.mxu0 0
    %5650 = vmatprep.subr.bf16.mxu0 0
    %5651 = vmatpush2.bf16.msra.mxu0 0
    %5652 = vmatprep.mubr.bf16.mxu0 0
    %5653 = vmatmul.mubr.bf16.gmra.mxu0 %v5559
    %v5654 = vpop.f32.mrf.mxu0
    %v5655 = vadd.f32 0.0, %v5654
    %v5656 = vpop.f32.mrf.mxu0
    %v5657 = vadd.f32 0.0, %v5656
    %v5658 = vpop.f32.mrf.mxu0
    %v5659 = vadd.f32 0.0, %v5658
    %v5660 = vpop.f32.mrf.mxu0
    %v5661 = vadd.f32 0.0, %v5660
    %5662 = vdwg.mxu0
    %v5663 = vadd.f32 %v5569, %v5612
    %v5664 = vadd.f32 %v5570, %v5614
    %v5665 = vadd.f32 %v5571, %v5655
    %v5666 = vadd.f32 %v5572, %v5657
    %v5667 = vadd.f32 %v5573, %v5616
    %v5668 = vadd.f32 %v5574, %v5618
    %v5669 = vadd.f32 %v5575, %v5659
    %v5670 = vadd.f32 %v5576, %v5661
    %v5671 = vmul.f32 %v5663, 0.5
    %v5672 = vmul.f32 %v5667, 0.5
    %v5673 = vtanh.pop %v5671
    %v5674 = vtanh.pop %v5672
    %v5675 = vmul.f32 %v5673, 0.5
    %v5676 = vmul.f32 %v5674, 0.5
    %v5677 = vadd.f32 %v5675, 0.5
    %v5678 = vadd.f32 %v5676, 0.5
    %v5679 = vmul.f32 %v5664, 0.5
    %v5680 = vmul.f32 %v5668, 0.5
    %v5681 = vtanh.pop %v5679
    %v5682 = vtanh.pop %v5680
    %v5683 = vmul.f32 %v5681, 0.5
    %v5684 = vmul.f32 %v5682, 0.5
    %v5685 = vadd.f32 %v5683, 0.5
    %v5686 = vadd.f32 %v5684, 0.5
    %v5687 = vtanh.pop %v5665
    %v5688 = vtanh.pop %v5669
    %v5689 = vmul.f32 %v5666, 0.5
    %v5690 = vmul.f32 %v5670, 0.5
    %v5691 = vtanh.pop %v5689
    %v5692 = vtanh.pop %v5690
    %v5693 = vmul.f32 %v5691, 0.5
    %v5694 = vmul.f32 %v5692, 0.5
    %v5695 = vadd.f32 %v5693, 0.5
    %v5696 = vadd.f32 %v5694, 0.5
    %v5697 = vmul.f32 %v5685, %v5553
    %v5698 = vmul.f32 %v5686, %v5554
    %v5699 = vmul.f32 %v5677, %v5687
    %v5700 = vmul.f32 %v5678, %v5688
    %v5701 = vadd.f32 %v5697, %v5699
    %v5702 = vadd.f32 %v5698, %v5700
    %v5703 = vtanh.pop %v5701
    %v5704 = vtanh.pop %v5702
    %v5705 = vmul.f32 %v5695, %v5703
    %v5706 = vmul.f32 %v5696, %v5704
    %v5707 = vpack.c.bf16 %v5706, %v5705
    %v5709 = vunpack.c.l.b16 %v5707
    %v5710 = vunpack.c.h.b16 %v5707
    %v5711 = vpack.c.b16 %v5709, %v5709
    %v5712 = vpack.c.b16 %v5710, %v5710
    %5715 = vst [vmem:[%s1803] sm:$0xf] %v5711
    %5716 = vst [vmem:[%s1803 + $0x4] sm:$0xf] %v5712
    %v5717 = vld [vmem:[%s1806] sm:$0xff]
    %v5718 = vld [vmem:[%s1806 + $0x8] sm:$0xff]
    %v5719 = vld [vmem:[%s1806 + $0x10] sm:$0xff]
    %v5720 = vld [vmem:[%s1806 + $0x18] sm:$0xff]
    %v5721 = vld [vmem:[%s1806 + $0x20] sm:$0xff]
    %v5722 = vld [vmem:[%s1806 + $0x28] sm:$0xff]
    %v5723 = vld [vmem:[%s1806 + $0x30] sm:$0xff]
    %v5724 = vld [vmem:[%s1806 + $0x38] sm:$0xff]
    %5725 = vmatprep.subr.bf16.mxu0 %v4802
    %5726 = vmatpush1.bf16.msra.mxu0 %v4801
    %5727 = vmatprep.subr.bf16.mxu0 %v4798
    %5728 = vmatpush1.bf16.msra.mxu0 %v4797
    %5729 = vmatprep.subr.bf16.mxu0 %v4794
    %5730 = vmatpush1.bf16.msra.mxu0 %v4793
    %5731 = vmatprep.subr.bf16.mxu0 %v4790
    %5732 = vmatpush1.bf16.msra.mxu0 %v4789
    %5733 = vmatprep.subr.bf16.mxu0 %v4786
    %5734 = vmatpush1.bf16.msra.mxu0 %v4785
    %5735 = vmatprep.subr.bf16.mxu0 %v4782
    %5736 = vmatpush1.bf16.msra.mxu0 %v4781
    %5737 = vmatprep.subr.bf16.mxu0 %v4778
    %5738 = vmatpush1.bf16.msra.mxu0 %v4777
    %5739 = vmatprep.subr.bf16.mxu0 %v4774
    %5740 = vmatpush1.bf16.msra.mxu0 %v4773
    %5741 = vmatprep.subr.bf16.mxu0 0
    %5742 = vmatpush2.bf16.msra.mxu0 0
    %5743 = vmatprep.subr.bf16.mxu0 0
    %5744 = vmatpush2.bf16.msra.mxu0 0
    %5745 = vmatprep.subr.bf16.mxu0 0
    %5746 = vmatpush2.bf16.msra.mxu0 0
    %5747 = vmatprep.subr.bf16.mxu0 0
    %5748 = vmatpush2.bf16.msra.mxu0 0
    %5749 = vmatprep.subr.bf16.mxu0 0
    %5750 = vmatpush2.bf16.msra.mxu0 0
    %5751 = vmatprep.subr.bf16.mxu0 0
    %5752 = vmatpush2.bf16.msra.mxu0 0
    %5753 = vmatprep.subr.bf16.mxu0 0
    %5754 = vmatpush2.bf16.msra.mxu0 0
    %5755 = vmatprep.subr.bf16.mxu0 0
    %5756 = vmatpush2.bf16.msra.mxu0 0
    %5757 = vmatprep.mubr.bf16.mxu0 0
    %5758 = vmatmul.mubr.bf16.gmra.mxu0 %v5707
    %v5759 = vpop.f32.mrf.mxu0
    %v5760 = vadd.f32 0.0, %v5759
    %v5761 = vpop.f32.mrf.mxu0
    %v5762 = vadd.f32 0.0, %v5761
    %v5763 = vpop.f32.mrf.mxu0
    %v5764 = vadd.f32 0.0, %v5763
    %v5765 = vpop.f32.mrf.mxu0
    %v5766 = vadd.f32 0.0, %v5765
    %5767 = vdwg.mxu0
    %5768 = vmatprep.subr.bf16.mxu0 %v4804
    %5769 = vmatpush1.bf16.msra.mxu0 %v4803
    %5770 = vmatprep.subr.bf16.mxu0 %v4800
    %5771 = vmatpush1.bf16.msra.mxu0 %v4799
    %5772 = vmatprep.subr.bf16.mxu0 %v4796
    %5773 = vmatpush1.bf16.msra.mxu0 %v4795
    %5774 = vmatprep.subr.bf16.mxu0 %v4792
    %5775 = vmatpush1.bf16.msra.mxu0 %v4791
    %5776 = vmatprep.subr.bf16.mxu0 %v4788
    %5777 = vmatpush1.bf16.msra.mxu0 %v4787
    %5778 = vmatprep.subr.bf16.mxu0 %v4784
    %5779 = vmatpush1.bf16.msra.mxu0 %v4783
    %5780 = vmatprep.subr.bf16.mxu0 %v4780
    %5781 = vmatpush1.bf16.msra.mxu0 %v4779
    %5782 = vmatprep.subr.bf16.mxu0 %v4776
    %5783 = vmatpush1.bf16.msra.mxu0 %v4775
    %5784 = vmatprep.subr.bf16.mxu0 0
    %5785 = vmatpush2.bf16.msra.mxu0 0
    %5786 = vmatprep.subr.bf16.mxu0 0
    %5787 = vmatpush2.bf16.msra.mxu0 0
    %5788 = vmatprep.subr.bf16.mxu0 0
    %5789 = vmatpush2.bf16.msra.mxu0 0
    %5790 = vmatprep.subr.bf16.mxu0 0
    %5791 = vmatpush2.bf16.msra.mxu0 0
    %5792 = vmatprep.subr.bf16.mxu0 0
    %5793 = vmatpush2.bf16.msra.mxu0 0
    %5794 = vmatprep.subr.bf16.mxu0 0
    %5795 = vmatpush2.bf16.msra.mxu0 0
    %5796 = vmatprep.subr.bf16.mxu0 0
    %5797 = vmatpush2.bf16.msra.mxu0 0
    %5798 = vmatprep.subr.bf16.mxu0 0
    %5799 = vmatpush2.bf16.msra.mxu0 0
    %5800 = vmatprep.mubr.bf16.mxu0 0
    %5801 = vmatmul.mubr.bf16.gmra.mxu0 %v5707
    %v5802 = vpop.f32.mrf.mxu0
    %v5803 = vadd.f32 0.0, %v5802
    %v5804 = vpop.f32.mrf.mxu0
    %v5805 = vadd.f32 0.0, %v5804
    %v5806 = vpop.f32.mrf.mxu0
    %v5807 = vadd.f32 0.0, %v5806
    %v5808 = vpop.f32.mrf.mxu0
    %v5809 = vadd.f32 0.0, %v5808
    %5810 = vdwg.mxu0
    %v5811 = vadd.f32 %v5717, %v5760
    %v5812 = vadd.f32 %v5718, %v5762
    %v5813 = vadd.f32 %v5719, %v5803
    %v5814 = vadd.f32 %v5720, %v5805
    %v5815 = vadd.f32 %v5721, %v5764
    %v5816 = vadd.f32 %v5722, %v5766
    %v5817 = vadd.f32 %v5723, %v5807
    %v5818 = vadd.f32 %v5724, %v5809
    %v5819 = vmul.f32 %v5811, 0.5
    %v5820 = vmul.f32 %v5815, 0.5
    %v5821 = vtanh.pop %v5819
    %v5822 = vtanh.pop %v5820
    %v5823 = vmul.f32 %v5821, 0.5
    %v5824 = vmul.f32 %v5822, 0.5
    %v5825 = vadd.f32 %v5823, 0.5
    %v5826 = vadd.f32 %v5824, 0.5
    %v5827 = vmul.f32 %v5812, 0.5
    %v5828 = vmul.f32 %v5816, 0.5
    %v5829 = vtanh.pop %v5827
    %v5830 = vtanh.pop %v5828
    %v5831 = vmul.f32 %v5829, 0.5
    %v5832 = vmul.f32 %v5830, 0.5
    %v5833 = vadd.f32 %v5831, 0.5
    %v5834 = vadd.f32 %v5832, 0.5
    %v5835 = vtanh.pop %v5813
    %v5836 = vtanh.pop %v5817
    %v5837 = vmul.f32 %v5814, 0.5
    %v5838 = vmul.f32 %v5818, 0.5
    %v5839 = vtanh.pop %v5837
    %v5840 = vtanh.pop %v5838
    %v5841 = vmul.f32 %v5839, 0.5
    %v5842 = vmul.f32 %v5840, 0.5
    %v5843 = vadd.f32 %v5841, 0.5
    %v5844 = vadd.f32 %v5842, 0.5
    %v5845 = vmul.f32 %v5833, %v5701
    %v5846 = vmul.f32 %v5834, %v5702
    %v5847 = vmul.f32 %v5825, %v5835
    %v5848 = vmul.f32 %v5826, %v5836
    %v5849 = vadd.f32 %v5845, %v5847
    %v5850 = vadd.f32 %v5846, %v5848
    %v5851 = vtanh.pop %v5849
    %v5852 = vtanh.pop %v5850
    %v5853 = vmul.f32 %v5843, %v5851
    %v5854 = vmul.f32 %v5844, %v5852
    %v5855 = vpack.c.bf16 %v5854, %v5853
    %v5857 = vunpack.c.l.b16 %v5855
    %v5858 = vunpack.c.h.b16 %v5855
    %v5859 = vpack.c.b16 %v5857, %v5857
    %v5860 = vpack.c.b16 %v5858, %v5858
    %5863 = vst [vmem:[%s1953] sm:$0xf] %v5859
    %5864 = vst [vmem:[%s1953 + $0x4] sm:$0xf] %v5860
    %v5865 = vld [vmem:[%s1956] sm:$0xff]
    %v5866 = vld [vmem:[%s1956 + $0x8] sm:$0xff]
    %v5867 = vld [vmem:[%s1956 + $0x10] sm:$0xff]
    %v5868 = vld [vmem:[%s1956 + $0x18] sm:$0xff]
    %v5869 = vld [vmem:[%s1956 + $0x20] sm:$0xff]
    %v5870 = vld [vmem:[%s1956 + $0x28] sm:$0xff]
    %v5871 = vld [vmem:[%s1956 + $0x30] sm:$0xff]
    %v5872 = vld [vmem:[%s1956 + $0x38] sm:$0xff]
    %5873 = vmatprep.subr.bf16.mxu0 %v4802
    %5874 = vmatpush1.bf16.msra.mxu0 %v4801
    %5875 = vmatprep.subr.bf16.mxu0 %v4798
    %5876 = vmatpush1.bf16.msra.mxu0 %v4797
    %5877 = vmatprep.subr.bf16.mxu0 %v4794
    %5878 = vmatpush1.bf16.msra.mxu0 %v4793
    %5879 = vmatprep.subr.bf16.mxu0 %v4790
    %5880 = vmatpush1.bf16.msra.mxu0 %v4789
    %5881 = vmatprep.subr.bf16.mxu0 %v4786
    %5882 = vmatpush1.bf16.msra.mxu0 %v4785
    %5883 = vmatprep.subr.bf16.mxu0 %v4782
    %5884 = vmatpush1.bf16.msra.mxu0 %v4781
    %5885 = vmatprep.subr.bf16.mxu0 %v4778
    %5886 = vmatpush1.bf16.msra.mxu0 %v4777
    %5887 = vmatprep.subr.bf16.mxu0 %v4774
    %5888 = vmatpush1.bf16.msra.mxu0 %v4773
    %5889 = vmatprep.subr.bf16.mxu0 0
    %5890 = vmatpush2.bf16.msra.mxu0 0
    %5891 = vmatprep.subr.bf16.mxu0 0
    %5892 = vmatpush2.bf16.msra.mxu0 0
    %5893 = vmatprep.subr.bf16.mxu0 0
    %5894 = vmatpush2.bf16.msra.mxu0 0
    %5895 = vmatprep.subr.bf16.mxu0 0
    %5896 = vmatpush2.bf16.msra.mxu0 0
    %5897 = vmatprep.subr.bf16.mxu0 0
    %5898 = vmatpush2.bf16.msra.mxu0 0
    %5899 = vmatprep.subr.bf16.mxu0 0
    %5900 = vmatpush2.bf16.msra.mxu0 0
    %5901 = vmatprep.subr.bf16.mxu0 0
    %5902 = vmatpush2.bf16.msra.mxu0 0
    %5903 = vmatprep.subr.bf16.mxu0 0
    %5904 = vmatpush2.bf16.msra.mxu0 0
    %5905 = vmatprep.mubr.bf16.mxu0 0
    %5906 = vmatmul.mubr.bf16.gmra.mxu0 %v5855
    %v5907 = vpop.f32.mrf.mxu0
    %v5908 = vadd.f32 0.0, %v5907
    %v5909 = vpop.f32.mrf.mxu0
    %v5910 = vadd.f32 0.0, %v5909
    %v5911 = vpop.f32.mrf.mxu0
    %v5912 = vadd.f32 0.0, %v5911
    %v5913 = vpop.f32.mrf.mxu0
    %v5914 = vadd.f32 0.0, %v5913
    %5915 = vdwg.mxu0
    %5916 = vmatprep.subr.bf16.mxu0 %v4804
    %5917 = vmatpush1.bf16.msra.mxu0 %v4803
    %5918 = vmatprep.subr.bf16.mxu0 %v4800
    %5919 = vmatpush1.bf16.msra.mxu0 %v4799
    %5920 = vmatprep.subr.bf16.mxu0 %v4796
    %5921 = vmatpush1.bf16.msra.mxu0 %v4795
    %5922 = vmatprep.subr.bf16.mxu0 %v4792
    %5923 = vmatpush1.bf16.msra.mxu0 %v4791
    %5924 = vmatprep.subr.bf16.mxu0 %v4788
    %5925 = vmatpush1.bf16.msra.mxu0 %v4787
    %5926 = vmatprep.subr.bf16.mxu0 %v4784
    %5927 = vmatpush1.bf16.msra.mxu0 %v4783
    %5928 = vmatprep.subr.bf16.mxu0 %v4780
    %5929 = vmatpush1.bf16.msra.mxu0 %v4779
    %5930 = vmatprep.subr.bf16.mxu0 %v4776
    %5931 = vmatpush1.bf16.msra.mxu0 %v4775
    %5932 = vmatprep.subr.bf16.mxu0 0
    %5933 = vmatpush2.bf16.msra.mxu0 0
    %5934 = vmatprep.subr.bf16.mxu0 0
    %5935 = vmatpush2.bf16.msra.mxu0 0
    %5936 = vmatprep.subr.bf16.mxu0 0
    %5937 = vmatpush2.bf16.msra.mxu0 0
    %5938 = vmatprep.subr.bf16.mxu0 0
    %5939 = vmatpush2.bf16.msra.mxu0 0
    %5940 = vmatprep.subr.bf16.mxu0 0
    %5941 = vmatpush2.bf16.msra.mxu0 0
    %5942 = vmatprep.subr.bf16.mxu0 0
    %5943 = vmatpush2.bf16.msra.mxu0 0
    %5944 = vmatprep.subr.bf16.mxu0 0
    %5945 = vmatpush2.bf16.msra.mxu0 0
    %5946 = vmatprep.subr.bf16.mxu0 0
    %5947 = vmatpush2.bf16.msra.mxu0 0
    %5948 = vmatprep.mubr.bf16.mxu0 0
    %5949 = vmatmul.mubr.bf16.gmra.mxu0 %v5855
    %v5950 = vpop.f32.mrf.mxu0
    %v5951 = vadd.f32 0.0, %v5950
    %v5952 = vpop.f32.mrf.mxu0
    %v5953 = vadd.f32 0.0, %v5952
    %v5954 = vpop.f32.mrf.mxu0
    %v5955 = vadd.f32 0.0, %v5954
    %v5956 = vpop.f32.mrf.mxu0
    %v5957 = vadd.f32 0.0, %v5956
    %5958 = vdwg.mxu0
    %v5959 = vadd.f32 %v5865, %v5908
    %v5960 = vadd.f32 %v5866, %v5910
    %v5961 = vadd.f32 %v5867, %v5951
    %v5962 = vadd.f32 %v5868, %v5953
    %v5963 = vadd.f32 %v5869, %v5912
    %v5964 = vadd.f32 %v5870, %v5914
    %v5965 = vadd.f32 %v5871, %v5955
    %v5966 = vadd.f32 %v5872, %v5957
    %v5967 = vmul.f32 %v5959, 0.5
    %v5968 = vmul.f32 %v5963, 0.5
    %v5969 = vtanh.pop %v5967
    %v5970 = vtanh.pop %v5968
    %v5971 = vmul.f32 %v5969, 0.5
    %v5972 = vmul.f32 %v5970, 0.5
    %v5973 = vadd.f32 %v5971, 0.5
    %v5974 = vadd.f32 %v5972, 0.5
    %v5975 = vmul.f32 %v5960, 0.5
    %v5976 = vmul.f32 %v5964, 0.5
    %v5977 = vtanh.pop %v5975
    %v5978 = vtanh.pop %v5976
    %v5979 = vmul.f32 %v5977, 0.5
    %v5980 = vmul.f32 %v5978, 0.5
    %v5981 = vadd.f32 %v5979, 0.5
    %v5982 = vadd.f32 %v5980, 0.5
    %v5983 = vtanh.pop %v5961
    %v5984 = vtanh.pop %v5965
    %v5985 = vmul.f32 %v5962, 0.5
    %v5986 = vmul.f32 %v5966, 0.5
    %v5987 = vtanh.pop %v5985
    %v5988 = vtanh.pop %v5986
    %v5989 = vmul.f32 %v5987, 0.5
    %v5990 = vmul.f32 %v5988, 0.5
    %v5991 = vadd.f32 %v5989, 0.5
    %v5992 = vadd.f32 %v5990, 0.5
    %v5993 = vmul.f32 %v5981, %v5849
    %v5994 = vmul.f32 %v5982, %v5850
    %v5995 = vmul.f32 %v5973, %v5983
    %v5996 = vmul.f32 %v5974, %v5984
    %v5997 = vadd.f32 %v5993, %v5995
    %v5998 = vadd.f32 %v5994, %v5996
    %v5999 = vtanh.pop %v5997
    %v6000 = vtanh.pop %v5998
    %v6001 = vmul.f32 %v5991, %v5999
    %v6002 = vmul.f32 %v5992, %v6000
    %v6003 = vpack.c.bf16 %v6002, %v6001
    %v6005 = vunpack.c.l.b16 %v6003
    %v6006 = vunpack.c.h.b16 %v6003
    %v6007 = vpack.c.b16 %v6005, %v6005
    %v6008 = vpack.c.b16 %v6006, %v6006
    %6011 = vst [vmem:[%s2103] sm:$0xf] %v6007
    %6012 = vst [vmem:[%s2103 + $0x4] sm:$0xf] %v6008
    %v6013 = vld [vmem:[#allocation2] sm:$0xf]
    %v6014 = vld [vmem:[#allocation2 + $0x4] sm:$0xf]
    %v6015 = vld [vmem:[#allocation2 + $0x8] sm:$0xf]
    %v6016 = vld [vmem:[#allocation2 + $0xc] sm:$0xf]
    %v6017 = vld [vmem:[#allocation2 + $0x10] sm:$0xf]
    %v6018 = vld [vmem:[#allocation2 + $0x14] sm:$0xf]
    %v6019 = vld [vmem:[#allocation2 + $0x18] sm:$0xf]
    %v6020 = vld [vmem:[#allocation2 + $0x1c] sm:$0xf]
    %v6021 = vld [vmem:[#allocation2 + $0x20] sm:$0xf]
    %v6022 = vld [vmem:[#allocation2 + $0x24] sm:$0xf]
    %v6023 = vld [vmem:[#allocation2 + $0x28] sm:$0xf]
    %v6024 = vld [vmem:[#allocation2 + $0x2c] sm:$0xf]
    %v6025 = vld [vmem:[#allocation2 + $0x30] sm:$0xf]
    %v6026 = vld [vmem:[#allocation2 + $0x34] sm:$0xf]
    %v6027 = vld [vmem:[#allocation2 + $0x38] sm:$0xf]
    %v6028 = vld [vmem:[#allocation2 + $0x3c] sm:$0xf]
    %s6029 = scalar_lea.vmem [#allocation9], 512
    %v6030 = vld [vmem:[%s6029] sm:$0xff]
    %v6031 = vld [vmem:[%s6029 + $0x8] sm:$0xff]
    %v6032 = vld [vmem:[%s6029 + $0x10] sm:$0xff]
    %v6033 = vld [vmem:[%s6029 + $0x18] sm:$0xff]
    %v6034 = vld [vmem:[%s6029 + $0x20] sm:$0xff]
    %v6035 = vld [vmem:[%s6029 + $0x28] sm:$0xff]
    %v6036 = vld [vmem:[%s6029 + $0x30] sm:$0xff]
    %v6037 = vld [vmem:[%s6029 + $0x38] sm:$0xff]
    %v6038 = vld [vmem:[%s6029 + $0x40] sm:$0xff]
    %v6039 = vld [vmem:[%s6029 + $0x48] sm:$0xff]
    %v6040 = vld [vmem:[%s6029 + $0x50] sm:$0xff]
    %v6041 = vld [vmem:[%s6029 + $0x58] sm:$0xff]
    %v6042 = vld [vmem:[%s6029 + $0x60] sm:$0xff]
    %v6043 = vld [vmem:[%s6029 + $0x68] sm:$0xff]
    %v6044 = vld [vmem:[%s6029 + $0x70] sm:$0xff]
    %v6045 = vld [vmem:[%s6029 + $0x78] sm:$0xff]
    %v6046 = vld [vmem:[%s6029 + $0x80] sm:$0xff]
    %v6047 = vld [vmem:[%s6029 + $0x88] sm:$0xff]
    %v6048 = vld [vmem:[%s6029 + $0x90] sm:$0xff]
    %v6049 = vld [vmem:[%s6029 + $0x98] sm:$0xff]
    %v6050 = vld [vmem:[%s6029 + $0xa0] sm:$0xff]
    %v6051 = vld [vmem:[%s6029 + $0xa8] sm:$0xff]
    %v6052 = vld [vmem:[%s6029 + $0xb0] sm:$0xff]
    %v6053 = vld [vmem:[%s6029 + $0xb8] sm:$0xff]
    %v6054 = vld [vmem:[%s6029 + $0xc0] sm:$0xff]
    %v6055 = vld [vmem:[%s6029 + $0xc8] sm:$0xff]
    %v6056 = vld [vmem:[%s6029 + $0xd0] sm:$0xff]
    %v6057 = vld [vmem:[%s6029 + $0xd8] sm:$0xff]
    %v6058 = vld [vmem:[%s6029 + $0xe0] sm:$0xff]
    %v6059 = vld [vmem:[%s6029 + $0xe8] sm:$0xff]
    %v6060 = vld [vmem:[%s6029 + $0xf0] sm:$0xff]
    %v6061 = vld [vmem:[%s6029 + $0xf8] sm:$0xff]
    %s6062 = scalar_lea.vmem [#allocation12], 12
    %v6063 = vld [vmem:[%s6062] sm:$0xf]
    %v6065 = vlaneseq
    %v6066 = vshrl.u32 %v6065, 7
    %v6067 = vsub.s32 0, %v6066
    %v6068 = vrot.slane %v6063, %v6067
    %v6069 = vlaneseq
    %v6070 = vshrl.u32 %v6069, 7
    %v6071 = vsub.s32 1, %v6070
    %v6072 = vrot.slane %v6063, %v6071
    %v6073 = vlaneseq
    %v6074 = vshrl.u32 %v6073, 7
    %v6075 = vsub.s32 2, %v6074
    %v6076 = vrot.slane %v6063, %v6075
    %v6077 = vlaneseq
    %v6078 = vshrl.u32 %v6077, 7
    %v6079 = vsub.s32 3, %v6078
    %v6080 = vrot.slane %v6063, %v6079
    %v6101 = vunpack.c.l.b16 %v6013
    %v6102 = vunpack.c.l.b16 %v6014
    %v6103 = vunpack.c.l.b16 %v6015
    %v6104 = vunpack.c.l.b16 %v6016
    %v6105 = vunpack.c.l.b16 %v6017
    %v6106 = vunpack.c.l.b16 %v6018
    %v6107 = vunpack.c.l.b16 %v6019
    %v6108 = vunpack.c.l.b16 %v6020
    %v6109 = vunpack.c.l.b16 %v6021
    %v6110 = vunpack.c.l.b16 %v6022
    %v6111 = vunpack.c.l.b16 %v6023
    %v6112 = vunpack.c.l.b16 %v6024
    %v6113 = vunpack.c.l.b16 %v6025
    %v6114 = vunpack.c.l.b16 %v6026
    %v6115 = vunpack.c.l.b16 %v6027
    %v6116 = vunpack.c.l.b16 %v6028
    %v6117 = vpack.c.b16 %v6102, %v6101
    %v6118 = vpack.c.b16 %v6104, %v6103
    %v6119 = vpack.c.b16 %v6106, %v6105
    %v6120 = vpack.c.b16 %v6108, %v6107
    %v6121 = vpack.c.b16 %v6110, %v6109
    %v6122 = vpack.c.b16 %v6112, %v6111
    %v6123 = vpack.c.b16 %v6114, %v6113
    %v6124 = vpack.c.b16 %v6116, %v6115
    %v6165 = vunpack.c.l.b16 %v6030
    %v6166 = vunpack.c.h.b16 %v6030
    %v6167 = vunpack.c.l.b16 %v6031
    %v6168 = vunpack.c.h.b16 %v6031
    %v6169 = vunpack.c.l.b16 %v6032
    %v6170 = vunpack.c.h.b16 %v6032
    %v6171 = vunpack.c.l.b16 %v6033
    %v6172 = vunpack.c.h.b16 %v6033
    %v6173 = vunpack.c.l.b16 %v6034
    %v6174 = vunpack.c.h.b16 %v6034
    %v6175 = vunpack.c.l.b16 %v6035
    %v6176 = vunpack.c.h.b16 %v6035
    %v6177 = vunpack.c.l.b16 %v6036
    %v6178 = vunpack.c.h.b16 %v6036
    %v6179 = vunpack.c.l.b16 %v6037
    %v6180 = vunpack.c.h.b16 %v6037
    %v6181 = vunpack.c.l.b16 %v6038
    %v6182 = vunpack.c.h.b16 %v6038
    %v6183 = vunpack.c.l.b16 %v6039
    %v6184 = vunpack.c.h.b16 %v6039
    %v6185 = vunpack.c.l.b16 %v6040
    %v6186 = vunpack.c.h.b16 %v6040
    %v6187 = vunpack.c.l.b16 %v6041
    %v6188 = vunpack.c.h.b16 %v6041
    %v6189 = vunpack.c.l.b16 %v6042
    %v6190 = vunpack.c.h.b16 %v6042
    %v6191 = vunpack.c.l.b16 %v6043
    %v6192 = vunpack.c.h.b16 %v6043
    %v6193 = vunpack.c.l.b16 %v6044
    %v6194 = vunpack.c.h.b16 %v6044
    %v6195 = vunpack.c.l.b16 %v6045
    %v6196 = vunpack.c.h.b16 %v6045
    %v6197 = vunpack.c.l.b16 %v6046
    %v6198 = vunpack.c.h.b16 %v6046
    %v6199 = vunpack.c.l.b16 %v6047
    %v6200 = vunpack.c.h.b16 %v6047
    %v6201 = vunpack.c.l.b16 %v6048
    %v6202 = vunpack.c.h.b16 %v6048
    %v6203 = vunpack.c.l.b16 %v6049
    %v6204 = vunpack.c.h.b16 %v6049
    %v6205 = vunpack.c.l.b16 %v6050
    %v6206 = vunpack.c.h.b16 %v6050
    %v6207 = vunpack.c.l.b16 %v6051
    %v6208 = vunpack.c.h.b16 %v6051
    %v6209 = vunpack.c.l.b16 %v6052
    %v6210 = vunpack.c.h.b16 %v6052
    %v6211 = vunpack.c.l.b16 %v6053
    %v6212 = vunpack.c.h.b16 %v6053
    %v6213 = vunpack.c.l.b16 %v6054
    %v6214 = vunpack.c.h.b16 %v6054
    %v6215 = vunpack.c.l.b16 %v6055
    %v6216 = vunpack.c.h.b16 %v6055
    %v6217 = vunpack.c.l.b16 %v6056
    %v6218 = vunpack.c.h.b16 %v6056
    %v6219 = vunpack.c.l.b16 %v6057
    %v6220 = vunpack.c.h.b16 %v6057
    %v6221 = vunpack.c.l.b16 %v6058
    %v6222 = vunpack.c.h.b16 %v6058
    %v6223 = vunpack.c.l.b16 %v6059
    %v6224 = vunpack.c.h.b16 %v6059
    %v6225 = vunpack.c.l.b16 %v6060
    %v6226 = vunpack.c.h.b16 %v6060
    %v6227 = vunpack.c.l.b16 %v6061
    %v6228 = vunpack.c.h.b16 %v6061
    %v6229 = vpack.c.b16 %v6169, %v6165
    %v6230 = vpack.c.b16 %v6170, %v6166
    %v6231 = vpack.c.b16 %v6171, %v6167
    %v6232 = vpack.c.b16 %v6172, %v6168
    %v6233 = vpack.c.b16 %v6177, %v6173
    %v6234 = vpack.c.b16 %v6178, %v6174
    %v6235 = vpack.c.b16 %v6179, %v6175
    %v6236 = vpack.c.b16 %v6180, %v6176
    %v6237 = vpack.c.b16 %v6185, %v6181
    %v6238 = vpack.c.b16 %v6186, %v6182
    %v6239 = vpack.c.b16 %v6187, %v6183
    %v6240 = vpack.c.b16 %v6188, %v6184
    %v6241 = vpack.c.b16 %v6193, %v6189
    %v6242 = vpack.c.b16 %v6194, %v6190
    %v6243 = vpack.c.b16 %v6195, %v6191
    %v6244 = vpack.c.b16 %v6196, %v6192
    %v6245 = vpack.c.b16 %v6201, %v6197
    %v6246 = vpack.c.b16 %v6202, %v6198
    %v6247 = vpack.c.b16 %v6203, %v6199
    %v6248 = vpack.c.b16 %v6204, %v6200
    %v6249 = vpack.c.b16 %v6209, %v6205
    %v6250 = vpack.c.b16 %v6210, %v6206
    %v6251 = vpack.c.b16 %v6211, %v6207
    %v6252 = vpack.c.b16 %v6212, %v6208
    %v6253 = vpack.c.b16 %v6217, %v6213
    %v6254 = vpack.c.b16 %v6218, %v6214
    %v6255 = vpack.c.b16 %v6219, %v6215
    %v6256 = vpack.c.b16 %v6220, %v6216
    %v6257 = vpack.c.b16 %v6225, %v6221
    %v6258 = vpack.c.b16 %v6226, %v6222
    %v6259 = vpack.c.b16 %v6227, %v6223
    %v6260 = vpack.c.b16 %v6228, %v6224
    %6293 = vmatprep.subr.bf16.mxu0 %v6258
    %6294 = vmatpush1.bf16.msra.mxu0 %v6257
    %6295 = vmatprep.subr.bf16.mxu0 %v6254
    %6296 = vmatpush1.bf16.msra.mxu0 %v6253
    %6297 = vmatprep.subr.bf16.mxu0 %v6250
    %6298 = vmatpush1.bf16.msra.mxu0 %v6249
    %6299 = vmatprep.subr.bf16.mxu0 %v6246
    %6300 = vmatpush1.bf16.msra.mxu0 %v6245
    %6301 = vmatprep.subr.bf16.mxu0 %v6242
    %6302 = vmatpush1.bf16.msra.mxu0 %v6241
    %6303 = vmatprep.subr.bf16.mxu0 %v6238
    %6304 = vmatpush1.bf16.msra.mxu0 %v6237
    %6305 = vmatprep.subr.bf16.mxu0 %v6234
    %6306 = vmatpush1.bf16.msra.mxu0 %v6233
    %6307 = vmatprep.subr.bf16.mxu0 %v6230
    %6308 = vmatpush1.bf16.msra.mxu0 %v6229
    %6309 = vmatprep.subr.bf16.mxu0 0
    %6310 = vmatpush2.bf16.msra.mxu0 0
    %6311 = vmatprep.subr.bf16.mxu0 0
    %6312 = vmatpush2.bf16.msra.mxu0 0
    %6313 = vmatprep.subr.bf16.mxu0 0
    %6314 = vmatpush2.bf16.msra.mxu0 0
    %6315 = vmatprep.subr.bf16.mxu0 0
    %6316 = vmatpush2.bf16.msra.mxu0 0
    %6317 = vmatprep.subr.bf16.mxu0 0
    %6318 = vmatpush2.bf16.msra.mxu0 0
    %6319 = vmatprep.subr.bf16.mxu0 0
    %6320 = vmatpush2.bf16.msra.mxu0 0
    %6321 = vmatprep.subr.bf16.mxu0 0
    %6322 = vmatpush2.bf16.msra.mxu0 0
    %6323 = vmatprep.subr.bf16.mxu0 0
    %6324 = vmatpush2.bf16.msra.mxu0 0
    %6325 = vmatprep.mubr.bf16.mxu0 0
    %6326 = vmatmul.mubr.bf16.gmra.mxu0 %v6117
    %v6327 = vpop.f32.mrf.mxu0
    %v6328 = vadd.f32 %v6068, %v6327
    %v6329 = vpop.f32.mrf.mxu0
    %v6330 = vadd.f32 %v6072, %v6329
    %v6331 = vpop.f32.mrf.mxu0
    %v6332 = vadd.f32 %v6068, %v6331
    %v6333 = vpop.f32.mrf.mxu0
    %v6334 = vadd.f32 %v6072, %v6333
    %6335 = vmatprep.mubr.bf16.mxu0 0
    %6336 = vmatmul.mubr.bf16.gmra.mxu0 %v6118
    %v6337 = vpop.f32.mrf.mxu0
    %v6338 = vadd.f32 %v6068, %v6337
    %v6339 = vpop.f32.mrf.mxu0
    %v6340 = vadd.f32 %v6072, %v6339
    %v6341 = vpop.f32.mrf.mxu0
    %v6342 = vadd.f32 %v6068, %v6341
    %v6343 = vpop.f32.mrf.mxu0
    %v6344 = vadd.f32 %v6072, %v6343
    %6345 = vmatprep.mubr.bf16.mxu0 0
    %6346 = vmatmul.mubr.bf16.gmra.mxu0 %v6119
    %v6347 = vpop.f32.mrf.mxu0
    %v6348 = vadd.f32 %v6068, %v6347
    %v6349 = vpop.f32.mrf.mxu0
    %v6350 = vadd.f32 %v6072, %v6349
    %v6351 = vpop.f32.mrf.mxu0
    %v6352 = vadd.f32 %v6068, %v6351
    %v6353 = vpop.f32.mrf.mxu0
    %v6354 = vadd.f32 %v6072, %v6353
    %6355 = vmatprep.mubr.bf16.mxu0 0
    %6356 = vmatmul.mubr.bf16.gmra.mxu0 %v6120
    %v6357 = vpop.f32.mrf.mxu0
    %v6358 = vadd.f32 %v6068, %v6357
    %v6359 = vpop.f32.mrf.mxu0
    %v6360 = vadd.f32 %v6072, %v6359
    %v6361 = vpop.f32.mrf.mxu0
    %v6362 = vadd.f32 %v6068, %v6361
    %v6363 = vpop.f32.mrf.mxu0
    %v6364 = vadd.f32 %v6072, %v6363
    %6365 = vmatprep.mubr.bf16.mxu0 0
    %6366 = vmatmul.mubr.bf16.gmra.mxu0 %v6121
    %v6367 = vpop.f32.mrf.mxu0
    %v6368 = vadd.f32 %v6068, %v6367
    %v6369 = vpop.f32.mrf.mxu0
    %v6370 = vadd.f32 %v6072, %v6369
    %v6371 = vpop.f32.mrf.mxu0
    %v6372 = vadd.f32 %v6068, %v6371
    %v6373 = vpop.f32.mrf.mxu0
    %v6374 = vadd.f32 %v6072, %v6373
    %6375 = vmatprep.mubr.bf16.mxu0 0
    %6376 = vmatmul.mubr.bf16.gmra.mxu0 %v6122
    %v6377 = vpop.f32.mrf.mxu0
    %v6378 = vadd.f32 %v6068, %v6377
    %v6379 = vpop.f32.mrf.mxu0
    %v6380 = vadd.f32 %v6072, %v6379
    %v6381 = vpop.f32.mrf.mxu0
    %v6382 = vadd.f32 %v6068, %v6381
    %v6383 = vpop.f32.mrf.mxu0
    %v6384 = vadd.f32 %v6072, %v6383
    %6385 = vmatprep.mubr.bf16.mxu0 0
    %6386 = vmatmul.mubr.bf16.gmra.mxu0 %v6123
    %v6387 = vpop.f32.mrf.mxu0
    %v6388 = vadd.f32 %v6068, %v6387
    %v6389 = vpop.f32.mrf.mxu0
    %v6390 = vadd.f32 %v6072, %v6389
    %v6391 = vpop.f32.mrf.mxu0
    %v6392 = vadd.f32 %v6068, %v6391
    %v6393 = vpop.f32.mrf.mxu0
    %v6394 = vadd.f32 %v6072, %v6393
    %6395 = vmatprep.mubr.bf16.mxu0 0
    %6396 = vmatmul.mubr.bf16.gmra.mxu0 %v6124
    %v6397 = vpop.f32.mrf.mxu0
    %v6398 = vadd.f32 %v6068, %v6397
    %v6399 = vpop.f32.mrf.mxu0
    %v6400 = vadd.f32 %v6072, %v6399
    %v6401 = vpop.f32.mrf.mxu0
    %v6402 = vadd.f32 %v6068, %v6401
    %v6403 = vpop.f32.mrf.mxu0
    %v6404 = vadd.f32 %v6072, %v6403
    %6405 = vdwg.mxu0
    %6406 = vmatprep.subr.bf16.mxu0 %v6260
    %6407 = vmatpush1.bf16.msra.mxu0 %v6259
    %6408 = vmatprep.subr.bf16.mxu0 %v6256
    %6409 = vmatpush1.bf16.msra.mxu0 %v6255
    %6410 = vmatprep.subr.bf16.mxu0 %v6252
    %6411 = vmatpush1.bf16.msra.mxu0 %v6251
    %6412 = vmatprep.subr.bf16.mxu0 %v6248
    %6413 = vmatpush1.bf16.msra.mxu0 %v6247
    %6414 = vmatprep.subr.bf16.mxu0 %v6244
    %6415 = vmatpush1.bf16.msra.mxu0 %v6243
    %6416 = vmatprep.subr.bf16.mxu0 %v6240
    %6417 = vmatpush1.bf16.msra.mxu0 %v6239
    %6418 = vmatprep.subr.bf16.mxu0 %v6236
    %6419 = vmatpush1.bf16.msra.mxu0 %v6235
    %6420 = vmatprep.subr.bf16.mxu0 %v6232
    %6421 = vmatpush1.bf16.msra.mxu0 %v6231
    %6422 = vmatprep.subr.bf16.mxu0 0
    %6423 = vmatpush2.bf16.msra.mxu0 0
    %6424 = vmatprep.subr.bf16.mxu0 0
    %6425 = vmatpush2.bf16.msra.mxu0 0
    %6426 = vmatprep.subr.bf16.mxu0 0
    %6427 = vmatpush2.bf16.msra.mxu0 0
    %6428 = vmatprep.subr.bf16.mxu0 0
    %6429 = vmatpush2.bf16.msra.mxu0 0
    %6430 = vmatprep.subr.bf16.mxu0 0
    %6431 = vmatpush2.bf16.msra.mxu0 0
    %6432 = vmatprep.subr.bf16.mxu0 0
    %6433 = vmatpush2.bf16.msra.mxu0 0
    %6434 = vmatprep.subr.bf16.mxu0 0
    %6435 = vmatpush2.bf16.msra.mxu0 0
    %6436 = vmatprep.subr.bf16.mxu0 0
    %6437 = vmatpush2.bf16.msra.mxu0 0
    %6438 = vmatprep.mubr.bf16.mxu0 0
    %6439 = vmatmul.mubr.bf16.gmra.mxu0 %v6117
    %v6440 = vpop.f32.mrf.mxu0
    %v6441 = vadd.f32 %v6076, %v6440
    %v6442 = vpop.f32.mrf.mxu0
    %v6443 = vadd.f32 %v6080, %v6442
    %v6444 = vpop.f32.mrf.mxu0
    %v6445 = vadd.f32 %v6076, %v6444
    %v6446 = vpop.f32.mrf.mxu0
    %v6447 = vadd.f32 %v6080, %v6446
    %6448 = vmatprep.mubr.bf16.mxu0 0
    %6449 = vmatmul.mubr.bf16.gmra.mxu0 %v6118
    %v6450 = vpop.f32.mrf.mxu0
    %v6451 = vadd.f32 %v6076, %v6450
    %v6452 = vpop.f32.mrf.mxu0
    %v6453 = vadd.f32 %v6080, %v6452
    %v6454 = vpop.f32.mrf.mxu0
    %v6455 = vadd.f32 %v6076, %v6454
    %v6456 = vpop.f32.mrf.mxu0
    %v6457 = vadd.f32 %v6080, %v6456
    %6458 = vmatprep.mubr.bf16.mxu0 0
    %6459 = vmatmul.mubr.bf16.gmra.mxu0 %v6119
    %v6460 = vpop.f32.mrf.mxu0
    %v6461 = vadd.f32 %v6076, %v6460
    %v6462 = vpop.f32.mrf.mxu0
    %v6463 = vadd.f32 %v6080, %v6462
    %v6464 = vpop.f32.mrf.mxu0
    %v6465 = vadd.f32 %v6076, %v6464
    %v6466 = vpop.f32.mrf.mxu0
    %v6467 = vadd.f32 %v6080, %v6466
    %6468 = vmatprep.mubr.bf16.mxu0 0
    %6469 = vmatmul.mubr.bf16.gmra.mxu0 %v6120
    %v6470 = vpop.f32.mrf.mxu0
    %v6471 = vadd.f32 %v6076, %v6470
    %v6472 = vpop.f32.mrf.mxu0
    %v6473 = vadd.f32 %v6080, %v6472
    %v6474 = vpop.f32.mrf.mxu0
    %v6475 = vadd.f32 %v6076, %v6474
    %v6476 = vpop.f32.mrf.mxu0
    %v6477 = vadd.f32 %v6080, %v6476
    %6478 = vmatprep.mubr.bf16.mxu0 0
    %6479 = vmatmul.mubr.bf16.gmra.mxu0 %v6121
    %v6480 = vpop.f32.mrf.mxu0
    %v6481 = vadd.f32 %v6076, %v6480
    %v6482 = vpop.f32.mrf.mxu0
    %v6483 = vadd.f32 %v6080, %v6482
    %v6484 = vpop.f32.mrf.mxu0
    %v6485 = vadd.f32 %v6076, %v6484
    %v6486 = vpop.f32.mrf.mxu0
    %v6487 = vadd.f32 %v6080, %v6486
    %6488 = vmatprep.mubr.bf16.mxu0 0
    %6489 = vmatmul.mubr.bf16.gmra.mxu0 %v6122
    %v6490 = vpop.f32.mrf.mxu0
    %v6491 = vadd.f32 %v6076, %v6490
    %v6492 = vpop.f32.mrf.mxu0
    %v6493 = vadd.f32 %v6080, %v6492
    %v6494 = vpop.f32.mrf.mxu0
    %v6495 = vadd.f32 %v6076, %v6494
    %v6496 = vpop.f32.mrf.mxu0
    %v6497 = vadd.f32 %v6080, %v6496
    %6498 = vmatprep.mubr.bf16.mxu0 0
    %6499 = vmatmul.mubr.bf16.gmra.mxu0 %v6123
    %v6500 = vpop.f32.mrf.mxu0
    %v6501 = vadd.f32 %v6076, %v6500
    %v6502 = vpop.f32.mrf.mxu0
    %v6503 = vadd.f32 %v6080, %v6502
    %v6504 = vpop.f32.mrf.mxu0
    %v6505 = vadd.f32 %v6076, %v6504
    %v6506 = vpop.f32.mrf.mxu0
    %v6507 = vadd.f32 %v6080, %v6506
    %6508 = vmatprep.mubr.bf16.mxu0 0
    %6509 = vmatmul.mubr.bf16.gmra.mxu0 %v6124
    %v6510 = vpop.f32.mrf.mxu0
    %v6511 = vadd.f32 %v6076, %v6510
    %v6512 = vpop.f32.mrf.mxu0
    %v6513 = vadd.f32 %v6080, %v6512
    %v6514 = vpop.f32.mrf.mxu0
    %v6515 = vadd.f32 %v6076, %v6514
    %v6516 = vpop.f32.mrf.mxu0
    %v6517 = vadd.f32 %v6080, %v6516
    %6518 = vdwg.mxu0
    %6519 = vst [vmem:[#allocation3] sm:$0xff] %v6328
    %6520 = vst [vmem:[#allocation3 + $0x8] sm:$0xff] %v6330
    %6521 = vst [vmem:[#allocation3 + $0x10] sm:$0xff] %v6441
    %6522 = vst [vmem:[#allocation3 + $0x18] sm:$0xff] %v6443
    %6523 = vst [vmem:[#allocation3 + $0x20] sm:$0xff] %v6332
    %6524 = vst [vmem:[#allocation3 + $0x28] sm:$0xff] %v6334
    %6525 = vst [vmem:[#allocation3 + $0x30] sm:$0xff] %v6445
    %6526 = vst [vmem:[#allocation3 + $0x38] sm:$0xff] %v6447
    %6527 = vst [vmem:[#allocation3 + $0x40] sm:$0xff] %v6338
    %6528 = vst [vmem:[#allocation3 + $0x48] sm:$0xff] %v6340
    %6529 = vst [vmem:[#allocation3 + $0x50] sm:$0xff] %v6451
    %6530 = vst [vmem:[#allocation3 + $0x58] sm:$0xff] %v6453
    %6531 = vst [vmem:[#allocation3 + $0x60] sm:$0xff] %v6342
    %6532 = vst [vmem:[#allocation3 + $0x68] sm:$0xff] %v6344
    %6533 = vst [vmem:[#allocation3 + $0x70] sm:$0xff] %v6455
    %6534 = vst [vmem:[#allocation3 + $0x78] sm:$0xff] %v6457
    %6535 = vst [vmem:[#allocation3 + $0x80] sm:$0xff] %v6348
    %6536 = vst [vmem:[#allocation3 + $0x88] sm:$0xff] %v6350
    %6537 = vst [vmem:[#allocation3 + $0x90] sm:$0xff] %v6461
    %6538 = vst [vmem:[#allocation3 + $0x98] sm:$0xff] %v6463
    %6539 = vst [vmem:[#allocation3 + $0xa0] sm:$0xff] %v6352
    %6540 = vst [vmem:[#allocation3 + $0xa8] sm:$0xff] %v6354
    %6541 = vst [vmem:[#allocation3 + $0xb0] sm:$0xff] %v6465
    %6542 = vst [vmem:[#allocation3 + $0xb8] sm:$0xff] %v6467
    %6543 = vst [vmem:[#allocation3 + $0xc0] sm:$0xff] %v6358
    %6544 = vst [vmem:[#allocation3 + $0xc8] sm:$0xff] %v6360
    %6545 = vst [vmem:[#allocation3 + $0xd0] sm:$0xff] %v6471
    %6546 = vst [vmem:[#allocation3 + $0xd8] sm:$0xff] %v6473
    %6547 = vst [vmem:[#allocation3 + $0xe0] sm:$0xff] %v6362
    %6548 = vst [vmem:[#allocation3 + $0xe8] sm:$0xff] %v6364
    %6549 = vst [vmem:[#allocation3 + $0xf0] sm:$0xff] %v6475
    %6550 = vst [vmem:[#allocation3 + $0xf8] sm:$0xff] %v6477
    %6551 = vst [vmem:[#allocation3 + $0x100] sm:$0xff] %v6368
    %6552 = vst [vmem:[#allocation3 + $0x108] sm:$0xff] %v6370
    %6553 = vst [vmem:[#allocation3 + $0x110] sm:$0xff] %v6481
    %6554 = vst [vmem:[#allocation3 + $0x118] sm:$0xff] %v6483
    %6555 = vst [vmem:[#allocation3 + $0x120] sm:$0xff] %v6372
    %6556 = vst [vmem:[#allocation3 + $0x128] sm:$0xff] %v6374
    %6557 = vst [vmem:[#allocation3 + $0x130] sm:$0xff] %v6485
    %6558 = vst [vmem:[#allocation3 + $0x138] sm:$0xff] %v6487
    %6559 = vst [vmem:[#allocation3 + $0x140] sm:$0xff] %v6378
    %6560 = vst [vmem:[#allocation3 + $0x148] sm:$0xff] %v6380
    %6561 = vst [vmem:[#allocation3 + $0x150] sm:$0xff] %v6491
    %6562 = vst [vmem:[#allocation3 + $0x158] sm:$0xff] %v6493
    %6563 = vst [vmem:[#allocation3 + $0x160] sm:$0xff] %v6382
    %6564 = vst [vmem:[#allocation3 + $0x168] sm:$0xff] %v6384
    %6565 = vst [vmem:[#allocation3 + $0x170] sm:$0xff] %v6495
    %6566 = vst [vmem:[#allocation3 + $0x178] sm:$0xff] %v6497
    %6567 = vst [vmem:[#allocation3 + $0x180] sm:$0xff] %v6388
    %6568 = vst [vmem:[#allocation3 + $0x188] sm:$0xff] %v6390
    %6569 = vst [vmem:[#allocation3 + $0x190] sm:$0xff] %v6501
    %6570 = vst [vmem:[#allocation3 + $0x198] sm:$0xff] %v6503
    %6571 = vst [vmem:[#allocation3 + $0x1a0] sm:$0xff] %v6392
    %6572 = vst [vmem:[#allocation3 + $0x1a8] sm:$0xff] %v6394
    %6573 = vst [vmem:[#allocation3 + $0x1b0] sm:$0xff] %v6505
    %6574 = vst [vmem:[#allocation3 + $0x1b8] sm:$0xff] %v6507
    %6575 = vst [vmem:[#allocation3 + $0x1c0] sm:$0xff] %v6398
    %6576 = vst [vmem:[#allocation3 + $0x1c8] sm:$0xff] %v6400
    %6577 = vst [vmem:[#allocation3 + $0x1d0] sm:$0xff] %v6511
    %6578 = vst [vmem:[#allocation3 + $0x1d8] sm:$0xff] %v6513
    %6579 = vst [vmem:[#allocation3 + $0x1e0] sm:$0xff] %v6402
    %6580 = vst [vmem:[#allocation3 + $0x1e8] sm:$0xff] %v6404
    %6581 = vst [vmem:[#allocation3 + $0x1f0] sm:$0xff] %v6515
    %6582 = vst [vmem:[#allocation3 + $0x1f8] sm:$0xff] %v6517
    %s6583 = scalar_lea.vmem [#allocation10], 768
    %v6584 = vld [vmem:[%s6583] sm:$0xff]
    %v6585 = vld [vmem:[%s6583 + $0x8] sm:$0xff]
    %v6586 = vld [vmem:[%s6583 + $0x10] sm:$0xff]
    %v6587 = vld [vmem:[%s6583 + $0x18] sm:$0xff]
    %v6588 = vld [vmem:[%s6583 + $0x20] sm:$0xff]
    %v6589 = vld [vmem:[%s6583 + $0x28] sm:$0xff]
    %v6590 = vld [vmem:[%s6583 + $0x30] sm:$0xff]
    %v6591 = vld [vmem:[%s6583 + $0x38] sm:$0xff]
    %v6592 = vld [vmem:[%s6583 + $0x40] sm:$0xff]
    %v6593 = vld [vmem:[%s6583 + $0x48] sm:$0xff]
    %v6594 = vld [vmem:[%s6583 + $0x50] sm:$0xff]
    %v6595 = vld [vmem:[%s6583 + $0x58] sm:$0xff]
    %v6596 = vld [vmem:[%s6583 + $0x60] sm:$0xff]
    %v6597 = vld [vmem:[%s6583 + $0x68] sm:$0xff]
    %v6598 = vld [vmem:[%s6583 + $0x70] sm:$0xff]
    %v6599 = vld [vmem:[%s6583 + $0x78] sm:$0xff]
    %v6600 = vld [vmem:[%s6583 + $0x80] sm:$0xff]
    %v6601 = vld [vmem:[%s6583 + $0x88] sm:$0xff]
    %v6602 = vld [vmem:[%s6583 + $0x90] sm:$0xff]
    %v6603 = vld [vmem:[%s6583 + $0x98] sm:$0xff]
    %v6604 = vld [vmem:[%s6583 + $0xa0] sm:$0xff]
    %v6605 = vld [vmem:[%s6583 + $0xa8] sm:$0xff]
    %v6606 = vld [vmem:[%s6583 + $0xb0] sm:$0xff]
    %v6607 = vld [vmem:[%s6583 + $0xb8] sm:$0xff]
    %v6608 = vld [vmem:[%s6583 + $0xc0] sm:$0xff]
    %v6609 = vld [vmem:[%s6583 + $0xc8] sm:$0xff]
    %v6610 = vld [vmem:[%s6583 + $0xd0] sm:$0xff]
    %v6611 = vld [vmem:[%s6583 + $0xd8] sm:$0xff]
    %v6612 = vld [vmem:[%s6583 + $0xe0] sm:$0xff]
    %v6613 = vld [vmem:[%s6583 + $0xe8] sm:$0xff]
    %v6614 = vld [vmem:[%s6583 + $0xf0] sm:$0xff]
    %v6615 = vld [vmem:[%s6583 + $0xf8] sm:$0xff]
    %s6616 = scalar_lea.vmem [#allocation13], 48
    %v6617 = vld [vmem:[%s6616] sm:$0xff]
    %v6618 = vld [vmem:[%s6616 + $0x8] sm:$0xff]
    %s6619 = scalar_lea.vmem [#allocation15], 48
    %v6620 = vld [vmem:[%s6619] sm:$0xff]
    %v6621 = vld [vmem:[%s6619 + $0x8] sm:$0xff]
    %v6622 = vld [vmem:[#allocation3] sm:$0xff]
    %v6623 = vld [vmem:[#allocation3 + $0x8] sm:$0xff]
    %v6624 = vld [vmem:[#allocation3 + $0x10] sm:$0xff]
    %v6625 = vld [vmem:[#allocation3 + $0x18] sm:$0xff]
    %v6626 = vld [vmem:[#allocation3 + $0x20] sm:$0xff]
    %v6627 = vld [vmem:[#allocation3 + $0x28] sm:$0xff]
    %v6628 = vld [vmem:[#allocation3 + $0x30] sm:$0xff]
    %v6629 = vld [vmem:[#allocation3 + $0x38] sm:$0xff]
    %v6630 = vpack.c.bf16 %v6618, %v6617
    %v6663 = vunpack.c.l.b16 %v6584
    %v6664 = vunpack.c.h.b16 %v6584
    %v6665 = vunpack.c.l.b16 %v6585
    %v6666 = vunpack.c.h.b16 %v6585
    %v6667 = vunpack.c.l.b16 %v6586
    %v6668 = vunpack.c.h.b16 %v6586
    %v6669 = vunpack.c.l.b16 %v6587
    %v6670 = vunpack.c.h.b16 %v6587
    %v6671 = vunpack.c.l.b16 %v6588
    %v6672 = vunpack.c.h.b16 %v6588
    %v6673 = vunpack.c.l.b16 %v6589
    %v6674 = vunpack.c.h.b16 %v6589
    %v6675 = vunpack.c.l.b16 %v6590
    %v6676 = vunpack.c.h.b16 %v6590
    %v6677 = vunpack.c.l.b16 %v6591
    %v6678 = vunpack.c.h.b16 %v6591
    %v6679 = vunpack.c.l.b16 %v6592
    %v6680 = vunpack.c.h.b16 %v6592
    %v6681 = vunpack.c.l.b16 %v6593
    %v6682 = vunpack.c.h.b16 %v6593
    %v6683 = vunpack.c.l.b16 %v6594
    %v6684 = vunpack.c.h.b16 %v6594
    %v6685 = vunpack.c.l.b16 %v6595
    %v6686 = vunpack.c.h.b16 %v6595
    %v6687 = vunpack.c.l.b16 %v6596
    %v6688 = vunpack.c.h.b16 %v6596
    %v6689 = vunpack.c.l.b16 %v6597
    %v6690 = vunpack.c.h.b16 %v6597
    %v6691 = vunpack.c.l.b16 %v6598
    %v6692 = vunpack.c.h.b16 %v6598
    %v6693 = vunpack.c.l.b16 %v6599
    %v6694 = vunpack.c.h.b16 %v6599
    %v6695 = vunpack.c.l.b16 %v6600
    %v6696 = vunpack.c.h.b16 %v6600
    %v6697 = vunpack.c.l.b16 %v6601
    %v6698 = vunpack.c.h.b16 %v6601
    %v6699 = vunpack.c.l.b16 %v6602
    %v6700 = vunpack.c.h.b16 %v6602
    %v6701 = vunpack.c.l.b16 %v6603
    %v6702 = vunpack.c.h.b16 %v6603
    %v6703 = vunpack.c.l.b16 %v6604
    %v6704 = vunpack.c.h.b16 %v6604
    %v6705 = vunpack.c.l.b16 %v6605
    %v6706 = vunpack.c.h.b16 %v6605
    %v6707 = vunpack.c.l.b16 %v6606
    %v6708 = vunpack.c.h.b16 %v6606
    %v6709 = vunpack.c.l.b16 %v6607
    %v6710 = vunpack.c.h.b16 %v6607
    %v6711 = vunpack.c.l.b16 %v6608
    %v6712 = vunpack.c.h.b16 %v6608
    %v6713 = vunpack.c.l.b16 %v6609
    %v6714 = vunpack.c.h.b16 %v6609
    %v6715 = vunpack.c.l.b16 %v6610
    %v6716 = vunpack.c.h.b16 %v6610
    %v6717 = vunpack.c.l.b16 %v6611
    %v6718 = vunpack.c.h.b16 %v6611
    %v6719 = vunpack.c.l.b16 %v6612
    %v6720 = vunpack.c.h.b16 %v6612
    %v6721 = vunpack.c.l.b16 %v6613
    %v6722 = vunpack.c.h.b16 %v6613
    %v6723 = vunpack.c.l.b16 %v6614
    %v6724 = vunpack.c.h.b16 %v6614
    %v6725 = vunpack.c.l.b16 %v6615
    %v6726 = vunpack.c.h.b16 %v6615
    %v6727 = vpack.c.b16 %v6667, %v6663
    %v6728 = vpack.c.b16 %v6668, %v6664
    %v6729 = vpack.c.b16 %v6669, %v6665
    %v6730 = vpack.c.b16 %v6670, %v6666
    %v6731 = vpack.c.b16 %v6675, %v6671
    %v6732 = vpack.c.b16 %v6676, %v6672
    %v6733 = vpack.c.b16 %v6677, %v6673
    %v6734 = vpack.c.b16 %v6678, %v6674
    %v6735 = vpack.c.b16 %v6683, %v6679
    %v6736 = vpack.c.b16 %v6684, %v6680
    %v6737 = vpack.c.b16 %v6685, %v6681
    %v6738 = vpack.c.b16 %v6686, %v6682
    %v6739 = vpack.c.b16 %v6691, %v6687
    %v6740 = vpack.c.b16 %v6692, %v6688
    %v6741 = vpack.c.b16 %v6693, %v6689
    %v6742 = vpack.c.b16 %v6694, %v6690
    %v6743 = vpack.c.b16 %v6699, %v6695
    %v6744 = vpack.c.b16 %v6700, %v6696
    %v6745 = vpack.c.b16 %v6701, %v6697
    %v6746 = vpack.c.b16 %v6702, %v6698
    %v6747 = vpack.c.b16 %v6707, %v6703
    %v6748 = vpack.c.b16 %v6708, %v6704
    %v6749 = vpack.c.b16 %v6709, %v6705
    %v6750 = vpack.c.b16 %v6710, %v6706
    %v6751 = vpack.c.b16 %v6715, %v6711
    %v6752 = vpack.c.b16 %v6716, %v6712
    %v6753 = vpack.c.b16 %v6717, %v6713
    %v6754 = vpack.c.b16 %v6718, %v6714
    %v6755 = vpack.c.b16 %v6723, %v6719
    %v6756 = vpack.c.b16 %v6724, %v6720
    %v6757 = vpack.c.b16 %v6725, %v6721
    %v6758 = vpack.c.b16 %v6726, %v6722
    %6791 = vmatprep.subr.bf16.mxu0 %v6756
    %6792 = vmatpush1.bf16.msra.mxu0 %v6755
    %6793 = vmatprep.subr.bf16.mxu0 %v6752
    %6794 = vmatpush1.bf16.msra.mxu0 %v6751
    %6795 = vmatprep.subr.bf16.mxu0 %v6748
    %6796 = vmatpush1.bf16.msra.mxu0 %v6747
    %6797 = vmatprep.subr.bf16.mxu0 %v6744
    %6798 = vmatpush1.bf16.msra.mxu0 %v6743
    %6799 = vmatprep.subr.bf16.mxu0 %v6740
    %6800 = vmatpush1.bf16.msra.mxu0 %v6739
    %6801 = vmatprep.subr.bf16.mxu0 %v6736
    %6802 = vmatpush1.bf16.msra.mxu0 %v6735
    %6803 = vmatprep.subr.bf16.mxu0 %v6732
    %6804 = vmatpush1.bf16.msra.mxu0 %v6731
    %6805 = vmatprep.subr.bf16.mxu0 %v6728
    %6806 = vmatpush1.bf16.msra.mxu0 %v6727
    %6807 = vmatprep.subr.bf16.mxu0 0
    %6808 = vmatpush2.bf16.msra.mxu0 0
    %6809 = vmatprep.subr.bf16.mxu0 0
    %6810 = vmatpush2.bf16.msra.mxu0 0
    %6811 = vmatprep.subr.bf16.mxu0 0
    %6812 = vmatpush2.bf16.msra.mxu0 0
    %6813 = vmatprep.subr.bf16.mxu0 0
    %6814 = vmatpush2.bf16.msra.mxu0 0
    %6815 = vmatprep.subr.bf16.mxu0 0
    %6816 = vmatpush2.bf16.msra.mxu0 0
    %6817 = vmatprep.subr.bf16.mxu0 0
    %6818 = vmatpush2.bf16.msra.mxu0 0
    %6819 = vmatprep.subr.bf16.mxu0 0
    %6820 = vmatpush2.bf16.msra.mxu0 0
    %6821 = vmatprep.subr.bf16.mxu0 0
    %6822 = vmatpush2.bf16.msra.mxu0 0
    %6823 = vmatprep.mubr.bf16.mxu0 0
    %6824 = vmatmul.mubr.bf16.gmra.mxu0 %v6630
    %v6825 = vpop.f32.mrf.mxu0
    %v6826 = vadd.f32 0.0, %v6825
    %v6827 = vpop.f32.mrf.mxu0
    %v6828 = vadd.f32 0.0, %v6827
    %v6829 = vpop.f32.mrf.mxu0
    %v6830 = vadd.f32 0.0, %v6829
    %v6831 = vpop.f32.mrf.mxu0
    %v6832 = vadd.f32 0.0, %v6831
    %6833 = vdwg.mxu0
    %6834 = vmatprep.subr.bf16.mxu0 %v6758
    %6835 = vmatpush1.bf16.msra.mxu0 %v6757
    %6836 = vmatprep.subr.bf16.mxu0 %v6754
    %6837 = vmatpush1.bf16.msra.mxu0 %v6753
    %6838 = vmatprep.subr.bf16.mxu0 %v6750
    %6839 = vmatpush1.bf16.msra.mxu0 %v6749
    %6840 = vmatprep.subr.bf16.mxu0 %v6746
    %6841 = vmatpush1.bf16.msra.mxu0 %v6745
    %6842 = vmatprep.subr.bf16.mxu0 %v6742
    %6843 = vmatpush1.bf16.msra.mxu0 %v6741
    %6844 = vmatprep.subr.bf16.mxu0 %v6738
    %6845 = vmatpush1.bf16.msra.mxu0 %v6737
    %6846 = vmatprep.subr.bf16.mxu0 %v6734
    %6847 = vmatpush1.bf16.msra.mxu0 %v6733
    %6848 = vmatprep.subr.bf16.mxu0 %v6730
    %6849 = vmatpush1.bf16.msra.mxu0 %v6729
    %6850 = vmatprep.subr.bf16.mxu0 0
    %6851 = vmatpush2.bf16.msra.mxu0 0
    %6852 = vmatprep.subr.bf16.mxu0 0
    %6853 = vmatpush2.bf16.msra.mxu0 0
    %6854 = vmatprep.subr.bf16.mxu0 0
    %6855 = vmatpush2.bf16.msra.mxu0 0
    %6856 = vmatprep.subr.bf16.mxu0 0
    %6857 = vmatpush2.bf16.msra.mxu0 0
    %6858 = vmatprep.subr.bf16.mxu0 0
    %6859 = vmatpush2.bf16.msra.mxu0 0
    %6860 = vmatprep.subr.bf16.mxu0 0
    %6861 = vmatpush2.bf16.msra.mxu0 0
    %6862 = vmatprep.subr.bf16.mxu0 0
    %6863 = vmatpush2.bf16.msra.mxu0 0
    %6864 = vmatprep.subr.bf16.mxu0 0
    %6865 = vmatpush2.bf16.msra.mxu0 0
    %6866 = vmatprep.mubr.bf16.mxu0 0
    %6867 = vmatmul.mubr.bf16.gmra.mxu0 %v6630
    %v6868 = vpop.f32.mrf.mxu0
    %v6869 = vadd.f32 0.0, %v6868
    %v6870 = vpop.f32.mrf.mxu0
    %v6871 = vadd.f32 0.0, %v6870
    %v6872 = vpop.f32.mrf.mxu0
    %v6873 = vadd.f32 0.0, %v6872
    %v6874 = vpop.f32.mrf.mxu0
    %v6875 = vadd.f32 0.0, %v6874
    %6876 = vdwg.mxu0
    %v6877 = vadd.f32 %v6622, %v6826
    %v6878 = vadd.f32 %v6623, %v6828
    %v6879 = vadd.f32 %v6624, %v6869
    %v6880 = vadd.f32 %v6625, %v6871
    %v6881 = vadd.f32 %v6626, %v6830
    %v6882 = vadd.f32 %v6627, %v6832
    %v6883 = vadd.f32 %v6628, %v6873
    %v6884 = vadd.f32 %v6629, %v6875
    %v6885 = vmul.f32 %v6877, 0.5
    %v6886 = vmul.f32 %v6881, 0.5
    %v6887 = vtanh.pop %v6885
    %v6888 = vtanh.pop %v6886
    %v6889 = vmul.f32 %v6887, 0.5
    %v6890 = vmul.f32 %v6888, 0.5
    %v6891 = vadd.f32 %v6889, 0.5
    %v6892 = vadd.f32 %v6890, 0.5
    %v6893 = vmul.f32 %v6878, 0.5
    %v6894 = vmul.f32 %v6882, 0.5
    %v6895 = vtanh.pop %v6893
    %v6896 = vtanh.pop %v6894
    %v6897 = vmul.f32 %v6895, 0.5
    %v6898 = vmul.f32 %v6896, 0.5
    %v6899 = vadd.f32 %v6897, 0.5
    %v6900 = vadd.f32 %v6898, 0.5
    %v6901 = vtanh.pop %v6879
    %v6902 = vtanh.pop %v6883
    %v6903 = vmul.f32 %v6880, 0.5
    %v6904 = vmul.f32 %v6884, 0.5
    %v6905 = vtanh.pop %v6903
    %v6906 = vtanh.pop %v6904
    %v6907 = vmul.f32 %v6905, 0.5
    %v6908 = vmul.f32 %v6906, 0.5
    %v6909 = vadd.f32 %v6907, 0.5
    %v6910 = vadd.f32 %v6908, 0.5
    %v6911 = vmul.f32 %v6899, %v6620
    %v6912 = vmul.f32 %v6900, %v6621
    %v6913 = vmul.f32 %v6891, %v6901
    %v6914 = vmul.f32 %v6892, %v6902
    %v6915 = vadd.f32 %v6911, %v6913
    %v6916 = vadd.f32 %v6912, %v6914
    %v6917 = vtanh.pop %v6915
    %v6918 = vtanh.pop %v6916
    %v6919 = vmul.f32 %v6909, %v6917
    %v6920 = vmul.f32 %v6910, %v6918
    %v6921 = vld [vmem:[%s1056] sm:$0xff]
    %v6922 = vld [vmem:[%s1056 + $0x8] sm:$0xff]
    %v6923 = vld [vmem:[%s1056 + $0x10] sm:$0xff]
    %v6924 = vld [vmem:[%s1056 + $0x18] sm:$0xff]
    %v6925 = vld [vmem:[%s1056 + $0x20] sm:$0xff]
    %v6926 = vld [vmem:[%s1056 + $0x28] sm:$0xff]
    %v6927 = vld [vmem:[%s1056 + $0x30] sm:$0xff]
    %v6928 = vld [vmem:[%s1056 + $0x38] sm:$0xff]
    %v6929 = vpack.c.bf16 %v6920, %v6919
    %6930 = vmatprep.subr.bf16.mxu0 %v6756
    %6931 = vmatpush1.bf16.msra.mxu0 %v6755
    %6932 = vmatprep.subr.bf16.mxu0 %v6752
    %6933 = vmatpush1.bf16.msra.mxu0 %v6751
    %6934 = vmatprep.subr.bf16.mxu0 %v6748
    %6935 = vmatpush1.bf16.msra.mxu0 %v6747
    %6936 = vmatprep.subr.bf16.mxu0 %v6744
    %6937 = vmatpush1.bf16.msra.mxu0 %v6743
    %6938 = vmatprep.subr.bf16.mxu0 %v6740
    %6939 = vmatpush1.bf16.msra.mxu0 %v6739
    %6940 = vmatprep.subr.bf16.mxu0 %v6736
    %6941 = vmatpush1.bf16.msra.mxu0 %v6735
    %6942 = vmatprep.subr.bf16.mxu0 %v6732
    %6943 = vmatpush1.bf16.msra.mxu0 %v6731
    %6944 = vmatprep.subr.bf16.mxu0 %v6728
    %6945 = vmatpush1.bf16.msra.mxu0 %v6727
    %6946 = vmatprep.subr.bf16.mxu0 0
    %6947 = vmatpush2.bf16.msra.mxu0 0
    %6948 = vmatprep.subr.bf16.mxu0 0
    %6949 = vmatpush2.bf16.msra.mxu0 0
    %6950 = vmatprep.subr.bf16.mxu0 0
    %6951 = vmatpush2.bf16.msra.mxu0 0
    %6952 = vmatprep.subr.bf16.mxu0 0
    %6953 = vmatpush2.bf16.msra.mxu0 0
    %6954 = vmatprep.subr.bf16.mxu0 0
    %6955 = vmatpush2.bf16.msra.mxu0 0
    %6956 = vmatprep.subr.bf16.mxu0 0
    %6957 = vmatpush2.bf16.msra.mxu0 0
    %6958 = vmatprep.subr.bf16.mxu0 0
    %6959 = vmatpush2.bf16.msra.mxu0 0
    %6960 = vmatprep.subr.bf16.mxu0 0
    %6961 = vmatpush2.bf16.msra.mxu0 0
    %6962 = vmatprep.mubr.bf16.mxu0 0
    %6963 = vmatmul.mubr.bf16.gmra.mxu0 %v6929
    %v6964 = vpop.f32.mrf.mxu0
    %v6965 = vadd.f32 0.0, %v6964
    %v6966 = vpop.f32.mrf.mxu0
    %v6967 = vadd.f32 0.0, %v6966
    %v6968 = vpop.f32.mrf.mxu0
    %v6969 = vadd.f32 0.0, %v6968
    %v6970 = vpop.f32.mrf.mxu0
    %v6971 = vadd.f32 0.0, %v6970
    %6972 = vdwg.mxu0
    %6973 = vmatprep.subr.bf16.mxu0 %v6758
    %6974 = vmatpush1.bf16.msra.mxu0 %v6757
    %6975 = vmatprep.subr.bf16.mxu0 %v6754
    %6976 = vmatpush1.bf16.msra.mxu0 %v6753
    %6977 = vmatprep.subr.bf16.mxu0 %v6750
    %6978 = vmatpush1.bf16.msra.mxu0 %v6749
    %6979 = vmatprep.subr.bf16.mxu0 %v6746
    %6980 = vmatpush1.bf16.msra.mxu0 %v6745
    %6981 = vmatprep.subr.bf16.mxu0 %v6742
    %6982 = vmatpush1.bf16.msra.mxu0 %v6741
    %6983 = vmatprep.subr.bf16.mxu0 %v6738
    %6984 = vmatpush1.bf16.msra.mxu0 %v6737
    %6985 = vmatprep.subr.bf16.mxu0 %v6734
    %6986 = vmatpush1.bf16.msra.mxu0 %v6733
    %6987 = vmatprep.subr.bf16.mxu0 %v6730
    %6988 = vmatpush1.bf16.msra.mxu0 %v6729
    %6989 = vmatprep.subr.bf16.mxu0 0
    %6990 = vmatpush2.bf16.msra.mxu0 0
    %6991 = vmatprep.subr.bf16.mxu0 0
    %6992 = vmatpush2.bf16.msra.mxu0 0
    %6993 = vmatprep.subr.bf16.mxu0 0
    %6994 = vmatpush2.bf16.msra.mxu0 0
    %6995 = vmatprep.subr.bf16.mxu0 0
    %6996 = vmatpush2.bf16.msra.mxu0 0
    %6997 = vmatprep.subr.bf16.mxu0 0
    %6998 = vmatpush2.bf16.msra.mxu0 0
    %6999 = vmatprep.subr.bf16.mxu0 0
    %7000 = vmatpush2.bf16.msra.mxu0 0
    %7001 = vmatprep.subr.bf16.mxu0 0
    %7002 = vmatpush2.bf16.msra.mxu0 0
    %7003 = vmatprep.subr.bf16.mxu0 0
    %7004 = vmatpush2.bf16.msra.mxu0 0
    %7005 = vmatprep.mubr.bf16.mxu0 0
    %7006 = vmatmul.mubr.bf16.gmra.mxu0 %v6929
    %v7007 = vpop.f32.mrf.mxu0
    %v7008 = vadd.f32 0.0, %v7007
    %v7009 = vpop.f32.mrf.mxu0
    %v7010 = vadd.f32 0.0, %v7009
    %v7011 = vpop.f32.mrf.mxu0
    %v7012 = vadd.f32 0.0, %v7011
    %v7013 = vpop.f32.mrf.mxu0
    %v7014 = vadd.f32 0.0, %v7013
    %7015 = vdwg.mxu0
    %v7016 = vadd.f32 %v6921, %v6965
    %v7017 = vadd.f32 %v6922, %v6967
    %v7018 = vadd.f32 %v6923, %v7008
    %v7019 = vadd.f32 %v6924, %v7010
    %v7020 = vadd.f32 %v6925, %v6969
    %v7021 = vadd.f32 %v6926, %v6971
    %v7022 = vadd.f32 %v6927, %v7012
    %v7023 = vadd.f32 %v6928, %v7014
    %v7024 = vmul.f32 %v7016, 0.5
    %v7025 = vmul.f32 %v7020, 0.5
    %v7026 = vtanh.pop %v7024
    %v7027 = vtanh.pop %v7025
    %v7028 = vmul.f32 %v7026, 0.5
    %v7029 = vmul.f32 %v7027, 0.5
    %v7030 = vadd.f32 %v7028, 0.5
    %v7031 = vadd.f32 %v7029, 0.5
    %v7032 = vmul.f32 %v7017, 0.5
    %v7033 = vmul.f32 %v7021, 0.5
    %v7034 = vtanh.pop %v7032
    %v7035 = vtanh.pop %v7033
    %v7036 = vmul.f32 %v7034, 0.5
    %v7037 = vmul.f32 %v7035, 0.5
    %v7038 = vadd.f32 %v7036, 0.5
    %v7039 = vadd.f32 %v7037, 0.5
    %v7040 = vtanh.pop %v7018
    %v7041 = vtanh.pop %v7022
    %v7042 = vmul.f32 %v7019, 0.5
    %v7043 = vmul.f32 %v7023, 0.5
    %v7044 = vtanh.pop %v7042
    %v7045 = vtanh.pop %v7043
    %v7046 = vmul.f32 %v7044, 0.5
    %v7047 = vmul.f32 %v7045, 0.5
    %v7048 = vadd.f32 %v7046, 0.5
    %v7049 = vadd.f32 %v7047, 0.5
    %v7050 = vmul.f32 %v7038, %v6915
    %v7051 = vmul.f32 %v7039, %v6916
    %v7052 = vmul.f32 %v7030, %v7040
    %v7053 = vmul.f32 %v7031, %v7041
    %v7054 = vadd.f32 %v7050, %v7052
    %v7055 = vadd.f32 %v7051, %v7053
    %v7056 = vtanh.pop %v7054
    %v7057 = vtanh.pop %v7055
    %v7058 = vmul.f32 %v7048, %v7056
    %v7059 = vmul.f32 %v7049, %v7057
    %v7060 = vld [vmem:[%s1206] sm:$0xff]
    %v7061 = vld [vmem:[%s1206 + $0x8] sm:$0xff]
    %v7062 = vld [vmem:[%s1206 + $0x10] sm:$0xff]
    %v7063 = vld [vmem:[%s1206 + $0x18] sm:$0xff]
    %v7064 = vld [vmem:[%s1206 + $0x20] sm:$0xff]
    %v7065 = vld [vmem:[%s1206 + $0x28] sm:$0xff]
    %v7066 = vld [vmem:[%s1206 + $0x30] sm:$0xff]
    %v7067 = vld [vmem:[%s1206 + $0x38] sm:$0xff]
    %v7068 = vpack.c.bf16 %v7059, %v7058
    %7069 = vmatprep.subr.bf16.mxu0 %v6756
    %7070 = vmatpush1.bf16.msra.mxu0 %v6755
    %7071 = vmatprep.subr.bf16.mxu0 %v6752
    %7072 = vmatpush1.bf16.msra.mxu0 %v6751
    %7073 = vmatprep.subr.bf16.mxu0 %v6748
    %7074 = vmatpush1.bf16.msra.mxu0 %v6747
    %7075 = vmatprep.subr.bf16.mxu0 %v6744
    %7076 = vmatpush1.bf16.msra.mxu0 %v6743
    %7077 = vmatprep.subr.bf16.mxu0 %v6740
    %7078 = vmatpush1.bf16.msra.mxu0 %v6739
    %7079 = vmatprep.subr.bf16.mxu0 %v6736
    %7080 = vmatpush1.bf16.msra.mxu0 %v6735
    %7081 = vmatprep.subr.bf16.mxu0 %v6732
    %7082 = vmatpush1.bf16.msra.mxu0 %v6731
    %7083 = vmatprep.subr.bf16.mxu0 %v6728
    %7084 = vmatpush1.bf16.msra.mxu0 %v6727
    %7085 = vmatprep.subr.bf16.mxu0 0
    %7086 = vmatpush2.bf16.msra.mxu0 0
    %7087 = vmatprep.subr.bf16.mxu0 0
    %7088 = vmatpush2.bf16.msra.mxu0 0
    %7089 = vmatprep.subr.bf16.mxu0 0
    %7090 = vmatpush2.bf16.msra.mxu0 0
    %7091 = vmatprep.subr.bf16.mxu0 0
    %7092 = vmatpush2.bf16.msra.mxu0 0
    %7093 = vmatprep.subr.bf16.mxu0 0
    %7094 = vmatpush2.bf16.msra.mxu0 0
    %7095 = vmatprep.subr.bf16.mxu0 0
    %7096 = vmatpush2.bf16.msra.mxu0 0
    %7097 = vmatprep.subr.bf16.mxu0 0
    %7098 = vmatpush2.bf16.msra.mxu0 0
    %7099 = vmatprep.subr.bf16.mxu0 0
    %7100 = vmatpush2.bf16.msra.mxu0 0
    %7101 = vmatprep.mubr.bf16.mxu0 0
    %7102 = vmatmul.mubr.bf16.gmra.mxu0 %v7068
    %v7103 = vpop.f32.mrf.mxu0
    %v7104 = vadd.f32 0.0, %v7103
    %v7105 = vpop.f32.mrf.mxu0
    %v7106 = vadd.f32 0.0, %v7105
    %v7107 = vpop.f32.mrf.mxu0
    %v7108 = vadd.f32 0.0, %v7107
    %v7109 = vpop.f32.mrf.mxu0
    %v7110 = vadd.f32 0.0, %v7109
    %7111 = vdwg.mxu0
    %7112 = vmatprep.subr.bf16.mxu0 %v6758
    %7113 = vmatpush1.bf16.msra.mxu0 %v6757
    %7114 = vmatprep.subr.bf16.mxu0 %v6754
    %7115 = vmatpush1.bf16.msra.mxu0 %v6753
    %7116 = vmatprep.subr.bf16.mxu0 %v6750
    %7117 = vmatpush1.bf16.msra.mxu0 %v6749
    %7118 = vmatprep.subr.bf16.mxu0 %v6746
    %7119 = vmatpush1.bf16.msra.mxu0 %v6745
    %7120 = vmatprep.subr.bf16.mxu0 %v6742
    %7121 = vmatpush1.bf16.msra.mxu0 %v6741
    %7122 = vmatprep.subr.bf16.mxu0 %v6738
    %7123 = vmatpush1.bf16.msra.mxu0 %v6737
    %7124 = vmatprep.subr.bf16.mxu0 %v6734
    %7125 = vmatpush1.bf16.msra.mxu0 %v6733
    %7126 = vmatprep.subr.bf16.mxu0 %v6730
    %7127 = vmatpush1.bf16.msra.mxu0 %v6729
    %7128 = vmatprep.subr.bf16.mxu0 0
    %7129 = vmatpush2.bf16.msra.mxu0 0
    %7130 = vmatprep.subr.bf16.mxu0 0
    %7131 = vmatpush2.bf16.msra.mxu0 0
    %7132 = vmatprep.subr.bf16.mxu0 0
    %7133 = vmatpush2.bf16.msra.mxu0 0
    %7134 = vmatprep.subr.bf16.mxu0 0
    %7135 = vmatpush2.bf16.msra.mxu0 0
    %7136 = vmatprep.subr.bf16.mxu0 0
    %7137 = vmatpush2.bf16.msra.mxu0 0
    %7138 = vmatprep.subr.bf16.mxu0 0
    %7139 = vmatpush2.bf16.msra.mxu0 0
    %7140 = vmatprep.subr.bf16.mxu0 0
    %7141 = vmatpush2.bf16.msra.mxu0 0
    %7142 = vmatprep.subr.bf16.mxu0 0
    %7143 = vmatpush2.bf16.msra.mxu0 0
    %7144 = vmatprep.mubr.bf16.mxu0 0
    %7145 = vmatmul.mubr.bf16.gmra.mxu0 %v7068
    %v7146 = vpop.f32.mrf.mxu0
    %v7147 = vadd.f32 0.0, %v7146
    %v7148 = vpop.f32.mrf.mxu0
    %v7149 = vadd.f32 0.0, %v7148
    %v7150 = vpop.f32.mrf.mxu0
    %v7151 = vadd.f32 0.0, %v7150
    %v7152 = vpop.f32.mrf.mxu0
    %v7153 = vadd.f32 0.0, %v7152
    %7154 = vdwg.mxu0
    %v7155 = vadd.f32 %v7060, %v7104
    %v7156 = vadd.f32 %v7061, %v7106
    %v7157 = vadd.f32 %v7062, %v7147
    %v7158 = vadd.f32 %v7063, %v7149
    %v7159 = vadd.f32 %v7064, %v7108
    %v7160 = vadd.f32 %v7065, %v7110
    %v7161 = vadd.f32 %v7066, %v7151
    %v7162 = vadd.f32 %v7067, %v7153
    %v7163 = vmul.f32 %v7155, 0.5
    %v7164 = vmul.f32 %v7159, 0.5
    %v7165 = vtanh.pop %v7163
    %v7166 = vtanh.pop %v7164
    %v7167 = vmul.f32 %v7165, 0.5
    %v7168 = vmul.f32 %v7166, 0.5
    %v7169 = vadd.f32 %v7167, 0.5
    %v7170 = vadd.f32 %v7168, 0.5
    %v7171 = vmul.f32 %v7156, 0.5
    %v7172 = vmul.f32 %v7160, 0.5
    %v7173 = vtanh.pop %v7171
    %v7174 = vtanh.pop %v7172
    %v7175 = vmul.f32 %v7173, 0.5
    %v7176 = vmul.f32 %v7174, 0.5
    %v7177 = vadd.f32 %v7175, 0.5
    %v7178 = vadd.f32 %v7176, 0.5
    %v7179 = vtanh.pop %v7157
    %v7180 = vtanh.pop %v7161
    %v7181 = vmul.f32 %v7158, 0.5
    %v7182 = vmul.f32 %v7162, 0.5
    %v7183 = vtanh.pop %v7181
    %v7184 = vtanh.pop %v7182
    %v7185 = vmul.f32 %v7183, 0.5
    %v7186 = vmul.f32 %v7184, 0.5
    %v7187 = vadd.f32 %v7185, 0.5
    %v7188 = vadd.f32 %v7186, 0.5
    %v7189 = vmul.f32 %v7177, %v7054
    %v7190 = vmul.f32 %v7178, %v7055
    %v7191 = vmul.f32 %v7169, %v7179
    %v7192 = vmul.f32 %v7170, %v7180
    %v7193 = vadd.f32 %v7189, %v7191
    %v7194 = vadd.f32 %v7190, %v7192
    %v7195 = vtanh.pop %v7193
    %v7196 = vtanh.pop %v7194
    %v7197 = vmul.f32 %v7187, %v7195
    %v7198 = vmul.f32 %v7188, %v7196
    %v7199 = vld [vmem:[%s1356] sm:$0xff]
    %v7200 = vld [vmem:[%s1356 + $0x8] sm:$0xff]
    %v7201 = vld [vmem:[%s1356 + $0x10] sm:$0xff]
    %v7202 = vld [vmem:[%s1356 + $0x18] sm:$0xff]
    %v7203 = vld [vmem:[%s1356 + $0x20] sm:$0xff]
    %v7204 = vld [vmem:[%s1356 + $0x28] sm:$0xff]
    %v7205 = vld [vmem:[%s1356 + $0x30] sm:$0xff]
    %v7206 = vld [vmem:[%s1356 + $0x38] sm:$0xff]
    %v7207 = vpack.c.bf16 %v7198, %v7197
    %7208 = vmatprep.subr.bf16.mxu0 %v6756
    %7209 = vmatpush1.bf16.msra.mxu0 %v6755
    %7210 = vmatprep.subr.bf16.mxu0 %v6752
    %7211 = vmatpush1.bf16.msra.mxu0 %v6751
    %7212 = vmatprep.subr.bf16.mxu0 %v6748
    %7213 = vmatpush1.bf16.msra.mxu0 %v6747
    %7214 = vmatprep.subr.bf16.mxu0 %v6744
    %7215 = vmatpush1.bf16.msra.mxu0 %v6743
    %7216 = vmatprep.subr.bf16.mxu0 %v6740
    %7217 = vmatpush1.bf16.msra.mxu0 %v6739
    %7218 = vmatprep.subr.bf16.mxu0 %v6736
    %7219 = vmatpush1.bf16.msra.mxu0 %v6735
    %7220 = vmatprep.subr.bf16.mxu0 %v6732
    %7221 = vmatpush1.bf16.msra.mxu0 %v6731
    %7222 = vmatprep.subr.bf16.mxu0 %v6728
    %7223 = vmatpush1.bf16.msra.mxu0 %v6727
    %7224 = vmatprep.subr.bf16.mxu0 0
    %7225 = vmatpush2.bf16.msra.mxu0 0
    %7226 = vmatprep.subr.bf16.mxu0 0
    %7227 = vmatpush2.bf16.msra.mxu0 0
    %7228 = vmatprep.subr.bf16.mxu0 0
    %7229 = vmatpush2.bf16.msra.mxu0 0
    %7230 = vmatprep.subr.bf16.mxu0 0
    %7231 = vmatpush2.bf16.msra.mxu0 0
    %7232 = vmatprep.subr.bf16.mxu0 0
    %7233 = vmatpush2.bf16.msra.mxu0 0
    %7234 = vmatprep.subr.bf16.mxu0 0
    %7235 = vmatpush2.bf16.msra.mxu0 0
    %7236 = vmatprep.subr.bf16.mxu0 0
    %7237 = vmatpush2.bf16.msra.mxu0 0
    %7238 = vmatprep.subr.bf16.mxu0 0
    %7239 = vmatpush2.bf16.msra.mxu0 0
    %7240 = vmatprep.mubr.bf16.mxu0 0
    %7241 = vmatmul.mubr.bf16.gmra.mxu0 %v7207
    %v7242 = vpop.f32.mrf.mxu0
    %v7243 = vadd.f32 0.0, %v7242
    %v7244 = vpop.f32.mrf.mxu0
    %v7245 = vadd.f32 0.0, %v7244
    %v7246 = vpop.f32.mrf.mxu0
    %v7247 = vadd.f32 0.0, %v7246
    %v7248 = vpop.f32.mrf.mxu0
    %v7249 = vadd.f32 0.0, %v7248
    %7250 = vdwg.mxu0
    %7251 = vmatprep.subr.bf16.mxu0 %v6758
    %7252 = vmatpush1.bf16.msra.mxu0 %v6757
    %7253 = vmatprep.subr.bf16.mxu0 %v6754
    %7254 = vmatpush1.bf16.msra.mxu0 %v6753
    %7255 = vmatprep.subr.bf16.mxu0 %v6750
    %7256 = vmatpush1.bf16.msra.mxu0 %v6749
    %7257 = vmatprep.subr.bf16.mxu0 %v6746
    %7258 = vmatpush1.bf16.msra.mxu0 %v6745
    %7259 = vmatprep.subr.bf16.mxu0 %v6742
    %7260 = vmatpush1.bf16.msra.mxu0 %v6741
    %7261 = vmatprep.subr.bf16.mxu0 %v6738
    %7262 = vmatpush1.bf16.msra.mxu0 %v6737
    %7263 = vmatprep.subr.bf16.mxu0 %v6734
    %7264 = vmatpush1.bf16.msra.mxu0 %v6733
    %7265 = vmatprep.subr.bf16.mxu0 %v6730
    %7266 = vmatpush1.bf16.msra.mxu0 %v6729
    %7267 = vmatprep.subr.bf16.mxu0 0
    %7268 = vmatpush2.bf16.msra.mxu0 0
    %7269 = vmatprep.subr.bf16.mxu0 0
    %7270 = vmatpush2.bf16.msra.mxu0 0
    %7271 = vmatprep.subr.bf16.mxu0 0
    %7272 = vmatpush2.bf16.msra.mxu0 0
    %7273 = vmatprep.subr.bf16.mxu0 0
    %7274 = vmatpush2.bf16.msra.mxu0 0
    %7275 = vmatprep.subr.bf16.mxu0 0
    %7276 = vmatpush2.bf16.msra.mxu0 0
    %7277 = vmatprep.subr.bf16.mxu0 0
    %7278 = vmatpush2.bf16.msra.mxu0 0
    %7279 = vmatprep.subr.bf16.mxu0 0
    %7280 = vmatpush2.bf16.msra.mxu0 0
    %7281 = vmatprep.subr.bf16.mxu0 0
    %7282 = vmatpush2.bf16.msra.mxu0 0
    %7283 = vmatprep.mubr.bf16.mxu0 0
    %7284 = vmatmul.mubr.bf16.gmra.mxu0 %v7207
    %v7285 = vpop.f32.mrf.mxu0
    %v7286 = vadd.f32 0.0, %v7285
    %v7287 = vpop.f32.mrf.mxu0
    %v7288 = vadd.f32 0.0, %v7287
    %v7289 = vpop.f32.mrf.mxu0
    %v7290 = vadd.f32 0.0, %v7289
    %v7291 = vpop.f32.mrf.mxu0
    %v7292 = vadd.f32 0.0, %v7291
    %7293 = vdwg.mxu0
    %v7294 = vadd.f32 %v7199, %v7243
    %v7295 = vadd.f32 %v7200, %v7245
    %v7296 = vadd.f32 %v7201, %v7286
    %v7297 = vadd.f32 %v7202, %v7288
    %v7298 = vadd.f32 %v7203, %v7247
    %v7299 = vadd.f32 %v7204, %v7249
    %v7300 = vadd.f32 %v7205, %v7290
    %v7301 = vadd.f32 %v7206, %v7292
    %v7302 = vmul.f32 %v7294, 0.5
    %v7303 = vmul.f32 %v7298, 0.5
    %v7304 = vtanh.pop %v7302
    %v7305 = vtanh.pop %v7303
    %v7306 = vmul.f32 %v7304, 0.5
    %v7307 = vmul.f32 %v7305, 0.5
    %v7308 = vadd.f32 %v7306, 0.5
    %v7309 = vadd.f32 %v7307, 0.5
    %v7310 = vmul.f32 %v7295, 0.5
    %v7311 = vmul.f32 %v7299, 0.5
    %v7312 = vtanh.pop %v7310
    %v7313 = vtanh.pop %v7311
    %v7314 = vmul.f32 %v7312, 0.5
    %v7315 = vmul.f32 %v7313, 0.5
    %v7316 = vadd.f32 %v7314, 0.5
    %v7317 = vadd.f32 %v7315, 0.5
    %v7318 = vtanh.pop %v7296
    %v7319 = vtanh.pop %v7300
    %v7320 = vmul.f32 %v7297, 0.5
    %v7321 = vmul.f32 %v7301, 0.5
    %v7322 = vtanh.pop %v7320
    %v7323 = vtanh.pop %v7321
    %v7324 = vmul.f32 %v7322, 0.5
    %v7325 = vmul.f32 %v7323, 0.5
    %v7326 = vadd.f32 %v7324, 0.5
    %v7327 = vadd.f32 %v7325, 0.5
    %v7328 = vmul.f32 %v7316, %v7193
    %v7329 = vmul.f32 %v7317, %v7194
    %v7330 = vmul.f32 %v7308, %v7318
    %v7331 = vmul.f32 %v7309, %v7319
    %v7332 = vadd.f32 %v7328, %v7330
    %v7333 = vadd.f32 %v7329, %v7331
    %v7334 = vtanh.pop %v7332
    %v7335 = vtanh.pop %v7333
    %v7336 = vmul.f32 %v7326, %v7334
    %v7337 = vmul.f32 %v7327, %v7335
    %v7338 = vld [vmem:[%s1506] sm:$0xff]
    %v7339 = vld [vmem:[%s1506 + $0x8] sm:$0xff]
    %v7340 = vld [vmem:[%s1506 + $0x10] sm:$0xff]
    %v7341 = vld [vmem:[%s1506 + $0x18] sm:$0xff]
    %v7342 = vld [vmem:[%s1506 + $0x20] sm:$0xff]
    %v7343 = vld [vmem:[%s1506 + $0x28] sm:$0xff]
    %v7344 = vld [vmem:[%s1506 + $0x30] sm:$0xff]
    %v7345 = vld [vmem:[%s1506 + $0x38] sm:$0xff]
    %v7346 = vpack.c.bf16 %v7337, %v7336
    %7347 = vmatprep.subr.bf16.mxu0 %v6756
    %7348 = vmatpush1.bf16.msra.mxu0 %v6755
    %7349 = vmatprep.subr.bf16.mxu0 %v6752
    %7350 = vmatpush1.bf16.msra.mxu0 %v6751
    %7351 = vmatprep.subr.bf16.mxu0 %v6748
    %7352 = vmatpush1.bf16.msra.mxu0 %v6747
    %7353 = vmatprep.subr.bf16.mxu0 %v6744
    %7354 = vmatpush1.bf16.msra.mxu0 %v6743
    %7355 = vmatprep.subr.bf16.mxu0 %v6740
    %7356 = vmatpush1.bf16.msra.mxu0 %v6739
    %7357 = vmatprep.subr.bf16.mxu0 %v6736
    %7358 = vmatpush1.bf16.msra.mxu0 %v6735
    %7359 = vmatprep.subr.bf16.mxu0 %v6732
    %7360 = vmatpush1.bf16.msra.mxu0 %v6731
    %7361 = vmatprep.subr.bf16.mxu0 %v6728
    %7362 = vmatpush1.bf16.msra.mxu0 %v6727
    %7363 = vmatprep.subr.bf16.mxu0 0
    %7364 = vmatpush2.bf16.msra.mxu0 0
    %7365 = vmatprep.subr.bf16.mxu0 0
    %7366 = vmatpush2.bf16.msra.mxu0 0
    %7367 = vmatprep.subr.bf16.mxu0 0
    %7368 = vmatpush2.bf16.msra.mxu0 0
    %7369 = vmatprep.subr.bf16.mxu0 0
    %7370 = vmatpush2.bf16.msra.mxu0 0
    %7371 = vmatprep.subr.bf16.mxu0 0
    %7372 = vmatpush2.bf16.msra.mxu0 0
    %7373 = vmatprep.subr.bf16.mxu0 0
    %7374 = vmatpush2.bf16.msra.mxu0 0
    %7375 = vmatprep.subr.bf16.mxu0 0
    %7376 = vmatpush2.bf16.msra.mxu0 0
    %7377 = vmatprep.subr.bf16.mxu0 0
    %7378 = vmatpush2.bf16.msra.mxu0 0
    %7379 = vmatprep.mubr.bf16.mxu0 0
    %7380 = vmatmul.mubr.bf16.gmra.mxu0 %v7346
    %v7381 = vpop.f32.mrf.mxu0
    %v7382 = vadd.f32 0.0, %v7381
    %v7383 = vpop.f32.mrf.mxu0
    %v7384 = vadd.f32 0.0, %v7383
    %v7385 = vpop.f32.mrf.mxu0
    %v7386 = vadd.f32 0.0, %v7385
    %v7387 = vpop.f32.mrf.mxu0
    %v7388 = vadd.f32 0.0, %v7387
    %7389 = vdwg.mxu0
    %7390 = vmatprep.subr.bf16.mxu0 %v6758
    %7391 = vmatpush1.bf16.msra.mxu0 %v6757
    %7392 = vmatprep.subr.bf16.mxu0 %v6754
    %7393 = vmatpush1.bf16.msra.mxu0 %v6753
    %7394 = vmatprep.subr.bf16.mxu0 %v6750
    %7395 = vmatpush1.bf16.msra.mxu0 %v6749
    %7396 = vmatprep.subr.bf16.mxu0 %v6746
    %7397 = vmatpush1.bf16.msra.mxu0 %v6745
    %7398 = vmatprep.subr.bf16.mxu0 %v6742
    %7399 = vmatpush1.bf16.msra.mxu0 %v6741
    %7400 = vmatprep.subr.bf16.mxu0 %v6738
    %7401 = vmatpush1.bf16.msra.mxu0 %v6737
    %7402 = vmatprep.subr.bf16.mxu0 %v6734
    %7403 = vmatpush1.bf16.msra.mxu0 %v6733
    %7404 = vmatprep.subr.bf16.mxu0 %v6730
    %7405 = vmatpush1.bf16.msra.mxu0 %v6729
    %7406 = vmatprep.subr.bf16.mxu0 0
    %7407 = vmatpush2.bf16.msra.mxu0 0
    %7408 = vmatprep.subr.bf16.mxu0 0
    %7409 = vmatpush2.bf16.msra.mxu0 0
    %7410 = vmatprep.subr.bf16.mxu0 0
    %7411 = vmatpush2.bf16.msra.mxu0 0
    %7412 = vmatprep.subr.bf16.mxu0 0
    %7413 = vmatpush2.bf16.msra.mxu0 0
    %7414 = vmatprep.subr.bf16.mxu0 0
    %7415 = vmatpush2.bf16.msra.mxu0 0
    %7416 = vmatprep.subr.bf16.mxu0 0
    %7417 = vmatpush2.bf16.msra.mxu0 0
    %7418 = vmatprep.subr.bf16.mxu0 0
    %7419 = vmatpush2.bf16.msra.mxu0 0
    %7420 = vmatprep.subr.bf16.mxu0 0
    %7421 = vmatpush2.bf16.msra.mxu0 0
    %7422 = vmatprep.mubr.bf16.mxu0 0
    %7423 = vmatmul.mubr.bf16.gmra.mxu0 %v7346
    %v7424 = vpop.f32.mrf.mxu0
    %v7425 = vadd.f32 0.0, %v7424
    %v7426 = vpop.f32.mrf.mxu0
    %v7427 = vadd.f32 0.0, %v7426
    %v7428 = vpop.f32.mrf.mxu0
    %v7429 = vadd.f32 0.0, %v7428
    %v7430 = vpop.f32.mrf.mxu0
    %v7431 = vadd.f32 0.0, %v7430
    %7432 = vdwg.mxu0
    %v7433 = vadd.f32 %v7338, %v7382
    %v7434 = vadd.f32 %v7339, %v7384
    %v7435 = vadd.f32 %v7340, %v7425
    %v7436 = vadd.f32 %v7341, %v7427
    %v7437 = vadd.f32 %v7342, %v7386
    %v7438 = vadd.f32 %v7343, %v7388
    %v7439 = vadd.f32 %v7344, %v7429
    %v7440 = vadd.f32 %v7345, %v7431
    %v7441 = vmul.f32 %v7433, 0.5
    %v7442 = vmul.f32 %v7437, 0.5
    %v7443 = vtanh.pop %v7441
    %v7444 = vtanh.pop %v7442
    %v7445 = vmul.f32 %v7443, 0.5
    %v7446 = vmul.f32 %v7444, 0.5
    %v7447 = vadd.f32 %v7445, 0.5
    %v7448 = vadd.f32 %v7446, 0.5
    %v7449 = vmul.f32 %v7434, 0.5
    %v7450 = vmul.f32 %v7438, 0.5
    %v7451 = vtanh.pop %v7449
    %v7452 = vtanh.pop %v7450
    %v7453 = vmul.f32 %v7451, 0.5
    %v7454 = vmul.f32 %v7452, 0.5
    %v7455 = vadd.f32 %v7453, 0.5
    %v7456 = vadd.f32 %v7454, 0.5
    %v7457 = vtanh.pop %v7435
    %v7458 = vtanh.pop %v7439
    %v7459 = vmul.f32 %v7436, 0.5
    %v7460 = vmul.f32 %v7440, 0.5
    %v7461 = vtanh.pop %v7459
    %v7462 = vtanh.pop %v7460
    %v7463 = vmul.f32 %v7461, 0.5
    %v7464 = vmul.f32 %v7462, 0.5
    %v7465 = vadd.f32 %v7463, 0.5
    %v7466 = vadd.f32 %v7464, 0.5
    %v7467 = vmul.f32 %v7455, %v7332
    %v7468 = vmul.f32 %v7456, %v7333
    %v7469 = vmul.f32 %v7447, %v7457
    %v7470 = vmul.f32 %v7448, %v7458
    %v7471 = vadd.f32 %v7467, %v7469
    %v7472 = vadd.f32 %v7468, %v7470
    %v7473 = vtanh.pop %v7471
    %v7474 = vtanh.pop %v7472
    %v7475 = vmul.f32 %v7465, %v7473
    %v7476 = vmul.f32 %v7466, %v7474
    %v7477 = vld [vmem:[%s1656] sm:$0xff]
    %v7478 = vld [vmem:[%s1656 + $0x8] sm:$0xff]
    %v7479 = vld [vmem:[%s1656 + $0x10] sm:$0xff]
    %v7480 = vld [vmem:[%s1656 + $0x18] sm:$0xff]
    %v7481 = vld [vmem:[%s1656 + $0x20] sm:$0xff]
    %v7482 = vld [vmem:[%s1656 + $0x28] sm:$0xff]
    %v7483 = vld [vmem:[%s1656 + $0x30] sm:$0xff]
    %v7484 = vld [vmem:[%s1656 + $0x38] sm:$0xff]
    %v7485 = vpack.c.bf16 %v7476, %v7475
    %7486 = vmatprep.subr.bf16.mxu0 %v6756
    %7487 = vmatpush1.bf16.msra.mxu0 %v6755
    %7488 = vmatprep.subr.bf16.mxu0 %v6752
    %7489 = vmatpush1.bf16.msra.mxu0 %v6751
    %7490 = vmatprep.subr.bf16.mxu0 %v6748
    %7491 = vmatpush1.bf16.msra.mxu0 %v6747
    %7492 = vmatprep.subr.bf16.mxu0 %v6744
    %7493 = vmatpush1.bf16.msra.mxu0 %v6743
    %7494 = vmatprep.subr.bf16.mxu0 %v6740
    %7495 = vmatpush1.bf16.msra.mxu0 %v6739
    %7496 = vmatprep.subr.bf16.mxu0 %v6736
    %7497 = vmatpush1.bf16.msra.mxu0 %v6735
    %7498 = vmatprep.subr.bf16.mxu0 %v6732
    %7499 = vmatpush1.bf16.msra.mxu0 %v6731
    %7500 = vmatprep.subr.bf16.mxu0 %v6728
    %7501 = vmatpush1.bf16.msra.mxu0 %v6727
    %7502 = vmatprep.subr.bf16.mxu0 0
    %7503 = vmatpush2.bf16.msra.mxu0 0
    %7504 = vmatprep.subr.bf16.mxu0 0
    %7505 = vmatpush2.bf16.msra.mxu0 0
    %7506 = vmatprep.subr.bf16.mxu0 0
    %7507 = vmatpush2.bf16.msra.mxu0 0
    %7508 = vmatprep.subr.bf16.mxu0 0
    %7509 = vmatpush2.bf16.msra.mxu0 0
    %7510 = vmatprep.subr.bf16.mxu0 0
    %7511 = vmatpush2.bf16.msra.mxu0 0
    %7512 = vmatprep.subr.bf16.mxu0 0
    %7513 = vmatpush2.bf16.msra.mxu0 0
    %7514 = vmatprep.subr.bf16.mxu0 0
    %7515 = vmatpush2.bf16.msra.mxu0 0
    %7516 = vmatprep.subr.bf16.mxu0 0
    %7517 = vmatpush2.bf16.msra.mxu0 0
    %7518 = vmatprep.mubr.bf16.mxu0 0
    %7519 = vmatmul.mubr.bf16.gmra.mxu0 %v7485
    %v7520 = vpop.f32.mrf.mxu0
    %v7521 = vadd.f32 0.0, %v7520
    %v7522 = vpop.f32.mrf.mxu0
    %v7523 = vadd.f32 0.0, %v7522
    %v7524 = vpop.f32.mrf.mxu0
    %v7525 = vadd.f32 0.0, %v7524
    %v7526 = vpop.f32.mrf.mxu0
    %v7527 = vadd.f32 0.0, %v7526
    %7528 = vdwg.mxu0
    %7529 = vmatprep.subr.bf16.mxu0 %v6758
    %7530 = vmatpush1.bf16.msra.mxu0 %v6757
    %7531 = vmatprep.subr.bf16.mxu0 %v6754
    %7532 = vmatpush1.bf16.msra.mxu0 %v6753
    %7533 = vmatprep.subr.bf16.mxu0 %v6750
    %7534 = vmatpush1.bf16.msra.mxu0 %v6749
    %7535 = vmatprep.subr.bf16.mxu0 %v6746
    %7536 = vmatpush1.bf16.msra.mxu0 %v6745
    %7537 = vmatprep.subr.bf16.mxu0 %v6742
    %7538 = vmatpush1.bf16.msra.mxu0 %v6741
    %7539 = vmatprep.subr.bf16.mxu0 %v6738
    %7540 = vmatpush1.bf16.msra.mxu0 %v6737
    %7541 = vmatprep.subr.bf16.mxu0 %v6734
    %7542 = vmatpush1.bf16.msra.mxu0 %v6733
    %7543 = vmatprep.subr.bf16.mxu0 %v6730
    %7544 = vmatpush1.bf16.msra.mxu0 %v6729
    %7545 = vmatprep.subr.bf16.mxu0 0
    %7546 = vmatpush2.bf16.msra.mxu0 0
    %7547 = vmatprep.subr.bf16.mxu0 0
    %7548 = vmatpush2.bf16.msra.mxu0 0
    %7549 = vmatprep.subr.bf16.mxu0 0
    %7550 = vmatpush2.bf16.msra.mxu0 0
    %7551 = vmatprep.subr.bf16.mxu0 0
    %7552 = vmatpush2.bf16.msra.mxu0 0
    %7553 = vmatprep.subr.bf16.mxu0 0
    %7554 = vmatpush2.bf16.msra.mxu0 0
    %7555 = vmatprep.subr.bf16.mxu0 0
    %7556 = vmatpush2.bf16.msra.mxu0 0
    %7557 = vmatprep.subr.bf16.mxu0 0
    %7558 = vmatpush2.bf16.msra.mxu0 0
    %7559 = vmatprep.subr.bf16.mxu0 0
    %7560 = vmatpush2.bf16.msra.mxu0 0
    %7561 = vmatprep.mubr.bf16.mxu0 0
    %7562 = vmatmul.mubr.bf16.gmra.mxu0 %v7485
    %v7563 = vpop.f32.mrf.mxu0
    %v7564 = vadd.f32 0.0, %v7563
    %v7565 = vpop.f32.mrf.mxu0
    %v7566 = vadd.f32 0.0, %v7565
    %v7567 = vpop.f32.mrf.mxu0
    %v7568 = vadd.f32 0.0, %v7567
    %v7569 = vpop.f32.mrf.mxu0
    %v7570 = vadd.f32 0.0, %v7569
    %7571 = vdwg.mxu0
    %v7572 = vadd.f32 %v7477, %v7521
    %v7573 = vadd.f32 %v7478, %v7523
    %v7574 = vadd.f32 %v7479, %v7564
    %v7575 = vadd.f32 %v7480, %v7566
    %v7576 = vadd.f32 %v7481, %v7525
    %v7577 = vadd.f32 %v7482, %v7527
    %v7578 = vadd.f32 %v7483, %v7568
    %v7579 = vadd.f32 %v7484, %v7570
    %v7580 = vmul.f32 %v7572, 0.5
    %v7581 = vmul.f32 %v7576, 0.5
    %v7582 = vtanh.pop %v7580
    %v7583 = vtanh.pop %v7581
    %v7584 = vmul.f32 %v7582, 0.5
    %v7585 = vmul.f32 %v7583, 0.5
    %v7586 = vadd.f32 %v7584, 0.5
    %v7587 = vadd.f32 %v7585, 0.5
    %v7588 = vmul.f32 %v7573, 0.5
    %v7589 = vmul.f32 %v7577, 0.5
    %v7590 = vtanh.pop %v7588
    %v7591 = vtanh.pop %v7589
    %v7592 = vmul.f32 %v7590, 0.5
    %v7593 = vmul.f32 %v7591, 0.5
    %v7594 = vadd.f32 %v7592, 0.5
    %v7595 = vadd.f32 %v7593, 0.5
    %v7596 = vtanh.pop %v7574
    %v7597 = vtanh.pop %v7578
    %v7598 = vmul.f32 %v7575, 0.5
    %v7599 = vmul.f32 %v7579, 0.5
    %v7600 = vtanh.pop %v7598
    %v7601 = vtanh.pop %v7599
    %v7602 = vmul.f32 %v7600, 0.5
    %v7603 = vmul.f32 %v7601, 0.5
    %v7604 = vadd.f32 %v7602, 0.5
    %v7605 = vadd.f32 %v7603, 0.5
    %v7606 = vmul.f32 %v7594, %v7471
    %v7607 = vmul.f32 %v7595, %v7472
    %v7608 = vmul.f32 %v7586, %v7596
    %v7609 = vmul.f32 %v7587, %v7597
    %v7610 = vadd.f32 %v7606, %v7608
    %v7611 = vadd.f32 %v7607, %v7609
    %v7612 = vtanh.pop %v7610
    %v7613 = vtanh.pop %v7611
    %v7614 = vmul.f32 %v7604, %v7612
    %v7615 = vmul.f32 %v7605, %v7613
    %v7616 = vld [vmem:[%s1806] sm:$0xff]
    %v7617 = vld [vmem:[%s1806 + $0x8] sm:$0xff]
    %v7618 = vld [vmem:[%s1806 + $0x10] sm:$0xff]
    %v7619 = vld [vmem:[%s1806 + $0x18] sm:$0xff]
    %v7620 = vld [vmem:[%s1806 + $0x20] sm:$0xff]
    %v7621 = vld [vmem:[%s1806 + $0x28] sm:$0xff]
    %v7622 = vld [vmem:[%s1806 + $0x30] sm:$0xff]
    %v7623 = vld [vmem:[%s1806 + $0x38] sm:$0xff]
    %v7624 = vpack.c.bf16 %v7615, %v7614
    %7625 = vmatprep.subr.bf16.mxu0 %v6756
    %7626 = vmatpush1.bf16.msra.mxu0 %v6755
    %7627 = vmatprep.subr.bf16.mxu0 %v6752
    %7628 = vmatpush1.bf16.msra.mxu0 %v6751
    %7629 = vmatprep.subr.bf16.mxu0 %v6748
    %7630 = vmatpush1.bf16.msra.mxu0 %v6747
    %7631 = vmatprep.subr.bf16.mxu0 %v6744
    %7632 = vmatpush1.bf16.msra.mxu0 %v6743
    %7633 = vmatprep.subr.bf16.mxu0 %v6740
    %7634 = vmatpush1.bf16.msra.mxu0 %v6739
    %7635 = vmatprep.subr.bf16.mxu0 %v6736
    %7636 = vmatpush1.bf16.msra.mxu0 %v6735
    %7637 = vmatprep.subr.bf16.mxu0 %v6732
    %7638 = vmatpush1.bf16.msra.mxu0 %v6731
    %7639 = vmatprep.subr.bf16.mxu0 %v6728
    %7640 = vmatpush1.bf16.msra.mxu0 %v6727
    %7641 = vmatprep.subr.bf16.mxu0 0
    %7642 = vmatpush2.bf16.msra.mxu0 0
    %7643 = vmatprep.subr.bf16.mxu0 0
    %7644 = vmatpush2.bf16.msra.mxu0 0
    %7645 = vmatprep.subr.bf16.mxu0 0
    %7646 = vmatpush2.bf16.msra.mxu0 0
    %7647 = vmatprep.subr.bf16.mxu0 0
    %7648 = vmatpush2.bf16.msra.mxu0 0
    %7649 = vmatprep.subr.bf16.mxu0 0
    %7650 = vmatpush2.bf16.msra.mxu0 0
    %7651 = vmatprep.subr.bf16.mxu0 0
    %7652 = vmatpush2.bf16.msra.mxu0 0
    %7653 = vmatprep.subr.bf16.mxu0 0
    %7654 = vmatpush2.bf16.msra.mxu0 0
    %7655 = vmatprep.subr.bf16.mxu0 0
    %7656 = vmatpush2.bf16.msra.mxu0 0
    %7657 = vmatprep.mubr.bf16.mxu0 0
    %7658 = vmatmul.mubr.bf16.gmra.mxu0 %v7624
    %v7659 = vpop.f32.mrf.mxu0
    %v7660 = vadd.f32 0.0, %v7659
    %v7661 = vpop.f32.mrf.mxu0
    %v7662 = vadd.f32 0.0, %v7661
    %v7663 = vpop.f32.mrf.mxu0
    %v7664 = vadd.f32 0.0, %v7663
    %v7665 = vpop.f32.mrf.mxu0
    %v7666 = vadd.f32 0.0, %v7665
    %7667 = vdwg.mxu0
    %7668 = vmatprep.subr.bf16.mxu0 %v6758
    %7669 = vmatpush1.bf16.msra.mxu0 %v6757
    %7670 = vmatprep.subr.bf16.mxu0 %v6754
    %7671 = vmatpush1.bf16.msra.mxu0 %v6753
    %7672 = vmatprep.subr.bf16.mxu0 %v6750
    %7673 = vmatpush1.bf16.msra.mxu0 %v6749
    %7674 = vmatprep.subr.bf16.mxu0 %v6746
    %7675 = vmatpush1.bf16.msra.mxu0 %v6745
    %7676 = vmatprep.subr.bf16.mxu0 %v6742
    %7677 = vmatpush1.bf16.msra.mxu0 %v6741
    %7678 = vmatprep.subr.bf16.mxu0 %v6738
    %7679 = vmatpush1.bf16.msra.mxu0 %v6737
    %7680 = vmatprep.subr.bf16.mxu0 %v6734
    %7681 = vmatpush1.bf16.msra.mxu0 %v6733
    %7682 = vmatprep.subr.bf16.mxu0 %v6730
    %7683 = vmatpush1.bf16.msra.mxu0 %v6729
    %7684 = vmatprep.subr.bf16.mxu0 0
    %7685 = vmatpush2.bf16.msra.mxu0 0
    %7686 = vmatprep.subr.bf16.mxu0 0
    %7687 = vmatpush2.bf16.msra.mxu0 0
    %7688 = vmatprep.subr.bf16.mxu0 0
    %7689 = vmatpush2.bf16.msra.mxu0 0
    %7690 = vmatprep.subr.bf16.mxu0 0
    %7691 = vmatpush2.bf16.msra.mxu0 0
    %7692 = vmatprep.subr.bf16.mxu0 0
    %7693 = vmatpush2.bf16.msra.mxu0 0
    %7694 = vmatprep.subr.bf16.mxu0 0
    %7695 = vmatpush2.bf16.msra.mxu0 0
    %7696 = vmatprep.subr.bf16.mxu0 0
    %7697 = vmatpush2.bf16.msra.mxu0 0
    %7698 = vmatprep.subr.bf16.mxu0 0
    %7699 = vmatpush2.bf16.msra.mxu0 0
    %7700 = vmatprep.mubr.bf16.mxu0 0
    %7701 = vmatmul.mubr.bf16.gmra.mxu0 %v7624
    %v7702 = vpop.f32.mrf.mxu0
    %v7703 = vadd.f32 0.0, %v7702
    %v7704 = vpop.f32.mrf.mxu0
    %v7705 = vadd.f32 0.0, %v7704
    %v7706 = vpop.f32.mrf.mxu0
    %v7707 = vadd.f32 0.0, %v7706
    %v7708 = vpop.f32.mrf.mxu0
    %v7709 = vadd.f32 0.0, %v7708
    %7710 = vdwg.mxu0
    %v7711 = vadd.f32 %v7616, %v7660
    %v7712 = vadd.f32 %v7617, %v7662
    %v7713 = vadd.f32 %v7618, %v7703
    %v7714 = vadd.f32 %v7619, %v7705
    %v7715 = vadd.f32 %v7620, %v7664
    %v7716 = vadd.f32 %v7621, %v7666
    %v7717 = vadd.f32 %v7622, %v7707
    %v7718 = vadd.f32 %v7623, %v7709
    %v7719 = vmul.f32 %v7711, 0.5
    %v7720 = vmul.f32 %v7715, 0.5
    %v7721 = vtanh.pop %v7719
    %v7722 = vtanh.pop %v7720
    %v7723 = vmul.f32 %v7721, 0.5
    %v7724 = vmul.f32 %v7722, 0.5
    %v7725 = vadd.f32 %v7723, 0.5
    %v7726 = vadd.f32 %v7724, 0.5
    %v7727 = vmul.f32 %v7712, 0.5
    %v7728 = vmul.f32 %v7716, 0.5
    %v7729 = vtanh.pop %v7727
    %v7730 = vtanh.pop %v7728
    %v7731 = vmul.f32 %v7729, 0.5
    %v7732 = vmul.f32 %v7730, 0.5
    %v7733 = vadd.f32 %v7731, 0.5
    %v7734 = vadd.f32 %v7732, 0.5
    %v7735 = vtanh.pop %v7713
    %v7736 = vtanh.pop %v7717
    %v7737 = vmul.f32 %v7714, 0.5
    %v7738 = vmul.f32 %v7718, 0.5
    %v7739 = vtanh.pop %v7737
    %v7740 = vtanh.pop %v7738
    %v7741 = vmul.f32 %v7739, 0.5
    %v7742 = vmul.f32 %v7740, 0.5
    %v7743 = vadd.f32 %v7741, 0.5
    %v7744 = vadd.f32 %v7742, 0.5
    %v7745 = vmul.f32 %v7733, %v7610
    %v7746 = vmul.f32 %v7734, %v7611
    %v7747 = vmul.f32 %v7725, %v7735
    %v7748 = vmul.f32 %v7726, %v7736
    %v7749 = vadd.f32 %v7745, %v7747
    %v7750 = vadd.f32 %v7746, %v7748
    %v7751 = vtanh.pop %v7749
    %v7752 = vtanh.pop %v7750
    %v7753 = vmul.f32 %v7743, %v7751
    %v7754 = vmul.f32 %v7744, %v7752
    %v7755 = vld [vmem:[%s1956] sm:$0xff]
    %v7756 = vld [vmem:[%s1956 + $0x8] sm:$0xff]
    %v7757 = vld [vmem:[%s1956 + $0x10] sm:$0xff]
    %v7758 = vld [vmem:[%s1956 + $0x18] sm:$0xff]
    %v7759 = vld [vmem:[%s1956 + $0x20] sm:$0xff]
    %v7760 = vld [vmem:[%s1956 + $0x28] sm:$0xff]
    %v7761 = vld [vmem:[%s1956 + $0x30] sm:$0xff]
    %v7762 = vld [vmem:[%s1956 + $0x38] sm:$0xff]
    %v7763 = vpack.c.bf16 %v7754, %v7753
    %7764 = vmatprep.subr.bf16.mxu0 %v6756
    %7765 = vmatpush1.bf16.msra.mxu0 %v6755
    %7766 = vmatprep.subr.bf16.mxu0 %v6752
    %7767 = vmatpush1.bf16.msra.mxu0 %v6751
    %7768 = vmatprep.subr.bf16.mxu0 %v6748
    %7769 = vmatpush1.bf16.msra.mxu0 %v6747
    %7770 = vmatprep.subr.bf16.mxu0 %v6744
    %7771 = vmatpush1.bf16.msra.mxu0 %v6743
    %7772 = vmatprep.subr.bf16.mxu0 %v6740
    %7773 = vmatpush1.bf16.msra.mxu0 %v6739
    %7774 = vmatprep.subr.bf16.mxu0 %v6736
    %7775 = vmatpush1.bf16.msra.mxu0 %v6735
    %7776 = vmatprep.subr.bf16.mxu0 %v6732
    %7777 = vmatpush1.bf16.msra.mxu0 %v6731
    %7778 = vmatprep.subr.bf16.mxu0 %v6728
    %7779 = vmatpush1.bf16.msra.mxu0 %v6727
    %7780 = vmatprep.subr.bf16.mxu0 0
    %7781 = vmatpush2.bf16.msra.mxu0 0
    %7782 = vmatprep.subr.bf16.mxu0 0
    %7783 = vmatpush2.bf16.msra.mxu0 0
    %7784 = vmatprep.subr.bf16.mxu0 0
    %7785 = vmatpush2.bf16.msra.mxu0 0
    %7786 = vmatprep.subr.bf16.mxu0 0
    %7787 = vmatpush2.bf16.msra.mxu0 0
    %7788 = vmatprep.subr.bf16.mxu0 0
    %7789 = vmatpush2.bf16.msra.mxu0 0
    %7790 = vmatprep.subr.bf16.mxu0 0
    %7791 = vmatpush2.bf16.msra.mxu0 0
    %7792 = vmatprep.subr.bf16.mxu0 0
    %7793 = vmatpush2.bf16.msra.mxu0 0
    %7794 = vmatprep.subr.bf16.mxu0 0
    %7795 = vmatpush2.bf16.msra.mxu0 0
    %7796 = vmatprep.mubr.bf16.mxu0 0
    %7797 = vmatmul.mubr.bf16.gmra.mxu0 %v7763
    %v7798 = vpop.f32.mrf.mxu0
    %v7799 = vadd.f32 0.0, %v7798
    %v7800 = vpop.f32.mrf.mxu0
    %v7801 = vadd.f32 0.0, %v7800
    %v7802 = vpop.f32.mrf.mxu0
    %v7803 = vadd.f32 0.0, %v7802
    %v7804 = vpop.f32.mrf.mxu0
    %v7805 = vadd.f32 0.0, %v7804
    %7806 = vdwg.mxu0
    %7807 = vmatprep.subr.bf16.mxu0 %v6758
    %7808 = vmatpush1.bf16.msra.mxu0 %v6757
    %7809 = vmatprep.subr.bf16.mxu0 %v6754
    %7810 = vmatpush1.bf16.msra.mxu0 %v6753
    %7811 = vmatprep.subr.bf16.mxu0 %v6750
    %7812 = vmatpush1.bf16.msra.mxu0 %v6749
    %7813 = vmatprep.subr.bf16.mxu0 %v6746
    %7814 = vmatpush1.bf16.msra.mxu0 %v6745
    %7815 = vmatprep.subr.bf16.mxu0 %v6742
    %7816 = vmatpush1.bf16.msra.mxu0 %v6741
    %7817 = vmatprep.subr.bf16.mxu0 %v6738
    %7818 = vmatpush1.bf16.msra.mxu0 %v6737
    %7819 = vmatprep.subr.bf16.mxu0 %v6734
    %7820 = vmatpush1.bf16.msra.mxu0 %v6733
    %7821 = vmatprep.subr.bf16.mxu0 %v6730
    %7822 = vmatpush1.bf16.msra.mxu0 %v6729
    %7823 = vmatprep.subr.bf16.mxu0 0
    %7824 = vmatpush2.bf16.msra.mxu0 0
    %7825 = vmatprep.subr.bf16.mxu0 0
    %7826 = vmatpush2.bf16.msra.mxu0 0
    %7827 = vmatprep.subr.bf16.mxu0 0
    %7828 = vmatpush2.bf16.msra.mxu0 0
    %7829 = vmatprep.subr.bf16.mxu0 0
    %7830 = vmatpush2.bf16.msra.mxu0 0
    %7831 = vmatprep.subr.bf16.mxu0 0
    %7832 = vmatpush2.bf16.msra.mxu0 0
    %7833 = vmatprep.subr.bf16.mxu0 0
    %7834 = vmatpush2.bf16.msra.mxu0 0
    %7835 = vmatprep.subr.bf16.mxu0 0
    %7836 = vmatpush2.bf16.msra.mxu0 0
    %7837 = vmatprep.subr.bf16.mxu0 0
    %7838 = vmatpush2.bf16.msra.mxu0 0
    %7839 = vmatprep.mubr.bf16.mxu0 0
    %7840 = vmatmul.mubr.bf16.gmra.mxu0 %v7763
    %v7841 = vpop.f32.mrf.mxu0
    %v7842 = vadd.f32 0.0, %v7841
    %v7843 = vpop.f32.mrf.mxu0
    %v7844 = vadd.f32 0.0, %v7843
    %v7845 = vpop.f32.mrf.mxu0
    %v7846 = vadd.f32 0.0, %v7845
    %v7847 = vpop.f32.mrf.mxu0
    %v7848 = vadd.f32 0.0, %v7847
    %7849 = vdwg.mxu0
    %v7850 = vadd.f32 %v7755, %v7799
    %v7851 = vadd.f32 %v7756, %v7801
    %v7852 = vadd.f32 %v7757, %v7842
    %v7853 = vadd.f32 %v7758, %v7844
    %v7854 = vadd.f32 %v7759, %v7803
    %v7855 = vadd.f32 %v7760, %v7805
    %v7856 = vadd.f32 %v7761, %v7846
    %v7857 = vadd.f32 %v7762, %v7848
    %v7858 = vmul.f32 %v7850, 0.5
    %v7859 = vmul.f32 %v7854, 0.5
    %v7860 = vtanh.pop %v7858
    %v7861 = vtanh.pop %v7859
    %v7862 = vmul.f32 %v7860, 0.5
    %v7863 = vmul.f32 %v7861, 0.5
    %v7864 = vadd.f32 %v7862, 0.5
    %v7865 = vadd.f32 %v7863, 0.5
    %v7866 = vmul.f32 %v7851, 0.5
    %v7867 = vmul.f32 %v7855, 0.5
    %v7868 = vtanh.pop %v7866
    %v7869 = vtanh.pop %v7867
    %v7870 = vmul.f32 %v7868, 0.5
    %v7871 = vmul.f32 %v7869, 0.5
    %v7872 = vadd.f32 %v7870, 0.5
    %v7873 = vadd.f32 %v7871, 0.5
    %v7874 = vtanh.pop %v7852
    %v7875 = vtanh.pop %v7856
    %v7876 = vmul.f32 %v7853, 0.5
    %v7877 = vmul.f32 %v7857, 0.5
    %v7878 = vtanh.pop %v7876
    %v7879 = vtanh.pop %v7877
    %v7880 = vmul.f32 %v7878, 0.5
    %v7881 = vmul.f32 %v7879, 0.5
    %v7882 = vadd.f32 %v7880, 0.5
    %v7883 = vadd.f32 %v7881, 0.5
    %v7884 = vmul.f32 %v7872, %v7749
    %v7885 = vmul.f32 %v7873, %v7750
    %v7886 = vmul.f32 %v7864, %v7874
    %v7887 = vmul.f32 %v7865, %v7875
    %v7888 = vadd.f32 %v7884, %v7886
    %v7889 = vadd.f32 %v7885, %v7887
    %v7890 = vtanh.pop %v7888
    %v7891 = vtanh.pop %v7889
    %v7892 = vmul.f32 %v7882, %v7890
    %v7893 = vmul.f32 %v7883, %v7891
    %v7894 = vpack.c.bf16 %v7893, %v7892
    %v7895 = vld [vmem:[#allocation16] sm:$0xf]
    %v7896 = vld [vmem:[#allocation16 + $0x4] sm:$0xf]
    %v7897 = vld [vmem:[#allocation16 + $0x8] sm:$0xf]
    %v7898 = vld [vmem:[#allocation16 + $0xc] sm:$0xf]
    %v7899 = vld [vmem:[#allocation16 + $0x10] sm:$0xf]
    %v7900 = vld [vmem:[#allocation16 + $0x14] sm:$0xf]
    %v7901 = vld [vmem:[#allocation16 + $0x18] sm:$0xf]
    %v7902 = vld [vmem:[#allocation16 + $0x1c] sm:$0xf]
    %v7903 = vld [vmem:[#allocation16 + $0x20] sm:$0xf]
    %v7904 = vld [vmem:[#allocation16 + $0x24] sm:$0xf]
    %v7905 = vld [vmem:[#allocation16 + $0x28] sm:$0xf]
    %v7906 = vld [vmem:[#allocation16 + $0x2c] sm:$0xf]
    %v7907 = vld [vmem:[#allocation16 + $0x30] sm:$0xf]
    %v7908 = vld [vmem:[#allocation16 + $0x34] sm:$0xf]
    %v7909 = vld [vmem:[#allocation16 + $0x38] sm:$0xf]
    %v7910 = vld [vmem:[#allocation16 + $0x3c] sm:$0xf]
    %v7911 = vld [vmem:[%s8] sm:$0x1]
    %v7913 = vlaneseq
    %v7914 = vshrl.u32 %v7913, 7
    %v7915 = vsub.s32 0, %v7914
    %v7916 = vrot.slane %v7911, %v7915
    %v7934 = vunpack.c.l.b16 %v7895
    %v7935 = vunpack.c.l.b16 %v7896
    %v7936 = vunpack.c.l.b16 %v7897
    %v7937 = vunpack.c.l.b16 %v7898
    %v7938 = vunpack.c.l.b16 %v7899
    %v7939 = vunpack.c.l.b16 %v7900
    %v7940 = vunpack.c.l.b16 %v7901
    %v7941 = vunpack.c.l.b16 %v7902
    %v7942 = vunpack.c.l.b16 %v7903
    %v7943 = vunpack.c.l.b16 %v7904
    %v7944 = vunpack.c.l.b16 %v7905
    %v7945 = vunpack.c.l.b16 %v7906
    %v7946 = vunpack.c.l.b16 %v7907
    %v7947 = vunpack.c.l.b16 %v7908
    %v7948 = vunpack.c.l.b16 %v7909
    %v7949 = vunpack.c.l.b16 %v7910
    %v7950 = vpack.c.b16 %v7935, %v7934
    %v7951 = vpack.c.b16 %v7937, %v7936
    %v7952 = vpack.c.b16 %v7939, %v7938
    %v7953 = vpack.c.b16 %v7941, %v7940
    %v7954 = vpack.c.b16 %v7943, %v7942
    %v7955 = vpack.c.b16 %v7945, %v7944
    %v7956 = vpack.c.b16 %v7947, %v7946
    %v7957 = vpack.c.b16 %v7949, %v7948
    %7966 = vmatprep.subr.bf16.mxu0 0
    %7967 = vmatpush1.bf16.msra.mxu0 %v7957
    %7968 = vmatprep.subr.bf16.mxu0 0
    %7969 = vmatpush1.bf16.msra.mxu0 %v7956
    %7970 = vmatprep.subr.bf16.mxu0 0
    %7971 = vmatpush1.bf16.msra.mxu0 %v7955
    %7972 = vmatprep.subr.bf16.mxu0 0
    %7973 = vmatpush1.bf16.msra.mxu0 %v7954
    %7974 = vmatprep.subr.bf16.mxu0 0
    %7975 = vmatpush1.bf16.msra.mxu0 %v7953
    %7976 = vmatprep.subr.bf16.mxu0 0
    %7977 = vmatpush1.bf16.msra.mxu0 %v7952
    %7978 = vmatprep.subr.bf16.mxu0 0
    %7979 = vmatpush1.bf16.msra.mxu0 %v7951
    %7980 = vmatprep.subr.bf16.mxu0 0
    %7981 = vmatpush1.bf16.msra.mxu0 %v7950
    %7982 = vmatprep.subr.bf16.mxu0 0
    %7983 = vmatpush2.bf16.msra.mxu0 0
    %7984 = vmatprep.subr.bf16.mxu0 0
    %7985 = vmatpush2.bf16.msra.mxu0 0
    %7986 = vmatprep.subr.bf16.mxu0 0
    %7987 = vmatpush2.bf16.msra.mxu0 0
    %7988 = vmatprep.subr.bf16.mxu0 0
    %7989 = vmatpush2.bf16.msra.mxu0 0
    %7990 = vmatprep.subr.bf16.mxu0 0
    %7991 = vmatpush2.bf16.msra.mxu0 0
    %7992 = vmatprep.subr.bf16.mxu0 0
    %7993 = vmatpush2.bf16.msra.mxu0 0
    %7994 = vmatprep.subr.bf16.mxu0 0
    %7995 = vmatpush2.bf16.msra.mxu0 0
    %7996 = vmatprep.subr.bf16.mxu0 0
    %7997 = vmatpush2.bf16.msra.mxu0 0
    %7998 = vmatprep.mubr.bf16.mxu0 0
    %7999 = vmatmul.mubr.bf16.gmra.mxu0 %v7894
    %v8000 = vpop.f32.mrf.mxu0
    %v8001 = vadd.f32 %v7916, %v8000
    %v8002 = vpop.f32.mrf.mxu0
    %v8003 = vpop.f32.mrf.mxu0
    %v8004 = vadd.f32 %v7916, %v8003
    %v8005 = vpop.f32.mrf.mxu0
    %8006 = vdwg.mxu0
    %8007 = vst [vmem:[#allocation18] sm:$0xff] %v8001
    %8008 = vst [vmem:[#allocation18 + $0x8] sm:$0xff] %v8004
    // Predicated region
    $region70: #{tpu_custom_call.1} parent=1 // pred_check
      _
    $region71: #{tpu_custom_call.1} parent=1 // pred_check_branch
      %8010 = sbr.rel (0) target = $region73
    $region72: #{tpu_custom_call.1} parent=1 // pred_region
      %s8012 = ssub.s32 256, 256
      %8013 = vsyncadd [#allocation6], %s8012
      %s8014 = sshll.u32 [#allocation18], 4
      %s8015 = int_to_ptr.vmem [resolvable:$true] %s8014
      %8020 = dma.vmem_to_hbm [thread:$0]  %s8015, 256, %s9, [#allocation6], 128, 128, 8
    $region73: #{tpu_custom_call.1} parent=1 // pred_fallthru
      _
    // Predicated region
    $region74: #{tpu_custom_call.1} parent=1 // pred_check
      _
    $region75: #{tpu_custom_call.1} parent=1 // pred_check_branch
      %8022 = sbr.rel (0) target = $region77
    $region76: #{tpu_custom_call.1} parent=1 // pred_region
      %8023 = dma.done [#allocation6], 256
    $region77: #{tpu_custom_call.1} parent=1 // pred_fallthru
      _
    %8024 = vsyncpa [#allocation5], 1
    %8025 = vsyncpa [#allocation8], 1
    %8026 = vsyncpa [#allocation11], 1
    %8027 = vsyncpa [#allocation14], 1
    %8028 = vsyncpa [#allocation17], 1
    %8029 = vsyncpa [#allocation6], 1

</llo_original>
